<compile_context>
chip_gen: v6e
topology: v6e:2x2x1
jax: 0.10.0
libtpu: 0.0.40
codegen_flags: <defaults>
</compile_context>

<pallas_src>
import functools

import jax
import jax.numpy as jnp
from jax.experimental import pallas as pl
from jax.experimental.pallas import tpu as pltpu

# ---- model config (PyTorch defaults) ----
D = 8
W = 256
INPUT_CH = 3
INPUT_CH_VIEWS = 3
IN_TOTAL = INPUT_CH + INPUT_CH_VIEWS
OUTPUT_CH = 4
SKIPS = (4,)

PAD_OUT = 128        # padded lane width for the output-layer matmul / write
PAD_IN = 8           # padded lane width for x on the MXU-input path
TM_DEFAULT = 2048    # rows per grid step (sweep 1024-2048)


def _round_up(a, b):
    return ((a + b - 1) // b) * b


def default_config():
    """Pick the per-generation kernel variant.

    v6e / v7x: bf16 VALU + MXU headroom -> MXU-ified K=3 input matmul and
    bf16 epilogues.  v5-and-older: MXU-bound, no bf16 VALU -> keep the VPU
    broadcast-FMA input path and f32 epilogues (activations still stored
    bf16 between layers)."""
    try:
        kind = jax.devices()[0].device_kind.lower()
    except Exception:
        kind = ""
    old_gen = any(("v%d" % v) in kind for v in (2, 3, 4, 5))
    return dict(mxu_input=not old_gen, bf16_epilogue=not old_gen)


def _nerf_kernel(x_ref, win_ref,
                 w1_ref, w2_ref, w3_ref, w4_ref, w5h_ref, w6_ref, w7_ref,
                 wout_ref,
                 b0_ref, b1_ref, b2_ref, b3_ref, b4_ref, b5_ref, b6_ref,
                 b7_ref, bout_ref,
                 out_ref, *, mxu_input, bf16_epilogue):
    cdt = jnp.bfloat16 if bf16_epilogue else jnp.float32

    # ---- fused input layer: layer-0 pre-activation + skip term -------------
    if mxu_input:
        # x: (TM, 8) bf16 (pts, views, 2 zero lanes); win: (8, 2W) bf16 with
        # rows >= INPUT_CH zeroed, so only the 3 point lanes contribute.
        fused = jnp.dot(x_ref[...], win_ref[...],
                        preferred_element_type=jnp.float32)        # (TM, 2W) f32
    else:
        # K=3 matmul as broadcast FMAs on the VPU (free filler on MXU-bound
        # gens); one fused (3, 2W) weight so the lane-broadcasts happen once.
        x = x_ref[...]                                             # (TM, 6) f32
        w = win_ref[...]                                           # (3, 2W) f32
        fused = x[:, 0:1] * w[0:1, :]
        for k in range(1, INPUT_CH):
            fused = fused + x[:, k:k + 1] * w[k:k + 1, :]

    h0 = fused[:, :W]                         # layer-0 pre-activation (f32)
    skip = fused[:, W:].astype(jnp.bfloat16)  # pts @ W5[:3], carried to layer 5

    # bias add / skip add / ReLU epilogue; activations handed to the next
    # matmul are always bf16.
    def epi(acc_f32, b_ref, extra=None):
        a = acc_f32.astype(cdt) + b_ref[...]
        if extra is not None:
            a = a + extra
        return jnp.maximum(a, 0.0).astype(jnp.bfloat16)

    # bf16 MXU matmul with f32 accumulation.
    def mxu(h, w_ref):
        return jnp.dot(h, w_ref[...], preferred_element_type=jnp.float32)

    h = epi(h0, b0_ref)                                  # layer 0
    h = epi(mxu(h, w1_ref), b1_ref)                      # layer 1
    h = epi(mxu(h, w2_ref), b2_ref)                      # layer 2
    h = epi(mxu(h, w3_ref), b3_ref)                      # layer 3
    h = epi(mxu(h, w4_ref), b4_ref)                      # layer 4 (skip after)
    # layer 5: relu(cat([pts, h]) @ W5 + b5) == relu(pts@W5[:3] + h@W5[3:] + b5)
    h = epi(mxu(h, w5h_ref), b5_ref, extra=skip)         # layer 5
    h = epi(mxu(h, w6_ref), b6_ref)                      # layer 6
    h = epi(mxu(h, w7_ref), b7_ref)                      # layer 7
    # output_linear (no relu): lane-dense 128-wide write; wout/bout zero-padded.
    out = jnp.dot(h, wout_ref[...],
                  preferred_element_type=jnp.float32)    # (TM, PAD_OUT) f32
    out_ref[...] = out + bout_ref[...]


def init_params(key):
    """PyTorch nn.Linear-style uniform(-1/sqrt(fan_in), 1/sqrt(fan_in)) init.
    Weights stored as (in_features, out_features)."""
    params = {}

    def linear(key, fan_in, fan_out):
        kw, kb = jax.random.split(key)
        bound = 1.0 / jnp.sqrt(fan_in)
        w = jax.random.uniform(kw, (fan_in, fan_out), jnp.float32, -bound, bound)
        b = jax.random.uniform(kb, (fan_out,), jnp.float32, -bound, bound)
        return w, b

    keys = jax.random.split(key, D + 1)
    ws, bs = [], []
    for i in range(D):
        if i == 0:
            fan_in = INPUT_CH
        elif (i - 1) in SKIPS:
            fan_in = W + INPUT_CH
        else:
            fan_in = W
        w, b = linear(keys[i], fan_in, W)
        ws.append(w)
        bs.append(b)
    params["pts_w"] = ws
    params["pts_b"] = bs
    wout, bout = linear(keys[D], W, OUTPUT_CH)
    params["out_w"] = wout
    params["out_b"] = bout
    return params


def prepare_params(params, *, mxu_input, bf16_epilogue):
    """One-time conversion of model params into kernel operands: fused input
    weight (w0 || w5[:3]), skip split, output padding, dtype casts."""
    ws = params["pts_w"]
    bs = params["pts_b"]
    w5_full = ws[5]
    bf16 = jnp.bfloat16

    # fused input weight: [w0 | w5[:INPUT_CH]]  -> (INPUT_CH, 2W)
    w_in = jnp.concatenate(
        [ws[0].astype(jnp.float32), w5_full[:INPUT_CH].astype(jnp.float32)],
        axis=1)
    if mxu_input:
        # pad rows to PAD_IN with zeros so the view-dir / pad lanes of x
        # contribute nothing; cast to bf16 for the MXU.
        w_in = jnp.zeros((PAD_IN, 2 * W), jnp.float32).at[:INPUT_CH].set(
            w_in).astype(bf16)

    wout_pad = jnp.zeros((W, PAD_OUT), bf16).at[:, :OUTPUT_CH].set(
        params["out_w"].astype(bf16))

    weights = [
        w_in,                              # win  (8|3, 2W)
        ws[1].astype(bf16),                # w1   (W, W) bf16
        ws[2].astype(bf16),                # w2
        ws[3].astype(bf16),                # w3
        ws[4].astype(bf16),                # w4
        w5_full[INPUT_CH:].astype(bf16),   # w5h  (W, W) bf16
        ws[6].astype(bf16),                # w6
        ws[7].astype(bf16),                # w7
        wout_pad,                          # wout (W, PAD_OUT) bf16
    ]
    bdt = bf16 if bf16_epilogue else jnp.float32
    biases = [b.reshape(1, W).astype(bdt) for b in bs]
    bout_pad = jnp.zeros((1, PAD_OUT), jnp.float32).at[:, :OUTPUT_CH].set(
        params["out_b"].reshape(1, OUTPUT_CH).astype(jnp.float32))
    biases.append(bout_pad)
    return weights, biases


def _choose_tm(n, tm_max):
    # tiny batches: a single grid step covering everything.
    if n <= 256:
        return _round_up(max(n, 16), 16)
    # keep >= 2 grid steps so both v7x TensorCores get work; round to 256.
    return max(256, min(tm_max, _round_up(pl.cdiv(n, 2), 256)))


def nerf_forward_pallas(x, weights, biases, *, tm=TM_DEFAULT,
                        mxu_input=True, bf16_epilogue=True):
    N = x.shape[0]
    tm = _choose_tm(N, tm)
    grid_n = pl.cdiv(N, tm)
    n_pad = grid_n * tm

    if mxu_input:
        # pad rows AND lanes (6 -> 8), cast bf16: aligned x DMA + MXU input.
        x_in = jnp.pad(x.astype(jnp.bfloat16),
                       ((0, n_pad - N), (0, PAD_IN - IN_TOTAL)))
        x_spec = pl.BlockSpec((tm, PAD_IN), lambda i: (i, 0))
        x_bytes = n_pad * PAD_IN * 2
        k_in = PAD_IN
    else:
        x_in = jnp.pad(x.astype(jnp.float32), ((0, n_pad - N), (0, 0)))
        x_spec = pl.BlockSpec((tm, IN_TOTAL), lambda i: (i, 0))
        x_bytes = n_pad * IN_TOTAL * 4
        k_in = INPUT_CH

    w_specs = [pl.BlockSpec(w.shape, lambda i: (0, 0)) for w in weights]
    b_specs = [pl.BlockSpec(b.shape, lambda i: (0, 0)) for b in biases]

    flops = 2 * n_pad * (7 * W * W + W * PAD_OUT + k_in * 2 * W)
    bytes_accessed = (
        x_bytes + n_pad * PAD_OUT * 4
        + sum(int(w.size) * w.dtype.itemsize for w in weights)
        + sum(int(b.size) * b.dtype.itemsize for b in biases))

    kernel = functools.partial(_nerf_kernel, mxu_input=mxu_input,
                               bf16_epilogue=bf16_epilogue)

    out = pl.pallas_call(
        kernel,
        out_shape=jax.ShapeDtypeStruct((n_pad, PAD_OUT), jnp.float32),
        grid_spec=pltpu.PrefetchScalarGridSpec(
            num_scalar_prefetch=0,
            grid=(grid_n,),
            in_specs=[x_spec] + w_specs + b_specs,
            out_specs=pl.BlockSpec((tm, PAD_OUT), lambda i: (i, 0)),
        ),
        compiler_params=pltpu.CompilerParams(
            dimension_semantics=("parallel",),
            vmem_limit_bytes=48 * 1024 * 1024),
        cost_estimate=pl.CostEstimate(
            flops=flops, transcendentals=0, bytes_accessed=bytes_accessed),
    )(x_in, *weights, *biases)

    return out[:N, :OUTPUT_CH]


def nerf_forward_ref(x, params):
    """Pure-JAX reference mirroring the PyTorch forward (use_viewdirs=False)."""
    input_pts = x[:, :INPUT_CH]
    h = input_pts
    for i in range(D):
        h = h @ params["pts_w"][i] + params["pts_b"][i]
        h = jax.nn.relu(h)
        if i in SKIPS:
            h = jnp.concatenate([input_pts, h], axis=-1)
    return h @ params["out_w"] + params["out_b"]


if __name__ == "__main__":
    key = jax.random.PRNGKey(0)
    k_param, k_x = jax.random.split(key)

    params = init_params(k_param)
    cfg = default_config()
    weights, biases = prepare_params(params, **cfg)

    # N deliberately not a multiple of the tile to exercise the padding path;
    # _choose_tm keeps grid=2 here so both v7x TensorCores stay busy.
    N = 1000
    x = jax.random.normal(k_x, (N, IN_TOTAL), jnp.float32)

    fwd = jax.jit(functools.partial(nerf_forward_pallas, tm=TM_DEFAULT, **cfg))
    out = jax.block_until_ready(fwd(x, weights, biases))

    ref = nerf_forward_ref(x, params)
    assert out.shape == (N, OUTPUT_CH), out.shape
    # bf16 MXU + bf16 epilogue path vs the f32 reference: loose tolerance.
    max_err = float(jnp.max(jnp.abs(out - ref)))
    assert jnp.allclose(out, ref, atol=5e-2, rtol=5e-2), max_err

    print("KERNEL_OK")
</pallas_src>

<mosaic_0001>
module attributes {stable_mosaic.version = 11 : i64} {
  func.func @_nerf_kernel(%arg0: i32, %arg1: memref<512x8xbf16, #tpu.memory_space<vmem>>, %arg2: memref<8x512xbf16, #tpu.memory_space<vmem>>, %arg3: memref<256x256xbf16, #tpu.memory_space<vmem>>, %arg4: memref<256x256xbf16, #tpu.memory_space<vmem>>, %arg5: memref<256x256xbf16, #tpu.memory_space<vmem>>, %arg6: memref<256x256xbf16, #tpu.memory_space<vmem>>, %arg7: memref<256x256xbf16, #tpu.memory_space<vmem>>, %arg8: memref<256x256xbf16, #tpu.memory_space<vmem>>, %arg9: memref<256x256xbf16, #tpu.memory_space<vmem>>, %arg10: memref<256x128xbf16, #tpu.memory_space<vmem>>, %arg11: memref<1x256xbf16, #tpu.memory_space<vmem>>, %arg12: memref<1x256xbf16, #tpu.memory_space<vmem>>, %arg13: memref<1x256xbf16, #tpu.memory_space<vmem>>, %arg14: memref<1x256xbf16, #tpu.memory_space<vmem>>, %arg15: memref<1x256xbf16, #tpu.memory_space<vmem>>, %arg16: memref<1x256xbf16, #tpu.memory_space<vmem>>, %arg17: memref<1x256xbf16, #tpu.memory_space<vmem>>, %arg18: memref<1x256xbf16, #tpu.memory_space<vmem>>, %arg19: memref<1x128xf32, #tpu.memory_space<vmem>>, %arg20: memref<512x128xf32, #tpu.memory_space<vmem>>) attributes {dimension_semantics = [#tpu.dimension_semantics<parallel>], iteration_bounds = array<i64: 2>, scalar_prefetch = 0 : i64, scratch_operands = 0 : i64, tpu.core_type = #tpu.core_type<tc>, window_params = [{transform_indices = @transform_0, window_bounds = array<i64: 512, 8>}, {pipeline_mode = #tpu.pipeline_mode<synchronous>, transform_indices = @transform_1, window_bounds = array<i64: 8, 512>}, {pipeline_mode = #tpu.pipeline_mode<synchronous>, transform_indices = @transform_2, window_bounds = array<i64: 256, 256>}, {pipeline_mode = #tpu.pipeline_mode<synchronous>, transform_indices = @transform_3, window_bounds = array<i64: 256, 256>}, {pipeline_mode = #tpu.pipeline_mode<synchronous>, transform_indices = @transform_4, window_bounds = array<i64: 256, 256>}, {pipeline_mode = #tpu.pipeline_mode<synchronous>, transform_indices = @transform_5, window_bounds = array<i64: 256, 256>}, {pipeline_mode = #tpu.pipeline_mode<synchronous>, transform_indices = @transform_6, window_bounds = array<i64: 256, 256>}, {pipeline_mode = #tpu.pipeline_mode<synchronous>, transform_indices = @transform_7, window_bounds = array<i64: 256, 256>}, {pipeline_mode = #tpu.pipeline_mode<synchronous>, transform_indices = @transform_8, window_bounds = array<i64: 256, 256>}, {pipeline_mode = #tpu.pipeline_mode<synchronous>, transform_indices = @transform_9, window_bounds = array<i64: 256, 128>}, {pipeline_mode = #tpu.pipeline_mode<synchronous>, transform_indices = @transform_10, window_bounds = array<i64: 1, 256>}, {pipeline_mode = #tpu.pipeline_mode<synchronous>, transform_indices = @transform_11, window_bounds = array<i64: 1, 256>}, {pipeline_mode = #tpu.pipeline_mode<synchronous>, transform_indices = @transform_12, window_bounds = array<i64: 1, 256>}, {pipeline_mode = #tpu.pipeline_mode<synchronous>, transform_indices = @transform_13, window_bounds = array<i64: 1, 256>}, {pipeline_mode = #tpu.pipeline_mode<synchronous>, transform_indices = @transform_14, window_bounds = array<i64: 1, 256>}, {pipeline_mode = #tpu.pipeline_mode<synchronous>, transform_indices = @transform_15, window_bounds = array<i64: 1, 256>}, {pipeline_mode = #tpu.pipeline_mode<synchronous>, transform_indices = @transform_16, window_bounds = array<i64: 1, 256>}, {pipeline_mode = #tpu.pipeline_mode<synchronous>, transform_indices = @transform_17, window_bounds = array<i64: 1, 256>}, {pipeline_mode = #tpu.pipeline_mode<synchronous>, transform_indices = @transform_18, window_bounds = array<i64: 1, 128>}, {transform_indices = @transform_19, window_bounds = array<i64: 512, 128>}]} {
    %c0 = arith.constant 0 : index
    %c0_0 = arith.constant 0 : index
    %0 = vector.load %arg1[%c0, %c0_0] : memref<512x8xbf16, #tpu.memory_space<vmem>>, vector<512x8xbf16>
    %c0_1 = arith.constant 0 : index
    %c0_2 = arith.constant 0 : index
    %1 = vector.load %arg2[%c0_1, %c0_2] : memref<8x512xbf16, #tpu.memory_space<vmem>>, vector<8x512xbf16>
    %cst = arith.constant dense<0.000000e+00> : vector<512x512xf32>
    %2 = tpu.matmul %0, %1, %cst {dimension_numbers = #tpu.dot_dimension_numbers<[1], [0], [0], [1], [0, 0, 1, 1], [], []>} : vector<512x8xbf16>, vector<8x512xbf16>, vector<512x512xf32> -> vector<512x512xf32>
    %3 = vector.extract_strided_slice %2 {offsets = [0, 0], sizes = [512, 256], strides = [1, 1]} : vector<512x512xf32> to vector<512x256xf32>
    %4 = vector.extract_strided_slice %2 {offsets = [0, 256], sizes = [512, 256], strides = [1, 1]} : vector<512x512xf32> to vector<512x256xf32>
    %5 = arith.truncf %4 : vector<512x256xf32> to vector<512x256xbf16>
    %6 = arith.truncf %3 : vector<512x256xf32> to vector<512x256xbf16>
    %c0_3 = arith.constant 0 : index
    %c0_4 = arith.constant 0 : index
    %7 = vector.load %arg11[%c0_3, %c0_4] : memref<1x256xbf16, #tpu.memory_space<vmem>>, vector<1x256xbf16>
    %8 = vector.broadcast %7 : vector<1x256xbf16> to vector<512x256xbf16>
    %9 = arith.addf %6, %8 : vector<512x256xbf16>
    %cst_5 = arith.constant 0.000000e+00 : bf16
    %10 = vector.broadcast %cst_5 : bf16 to vector<512x256xbf16>
    %11 = arith.maximumf %9, %10 : vector<512x256xbf16>
    %c0_6 = arith.constant 0 : index
    %c0_7 = arith.constant 0 : index
    %12 = vector.load %arg3[%c0_6, %c0_7] : memref<256x256xbf16, #tpu.memory_space<vmem>>, vector<256x256xbf16>
    %cst_8 = arith.constant dense<0.000000e+00> : vector<512x256xf32>
    %13 = tpu.matmul %11, %12, %cst_8 {dimension_numbers = #tpu.dot_dimension_numbers<[1], [0], [0], [1], [0, 0, 1, 1], [], []>} : vector<512x256xbf16>, vector<256x256xbf16>, vector<512x256xf32> -> vector<512x256xf32>
    %14 = arith.truncf %13 : vector<512x256xf32> to vector<512x256xbf16>
    %c0_9 = arith.constant 0 : index
    %c0_10 = arith.constant 0 : index
    %15 = vector.load %arg12[%c0_9, %c0_10] : memref<1x256xbf16, #tpu.memory_space<vmem>>, vector<1x256xbf16>
    %16 = vector.broadcast %15 : vector<1x256xbf16> to vector<512x256xbf16>
    %17 = arith.addf %14, %16 : vector<512x256xbf16>
    %cst_11 = arith.constant 0.000000e+00 : bf16
    %18 = vector.broadcast %cst_11 : bf16 to vector<512x256xbf16>
    %19 = arith.maximumf %17, %18 : vector<512x256xbf16>
    %c0_12 = arith.constant 0 : index
    %c0_13 = arith.constant 0 : index
    %20 = vector.load %arg4[%c0_12, %c0_13] : memref<256x256xbf16, #tpu.memory_space<vmem>>, vector<256x256xbf16>
    %cst_14 = arith.constant dense<0.000000e+00> : vector<512x256xf32>
    %21 = tpu.matmul %19, %20, %cst_14 {dimension_numbers = #tpu.dot_dimension_numbers<[1], [0], [0], [1], [0, 0, 1, 1], [], []>} : vector<512x256xbf16>, vector<256x256xbf16>, vector<512x256xf32> -> vector<512x256xf32>
    %22 = arith.truncf %21 : vector<512x256xf32> to vector<512x256xbf16>
    %c0_15 = arith.constant 0 : index
    %c0_16 = arith.constant 0 : index
    %23 = vector.load %arg13[%c0_15, %c0_16] : memref<1x256xbf16, #tpu.memory_space<vmem>>, vector<1x256xbf16>
    %24 = vector.broadcast %23 : vector<1x256xbf16> to vector<512x256xbf16>
    %25 = arith.addf %22, %24 : vector<512x256xbf16>
    %cst_17 = arith.constant 0.000000e+00 : bf16
    %26 = vector.broadcast %cst_17 : bf16 to vector<512x256xbf16>
    %27 = arith.maximumf %25, %26 : vector<512x256xbf16>
    %c0_18 = arith.constant 0 : index
    %c0_19 = arith.constant 0 : index
    %28 = vector.load %arg5[%c0_18, %c0_19] : memref<256x256xbf16, #tpu.memory_space<vmem>>, vector<256x256xbf16>
    %cst_20 = arith.constant dense<0.000000e+00> : vector<512x256xf32>
    %29 = tpu.matmul %27, %28, %cst_20 {dimension_numbers = #tpu.dot_dimension_numbers<[1], [0], [0], [1], [0, 0, 1, 1], [], []>} : vector<512x256xbf16>, vector<256x256xbf16>, vector<512x256xf32> -> vector<512x256xf32>
    %30 = arith.truncf %29 : vector<512x256xf32> to vector<512x256xbf16>
    %c0_21 = arith.constant 0 : index
    %c0_22 = arith.constant 0 : index
    %31 = vector.load %arg14[%c0_21, %c0_22] : memref<1x256xbf16, #tpu.memory_space<vmem>>, vector<1x256xbf16>
    %32 = vector.broadcast %31 : vector<1x256xbf16> to vector<512x256xbf16>
    %33 = arith.addf %30, %32 : vector<512x256xbf16>
    %cst_23 = arith.constant 0.000000e+00 : bf16
    %34 = vector.broadcast %cst_23 : bf16 to vector<512x256xbf16>
    %35 = arith.maximumf %33, %34 : vector<512x256xbf16>
    %c0_24 = arith.constant 0 : index
    %c0_25 = arith.constant 0 : index
    %36 = vector.load %arg6[%c0_24, %c0_25] : memref<256x256xbf16, #tpu.memory_space<vmem>>, vector<256x256xbf16>
    %cst_26 = arith.constant dense<0.000000e+00> : vector<512x256xf32>
    %37 = tpu.matmul %35, %36, %cst_26 {dimension_numbers = #tpu.dot_dimension_numbers<[1], [0], [0], [1], [0, 0, 1, 1], [], []>} : vector<512x256xbf16>, vector<256x256xbf16>, vector<512x256xf32> -> vector<512x256xf32>
    %38 = arith.truncf %37 : vector<512x256xf32> to vector<512x256xbf16>
    %c0_27 = arith.constant 0 : index
    %c0_28 = arith.constant 0 : index
    %39 = vector.load %arg15[%c0_27, %c0_28] : memref<1x256xbf16, #tpu.memory_space<vmem>>, vector<1x256xbf16>
    %40 = vector.broadcast %39 : vector<1x256xbf16> to vector<512x256xbf16>
    %41 = arith.addf %38, %40 : vector<512x256xbf16>
    %cst_29 = arith.constant 0.000000e+00 : bf16
    %42 = vector.broadcast %cst_29 : bf16 to vector<512x256xbf16>
    %43 = arith.maximumf %41, %42 : vector<512x256xbf16>
    %c0_30 = arith.constant 0 : index
    %c0_31 = arith.constant 0 : index
    %44 = vector.load %arg7[%c0_30, %c0_31] : memref<256x256xbf16, #tpu.memory_space<vmem>>, vector<256x256xbf16>
    %cst_32 = arith.constant dense<0.000000e+00> : vector<512x256xf32>
    %45 = tpu.matmul %43, %44, %cst_32 {dimension_numbers = #tpu.dot_dimension_numbers<[1], [0], [0], [1], [0, 0, 1, 1], [], []>} : vector<512x256xbf16>, vector<256x256xbf16>, vector<512x256xf32> -> vector<512x256xf32>
    %46 = arith.truncf %45 : vector<512x256xf32> to vector<512x256xbf16>
    %c0_33 = arith.constant 0 : index
    %c0_34 = arith.constant 0 : index
    %47 = vector.load %arg16[%c0_33, %c0_34] : memref<1x256xbf16, #tpu.memory_space<vmem>>, vector<1x256xbf16>
    %48 = vector.broadcast %47 : vector<1x256xbf16> to vector<512x256xbf16>
    %49 = arith.addf %46, %48 : vector<512x256xbf16>
    %50 = arith.addf %49, %5 : vector<512x256xbf16>
    %cst_35 = arith.constant 0.000000e+00 : bf16
    %51 = vector.broadcast %cst_35 : bf16 to vector<512x256xbf16>
    %52 = arith.maximumf %50, %51 : vector<512x256xbf16>
    %c0_36 = arith.constant 0 : index
    %c0_37 = arith.constant 0 : index
    %53 = vector.load %arg8[%c0_36, %c0_37] : memref<256x256xbf16, #tpu.memory_space<vmem>>, vector<256x256xbf16>
    %cst_38 = arith.constant dense<0.000000e+00> : vector<512x256xf32>
    %54 = tpu.matmul %52, %53, %cst_38 {dimension_numbers = #tpu.dot_dimension_numbers<[1], [0], [0], [1], [0, 0, 1, 1], [], []>} : vector<512x256xbf16>, vector<256x256xbf16>, vector<512x256xf32> -> vector<512x256xf32>
    %55 = arith.truncf %54 : vector<512x256xf32> to vector<512x256xbf16>
    %c0_39 = arith.constant 0 : index
    %c0_40 = arith.constant 0 : index
    %56 = vector.load %arg17[%c0_39, %c0_40] : memref<1x256xbf16, #tpu.memory_space<vmem>>, vector<1x256xbf16>
    %57 = vector.broadcast %56 : vector<1x256xbf16> to vector<512x256xbf16>
    %58 = arith.addf %55, %57 : vector<512x256xbf16>
    %cst_41 = arith.constant 0.000000e+00 : bf16
    %59 = vector.broadcast %cst_41 : bf16 to vector<512x256xbf16>
    %60 = arith.maximumf %58, %59 : vector<512x256xbf16>
    %c0_42 = arith.constant 0 : index
    %c0_43 = arith.constant 0 : index
    %61 = vector.load %arg9[%c0_42, %c0_43] : memref<256x256xbf16, #tpu.memory_space<vmem>>, vector<256x256xbf16>
    %cst_44 = arith.constant dense<0.000000e+00> : vector<512x256xf32>
    %62 = tpu.matmul %60, %61, %cst_44 {dimension_numbers = #tpu.dot_dimension_numbers<[1], [0], [0], [1], [0, 0, 1, 1], [], []>} : vector<512x256xbf16>, vector<256x256xbf16>, vector<512x256xf32> -> vector<512x256xf32>
    %63 = arith.truncf %62 : vector<512x256xf32> to vector<512x256xbf16>
    %c0_45 = arith.constant 0 : index
    %c0_46 = arith.constant 0 : index
    %64 = vector.load %arg18[%c0_45, %c0_46] : memref<1x256xbf16, #tpu.memory_space<vmem>>, vector<1x256xbf16>
    %65 = vector.broadcast %64 : vector<1x256xbf16> to vector<512x256xbf16>
    %66 = arith.addf %63, %65 : vector<512x256xbf16>
    %cst_47 = arith.constant 0.000000e+00 : bf16
    %67 = vector.broadcast %cst_47 : bf16 to vector<512x256xbf16>
    %68 = arith.maximumf %66, %67 : vector<512x256xbf16>
    %c0_48 = arith.constant 0 : index
    %c0_49 = arith.constant 0 : index
    %69 = vector.load %arg10[%c0_48, %c0_49] : memref<256x128xbf16, #tpu.memory_space<vmem>>, vector<256x128xbf16>
    %cst_50 = arith.constant dense<0.000000e+00> : vector<512x128xf32>
    %70 = tpu.matmul %68, %69, %cst_50 {dimension_numbers = #tpu.dot_dimension_numbers<[1], [0], [0], [1], [0, 0, 1, 1], [], []>} : vector<512x256xbf16>, vector<256x128xbf16>, vector<512x128xf32> -> vector<512x128xf32>
    %c0_51 = arith.constant 0 : index
    %c0_52 = arith.constant 0 : index
    %71 = vector.load %arg19[%c0_51, %c0_52] : memref<1x128xf32, #tpu.memory_space<vmem>>, vector<1x128xf32>
    %72 = vector.broadcast %71 : vector<1x128xf32> to vector<512x128xf32>
    %73 = arith.addf %70, %72 : vector<512x128xf32>
    %c0_53 = arith.constant 0 : index
    %c0_54 = arith.constant 0 : index
    %74 = vector.load %arg20[%c0_53, %c0_54] : memref<512x128xf32, #tpu.memory_space<vmem>>, vector<512x128xf32>
    tpu.vector_store %arg20[%c0_53, %c0_54], %73 {strides = array<i32>} : memref<512x128xf32, #tpu.memory_space<vmem>>, vector<512x128xf32>,
    return
  }
  func.func @transform_0(%arg0: i32) -> (i32, i32) {
    %c0_i32 = arith.constant 0 : i32
    %c0_i32_0 = arith.constant 0 : i32
    return %arg0, %c0_i32 : i32, i32
  }
  func.func @transform_1(%arg0: i32) -> (i32, i32) {
    %c0_i32 = arith.constant 0 : i32
    %c0_i32_0 = arith.constant 0 : i32
    %c0_i32_1 = arith.constant 0 : i32
    return %c0_i32, %c0_i32_0 : i32, i32
  }
  func.func @transform_2(%arg0: i32) -> (i32, i32) {
    %c0_i32 = arith.constant 0 : i32
    %c0_i32_0 = arith.constant 0 : i32
    %c0_i32_1 = arith.constant 0 : i32
    return %c0_i32, %c0_i32_0 : i32, i32
  }
  func.func @transform_3(%arg0: i32) -> (i32, i32) {
    %c0_i32 = arith.constant 0 : i32
    %c0_i32_0 = arith.constant 0 : i32
    %c0_i32_1 = arith.constant 0 : i32
    return %c0_i32, %c0_i32_0 : i32, i32
  }
  func.func @transform_4(%arg0: i32) -> (i32, i32) {
    %c0_i32 = arith.constant 0 : i32
    %c0_i32_0 = arith.constant 0 : i32
    %c0_i32_1 = arith.constant 0 : i32
    return %c0_i32, %c0_i32_0 : i32, i32
  }
  func.func @transform_5(%arg0: i32) -> (i32, i32) {
    %c0_i32 = arith.constant 0 : i32
    %c0_i32_0 = arith.constant 0 : i32
    %c0_i32_1 = arith.constant 0 : i32
    return %c0_i32, %c0_i32_0 : i32, i32
  }
  func.func @transform_6(%arg0: i32) -> (i32, i32) {
    %c0_i32 = arith.constant 0 : i32
    %c0_i32_0 = arith.constant 0 : i32
    %c0_i32_1 = arith.constant 0 : i32
    return %c0_i32, %c0_i32_0 : i32, i32
  }
  func.func @transform_7(%arg0: i32) -> (i32, i32) {
    %c0_i32 = arith.constant 0 : i32
    %c0_i32_0 = arith.constant 0 : i32
    %c0_i32_1 = arith.constant 0 : i32
    return %c0_i32, %c0_i32_0 : i32, i32
  }
  func.func @transform_8(%arg0: i32) -> (i32, i32) {
    %c0_i32 = arith.constant 0 : i32
    %c0_i32_0 = arith.constant 0 : i32
    %c0_i32_1 = arith.constant 0 : i32
    return %c0_i32, %c0_i32_0 : i32, i32
  }
  func.func @transform_9(%arg0: i32) -> (i32, i32) {
    %c0_i32 = arith.constant 0 : i32
    %c0_i32_0 = arith.constant 0 : i32
    %c0_i32_1 = arith.constant 0 : i32
    return %c0_i32, %c0_i32_0 : i32, i32
  }
  func.func @transform_10(%arg0: i32) -> (i32, i32) {
    %c0_i32 = arith.constant 0 : i32
    %c0_i32_0 = arith.constant 0 : i32
    %c0_i32_1 = arith.constant 0 : i32
    return %c0_i32, %c0_i32_0 : i32, i32
  }
  func.func @transform_11(%arg0: i32) -> (i32, i32) {
    %c0_i32 = arith.constant 0 : i32
    %c0_i32_0 = arith.constant 0 : i32
    %c0_i32_1 = arith.constant 0 : i32
    return %c0_i32, %c0_i32_0 : i32, i32
  }
  func.func @transform_12(%arg0: i32) -> (i32, i32) {
    %c0_i32 = arith.constant 0 : i32
    %c0_i32_0 = arith.constant 0 : i32
    %c0_i32_1 = arith.constant 0 : i32
    return %c0_i32, %c0_i32_0 : i32, i32
  }
  func.func @transform_13(%arg0: i32) -> (i32, i32) {
    %c0_i32 = arith.constant 0 : i32
    %c0_i32_0 = arith.constant 0 : i32
    %c0_i32_1 = arith.constant 0 : i32
    return %c0_i32, %c0_i32_0 : i32, i32
  }
  func.func @transform_14(%arg0: i32) -> (i32, i32) {
    %c0_i32 = arith.constant 0 : i32
    %c0_i32_0 = arith.constant 0 : i32
    %c0_i32_1 = arith.constant 0 : i32
    return %c0_i32, %c0_i32_0 : i32, i32
  }
  func.func @transform_15(%arg0: i32) -> (i32, i32) {
    %c0_i32 = arith.constant 0 : i32
    %c0_i32_0 = arith.constant 0 : i32
    %c0_i32_1 = arith.constant 0 : i32
    return %c0_i32, %c0_i32_0 : i32, i32
  }
  func.func @transform_16(%arg0: i32) -> (i32, i32) {
    %c0_i32 = arith.constant 0 : i32
    %c0_i32_0 = arith.constant 0 : i32
    %c0_i32_1 = arith.constant 0 : i32
    return %c0_i32, %c0_i32_0 : i32, i32
  }
  func.func @transform_17(%arg0: i32) -> (i32, i32) {
    %c0_i32 = arith.constant 0 : i32
    %c0_i32_0 = arith.constant 0 : i32
    %c0_i32_1 = arith.constant 0 : i32
    return %c0_i32, %c0_i32_0 : i32, i32
  }
  func.func @transform_18(%arg0: i32) -> (i32, i32) {
    %c0_i32 = arith.constant 0 : i32
    %c0_i32_0 = arith.constant 0 : i32
    %c0_i32_1 = arith.constant 0 : i32
    return %c0_i32, %c0_i32_0 : i32, i32
  }
  func.func @transform_19(%arg0: i32) -> (i32, i32) {
    %c0_i32 = arith.constant 0 : i32
    %c0_i32_0 = arith.constant 0 : i32
    return %arg0, %c0_i32 : i32, i32
  }
}

</mosaic_0001>

<llo_original>
// kernel: nerf_forward_pallas.1
$region0: #{nerf_forward_pallas.1}
  #allocation0 [shape = 'u32[]', space=smem, size = 0x4, offset = 0x4, fixed_abs, tag = 'smem constant byte address 0x4 - core index']
  #allocation1 [shape = 'u32[144,128]{1,0:T(1,128)}', space=vmem, size = 0x12000, scoped, tag = 'internal scratch']
  %s0 = inlined_call_operand.vmem [shape: bf16[1024,8], index: 0, kind: input, shape index: {}]
  %s1 = inlined_call_operand.vmem [shape: bf16[8,512], index: 1, kind: input, shape index: {}]
  %s2 = inlined_call_operand.vmem [shape: bf16[256,256], index: 2, kind: input, shape index: {}]
  %s3 = inlined_call_operand.vmem [shape: bf16[256,256], index: 3, kind: input, shape index: {}]
  %s4 = inlined_call_operand.vmem [shape: bf16[256,256], index: 4, kind: input, shape index: {}]
  %s5 = inlined_call_operand.vmem [shape: bf16[256,256], index: 5, kind: input, shape index: {}]
  %s6 = inlined_call_operand.vmem [shape: bf16[256,256], index: 6, kind: input, shape index: {}]
  %s7 = inlined_call_operand.vmem [shape: bf16[256,256], index: 7, kind: input, shape index: {}]
  %s8 = inlined_call_operand.hbm [shape: bf16[256,256], index: 8, kind: input, shape index: {}]
  %s9 = inlined_call_operand.hbm [shape: bf16[256,128], index: 9, kind: input, shape index: {}]
  %s10 = inlined_call_operand.vmem [shape: bf16[1,256], index: 10, kind: input, shape index: {}]
  %s11 = inlined_call_operand.vmem [shape: bf16[1,256], index: 11, kind: input, shape index: {}]
  %s12 = inlined_call_operand.vmem [shape: bf16[1,256], index: 12, kind: input, shape index: {}]
  %s13 = inlined_call_operand.vmem [shape: bf16[1,256], index: 13, kind: input, shape index: {}]
  %s14 = inlined_call_operand.vmem [shape: bf16[1,256], index: 14, kind: input, shape index: {}]
  %s15 = inlined_call_operand.vmem [shape: bf16[1,256], index: 15, kind: input, shape index: {}]
  %s16 = inlined_call_operand.vmem [shape: bf16[1,256], index: 16, kind: input, shape index: {}]
  %s17 = inlined_call_operand.vmem [shape: bf16[1,256], index: 17, kind: input, shape index: {}]
  %s18 = inlined_call_operand.vmem [shape: f32[1,128], index: 18, kind: input, shape index: {}]
  %s19 = inlined_call_operand.vmem [shape: f32[1024,128], index: 19, kind: output, shape index: {}]
  %s20 = sld [smem:[#allocation0]]
  $region117: #{nerf_forward_pallas.1} parent=0
    _
  %s22 = ssub.s32 1, %s20
  %s23 = scalar_select 0, %s22, %s20
  $region1: #{nerf_forward_pallas.1} parent=0
    #allocation2 [shape = 'u8[131072]{0}', space=vmem, size = 0x20000, scoped, tag = 'input window, operand 8, single buffered']
    #allocation3 [shape = 's32[2]{0}', space=sflag, size = 0x8, scoped, tag = 'scoped memory for nerf_forward_pallas.1']
    #allocation4 [shape = 'u8[65536]{0}', space=vmem, size = 0x10000, scoped, tag = 'input window, operand 9, single buffered']
    #allocation5 [shape = 's32[1]{0}', space=sflag, size = 0x4, scoped, tag = 'scoped memory for nerf_forward_pallas.1']
    %24 = vsyncpa [#allocation3], 0
    %25 = vsyncpa [#allocation5], 0
    loop: start=0, step=1, limit=4
    $region2: #{nerf_forward_pallas.1} parent=1 // loop_pre_header
      _
    $region3: #{nerf_forward_pallas.1} parent=1 // loop_header
      %s27 = sphi 0, %s31
      %p28 = scmp.ge.s32.totalorder %s27, 4
      %s37 = sphi 0, %s39
      %s40 = sphi 0, %s37
      %s41 = sphi 0, %s40
      %s57 = sphi 0, %s41
      %s61 = sphi 0, %s61
      %s63 = sphi 0, %s61
      %s64 = sphi 0, %s63
      %s78 = sphi 0, %s64
      %s82 = sphi 0, %s82
      %s84 = sphi 0, %s82
      %s85 = sphi 0, %s84
      %s99 = sphi 0, %s85
      %s103 = sphi 0, %s103
      %s105 = sphi 0, %s103
      %s106 = sphi 0, %s105
      %s120 = sphi 0, %s106
      %s124 = sphi 0, %s124
      %s126 = sphi 0, %s124
      %s127 = sphi 0, %s126
      %s141 = sphi 0, %s127
      %s145 = sphi 0, %s145
      %s147 = sphi 0, %s145
      %s148 = sphi 0, %s147
      %s162 = sphi 0, %s148
      %s166 = sphi 0, %s166
      %s168 = sphi 0, %s166
      %s169 = sphi 0, %s168
      %s183 = sphi 0, %s169
      %s187 = sphi 0, %s187
      %s189 = sphi 0, %s187
      %s190 = sphi 0, %s189
      %s204 = sphi 0, %s190
      %s208 = sphi 0, %s208
      %s210 = sphi 0, %s208
      %s211 = sphi 0, %s210
      %s225 = sphi 0, %s211
      %s229 = sphi 0, %s229
      %s231 = sphi 0, %s229
      %s232 = sphi 0, %s231
      %s246 = sphi 0, %s232
      %s250 = sphi 0, %s250
      %s252 = sphi 0, %s250
      %s253 = sphi 0, %s252
      %s267 = sphi 0, %s253
      %s271 = sphi 0, %s271
      %s273 = sphi 0, %s271
      %s274 = sphi 0, %s273
      %s288 = sphi 0, %s274
      %s292 = sphi 0, %s292
      %s294 = sphi 0, %s292
      %s295 = sphi 0, %s294
      %s309 = sphi 0, %s295
      %s313 = sphi 0, %s313
      %s315 = sphi 0, %s313
      %s316 = sphi 0, %s315
      %s330 = sphi 0, %s316
      %s334 = sphi 0, %s334
      %s336 = sphi 0, %s334
      %s337 = sphi 0, %s336
      %s351 = sphi 0, %s337
      %s355 = sphi 0, %s355
      %s357 = sphi 0, %s355
      %s358 = sphi 0, %s357
      %s372 = sphi 0, %s358
      %s376 = sphi 0, %s376
      %s378 = sphi 0, %s376
      %s379 = sphi 0, %s378
      %s393 = sphi 0, %s379
      %s397 = sphi 0, %s397
      %s399 = sphi 0, %s397
      %s400 = sphi 0, %s399
      %s414 = sphi 0, %s400
      %s418 = sphi 0, %s418
      %s420 = sphi 0, %s418
      %s421 = sphi 0, %s420
      %s435 = sphi 0, %s421
      %s441 = sphi 0, %s443
      %s444 = sphi 0, %s441
      %s445 = sphi 0, %s444
      %s461 = sphi 0, %s445
    $region4: #{nerf_forward_pallas.1} parent=1 // loop_header_branch
      %30 = sbr.rel (%p28) target = $region8
    $region5: #{nerf_forward_pallas.1} parent=1 // loop_body
      %s32 = ssub.s32 %s27, 1
      %s33 = ssub.s32 %s27, 2
      %s34 = sadd.s32 %s27, 1
      %s35 = ssub.s32 %s27, %s34
      %p36 = scmp.eq.s32.totalorder %s35, 0
      %s38 = sadd.s32 %s37, 1
      %s39 = scalar_select %p36, %s37, %s38
      %p42 = pneg %p36
      %p43 = scmp.eq.s32.totalorder %s27, 1
      %p44 = por %p42, %p43
      %p45 = scmp.ne.s32.totalorder %s37, %s40
      %p46 = scmp.eq.s32.totalorder %s27, 0
      %p47 = por %p45, %p46
      %p48 = scmp.ne.s32.totalorder %s37, %s40
      %p49 = scmp.eq.s32.totalorder %s32, 1
      %p50 = por %p48, %p49
      %p51 = scmp.ne.s32.totalorder %s40, %s41
      %p52 = scmp.eq.s32.totalorder %s32, 0
      %p53 = por %p51, %p52
      %p54 = scmp.ne.s32.totalorder %s40, %s41
      %p55 = scmp.eq.s32.totalorder %s33, 1
      %p56 = por %p54, %p55
      %p58 = scmp.ne.s32.totalorder %s41, %s57
      %p59 = scmp.eq.s32.totalorder %s33, 0
      %p60 = por %p58, %p59
      %s62 = sadd.s32 %s61, 1
      %p65 = scmp.eq.s32.totalorder %s27, 1
      %p66 = scmp.ne.s32.totalorder %s61, %s63
      %p67 = scmp.eq.s32.totalorder %s27, 0
      %p68 = por %p66, %p67
      %p69 = scmp.ne.s32.totalorder %s61, %s63
      %p70 = scmp.eq.s32.totalorder %s32, 1
      %p71 = por %p69, %p70
      %p72 = scmp.ne.s32.totalorder %s63, %s64
      %p73 = scmp.eq.s32.totalorder %s32, 0
      %p74 = por %p72, %p73
      %p75 = scmp.ne.s32.totalorder %s63, %s64
      %p76 = scmp.eq.s32.totalorder %s33, 1
      %p77 = por %p75, %p76
      %p79 = scmp.ne.s32.totalorder %s64, %s78
      %p80 = scmp.eq.s32.totalorder %s33, 0
      %p81 = por %p79, %p80
      %s83 = sadd.s32 %s82, 1
      %p86 = scmp.eq.s32.totalorder %s27, 1
      %p87 = scmp.ne.s32.totalorder %s82, %s84
      %p88 = scmp.eq.s32.totalorder %s27, 0
      %p89 = por %p87, %p88
      %p90 = scmp.ne.s32.totalorder %s82, %s84
      %p91 = scmp.eq.s32.totalorder %s32, 1
      %p92 = por %p90, %p91
      %p93 = scmp.ne.s32.totalorder %s84, %s85
      %p94 = scmp.eq.s32.totalorder %s32, 0
      %p95 = por %p93, %p94
      %p96 = scmp.ne.s32.totalorder %s84, %s85
      %p97 = scmp.eq.s32.totalorder %s33, 1
      %p98 = por %p96, %p97
      %p100 = scmp.ne.s32.totalorder %s85, %s99
      %p101 = scmp.eq.s32.totalorder %s33, 0
      %p102 = por %p100, %p101
      %s104 = sadd.s32 %s103, 1
      %p107 = scmp.eq.s32.totalorder %s27, 1
      %p108 = scmp.ne.s32.totalorder %s103, %s105
      %p109 = scmp.eq.s32.totalorder %s27, 0
      %p110 = por %p108, %p109
      %p111 = scmp.ne.s32.totalorder %s103, %s105
      %p112 = scmp.eq.s32.totalorder %s32, 1
      %p113 = por %p111, %p112
      %p114 = scmp.ne.s32.totalorder %s105, %s106
      %p115 = scmp.eq.s32.totalorder %s32, 0
      %p116 = por %p114, %p115
      %p117 = scmp.ne.s32.totalorder %s105, %s106
      %p118 = scmp.eq.s32.totalorder %s33, 1
      %p119 = por %p117, %p118
      %p121 = scmp.ne.s32.totalorder %s106, %s120
      %p122 = scmp.eq.s32.totalorder %s33, 0
      %p123 = por %p121, %p122
      %s125 = sadd.s32 %s124, 1
      %p128 = scmp.eq.s32.totalorder %s27, 1
      %p129 = scmp.ne.s32.totalorder %s124, %s126
      %p130 = scmp.eq.s32.totalorder %s27, 0
      %p131 = por %p129, %p130
      %p132 = scmp.ne.s32.totalorder %s124, %s126
      %p133 = scmp.eq.s32.totalorder %s32, 1
      %p134 = por %p132, %p133
      %p135 = scmp.ne.s32.totalorder %s126, %s127
      %p136 = scmp.eq.s32.totalorder %s32, 0
      %p137 = por %p135, %p136
      %p138 = scmp.ne.s32.totalorder %s126, %s127
      %p139 = scmp.eq.s32.totalorder %s33, 1
      %p140 = por %p138, %p139
      %p142 = scmp.ne.s32.totalorder %s127, %s141
      %p143 = scmp.eq.s32.totalorder %s33, 0
      %p144 = por %p142, %p143
      %s146 = sadd.s32 %s145, 1
      %p149 = scmp.eq.s32.totalorder %s27, 1
      %p150 = scmp.ne.s32.totalorder %s145, %s147
      %p151 = scmp.eq.s32.totalorder %s27, 0
      %p152 = por %p150, %p151
      %p153 = scmp.ne.s32.totalorder %s145, %s147
      %p154 = scmp.eq.s32.totalorder %s32, 1
      %p155 = por %p153, %p154
      %p156 = scmp.ne.s32.totalorder %s147, %s148
      %p157 = scmp.eq.s32.totalorder %s32, 0
      %p158 = por %p156, %p157
      %p159 = scmp.ne.s32.totalorder %s147, %s148
      %p160 = scmp.eq.s32.totalorder %s33, 1
      %p161 = por %p159, %p160
      %p163 = scmp.ne.s32.totalorder %s148, %s162
      %p164 = scmp.eq.s32.totalorder %s33, 0
      %p165 = por %p163, %p164
      %s167 = sadd.s32 %s166, 1
      %p170 = scmp.eq.s32.totalorder %s27, 1
      %p171 = scmp.ne.s32.totalorder %s166, %s168
      %p172 = scmp.eq.s32.totalorder %s27, 0
      %p173 = por %p171, %p172
      %p174 = scmp.ne.s32.totalorder %s166, %s168
      %p175 = scmp.eq.s32.totalorder %s32, 1
      %p176 = por %p174, %p175
      %p177 = scmp.ne.s32.totalorder %s168, %s169
      %p178 = scmp.eq.s32.totalorder %s32, 0
      %p179 = por %p177, %p178
      %p180 = scmp.ne.s32.totalorder %s168, %s169
      %p181 = scmp.eq.s32.totalorder %s33, 1
      %p182 = por %p180, %p181
      %p184 = scmp.ne.s32.totalorder %s169, %s183
      %p185 = scmp.eq.s32.totalorder %s33, 0
      %p186 = por %p184, %p185
      %s188 = sadd.s32 %s187, 1
      %p191 = scmp.eq.s32.totalorder %s27, 1
      %p192 = scmp.ne.s32.totalorder %s187, %s189
      %p193 = scmp.eq.s32.totalorder %s27, 0
      %p194 = por %p192, %p193
      %p195 = scmp.ne.s32.totalorder %s187, %s189
      %p196 = scmp.eq.s32.totalorder %s32, 1
      %p197 = por %p195, %p196
      %p198 = scmp.ne.s32.totalorder %s189, %s190
      %p199 = scmp.eq.s32.totalorder %s32, 0
      %p200 = por %p198, %p199
      %p201 = scmp.ne.s32.totalorder %s189, %s190
      %p202 = scmp.eq.s32.totalorder %s33, 1
      %p203 = por %p201, %p202
      %p205 = scmp.ne.s32.totalorder %s190, %s204
      %p206 = scmp.eq.s32.totalorder %s33, 0
      %p207 = por %p205, %p206
      %s209 = sadd.s32 %s208, 1
      %p212 = scmp.eq.s32.totalorder %s27, 1
      %p213 = scmp.ne.s32.totalorder %s208, %s210
      %p214 = scmp.eq.s32.totalorder %s27, 0
      %p215 = por %p213, %p214
      %p216 = scmp.ne.s32.totalorder %s208, %s210
      %p217 = scmp.eq.s32.totalorder %s32, 1
      %p218 = por %p216, %p217
      %p219 = scmp.ne.s32.totalorder %s210, %s211
      %p220 = scmp.eq.s32.totalorder %s32, 0
      %p221 = por %p219, %p220
      %p222 = scmp.ne.s32.totalorder %s210, %s211
      %p223 = scmp.eq.s32.totalorder %s33, 1
      %p224 = por %p222, %p223
      %p226 = scmp.ne.s32.totalorder %s211, %s225
      %p227 = scmp.eq.s32.totalorder %s33, 0
      %p228 = por %p226, %p227
      %s230 = sadd.s32 %s229, 1
      %p233 = scmp.eq.s32.totalorder %s27, 1
      %p234 = scmp.ne.s32.totalorder %s229, %s231
      %p235 = scmp.eq.s32.totalorder %s27, 0
      %p236 = por %p234, %p235
      %p237 = scmp.ne.s32.totalorder %s229, %s231
      %p238 = scmp.eq.s32.totalorder %s32, 1
      %p239 = por %p237, %p238
      %p240 = scmp.ne.s32.totalorder %s231, %s232
      %p241 = scmp.eq.s32.totalorder %s32, 0
      %p242 = por %p240, %p241
      %p243 = scmp.ne.s32.totalorder %s231, %s232
      %p244 = scmp.eq.s32.totalorder %s33, 1
      %p245 = por %p243, %p244
      %p247 = scmp.ne.s32.totalorder %s232, %s246
      %p248 = scmp.eq.s32.totalorder %s33, 0
      %p249 = por %p247, %p248
      %s251 = sadd.s32 %s250, 1
      %p254 = scmp.eq.s32.totalorder %s27, 1
      %p255 = scmp.ne.s32.totalorder %s250, %s252
      %p256 = scmp.eq.s32.totalorder %s27, 0
      %p257 = por %p255, %p256
      %p258 = scmp.ne.s32.totalorder %s250, %s252
      %p259 = scmp.eq.s32.totalorder %s32, 1
      %p260 = por %p258, %p259
      %p261 = scmp.ne.s32.totalorder %s252, %s253
      %p262 = scmp.eq.s32.totalorder %s32, 0
      %p263 = por %p261, %p262
      %p264 = scmp.ne.s32.totalorder %s252, %s253
      %p265 = scmp.eq.s32.totalorder %s33, 1
      %p266 = por %p264, %p265
      %p268 = scmp.ne.s32.totalorder %s253, %s267
      %p269 = scmp.eq.s32.totalorder %s33, 0
      %p270 = por %p268, %p269
      %s272 = sadd.s32 %s271, 1
      %p275 = scmp.eq.s32.totalorder %s27, 1
      %p276 = scmp.ne.s32.totalorder %s271, %s273
      %p277 = scmp.eq.s32.totalorder %s27, 0
      %p278 = por %p276, %p277
      %p279 = scmp.ne.s32.totalorder %s271, %s273
      %p280 = scmp.eq.s32.totalorder %s32, 1
      %p281 = por %p279, %p280
      %p282 = scmp.ne.s32.totalorder %s273, %s274
      %p283 = scmp.eq.s32.totalorder %s32, 0
      %p284 = por %p282, %p283
      %p285 = scmp.ne.s32.totalorder %s273, %s274
      %p286 = scmp.eq.s32.totalorder %s33, 1
      %p287 = por %p285, %p286
      %p289 = scmp.ne.s32.totalorder %s274, %s288
      %p290 = scmp.eq.s32.totalorder %s33, 0
      %p291 = por %p289, %p290
      %s293 = sadd.s32 %s292, 1
      %p296 = scmp.eq.s32.totalorder %s27, 1
      %p297 = scmp.ne.s32.totalorder %s292, %s294
      %p298 = scmp.eq.s32.totalorder %s27, 0
      %p299 = por %p297, %p298
      %p300 = scmp.ne.s32.totalorder %s292, %s294
      %p301 = scmp.eq.s32.totalorder %s32, 1
      %p302 = por %p300, %p301
      %p303 = scmp.ne.s32.totalorder %s294, %s295
      %p304 = scmp.eq.s32.totalorder %s32, 0
      %p305 = por %p303, %p304
      %p306 = scmp.ne.s32.totalorder %s294, %s295
      %p307 = scmp.eq.s32.totalorder %s33, 1
      %p308 = por %p306, %p307
      %p310 = scmp.ne.s32.totalorder %s295, %s309
      %p311 = scmp.eq.s32.totalorder %s33, 0
      %p312 = por %p310, %p311
      %s314 = sadd.s32 %s313, 1
      %p317 = scmp.eq.s32.totalorder %s27, 1
      %p318 = scmp.ne.s32.totalorder %s313, %s315
      %p319 = scmp.eq.s32.totalorder %s27, 0
      %p320 = por %p318, %p319
      %p321 = scmp.ne.s32.totalorder %s313, %s315
      %p322 = scmp.eq.s32.totalorder %s32, 1
      %p323 = por %p321, %p322
      %p324 = scmp.ne.s32.totalorder %s315, %s316
      %p325 = scmp.eq.s32.totalorder %s32, 0
      %p326 = por %p324, %p325
      %p327 = scmp.ne.s32.totalorder %s315, %s316
      %p328 = scmp.eq.s32.totalorder %s33, 1
      %p329 = por %p327, %p328
      %p331 = scmp.ne.s32.totalorder %s316, %s330
      %p332 = scmp.eq.s32.totalorder %s33, 0
      %p333 = por %p331, %p332
      %s335 = sadd.s32 %s334, 1
      %p338 = scmp.eq.s32.totalorder %s27, 1
      %p339 = scmp.ne.s32.totalorder %s334, %s336
      %p340 = scmp.eq.s32.totalorder %s27, 0
      %p341 = por %p339, %p340
      %p342 = scmp.ne.s32.totalorder %s334, %s336
      %p343 = scmp.eq.s32.totalorder %s32, 1
      %p344 = por %p342, %p343
      %p345 = scmp.ne.s32.totalorder %s336, %s337
      %p346 = scmp.eq.s32.totalorder %s32, 0
      %p347 = por %p345, %p346
      %p348 = scmp.ne.s32.totalorder %s336, %s337
      %p349 = scmp.eq.s32.totalorder %s33, 1
      %p350 = por %p348, %p349
      %p352 = scmp.ne.s32.totalorder %s337, %s351
      %p353 = scmp.eq.s32.totalorder %s33, 0
      %p354 = por %p352, %p353
      %s356 = sadd.s32 %s355, 1
      %p359 = scmp.eq.s32.totalorder %s27, 1
      %p360 = scmp.ne.s32.totalorder %s355, %s357
      %p361 = scmp.eq.s32.totalorder %s27, 0
      %p362 = por %p360, %p361
      %p363 = scmp.ne.s32.totalorder %s355, %s357
      %p364 = scmp.eq.s32.totalorder %s32, 1
      %p365 = por %p363, %p364
      %p366 = scmp.ne.s32.totalorder %s357, %s358
      %p367 = scmp.eq.s32.totalorder %s32, 0
      %p368 = por %p366, %p367
      %p369 = scmp.ne.s32.totalorder %s357, %s358
      %p370 = scmp.eq.s32.totalorder %s33, 1
      %p371 = por %p369, %p370
      %p373 = scmp.ne.s32.totalorder %s358, %s372
      %p374 = scmp.eq.s32.totalorder %s33, 0
      %p375 = por %p373, %p374
      %s377 = sadd.s32 %s376, 1
      %p380 = scmp.eq.s32.totalorder %s27, 1
      %p381 = scmp.ne.s32.totalorder %s376, %s378
      %p382 = scmp.eq.s32.totalorder %s27, 0
      %p383 = por %p381, %p382
      %p384 = scmp.ne.s32.totalorder %s376, %s378
      %p385 = scmp.eq.s32.totalorder %s32, 1
      %p386 = por %p384, %p385
      %p387 = scmp.ne.s32.totalorder %s378, %s379
      %p388 = scmp.eq.s32.totalorder %s32, 0
      %p389 = por %p387, %p388
      %p390 = scmp.ne.s32.totalorder %s378, %s379
      %p391 = scmp.eq.s32.totalorder %s33, 1
      %p392 = por %p390, %p391
      %p394 = scmp.ne.s32.totalorder %s379, %s393
      %p395 = scmp.eq.s32.totalorder %s33, 0
      %p396 = por %p394, %p395
      %s398 = sadd.s32 %s397, 1
      %p401 = scmp.eq.s32.totalorder %s27, 1
      %p402 = scmp.ne.s32.totalorder %s397, %s399
      %p403 = scmp.eq.s32.totalorder %s27, 0
      %p404 = por %p402, %p403
      %p405 = scmp.ne.s32.totalorder %s397, %s399
      %p406 = scmp.eq.s32.totalorder %s32, 1
      %p407 = por %p405, %p406
      %p408 = scmp.ne.s32.totalorder %s399, %s400
      %p409 = scmp.eq.s32.totalorder %s32, 0
      %p410 = por %p408, %p409
      %p411 = scmp.ne.s32.totalorder %s399, %s400
      %p412 = scmp.eq.s32.totalorder %s33, 1
      %p413 = por %p411, %p412
      %p415 = scmp.ne.s32.totalorder %s400, %s414
      %p416 = scmp.eq.s32.totalorder %s33, 0
      %p417 = por %p415, %p416
      %s419 = sadd.s32 %s418, 1
      %p422 = scmp.eq.s32.totalorder %s27, 1
      %p423 = scmp.ne.s32.totalorder %s418, %s420
      %p424 = scmp.eq.s32.totalorder %s27, 0
      %p425 = por %p423, %p424
      %p426 = scmp.ne.s32.totalorder %s418, %s420
      %p427 = scmp.eq.s32.totalorder %s32, 1
      %p428 = por %p426, %p427
      %p429 = scmp.ne.s32.totalorder %s420, %s421
      %p430 = scmp.eq.s32.totalorder %s32, 0
      %p431 = por %p429, %p430
      %p432 = scmp.ne.s32.totalorder %s420, %s421
      %p433 = scmp.eq.s32.totalorder %s33, 1
      %p434 = por %p432, %p433
      %p436 = scmp.ne.s32.totalorder %s421, %s435
      %p437 = scmp.eq.s32.totalorder %s33, 0
      %p438 = por %p436, %p437
      %s439 = ssub.s32 %s27, %s34
      %p440 = scmp.eq.s32.totalorder %s439, 0
      %s442 = sadd.s32 %s441, 1
      %s443 = scalar_select %p440, %s441, %s442
      %p446 = pneg %p440
      %p447 = scmp.eq.s32.totalorder %s27, 1
      %p448 = por %p446, %p447
      %p449 = scmp.ne.s32.totalorder %s441, %s444
      %p450 = scmp.eq.s32.totalorder %s27, 0
      %p451 = por %p449, %p450
      %p452 = scmp.ne.s32.totalorder %s441, %s444
      %p453 = scmp.eq.s32.totalorder %s32, 1
      %p454 = por %p452, %p453
      %p455 = scmp.ne.s32.totalorder %s444, %s445
      %p456 = scmp.eq.s32.totalorder %s32, 0
      %p457 = por %p455, %p456
      %p458 = scmp.ne.s32.totalorder %s444, %s445
      %p459 = scmp.eq.s32.totalorder %s33, 1
      %p460 = por %p458, %p459
      %p462 = scmp.ne.s32.totalorder %s445, %s461
      %p463 = scmp.eq.s32.totalorder %s33, 0
      %p464 = por %p462, %p463
      %p465 = scmp.le.s32.totalorder 1, %s27
      %p466 = scmp.lt.s32.totalorder %s27, 3
      %p467 = pnand %p465, %p466
      %p468 = pneg %p467
      // Predicated region
      $region9: #{nerf_forward_pallas.1} parent=5 // pred_check
        _
      $region10: #{nerf_forward_pallas.1} parent=5 // pred_check_branch
        %470 = sbr.rel (%p467) target = $region12
      $region11: #{nerf_forward_pallas.1} parent=5 // pred_region
        %s471 = ssub.s32 %s27, 1
        // Predicated region
        $region13: #{nerf_forward_pallas.1} parent=11 // pred_check
          %p472 = pneg %p74
        $region14: #{nerf_forward_pallas.1} parent=11 // pred_check_branch
          %474 = sbr.rel (%p472) target = $region16
        $region15: #{nerf_forward_pallas.1} parent=11 // pred_region
          _
        $region16: #{nerf_forward_pallas.1} parent=11 // pred_fallthru
          _
        // Predicated region
        $region17: #{nerf_forward_pallas.1} parent=11 // pred_check
          %p475 = pneg %p95
        $region18: #{nerf_forward_pallas.1} parent=11 // pred_check_branch
          %477 = sbr.rel (%p475) target = $region20
        $region19: #{nerf_forward_pallas.1} parent=11 // pred_region
          _
        $region20: #{nerf_forward_pallas.1} parent=11 // pred_fallthru
          _
        // Predicated region
        $region21: #{nerf_forward_pallas.1} parent=11 // pred_check
          %p478 = pneg %p116
        $region22: #{nerf_forward_pallas.1} parent=11 // pred_check_branch
          %480 = sbr.rel (%p478) target = $region24
        $region23: #{nerf_forward_pallas.1} parent=11 // pred_region
          _
        $region24: #{nerf_forward_pallas.1} parent=11 // pred_fallthru
          _
        // Predicated region
        $region25: #{nerf_forward_pallas.1} parent=11 // pred_check
          %p481 = pneg %p137
        $region26: #{nerf_forward_pallas.1} parent=11 // pred_check_branch
          %483 = sbr.rel (%p481) target = $region28
        $region27: #{nerf_forward_pallas.1} parent=11 // pred_region
          _
        $region28: #{nerf_forward_pallas.1} parent=11 // pred_fallthru
          _
        // Predicated region
        $region29: #{nerf_forward_pallas.1} parent=11 // pred_check
          %p484 = pneg %p158
        $region30: #{nerf_forward_pallas.1} parent=11 // pred_check_branch
          %486 = sbr.rel (%p484) target = $region32
        $region31: #{nerf_forward_pallas.1} parent=11 // pred_region
          _
        $region32: #{nerf_forward_pallas.1} parent=11 // pred_fallthru
          _
        // Predicated region
        $region33: #{nerf_forward_pallas.1} parent=11 // pred_check
          %p487 = pneg %p179
        $region34: #{nerf_forward_pallas.1} parent=11 // pred_check_branch
          %489 = sbr.rel (%p487) target = $region36
        $region35: #{nerf_forward_pallas.1} parent=11 // pred_region
          _
        $region36: #{nerf_forward_pallas.1} parent=11 // pred_fallthru
          _
        // Predicated region
        $region37: #{nerf_forward_pallas.1} parent=11 // pred_check
          %p490 = pneg %p200
        $region38: #{nerf_forward_pallas.1} parent=11 // pred_check_branch
          %492 = sbr.rel (%p490) target = $region40
        $region39: #{nerf_forward_pallas.1} parent=11 // pred_region
          _
        $region40: #{nerf_forward_pallas.1} parent=11 // pred_fallthru
          _
        // Predicated region
        $region41: #{nerf_forward_pallas.1} parent=11 // pred_check
          %p493 = pneg %p221
        $region42: #{nerf_forward_pallas.1} parent=11 // pred_check_branch
          %495 = sbr.rel (%p493) target = $region44
        $region43: #{nerf_forward_pallas.1} parent=11 // pred_region
          %s497 = ssub.s32 4096, 4096
          %498 = vsyncadd [#allocation3], %s497
          %s499 = sshll.u32 [#allocation2], 4
          %s500 = int_to_ptr.vmem [resolvable:$true] %s499
          %505 = dma.hbm_to_vmem [thread:$0]  %s8, 4096, %s500, [#allocation3], 128, 128, 8
        $region44: #{nerf_forward_pallas.1} parent=11 // pred_fallthru
          _
        // Predicated region
        $region45: #{nerf_forward_pallas.1} parent=11 // pred_check
          %p506 = pneg %p242
        $region46: #{nerf_forward_pallas.1} parent=11 // pred_check_branch
          %508 = sbr.rel (%p506) target = $region48
        $region47: #{nerf_forward_pallas.1} parent=11 // pred_region
          %s510 = ssub.s32 2048, 2048
          %511 = vsyncadd [#allocation5], %s510
          %s512 = sshll.u32 [#allocation4], 4
          %s513 = int_to_ptr.vmem [resolvable:$true] %s512
          %518 = dma.hbm_to_vmem [thread:$0]  %s9, 2048, %s513, [#allocation5], 64, 64, 4
        $region48: #{nerf_forward_pallas.1} parent=11 // pred_fallthru
          _
        // Predicated region
        $region49: #{nerf_forward_pallas.1} parent=11 // pred_check
          %p519 = pneg %p263
        $region50: #{nerf_forward_pallas.1} parent=11 // pred_check_branch
          %521 = sbr.rel (%p519) target = $region52
        $region51: #{nerf_forward_pallas.1} parent=11 // pred_region
          _
        $region52: #{nerf_forward_pallas.1} parent=11 // pred_fallthru
          _
        // Predicated region
        $region53: #{nerf_forward_pallas.1} parent=11 // pred_check
          %p522 = pneg %p284
        $region54: #{nerf_forward_pallas.1} parent=11 // pred_check_branch
          %524 = sbr.rel (%p522) target = $region56
        $region55: #{nerf_forward_pallas.1} parent=11 // pred_region
          _
        $region56: #{nerf_forward_pallas.1} parent=11 // pred_fallthru
          _
        // Predicated region
        $region57: #{nerf_forward_pallas.1} parent=11 // pred_check
          %p525 = pneg %p305
        $region58: #{nerf_forward_pallas.1} parent=11 // pred_check_branch
          %527 = sbr.rel (%p525) target = $region60
        $region59: #{nerf_forward_pallas.1} parent=11 // pred_region
          _
        $region60: #{nerf_forward_pallas.1} parent=11 // pred_fallthru
          _
        // Predicated region
        $region61: #{nerf_forward_pallas.1} parent=11 // pred_check
          %p528 = pneg %p326
        $region62: #{nerf_forward_pallas.1} parent=11 // pred_check_branch
          %530 = sbr.rel (%p528) target = $region64
        $region63: #{nerf_forward_pallas.1} parent=11 // pred_region
          _
        $region64: #{nerf_forward_pallas.1} parent=11 // pred_fallthru
          _
        // Predicated region
        $region65: #{nerf_forward_pallas.1} parent=11 // pred_check
          %p531 = pneg %p347
        $region66: #{nerf_forward_pallas.1} parent=11 // pred_check_branch
          %533 = sbr.rel (%p531) target = $region68
        $region67: #{nerf_forward_pallas.1} parent=11 // pred_region
          _
        $region68: #{nerf_forward_pallas.1} parent=11 // pred_fallthru
          _
        // Predicated region
        $region69: #{nerf_forward_pallas.1} parent=11 // pred_check
          %p534 = pneg %p368
        $region70: #{nerf_forward_pallas.1} parent=11 // pred_check_branch
          %536 = sbr.rel (%p534) target = $region72
        $region71: #{nerf_forward_pallas.1} parent=11 // pred_region
          _
        $region72: #{nerf_forward_pallas.1} parent=11 // pred_fallthru
          _
        // Predicated region
        $region73: #{nerf_forward_pallas.1} parent=11 // pred_check
          %p537 = pneg %p389
        $region74: #{nerf_forward_pallas.1} parent=11 // pred_check_branch
          %539 = sbr.rel (%p537) target = $region76
        $region75: #{nerf_forward_pallas.1} parent=11 // pred_region
          _
        $region76: #{nerf_forward_pallas.1} parent=11 // pred_fallthru
          _
        // Predicated region
        $region77: #{nerf_forward_pallas.1} parent=11 // pred_check
          %p540 = pneg %p410
        $region78: #{nerf_forward_pallas.1} parent=11 // pred_check_branch
          %542 = sbr.rel (%p540) target = $region80
        $region79: #{nerf_forward_pallas.1} parent=11 // pred_region
          _
        $region80: #{nerf_forward_pallas.1} parent=11 // pred_fallthru
          _
        // Predicated region
        $region81: #{nerf_forward_pallas.1} parent=11 // pred_check
          %p543 = pneg %p431
        $region82: #{nerf_forward_pallas.1} parent=11 // pred_check_branch
          %545 = sbr.rel (%p543) target = $region84
        $region83: #{nerf_forward_pallas.1} parent=11 // pred_region
          _
        $region84: #{nerf_forward_pallas.1} parent=11 // pred_fallthru
          _
      $region12: #{nerf_forward_pallas.1} parent=5 // pred_fallthru
        _
      %p546 = scmp.lt.s32.totalorder %s27, 2
      // Predicated region
      $region85: #{nerf_forward_pallas.1} parent=5 // pred_check
        %p547 = pneg %p546
      $region86: #{nerf_forward_pallas.1} parent=5 // pred_check_branch
        %549 = sbr.rel (%p547) target = $region88
      $region87: #{nerf_forward_pallas.1} parent=5 // pred_region
        // Predicated region
        $region89: #{nerf_forward_pallas.1} parent=87 // pred_check
          %p550 = pneg %p47
        $region90: #{nerf_forward_pallas.1} parent=87 // pred_check_branch
          %552 = sbr.rel (%p550) target = $region92
        $region91: #{nerf_forward_pallas.1} parent=87 // pred_region
          %s553 = smul.u32 64, %s27
          %p554 = scmp.lt.s32.totalorder %s553, 127
          %s555 = scalar_select %p554, %s553, 127
          %s556 = smul.addr %s555, 4
          %s557 = scalar_lea.vmem %s0, %s556
          %s558 = smul.u32 64, %s27
        $region92: #{nerf_forward_pallas.1} parent=87 // pred_fallthru
          _
      $region88: #{nerf_forward_pallas.1} parent=5 // pred_fallthru
        _
      %p559 = scmp.le.s32.totalorder 1, %s27
      %p560 = scmp.lt.s32.totalorder %s27, 3
      %p561 = pnand %p559, %p560
      %p562 = pneg %p561
      // Predicated region
      $region93: #{nerf_forward_pallas.1} parent=5 // pred_check
        _
      $region94: #{nerf_forward_pallas.1} parent=5 // pred_check_branch
        %564 = sbr.rel (%p561) target = $region96
      $region95: #{nerf_forward_pallas.1} parent=5 // pred_region
        %s565 = ssub.s32 %s27, 1
        // Predicated region
        $region97: #{nerf_forward_pallas.1} parent=95 // pred_check
          %p566 = pneg %p221
        $region98: #{nerf_forward_pallas.1} parent=95 // pred_check_branch
          %568 = sbr.rel (%p566) target = $region100
        $region99: #{nerf_forward_pallas.1} parent=95 // pred_region
          %569 = dma.done [#allocation3], 4096
        $region100: #{nerf_forward_pallas.1} parent=95 // pred_fallthru
          _
        // Predicated region
        $region101: #{nerf_forward_pallas.1} parent=95 // pred_check
          %p570 = pneg %p242
        $region102: #{nerf_forward_pallas.1} parent=95 // pred_check_branch
          %572 = sbr.rel (%p570) target = $region104
        $region103: #{nerf_forward_pallas.1} parent=95 // pred_region
          %573 = dma.done [#allocation5], 2048
        $region104: #{nerf_forward_pallas.1} parent=95 // pred_fallthru
          _
        %s574 = smul.u32 64, %s32
        %p575 = scmp.lt.s32.totalorder %s574, 127
        %s576 = scalar_select %p575, %s574, 127
        %s577 = smul.addr %s576, 4
        %s578 = scalar_lea.vmem %s0, %s577
        %p579 = pneg %p53
        %p580 = pneg %p50
        %p581 = pneg %p74
        %p582 = pneg %p71
        %p583 = pneg %p95
        %p584 = pneg %p92
        %p585 = pneg %p116
        %p586 = pneg %p113
        %p587 = pneg %p137
        %p588 = pneg %p134
        %p589 = pneg %p158
        %p590 = pneg %p155
        %p591 = pneg %p179
        %p592 = pneg %p176
        %p593 = pneg %p200
        %p594 = pneg %p197
        %p595 = pneg %p221
        %p596 = pneg %p218
        %p597 = pneg %p242
        %p598 = pneg %p239
        %p599 = pneg %p263
        %p600 = pneg %p260
        %p601 = pneg %p284
        %p602 = pneg %p281
        %p603 = pneg %p305
        %p604 = pneg %p302
        %p605 = pneg %p326
        %p606 = pneg %p323
        %p607 = pneg %p347
        %p608 = pneg %p344
        %p609 = pneg %p368
        %p610 = pneg %p365
        %p611 = pneg %p389
        %p612 = pneg %p386
        %p613 = pneg %p410
        %p614 = pneg %p407
        %p615 = pneg %p431
        %p616 = pneg %p428
        %p617 = pneg %p457
        %p618 = pneg %p454
        %s619 = smul.u32 64, %s32
        %p620 = scmp.lt.s32.totalorder %s619, 127
        %s621 = scalar_select %p620, %s619, 127
        %s622 = smul.addr %s621, 8
        %s623 = scalar_lea.vmem %s19, %s622
        %s624 = smul.u32 64, %s32
        %p625 = scmp.lt.s32.totalorder %s624, 127
        %s626 = scalar_select %p625, %s624, 127
        %s627 = smul.addr %s626, 4
        %s628 = scalar_lea.vmem %s0, %s627
        %s629 = smul.u32 64, %s32
        %s630 = smul.u32 64, %s32
        %p631 = scmp.lt.s32.totalorder %s630, 127
        %s632 = scalar_select %p631, %s630, 127
        %s633 = smul.addr %s632, 8
        %s634 = scalar_lea.vmem %s19, %s633
        %s635 = smul.u32 64, %s32
        %v637 = vld [vmem:[%s628] sm:$0xf]
        %v638 = vld [vmem:[%s628 + $0x4] sm:$0xf]
        %v639 = vld [vmem:[%s628 + $0x8] sm:$0xf]
        %v640 = vld [vmem:[%s628 + $0xc] sm:$0xf]
        %v641 = vld [vmem:[%s628 + $0x10] sm:$0xf]
        %v642 = vld [vmem:[%s628 + $0x14] sm:$0xf]
        %v643 = vld [vmem:[%s628 + $0x18] sm:$0xf]
        %v644 = vld [vmem:[%s628 + $0x1c] sm:$0xf]
        %v645 = vld [vmem:[%s628 + $0x20] sm:$0xf]
        %v646 = vld [vmem:[%s628 + $0x24] sm:$0xf]
        %v647 = vld [vmem:[%s628 + $0x28] sm:$0xf]
        %v648 = vld [vmem:[%s628 + $0x2c] sm:$0xf]
        %v649 = vld [vmem:[%s628 + $0x30] sm:$0xf]
        %v650 = vld [vmem:[%s628 + $0x34] sm:$0xf]
        %v651 = vld [vmem:[%s628 + $0x38] sm:$0xf]
        %v652 = vld [vmem:[%s628 + $0x3c] sm:$0xf]
        %v653 = vld [vmem:[%s628 + $0x40] sm:$0xf]
        %v654 = vld [vmem:[%s628 + $0x44] sm:$0xf]
        %v655 = vld [vmem:[%s628 + $0x48] sm:$0xf]
        %v656 = vld [vmem:[%s628 + $0x4c] sm:$0xf]
        %v657 = vld [vmem:[%s628 + $0x50] sm:$0xf]
        %v658 = vld [vmem:[%s628 + $0x54] sm:$0xf]
        %v659 = vld [vmem:[%s628 + $0x58] sm:$0xf]
        %v660 = vld [vmem:[%s628 + $0x5c] sm:$0xf]
        %v661 = vld [vmem:[%s628 + $0x60] sm:$0xf]
        %v662 = vld [vmem:[%s628 + $0x64] sm:$0xf]
        %v663 = vld [vmem:[%s628 + $0x68] sm:$0xf]
        %v664 = vld [vmem:[%s628 + $0x6c] sm:$0xf]
        %v665 = vld [vmem:[%s628 + $0x70] sm:$0xf]
        %v666 = vld [vmem:[%s628 + $0x74] sm:$0xf]
        %v667 = vld [vmem:[%s628 + $0x78] sm:$0xf]
        %v668 = vld [vmem:[%s628 + $0x7c] sm:$0xf]
        %v669 = vld [vmem:[%s628 + $0x80] sm:$0xf]
        %v670 = vld [vmem:[%s628 + $0x84] sm:$0xf]
        %v671 = vld [vmem:[%s628 + $0x88] sm:$0xf]
        %v672 = vld [vmem:[%s628 + $0x8c] sm:$0xf]
        %v673 = vld [vmem:[%s628 + $0x90] sm:$0xf]
        %v674 = vld [vmem:[%s628 + $0x94] sm:$0xf]
        %v675 = vld [vmem:[%s628 + $0x98] sm:$0xf]
        %v676 = vld [vmem:[%s628 + $0x9c] sm:$0xf]
        %v677 = vld [vmem:[%s628 + $0xa0] sm:$0xf]
        %v678 = vld [vmem:[%s628 + $0xa4] sm:$0xf]
        %v679 = vld [vmem:[%s628 + $0xa8] sm:$0xf]
        %v680 = vld [vmem:[%s628 + $0xac] sm:$0xf]
        %v681 = vld [vmem:[%s628 + $0xb0] sm:$0xf]
        %v682 = vld [vmem:[%s628 + $0xb4] sm:$0xf]
        %v683 = vld [vmem:[%s628 + $0xb8] sm:$0xf]
        %v684 = vld [vmem:[%s628 + $0xbc] sm:$0xf]
        %v685 = vld [vmem:[%s628 + $0xc0] sm:$0xf]
        %v686 = vld [vmem:[%s628 + $0xc4] sm:$0xf]
        %v687 = vld [vmem:[%s628 + $0xc8] sm:$0xf]
        %v688 = vld [vmem:[%s628 + $0xcc] sm:$0xf]
        %v689 = vld [vmem:[%s628 + $0xd0] sm:$0xf]
        %v690 = vld [vmem:[%s628 + $0xd4] sm:$0xf]
        %v691 = vld [vmem:[%s628 + $0xd8] sm:$0xf]
        %v692 = vld [vmem:[%s628 + $0xdc] sm:$0xf]
        %v693 = vld [vmem:[%s628 + $0xe0] sm:$0xf]
        %v694 = vld [vmem:[%s628 + $0xe4] sm:$0xf]
        %v695 = vld [vmem:[%s628 + $0xe8] sm:$0xf]
        %v696 = vld [vmem:[%s628 + $0xec] sm:$0xf]
        %v697 = vld [vmem:[%s628 + $0xf0] sm:$0xf]
        %v698 = vld [vmem:[%s628 + $0xf4] sm:$0xf]
        %v699 = vld [vmem:[%s628 + $0xf8] sm:$0xf]
        %v700 = vld [vmem:[%s628 + $0xfc] sm:$0xf]
        %v701 = vld [vmem:[%s1] sm:$0xff]
        %v702 = vld [vmem:[%s1 + $0x8] sm:$0xff]
        %v767 = vunpack.c.l.b16 %v637
        %v768 = vunpack.c.l.b16 %v638
        %v769 = vunpack.c.l.b16 %v639
        %v770 = vunpack.c.l.b16 %v640
        %v771 = vunpack.c.l.b16 %v641
        %v772 = vunpack.c.l.b16 %v642
        %v773 = vunpack.c.l.b16 %v643
        %v774 = vunpack.c.l.b16 %v644
        %v775 = vunpack.c.l.b16 %v645
        %v776 = vunpack.c.l.b16 %v646
        %v777 = vunpack.c.l.b16 %v647
        %v778 = vunpack.c.l.b16 %v648
        %v779 = vunpack.c.l.b16 %v649
        %v780 = vunpack.c.l.b16 %v650
        %v781 = vunpack.c.l.b16 %v651
        %v782 = vunpack.c.l.b16 %v652
        %v783 = vunpack.c.l.b16 %v653
        %v784 = vunpack.c.l.b16 %v654
        %v785 = vunpack.c.l.b16 %v655
        %v786 = vunpack.c.l.b16 %v656
        %v787 = vunpack.c.l.b16 %v657
        %v788 = vunpack.c.l.b16 %v658
        %v789 = vunpack.c.l.b16 %v659
        %v790 = vunpack.c.l.b16 %v660
        %v791 = vunpack.c.l.b16 %v661
        %v792 = vunpack.c.l.b16 %v662
        %v793 = vunpack.c.l.b16 %v663
        %v794 = vunpack.c.l.b16 %v664
        %v795 = vunpack.c.l.b16 %v665
        %v796 = vunpack.c.l.b16 %v666
        %v797 = vunpack.c.l.b16 %v667
        %v798 = vunpack.c.l.b16 %v668
        %v799 = vunpack.c.l.b16 %v669
        %v800 = vunpack.c.l.b16 %v670
        %v801 = vunpack.c.l.b16 %v671
        %v802 = vunpack.c.l.b16 %v672
        %v803 = vunpack.c.l.b16 %v673
        %v804 = vunpack.c.l.b16 %v674
        %v805 = vunpack.c.l.b16 %v675
        %v806 = vunpack.c.l.b16 %v676
        %v807 = vunpack.c.l.b16 %v677
        %v808 = vunpack.c.l.b16 %v678
        %v809 = vunpack.c.l.b16 %v679
        %v810 = vunpack.c.l.b16 %v680
        %v811 = vunpack.c.l.b16 %v681
        %v812 = vunpack.c.l.b16 %v682
        %v813 = vunpack.c.l.b16 %v683
        %v814 = vunpack.c.l.b16 %v684
        %v815 = vunpack.c.l.b16 %v685
        %v816 = vunpack.c.l.b16 %v686
        %v817 = vunpack.c.l.b16 %v687
        %v818 = vunpack.c.l.b16 %v688
        %v819 = vunpack.c.l.b16 %v689
        %v820 = vunpack.c.l.b16 %v690
        %v821 = vunpack.c.l.b16 %v691
        %v822 = vunpack.c.l.b16 %v692
        %v823 = vunpack.c.l.b16 %v693
        %v824 = vunpack.c.l.b16 %v694
        %v825 = vunpack.c.l.b16 %v695
        %v826 = vunpack.c.l.b16 %v696
        %v827 = vunpack.c.l.b16 %v697
        %v828 = vunpack.c.l.b16 %v698
        %v829 = vunpack.c.l.b16 %v699
        %v830 = vunpack.c.l.b16 %v700
        %v831 = vpack.c.b16 %v768, %v767
        %v832 = vpack.c.b16 %v770, %v769
        %v833 = vpack.c.b16 %v772, %v771
        %v834 = vpack.c.b16 %v774, %v773
        %v835 = vpack.c.b16 %v776, %v775
        %v836 = vpack.c.b16 %v778, %v777
        %v837 = vpack.c.b16 %v780, %v779
        %v838 = vpack.c.b16 %v782, %v781
        %v839 = vpack.c.b16 %v784, %v783
        %v840 = vpack.c.b16 %v786, %v785
        %v841 = vpack.c.b16 %v788, %v787
        %v842 = vpack.c.b16 %v790, %v789
        %v843 = vpack.c.b16 %v792, %v791
        %v844 = vpack.c.b16 %v794, %v793
        %v845 = vpack.c.b16 %v796, %v795
        %v846 = vpack.c.b16 %v798, %v797
        %v847 = vpack.c.b16 %v800, %v799
        %v848 = vpack.c.b16 %v802, %v801
        %v849 = vpack.c.b16 %v804, %v803
        %v850 = vpack.c.b16 %v806, %v805
        %v851 = vpack.c.b16 %v808, %v807
        %v852 = vpack.c.b16 %v810, %v809
        %v853 = vpack.c.b16 %v812, %v811
        %v854 = vpack.c.b16 %v814, %v813
        %v855 = vpack.c.b16 %v816, %v815
        %v856 = vpack.c.b16 %v818, %v817
        %v857 = vpack.c.b16 %v820, %v819
        %v858 = vpack.c.b16 %v822, %v821
        %v859 = vpack.c.b16 %v824, %v823
        %v860 = vpack.c.b16 %v826, %v825
        %v861 = vpack.c.b16 %v828, %v827
        %v862 = vpack.c.b16 %v830, %v829
        %v865 = vunpack.c.l.b16 %v701
        %v866 = vunpack.c.h.b16 %v701
        %v867 = vunpack.c.l.b16 %v702
        %v868 = vunpack.c.h.b16 %v702
        %v869 = vpack.c.b16 %v865, %v865
        %v870 = vpack.c.b16 %v866, %v866
        %v871 = vpack.c.b16 %v867, %v867
        %v872 = vpack.c.b16 %v868, %v868
        %vm873 = vcmask 64512
        %v875 = vsel %vm873, %v831, 0
        %v878 = vsel %vm873, %v832, 0
        %v881 = vsel %vm873, %v833, 0
        %v884 = vsel %vm873, %v834, 0
        %v887 = vsel %vm873, %v835, 0
        %v890 = vsel %vm873, %v836, 0
        %v893 = vsel %vm873, %v837, 0
        %v896 = vsel %vm873, %v838, 0
        %v899 = vsel %vm873, %v839, 0
        %v902 = vsel %vm873, %v840, 0
        %v905 = vsel %vm873, %v841, 0
        %v908 = vsel %vm873, %v842, 0
        %v911 = vsel %vm873, %v843, 0
        %v914 = vsel %vm873, %v844, 0
        %v917 = vsel %vm873, %v845, 0
        %v920 = vsel %vm873, %v846, 0
        %v923 = vsel %vm873, %v847, 0
        %v926 = vsel %vm873, %v848, 0
        %v929 = vsel %vm873, %v849, 0
        %v932 = vsel %vm873, %v850, 0
        %v935 = vsel %vm873, %v851, 0
        %v938 = vsel %vm873, %v852, 0
        %v941 = vsel %vm873, %v853, 0
        %v944 = vsel %vm873, %v854, 0
        %v947 = vsel %vm873, %v855, 0
        %v950 = vsel %vm873, %v856, 0
        %v953 = vsel %vm873, %v857, 0
        %v956 = vsel %vm873, %v858, 0
        %v959 = vsel %vm873, %v859, 0
        %v962 = vsel %vm873, %v860, 0
        %v965 = vsel %vm873, %v861, 0
        %v968 = vsel %vm873, %v862, 0
        %vm970 = vcmask 1043456
        %v972 = vsel %vm970, %v869, 0
        %v975 = vsel %vm970, %v870, 0
        %v978 = vsel %vm970, %v871, 0
        %v981 = vsel %vm970, %v872, 0
        %983 = vmatprep.subr.bf16.mxu0 0
        %984 = vmatpush1.bf16.msra.mxu0 0
        %985 = vmatprep.subr.bf16.mxu0 0
        %986 = vmatpush1.bf16.msra.mxu0 0
        %987 = vmatprep.subr.bf16.mxu0 0
        %988 = vmatpush1.bf16.msra.mxu0 0
        %989 = vmatprep.subr.bf16.mxu0 0
        %990 = vmatpush1.bf16.msra.mxu0 0
        %991 = vmatprep.subr.bf16.mxu0 0
        %992 = vmatpush1.bf16.msra.mxu0 0
        %993 = vmatprep.subr.bf16.mxu0 0
        %994 = vmatpush1.bf16.msra.mxu0 0
        %995 = vmatprep.subr.bf16.mxu0 0
        %996 = vmatpush1.bf16.msra.mxu0 0
        %997 = vmatprep.subr.bf16.mxu0 %v975
        %998 = vmatpush1.bf16.msra.mxu0 %v972
        %999 = vmatprep.subr.bf16.mxu0 0
        %1000 = vmatpush2.bf16.msra.mxu0 0
        %1001 = vmatprep.subr.bf16.mxu0 0
        %1002 = vmatpush2.bf16.msra.mxu0 0
        %1003 = vmatprep.subr.bf16.mxu0 0
        %1004 = vmatpush2.bf16.msra.mxu0 0
        %1005 = vmatprep.subr.bf16.mxu0 0
        %1006 = vmatpush2.bf16.msra.mxu0 0
        %1007 = vmatprep.subr.bf16.mxu0 0
        %1008 = vmatpush2.bf16.msra.mxu0 0
        %1009 = vmatprep.subr.bf16.mxu0 0
        %1010 = vmatpush2.bf16.msra.mxu0 0
        %1011 = vmatprep.subr.bf16.mxu0 0
        %1012 = vmatpush2.bf16.msra.mxu0 0
        %1013 = vmatprep.subr.bf16.mxu0 0
        %1014 = vmatpush2.bf16.msra.mxu0 0
        %1015 = vmatprep.mubr.bf16.mxu0 0
        %1016 = vmatmul.mubr.bf16.gmra.mxu0 %v875
        %v1017 = vpop.f32.mrf.mxu0
        %v1018 = vadd.f32 0.0, %v1017
        %v1019 = vpop.f32.mrf.mxu0
        %v1020 = vadd.f32 0.0, %v1019
        %v1021 = vpop.f32.mrf.mxu0
        %v1022 = vadd.f32 0.0, %v1021
        %v1023 = vpop.f32.mrf.mxu0
        %v1024 = vadd.f32 0.0, %v1023
        %1025 = vmatprep.mubr.bf16.mxu0 0
        %1026 = vmatmul.mubr.bf16.gmra.mxu0 %v878
        %v1027 = vpop.f32.mrf.mxu0
        %v1028 = vadd.f32 0.0, %v1027
        %v1029 = vpop.f32.mrf.mxu0
        %v1030 = vadd.f32 0.0, %v1029
        %v1031 = vpop.f32.mrf.mxu0
        %v1032 = vadd.f32 0.0, %v1031
        %v1033 = vpop.f32.mrf.mxu0
        %v1034 = vadd.f32 0.0, %v1033
        %1035 = vmatprep.mubr.bf16.mxu0 0
        %1036 = vmatmul.mubr.bf16.gmra.mxu0 %v881
        %v1037 = vpop.f32.mrf.mxu0
        %v1038 = vadd.f32 0.0, %v1037
        %v1039 = vpop.f32.mrf.mxu0
        %v1040 = vadd.f32 0.0, %v1039
        %v1041 = vpop.f32.mrf.mxu0
        %v1042 = vadd.f32 0.0, %v1041
        %v1043 = vpop.f32.mrf.mxu0
        %v1044 = vadd.f32 0.0, %v1043
        %1045 = vmatprep.mubr.bf16.mxu0 0
        %1046 = vmatmul.mubr.bf16.gmra.mxu0 %v884
        %v1047 = vpop.f32.mrf.mxu0
        %v1048 = vadd.f32 0.0, %v1047
        %v1049 = vpop.f32.mrf.mxu0
        %v1050 = vadd.f32 0.0, %v1049
        %v1051 = vpop.f32.mrf.mxu0
        %v1052 = vadd.f32 0.0, %v1051
        %v1053 = vpop.f32.mrf.mxu0
        %v1054 = vadd.f32 0.0, %v1053
        %1055 = vmatprep.mubr.bf16.mxu0 0
        %1056 = vmatmul.mubr.bf16.gmra.mxu0 %v887
        %v1057 = vpop.f32.mrf.mxu0
        %v1058 = vadd.f32 0.0, %v1057
        %v1059 = vpop.f32.mrf.mxu0
        %v1060 = vadd.f32 0.0, %v1059
        %v1061 = vpop.f32.mrf.mxu0
        %v1062 = vadd.f32 0.0, %v1061
        %v1063 = vpop.f32.mrf.mxu0
        %v1064 = vadd.f32 0.0, %v1063
        %1065 = vmatprep.mubr.bf16.mxu0 0
        %1066 = vmatmul.mubr.bf16.gmra.mxu0 %v890
        %v1067 = vpop.f32.mrf.mxu0
        %v1068 = vadd.f32 0.0, %v1067
        %v1069 = vpop.f32.mrf.mxu0
        %v1070 = vadd.f32 0.0, %v1069
        %v1071 = vpop.f32.mrf.mxu0
        %v1072 = vadd.f32 0.0, %v1071
        %v1073 = vpop.f32.mrf.mxu0
        %v1074 = vadd.f32 0.0, %v1073
        %1075 = vmatprep.mubr.bf16.mxu0 0
        %1076 = vmatmul.mubr.bf16.gmra.mxu0 %v893
        %v1077 = vpop.f32.mrf.mxu0
        %v1078 = vadd.f32 0.0, %v1077
        %v1079 = vpop.f32.mrf.mxu0
        %v1080 = vadd.f32 0.0, %v1079
        %v1081 = vpop.f32.mrf.mxu0
        %v1082 = vadd.f32 0.0, %v1081
        %v1083 = vpop.f32.mrf.mxu0
        %v1084 = vadd.f32 0.0, %v1083
        %1085 = vmatprep.mubr.bf16.mxu0 0
        %1086 = vmatmul.mubr.bf16.gmra.mxu0 %v896
        %v1087 = vpop.f32.mrf.mxu0
        %v1088 = vadd.f32 0.0, %v1087
        %v1089 = vpop.f32.mrf.mxu0
        %v1090 = vadd.f32 0.0, %v1089
        %v1091 = vpop.f32.mrf.mxu0
        %v1092 = vadd.f32 0.0, %v1091
        %v1093 = vpop.f32.mrf.mxu0
        %v1094 = vadd.f32 0.0, %v1093
        %1095 = vmatprep.mubr.bf16.mxu0 0
        %1096 = vmatmul.mubr.bf16.gmra.mxu0 %v899
        %v1097 = vpop.f32.mrf.mxu0
        %v1098 = vadd.f32 0.0, %v1097
        %v1099 = vpop.f32.mrf.mxu0
        %v1100 = vadd.f32 0.0, %v1099
        %v1101 = vpop.f32.mrf.mxu0
        %v1102 = vadd.f32 0.0, %v1101
        %v1103 = vpop.f32.mrf.mxu0
        %v1104 = vadd.f32 0.0, %v1103
        %1105 = vmatprep.mubr.bf16.mxu0 0
        %1106 = vmatmul.mubr.bf16.gmra.mxu0 %v902
        %v1107 = vpop.f32.mrf.mxu0
        %v1108 = vadd.f32 0.0, %v1107
        %v1109 = vpop.f32.mrf.mxu0
        %v1110 = vadd.f32 0.0, %v1109
        %v1111 = vpop.f32.mrf.mxu0
        %v1112 = vadd.f32 0.0, %v1111
        %v1113 = vpop.f32.mrf.mxu0
        %v1114 = vadd.f32 0.0, %v1113
        %1115 = vmatprep.mubr.bf16.mxu0 0
        %1116 = vmatmul.mubr.bf16.gmra.mxu0 %v905
        %v1117 = vpop.f32.mrf.mxu0
        %v1118 = vadd.f32 0.0, %v1117
        %v1119 = vpop.f32.mrf.mxu0
        %v1120 = vadd.f32 0.0, %v1119
        %v1121 = vpop.f32.mrf.mxu0
        %v1122 = vadd.f32 0.0, %v1121
        %v1123 = vpop.f32.mrf.mxu0
        %v1124 = vadd.f32 0.0, %v1123
        %1125 = vmatprep.mubr.bf16.mxu0 0
        %1126 = vmatmul.mubr.bf16.gmra.mxu0 %v908
        %v1127 = vpop.f32.mrf.mxu0
        %v1128 = vadd.f32 0.0, %v1127
        %v1129 = vpop.f32.mrf.mxu0
        %v1130 = vadd.f32 0.0, %v1129
        %v1131 = vpop.f32.mrf.mxu0
        %v1132 = vadd.f32 0.0, %v1131
        %v1133 = vpop.f32.mrf.mxu0
        %v1134 = vadd.f32 0.0, %v1133
        %1135 = vmatprep.mubr.bf16.mxu0 0
        %1136 = vmatmul.mubr.bf16.gmra.mxu0 %v911
        %v1137 = vpop.f32.mrf.mxu0
        %v1138 = vadd.f32 0.0, %v1137
        %v1139 = vpop.f32.mrf.mxu0
        %v1140 = vadd.f32 0.0, %v1139
        %v1141 = vpop.f32.mrf.mxu0
        %v1142 = vadd.f32 0.0, %v1141
        %v1143 = vpop.f32.mrf.mxu0
        %v1144 = vadd.f32 0.0, %v1143
        %1145 = vmatprep.mubr.bf16.mxu0 0
        %1146 = vmatmul.mubr.bf16.gmra.mxu0 %v914
        %v1147 = vpop.f32.mrf.mxu0
        %v1148 = vadd.f32 0.0, %v1147
        %v1149 = vpop.f32.mrf.mxu0
        %v1150 = vadd.f32 0.0, %v1149
        %v1151 = vpop.f32.mrf.mxu0
        %v1152 = vadd.f32 0.0, %v1151
        %v1153 = vpop.f32.mrf.mxu0
        %v1154 = vadd.f32 0.0, %v1153
        %1155 = vmatprep.mubr.bf16.mxu0 0
        %1156 = vmatmul.mubr.bf16.gmra.mxu0 %v917
        %v1157 = vpop.f32.mrf.mxu0
        %v1158 = vadd.f32 0.0, %v1157
        %v1159 = vpop.f32.mrf.mxu0
        %v1160 = vadd.f32 0.0, %v1159
        %v1161 = vpop.f32.mrf.mxu0
        %v1162 = vadd.f32 0.0, %v1161
        %v1163 = vpop.f32.mrf.mxu0
        %v1164 = vadd.f32 0.0, %v1163
        %1165 = vmatprep.mubr.bf16.mxu0 0
        %1166 = vmatmul.mubr.bf16.gmra.mxu0 %v920
        %v1167 = vpop.f32.mrf.mxu0
        %v1168 = vadd.f32 0.0, %v1167
        %v1169 = vpop.f32.mrf.mxu0
        %v1170 = vadd.f32 0.0, %v1169
        %v1171 = vpop.f32.mrf.mxu0
        %v1172 = vadd.f32 0.0, %v1171
        %v1173 = vpop.f32.mrf.mxu0
        %v1174 = vadd.f32 0.0, %v1173
        %1175 = vmatprep.mubr.bf16.mxu0 0
        %1176 = vmatmul.mubr.bf16.gmra.mxu0 %v923
        %v1177 = vpop.f32.mrf.mxu0
        %v1178 = vadd.f32 0.0, %v1177
        %v1179 = vpop.f32.mrf.mxu0
        %v1180 = vadd.f32 0.0, %v1179
        %v1181 = vpop.f32.mrf.mxu0
        %v1182 = vadd.f32 0.0, %v1181
        %v1183 = vpop.f32.mrf.mxu0
        %v1184 = vadd.f32 0.0, %v1183
        %1185 = vmatprep.mubr.bf16.mxu0 0
        %1186 = vmatmul.mubr.bf16.gmra.mxu0 %v926
        %v1187 = vpop.f32.mrf.mxu0
        %v1188 = vadd.f32 0.0, %v1187
        %v1189 = vpop.f32.mrf.mxu0
        %v1190 = vadd.f32 0.0, %v1189
        %v1191 = vpop.f32.mrf.mxu0
        %v1192 = vadd.f32 0.0, %v1191
        %v1193 = vpop.f32.mrf.mxu0
        %v1194 = vadd.f32 0.0, %v1193
        %1195 = vmatprep.mubr.bf16.mxu0 0
        %1196 = vmatmul.mubr.bf16.gmra.mxu0 %v929
        %v1197 = vpop.f32.mrf.mxu0
        %v1198 = vadd.f32 0.0, %v1197
        %v1199 = vpop.f32.mrf.mxu0
        %v1200 = vadd.f32 0.0, %v1199
        %v1201 = vpop.f32.mrf.mxu0
        %v1202 = vadd.f32 0.0, %v1201
        %v1203 = vpop.f32.mrf.mxu0
        %v1204 = vadd.f32 0.0, %v1203
        %1205 = vmatprep.mubr.bf16.mxu0 0
        %1206 = vmatmul.mubr.bf16.gmra.mxu0 %v932
        %v1207 = vpop.f32.mrf.mxu0
        %v1208 = vadd.f32 0.0, %v1207
        %v1209 = vpop.f32.mrf.mxu0
        %v1210 = vadd.f32 0.0, %v1209
        %v1211 = vpop.f32.mrf.mxu0
        %v1212 = vadd.f32 0.0, %v1211
        %v1213 = vpop.f32.mrf.mxu0
        %v1214 = vadd.f32 0.0, %v1213
        %1215 = vmatprep.mubr.bf16.mxu0 0
        %1216 = vmatmul.mubr.bf16.gmra.mxu0 %v935
        %v1217 = vpop.f32.mrf.mxu0
        %v1218 = vadd.f32 0.0, %v1217
        %v1219 = vpop.f32.mrf.mxu0
        %v1220 = vadd.f32 0.0, %v1219
        %v1221 = vpop.f32.mrf.mxu0
        %v1222 = vadd.f32 0.0, %v1221
        %v1223 = vpop.f32.mrf.mxu0
        %v1224 = vadd.f32 0.0, %v1223
        %1225 = vmatprep.mubr.bf16.mxu0 0
        %1226 = vmatmul.mubr.bf16.gmra.mxu0 %v938
        %v1227 = vpop.f32.mrf.mxu0
        %v1228 = vadd.f32 0.0, %v1227
        %v1229 = vpop.f32.mrf.mxu0
        %v1230 = vadd.f32 0.0, %v1229
        %v1231 = vpop.f32.mrf.mxu0
        %v1232 = vadd.f32 0.0, %v1231
        %v1233 = vpop.f32.mrf.mxu0
        %v1234 = vadd.f32 0.0, %v1233
        %1235 = vmatprep.mubr.bf16.mxu0 0
        %1236 = vmatmul.mubr.bf16.gmra.mxu0 %v941
        %v1237 = vpop.f32.mrf.mxu0
        %v1238 = vadd.f32 0.0, %v1237
        %v1239 = vpop.f32.mrf.mxu0
        %v1240 = vadd.f32 0.0, %v1239
        %v1241 = vpop.f32.mrf.mxu0
        %v1242 = vadd.f32 0.0, %v1241
        %v1243 = vpop.f32.mrf.mxu0
        %v1244 = vadd.f32 0.0, %v1243
        %1245 = vmatprep.mubr.bf16.mxu0 0
        %1246 = vmatmul.mubr.bf16.gmra.mxu0 %v944
        %v1247 = vpop.f32.mrf.mxu0
        %v1248 = vadd.f32 0.0, %v1247
        %v1249 = vpop.f32.mrf.mxu0
        %v1250 = vadd.f32 0.0, %v1249
        %v1251 = vpop.f32.mrf.mxu0
        %v1252 = vadd.f32 0.0, %v1251
        %v1253 = vpop.f32.mrf.mxu0
        %v1254 = vadd.f32 0.0, %v1253
        %1255 = vmatprep.mubr.bf16.mxu0 0
        %1256 = vmatmul.mubr.bf16.gmra.mxu0 %v947
        %v1257 = vpop.f32.mrf.mxu0
        %v1258 = vadd.f32 0.0, %v1257
        %v1259 = vpop.f32.mrf.mxu0
        %v1260 = vadd.f32 0.0, %v1259
        %v1261 = vpop.f32.mrf.mxu0
        %v1262 = vadd.f32 0.0, %v1261
        %v1263 = vpop.f32.mrf.mxu0
        %v1264 = vadd.f32 0.0, %v1263
        %1265 = vmatprep.mubr.bf16.mxu0 0
        %1266 = vmatmul.mubr.bf16.gmra.mxu0 %v950
        %v1267 = vpop.f32.mrf.mxu0
        %v1268 = vadd.f32 0.0, %v1267
        %v1269 = vpop.f32.mrf.mxu0
        %v1270 = vadd.f32 0.0, %v1269
        %v1271 = vpop.f32.mrf.mxu0
        %v1272 = vadd.f32 0.0, %v1271
        %v1273 = vpop.f32.mrf.mxu0
        %v1274 = vadd.f32 0.0, %v1273
        %1275 = vmatprep.mubr.bf16.mxu0 0
        %1276 = vmatmul.mubr.bf16.gmra.mxu0 %v953
        %v1277 = vpop.f32.mrf.mxu0
        %v1278 = vadd.f32 0.0, %v1277
        %v1279 = vpop.f32.mrf.mxu0
        %v1280 = vadd.f32 0.0, %v1279
        %v1281 = vpop.f32.mrf.mxu0
        %v1282 = vadd.f32 0.0, %v1281
        %v1283 = vpop.f32.mrf.mxu0
        %v1284 = vadd.f32 0.0, %v1283
        %1285 = vmatprep.mubr.bf16.mxu0 0
        %1286 = vmatmul.mubr.bf16.gmra.mxu0 %v956
        %v1287 = vpop.f32.mrf.mxu0
        %v1288 = vadd.f32 0.0, %v1287
        %v1289 = vpop.f32.mrf.mxu0
        %v1290 = vadd.f32 0.0, %v1289
        %v1291 = vpop.f32.mrf.mxu0
        %v1292 = vadd.f32 0.0, %v1291
        %v1293 = vpop.f32.mrf.mxu0
        %v1294 = vadd.f32 0.0, %v1293
        %1295 = vmatprep.mubr.bf16.mxu0 0
        %1296 = vmatmul.mubr.bf16.gmra.mxu0 %v959
        %v1297 = vpop.f32.mrf.mxu0
        %v1298 = vadd.f32 0.0, %v1297
        %v1299 = vpop.f32.mrf.mxu0
        %v1300 = vadd.f32 0.0, %v1299
        %v1301 = vpop.f32.mrf.mxu0
        %v1302 = vadd.f32 0.0, %v1301
        %v1303 = vpop.f32.mrf.mxu0
        %v1304 = vadd.f32 0.0, %v1303
        %1305 = vmatprep.mubr.bf16.mxu0 0
        %1306 = vmatmul.mubr.bf16.gmra.mxu0 %v962
        %v1307 = vpop.f32.mrf.mxu0
        %v1308 = vadd.f32 0.0, %v1307
        %v1309 = vpop.f32.mrf.mxu0
        %v1310 = vadd.f32 0.0, %v1309
        %v1311 = vpop.f32.mrf.mxu0
        %v1312 = vadd.f32 0.0, %v1311
        %v1313 = vpop.f32.mrf.mxu0
        %v1314 = vadd.f32 0.0, %v1313
        %1315 = vmatprep.mubr.bf16.mxu0 0
        %1316 = vmatmul.mubr.bf16.gmra.mxu0 %v965
        %v1317 = vpop.f32.mrf.mxu0
        %v1318 = vadd.f32 0.0, %v1317
        %v1319 = vpop.f32.mrf.mxu0
        %v1320 = vadd.f32 0.0, %v1319
        %v1321 = vpop.f32.mrf.mxu0
        %v1322 = vadd.f32 0.0, %v1321
        %v1323 = vpop.f32.mrf.mxu0
        %v1324 = vadd.f32 0.0, %v1323
        %1325 = vmatprep.mubr.bf16.mxu0 0
        %1326 = vmatmul.mubr.bf16.gmra.mxu0 %v968
        %v1327 = vpop.f32.mrf.mxu0
        %v1328 = vadd.f32 0.0, %v1327
        %v1329 = vpop.f32.mrf.mxu0
        %v1330 = vadd.f32 0.0, %v1329
        %v1331 = vpop.f32.mrf.mxu0
        %v1332 = vadd.f32 0.0, %v1331
        %v1333 = vpop.f32.mrf.mxu0
        %v1334 = vadd.f32 0.0, %v1333
        %1335 = vdwg.mxu0
        %1336 = vmatprep.subr.bf16.mxu0 0
        %1337 = vmatpush1.bf16.msra.mxu0 0
        %1338 = vmatprep.subr.bf16.mxu0 0
        %1339 = vmatpush1.bf16.msra.mxu0 0
        %1340 = vmatprep.subr.bf16.mxu0 0
        %1341 = vmatpush1.bf16.msra.mxu0 0
        %1342 = vmatprep.subr.bf16.mxu0 0
        %1343 = vmatpush1.bf16.msra.mxu0 0
        %1344 = vmatprep.subr.bf16.mxu0 0
        %1345 = vmatpush1.bf16.msra.mxu0 0
        %1346 = vmatprep.subr.bf16.mxu0 0
        %1347 = vmatpush1.bf16.msra.mxu0 0
        %1348 = vmatprep.subr.bf16.mxu0 0
        %1349 = vmatpush1.bf16.msra.mxu0 0
        %1350 = vmatprep.subr.bf16.mxu0 %v981
        %1351 = vmatpush1.bf16.msra.mxu0 %v978
        %1352 = vmatprep.subr.bf16.mxu0 0
        %1353 = vmatpush2.bf16.msra.mxu0 0
        %1354 = vmatprep.subr.bf16.mxu0 0
        %1355 = vmatpush2.bf16.msra.mxu0 0
        %1356 = vmatprep.subr.bf16.mxu0 0
        %1357 = vmatpush2.bf16.msra.mxu0 0
        %1358 = vmatprep.subr.bf16.mxu0 0
        %1359 = vmatpush2.bf16.msra.mxu0 0
        %1360 = vmatprep.subr.bf16.mxu0 0
        %1361 = vmatpush2.bf16.msra.mxu0 0
        %1362 = vmatprep.subr.bf16.mxu0 0
        %1363 = vmatpush2.bf16.msra.mxu0 0
        %1364 = vmatprep.subr.bf16.mxu0 0
        %1365 = vmatpush2.bf16.msra.mxu0 0
        %1366 = vmatprep.subr.bf16.mxu0 0
        %1367 = vmatpush2.bf16.msra.mxu0 0
        %1368 = vmatprep.mubr.bf16.mxu0 0
        %1369 = vmatmul.mubr.bf16.gmra.mxu0 %v875
        %v1370 = vpop.f32.mrf.mxu0
        %v1371 = vadd.f32 0.0, %v1370
        %v1372 = vpop.f32.mrf.mxu0
        %v1373 = vadd.f32 0.0, %v1372
        %v1374 = vpop.f32.mrf.mxu0
        %v1375 = vadd.f32 0.0, %v1374
        %v1376 = vpop.f32.mrf.mxu0
        %v1377 = vadd.f32 0.0, %v1376
        %1378 = vmatprep.mubr.bf16.mxu0 0
        %1379 = vmatmul.mubr.bf16.gmra.mxu0 %v878
        %v1380 = vpop.f32.mrf.mxu0
        %v1381 = vadd.f32 0.0, %v1380
        %v1382 = vpop.f32.mrf.mxu0
        %v1383 = vadd.f32 0.0, %v1382
        %v1384 = vpop.f32.mrf.mxu0
        %v1385 = vadd.f32 0.0, %v1384
        %v1386 = vpop.f32.mrf.mxu0
        %v1387 = vadd.f32 0.0, %v1386
        %1388 = vmatprep.mubr.bf16.mxu0 0
        %1389 = vmatmul.mubr.bf16.gmra.mxu0 %v881
        %v1390 = vpop.f32.mrf.mxu0
        %v1391 = vadd.f32 0.0, %v1390
        %v1392 = vpop.f32.mrf.mxu0
        %v1393 = vadd.f32 0.0, %v1392
        %v1394 = vpop.f32.mrf.mxu0
        %v1395 = vadd.f32 0.0, %v1394
        %v1396 = vpop.f32.mrf.mxu0
        %v1397 = vadd.f32 0.0, %v1396
        %1398 = vmatprep.mubr.bf16.mxu0 0
        %1399 = vmatmul.mubr.bf16.gmra.mxu0 %v884
        %v1400 = vpop.f32.mrf.mxu0
        %v1401 = vadd.f32 0.0, %v1400
        %v1402 = vpop.f32.mrf.mxu0
        %v1403 = vadd.f32 0.0, %v1402
        %v1404 = vpop.f32.mrf.mxu0
        %v1405 = vadd.f32 0.0, %v1404
        %v1406 = vpop.f32.mrf.mxu0
        %v1407 = vadd.f32 0.0, %v1406
        %1408 = vmatprep.mubr.bf16.mxu0 0
        %1409 = vmatmul.mubr.bf16.gmra.mxu0 %v887
        %v1410 = vpop.f32.mrf.mxu0
        %v1411 = vadd.f32 0.0, %v1410
        %v1412 = vpop.f32.mrf.mxu0
        %v1413 = vadd.f32 0.0, %v1412
        %v1414 = vpop.f32.mrf.mxu0
        %v1415 = vadd.f32 0.0, %v1414
        %v1416 = vpop.f32.mrf.mxu0
        %v1417 = vadd.f32 0.0, %v1416
        %1418 = vmatprep.mubr.bf16.mxu0 0
        %1419 = vmatmul.mubr.bf16.gmra.mxu0 %v890
        %v1420 = vpop.f32.mrf.mxu0
        %v1421 = vadd.f32 0.0, %v1420
        %v1422 = vpop.f32.mrf.mxu0
        %v1423 = vadd.f32 0.0, %v1422
        %v1424 = vpop.f32.mrf.mxu0
        %v1425 = vadd.f32 0.0, %v1424
        %v1426 = vpop.f32.mrf.mxu0
        %v1427 = vadd.f32 0.0, %v1426
        %1428 = vmatprep.mubr.bf16.mxu0 0
        %1429 = vmatmul.mubr.bf16.gmra.mxu0 %v893
        %v1430 = vpop.f32.mrf.mxu0
        %v1431 = vadd.f32 0.0, %v1430
        %v1432 = vpop.f32.mrf.mxu0
        %v1433 = vadd.f32 0.0, %v1432
        %v1434 = vpop.f32.mrf.mxu0
        %v1435 = vadd.f32 0.0, %v1434
        %v1436 = vpop.f32.mrf.mxu0
        %v1437 = vadd.f32 0.0, %v1436
        %1438 = vmatprep.mubr.bf16.mxu0 0
        %1439 = vmatmul.mubr.bf16.gmra.mxu0 %v896
        %v1440 = vpop.f32.mrf.mxu0
        %v1441 = vadd.f32 0.0, %v1440
        %v1442 = vpop.f32.mrf.mxu0
        %v1443 = vadd.f32 0.0, %v1442
        %v1444 = vpop.f32.mrf.mxu0
        %v1445 = vadd.f32 0.0, %v1444
        %v1446 = vpop.f32.mrf.mxu0
        %v1447 = vadd.f32 0.0, %v1446
        %1448 = vmatprep.mubr.bf16.mxu0 0
        %1449 = vmatmul.mubr.bf16.gmra.mxu0 %v899
        %v1450 = vpop.f32.mrf.mxu0
        %v1451 = vadd.f32 0.0, %v1450
        %v1452 = vpop.f32.mrf.mxu0
        %v1453 = vadd.f32 0.0, %v1452
        %v1454 = vpop.f32.mrf.mxu0
        %v1455 = vadd.f32 0.0, %v1454
        %v1456 = vpop.f32.mrf.mxu0
        %v1457 = vadd.f32 0.0, %v1456
        %1458 = vmatprep.mubr.bf16.mxu0 0
        %1459 = vmatmul.mubr.bf16.gmra.mxu0 %v902
        %v1460 = vpop.f32.mrf.mxu0
        %v1461 = vadd.f32 0.0, %v1460
        %v1462 = vpop.f32.mrf.mxu0
        %v1463 = vadd.f32 0.0, %v1462
        %v1464 = vpop.f32.mrf.mxu0
        %v1465 = vadd.f32 0.0, %v1464
        %v1466 = vpop.f32.mrf.mxu0
        %v1467 = vadd.f32 0.0, %v1466
        %1468 = vmatprep.mubr.bf16.mxu0 0
        %1469 = vmatmul.mubr.bf16.gmra.mxu0 %v905
        %v1470 = vpop.f32.mrf.mxu0
        %v1471 = vadd.f32 0.0, %v1470
        %v1472 = vpop.f32.mrf.mxu0
        %v1473 = vadd.f32 0.0, %v1472
        %v1474 = vpop.f32.mrf.mxu0
        %v1475 = vadd.f32 0.0, %v1474
        %v1476 = vpop.f32.mrf.mxu0
        %v1477 = vadd.f32 0.0, %v1476
        %1478 = vmatprep.mubr.bf16.mxu0 0
        %1479 = vmatmul.mubr.bf16.gmra.mxu0 %v908
        %v1480 = vpop.f32.mrf.mxu0
        %v1481 = vadd.f32 0.0, %v1480
        %v1482 = vpop.f32.mrf.mxu0
        %v1483 = vadd.f32 0.0, %v1482
        %v1484 = vpop.f32.mrf.mxu0
        %v1485 = vadd.f32 0.0, %v1484
        %v1486 = vpop.f32.mrf.mxu0
        %v1487 = vadd.f32 0.0, %v1486
        %1488 = vmatprep.mubr.bf16.mxu0 0
        %1489 = vmatmul.mubr.bf16.gmra.mxu0 %v911
        %v1490 = vpop.f32.mrf.mxu0
        %v1491 = vadd.f32 0.0, %v1490
        %v1492 = vpop.f32.mrf.mxu0
        %v1493 = vadd.f32 0.0, %v1492
        %v1494 = vpop.f32.mrf.mxu0
        %v1495 = vadd.f32 0.0, %v1494
        %v1496 = vpop.f32.mrf.mxu0
        %v1497 = vadd.f32 0.0, %v1496
        %1498 = vmatprep.mubr.bf16.mxu0 0
        %1499 = vmatmul.mubr.bf16.gmra.mxu0 %v914
        %v1500 = vpop.f32.mrf.mxu0
        %v1501 = vadd.f32 0.0, %v1500
        %v1502 = vpop.f32.mrf.mxu0
        %v1503 = vadd.f32 0.0, %v1502
        %v1504 = vpop.f32.mrf.mxu0
        %v1505 = vadd.f32 0.0, %v1504
        %v1506 = vpop.f32.mrf.mxu0
        %v1507 = vadd.f32 0.0, %v1506
        %1508 = vmatprep.mubr.bf16.mxu0 0
        %1509 = vmatmul.mubr.bf16.gmra.mxu0 %v917
        %v1510 = vpop.f32.mrf.mxu0
        %v1511 = vadd.f32 0.0, %v1510
        %v1512 = vpop.f32.mrf.mxu0
        %v1513 = vadd.f32 0.0, %v1512
        %v1514 = vpop.f32.mrf.mxu0
        %v1515 = vadd.f32 0.0, %v1514
        %v1516 = vpop.f32.mrf.mxu0
        %v1517 = vadd.f32 0.0, %v1516
        %1518 = vmatprep.mubr.bf16.mxu0 0
        %1519 = vmatmul.mubr.bf16.gmra.mxu0 %v920
        %v1520 = vpop.f32.mrf.mxu0
        %v1521 = vadd.f32 0.0, %v1520
        %v1522 = vpop.f32.mrf.mxu0
        %v1523 = vadd.f32 0.0, %v1522
        %v1524 = vpop.f32.mrf.mxu0
        %v1525 = vadd.f32 0.0, %v1524
        %v1526 = vpop.f32.mrf.mxu0
        %v1527 = vadd.f32 0.0, %v1526
        %1528 = vmatprep.mubr.bf16.mxu0 0
        %1529 = vmatmul.mubr.bf16.gmra.mxu0 %v923
        %v1530 = vpop.f32.mrf.mxu0
        %v1531 = vadd.f32 0.0, %v1530
        %v1532 = vpop.f32.mrf.mxu0
        %v1533 = vadd.f32 0.0, %v1532
        %v1534 = vpop.f32.mrf.mxu0
        %v1535 = vadd.f32 0.0, %v1534
        %v1536 = vpop.f32.mrf.mxu0
        %v1537 = vadd.f32 0.0, %v1536
        %1538 = vmatprep.mubr.bf16.mxu0 0
        %1539 = vmatmul.mubr.bf16.gmra.mxu0 %v926
        %v1540 = vpop.f32.mrf.mxu0
        %v1541 = vadd.f32 0.0, %v1540
        %v1542 = vpop.f32.mrf.mxu0
        %v1543 = vadd.f32 0.0, %v1542
        %v1544 = vpop.f32.mrf.mxu0
        %v1545 = vadd.f32 0.0, %v1544
        %v1546 = vpop.f32.mrf.mxu0
        %v1547 = vadd.f32 0.0, %v1546
        %1548 = vmatprep.mubr.bf16.mxu0 0
        %1549 = vmatmul.mubr.bf16.gmra.mxu0 %v929
        %v1550 = vpop.f32.mrf.mxu0
        %v1551 = vadd.f32 0.0, %v1550
        %v1552 = vpop.f32.mrf.mxu0
        %v1553 = vadd.f32 0.0, %v1552
        %v1554 = vpop.f32.mrf.mxu0
        %v1555 = vadd.f32 0.0, %v1554
        %v1556 = vpop.f32.mrf.mxu0
        %v1557 = vadd.f32 0.0, %v1556
        %1558 = vmatprep.mubr.bf16.mxu0 0
        %1559 = vmatmul.mubr.bf16.gmra.mxu0 %v932
        %v1560 = vpop.f32.mrf.mxu0
        %v1561 = vadd.f32 0.0, %v1560
        %v1562 = vpop.f32.mrf.mxu0
        %v1563 = vadd.f32 0.0, %v1562
        %v1564 = vpop.f32.mrf.mxu0
        %v1565 = vadd.f32 0.0, %v1564
        %v1566 = vpop.f32.mrf.mxu0
        %v1567 = vadd.f32 0.0, %v1566
        %1568 = vmatprep.mubr.bf16.mxu0 0
        %1569 = vmatmul.mubr.bf16.gmra.mxu0 %v935
        %v1570 = vpop.f32.mrf.mxu0
        %v1571 = vadd.f32 0.0, %v1570
        %v1572 = vpop.f32.mrf.mxu0
        %v1573 = vadd.f32 0.0, %v1572
        %v1574 = vpop.f32.mrf.mxu0
        %v1575 = vadd.f32 0.0, %v1574
        %v1576 = vpop.f32.mrf.mxu0
        %v1577 = vadd.f32 0.0, %v1576
        %1578 = vmatprep.mubr.bf16.mxu0 0
        %1579 = vmatmul.mubr.bf16.gmra.mxu0 %v938
        %v1580 = vpop.f32.mrf.mxu0
        %v1581 = vadd.f32 0.0, %v1580
        %v1582 = vpop.f32.mrf.mxu0
        %v1583 = vadd.f32 0.0, %v1582
        %v1584 = vpop.f32.mrf.mxu0
        %v1585 = vadd.f32 0.0, %v1584
        %v1586 = vpop.f32.mrf.mxu0
        %v1587 = vadd.f32 0.0, %v1586
        %1588 = vmatprep.mubr.bf16.mxu0 0
        %1589 = vmatmul.mubr.bf16.gmra.mxu0 %v941
        %v1590 = vpop.f32.mrf.mxu0
        %v1591 = vadd.f32 0.0, %v1590
        %v1592 = vpop.f32.mrf.mxu0
        %v1593 = vadd.f32 0.0, %v1592
        %v1594 = vpop.f32.mrf.mxu0
        %v1595 = vadd.f32 0.0, %v1594
        %v1596 = vpop.f32.mrf.mxu0
        %v1597 = vadd.f32 0.0, %v1596
        %1598 = vmatprep.mubr.bf16.mxu0 0
        %1599 = vmatmul.mubr.bf16.gmra.mxu0 %v944
        %v1600 = vpop.f32.mrf.mxu0
        %v1601 = vadd.f32 0.0, %v1600
        %v1602 = vpop.f32.mrf.mxu0
        %v1603 = vadd.f32 0.0, %v1602
        %v1604 = vpop.f32.mrf.mxu0
        %v1605 = vadd.f32 0.0, %v1604
        %v1606 = vpop.f32.mrf.mxu0
        %v1607 = vadd.f32 0.0, %v1606
        %1608 = vmatprep.mubr.bf16.mxu0 0
        %1609 = vmatmul.mubr.bf16.gmra.mxu0 %v947
        %v1610 = vpop.f32.mrf.mxu0
        %v1611 = vadd.f32 0.0, %v1610
        %v1612 = vpop.f32.mrf.mxu0
        %v1613 = vadd.f32 0.0, %v1612
        %v1614 = vpop.f32.mrf.mxu0
        %v1615 = vadd.f32 0.0, %v1614
        %v1616 = vpop.f32.mrf.mxu0
        %v1617 = vadd.f32 0.0, %v1616
        %1618 = vmatprep.mubr.bf16.mxu0 0
        %1619 = vmatmul.mubr.bf16.gmra.mxu0 %v950
        %v1620 = vpop.f32.mrf.mxu0
        %v1621 = vadd.f32 0.0, %v1620
        %v1622 = vpop.f32.mrf.mxu0
        %v1623 = vadd.f32 0.0, %v1622
        %v1624 = vpop.f32.mrf.mxu0
        %v1625 = vadd.f32 0.0, %v1624
        %v1626 = vpop.f32.mrf.mxu0
        %v1627 = vadd.f32 0.0, %v1626
        %1628 = vmatprep.mubr.bf16.mxu0 0
        %1629 = vmatmul.mubr.bf16.gmra.mxu0 %v953
        %v1630 = vpop.f32.mrf.mxu0
        %v1631 = vadd.f32 0.0, %v1630
        %v1632 = vpop.f32.mrf.mxu0
        %v1633 = vadd.f32 0.0, %v1632
        %v1634 = vpop.f32.mrf.mxu0
        %v1635 = vadd.f32 0.0, %v1634
        %v1636 = vpop.f32.mrf.mxu0
        %v1637 = vadd.f32 0.0, %v1636
        %1638 = vmatprep.mubr.bf16.mxu0 0
        %1639 = vmatmul.mubr.bf16.gmra.mxu0 %v956
        %v1640 = vpop.f32.mrf.mxu0
        %v1641 = vadd.f32 0.0, %v1640
        %v1642 = vpop.f32.mrf.mxu0
        %v1643 = vadd.f32 0.0, %v1642
        %v1644 = vpop.f32.mrf.mxu0
        %v1645 = vadd.f32 0.0, %v1644
        %v1646 = vpop.f32.mrf.mxu0
        %v1647 = vadd.f32 0.0, %v1646
        %1648 = vmatprep.mubr.bf16.mxu0 0
        %1649 = vmatmul.mubr.bf16.gmra.mxu0 %v959
        %v1650 = vpop.f32.mrf.mxu0
        %v1651 = vadd.f32 0.0, %v1650
        %v1652 = vpop.f32.mrf.mxu0
        %v1653 = vadd.f32 0.0, %v1652
        %v1654 = vpop.f32.mrf.mxu0
        %v1655 = vadd.f32 0.0, %v1654
        %v1656 = vpop.f32.mrf.mxu0
        %v1657 = vadd.f32 0.0, %v1656
        %1658 = vmatprep.mubr.bf16.mxu0 0
        %1659 = vmatmul.mubr.bf16.gmra.mxu0 %v962
        %v1660 = vpop.f32.mrf.mxu0
        %v1661 = vadd.f32 0.0, %v1660
        %v1662 = vpop.f32.mrf.mxu0
        %v1663 = vadd.f32 0.0, %v1662
        %v1664 = vpop.f32.mrf.mxu0
        %v1665 = vadd.f32 0.0, %v1664
        %v1666 = vpop.f32.mrf.mxu0
        %v1667 = vadd.f32 0.0, %v1666
        %1668 = vmatprep.mubr.bf16.mxu0 0
        %1669 = vmatmul.mubr.bf16.gmra.mxu0 %v965
        %v1670 = vpop.f32.mrf.mxu0
        %v1671 = vadd.f32 0.0, %v1670
        %v1672 = vpop.f32.mrf.mxu0
        %v1673 = vadd.f32 0.0, %v1672
        %v1674 = vpop.f32.mrf.mxu0
        %v1675 = vadd.f32 0.0, %v1674
        %v1676 = vpop.f32.mrf.mxu0
        %v1677 = vadd.f32 0.0, %v1676
        %1678 = vmatprep.mubr.bf16.mxu0 0
        %1679 = vmatmul.mubr.bf16.gmra.mxu0 %v968
        %v1680 = vpop.f32.mrf.mxu0
        %v1681 = vadd.f32 0.0, %v1680
        %v1682 = vpop.f32.mrf.mxu0
        %v1683 = vadd.f32 0.0, %v1682
        %v1684 = vpop.f32.mrf.mxu0
        %v1685 = vadd.f32 0.0, %v1684
        %v1686 = vpop.f32.mrf.mxu0
        %v1687 = vadd.f32 0.0, %v1686
        %1688 = vdwg.mxu0
        %v1689 = vpack.c.bf16 %v1375, %v1371
        %v1690 = vpack.c.bf16 %v1377, %v1373
        %v1691 = vpack.c.bf16 %v1385, %v1381
        %v1692 = vpack.c.bf16 %v1387, %v1383
        %v1693 = vpack.c.bf16 %v1395, %v1391
        %v1694 = vpack.c.bf16 %v1397, %v1393
        %v1695 = vpack.c.bf16 %v1405, %v1401
        %v1696 = vpack.c.bf16 %v1407, %v1403
        %v1697 = vpack.c.bf16 %v1415, %v1411
        %v1698 = vpack.c.bf16 %v1417, %v1413
        %v1699 = vpack.c.bf16 %v1425, %v1421
        %v1700 = vpack.c.bf16 %v1427, %v1423
        %v1701 = vpack.c.bf16 %v1435, %v1431
        %v1702 = vpack.c.bf16 %v1437, %v1433
        %v1703 = vpack.c.bf16 %v1445, %v1441
        %v1704 = vpack.c.bf16 %v1447, %v1443
        %v1705 = vpack.c.bf16 %v1455, %v1451
        %v1706 = vpack.c.bf16 %v1457, %v1453
        %v1707 = vpack.c.bf16 %v1465, %v1461
        %v1708 = vpack.c.bf16 %v1467, %v1463
        %v1709 = vpack.c.bf16 %v1475, %v1471
        %v1710 = vpack.c.bf16 %v1477, %v1473
        %v1711 = vpack.c.bf16 %v1485, %v1481
        %v1712 = vpack.c.bf16 %v1487, %v1483
        %v1713 = vpack.c.bf16 %v1495, %v1491
        %v1714 = vpack.c.bf16 %v1497, %v1493
        %v1715 = vpack.c.bf16 %v1505, %v1501
        %v1716 = vpack.c.bf16 %v1507, %v1503
        %v1717 = vpack.c.bf16 %v1515, %v1511
        %v1718 = vpack.c.bf16 %v1517, %v1513
        %v1719 = vpack.c.bf16 %v1525, %v1521
        %v1720 = vpack.c.bf16 %v1527, %v1523
        %v1721 = vpack.c.bf16 %v1535, %v1531
        %v1722 = vpack.c.bf16 %v1537, %v1533
        %v1723 = vpack.c.bf16 %v1545, %v1541
        %v1724 = vpack.c.bf16 %v1547, %v1543
        %v1725 = vpack.c.bf16 %v1555, %v1551
        %v1726 = vpack.c.bf16 %v1557, %v1553
        %v1727 = vpack.c.bf16 %v1565, %v1561
        %v1728 = vpack.c.bf16 %v1567, %v1563
        %v1729 = vpack.c.bf16 %v1575, %v1571
        %v1730 = vpack.c.bf16 %v1577, %v1573
        %v1731 = vpack.c.bf16 %v1585, %v1581
        %v1732 = vpack.c.bf16 %v1587, %v1583
        %v1733 = vpack.c.bf16 %v1595, %v1591
        %v1734 = vpack.c.bf16 %v1597, %v1593
        %v1735 = vpack.c.bf16 %v1605, %v1601
        %v1736 = vpack.c.bf16 %v1607, %v1603
        %v1737 = vpack.c.bf16 %v1615, %v1611
        %v1738 = vpack.c.bf16 %v1617, %v1613
        %v1739 = vpack.c.bf16 %v1625, %v1621
        %v1740 = vpack.c.bf16 %v1627, %v1623
        %v1741 = vpack.c.bf16 %v1635, %v1631
        %v1742 = vpack.c.bf16 %v1637, %v1633
        %v1743 = vpack.c.bf16 %v1645, %v1641
        %v1744 = vpack.c.bf16 %v1647, %v1643
        %v1745 = vpack.c.bf16 %v1655, %v1651
        %v1746 = vpack.c.bf16 %v1657, %v1653
        %v1747 = vpack.c.bf16 %v1665, %v1661
        %v1748 = vpack.c.bf16 %v1667, %v1663
        %v1749 = vpack.c.bf16 %v1675, %v1671
        %v1750 = vpack.c.bf16 %v1677, %v1673
        %v1751 = vpack.c.bf16 %v1685, %v1681
        %v1752 = vpack.c.bf16 %v1687, %v1683
        %v1753 = vpack.c.bf16 %v1022, %v1018
        %v1754 = vpack.c.bf16 %v1024, %v1020
        %v1755 = vpack.c.bf16 %v1032, %v1028
        %v1756 = vpack.c.bf16 %v1034, %v1030
        %v1757 = vpack.c.bf16 %v1042, %v1038
        %v1758 = vpack.c.bf16 %v1044, %v1040
        %v1759 = vpack.c.bf16 %v1052, %v1048
        %v1760 = vpack.c.bf16 %v1054, %v1050
        %v1761 = vpack.c.bf16 %v1062, %v1058
        %v1762 = vpack.c.bf16 %v1064, %v1060
        %v1763 = vpack.c.bf16 %v1072, %v1068
        %v1764 = vpack.c.bf16 %v1074, %v1070
        %v1765 = vpack.c.bf16 %v1082, %v1078
        %v1766 = vpack.c.bf16 %v1084, %v1080
        %v1767 = vpack.c.bf16 %v1092, %v1088
        %v1768 = vpack.c.bf16 %v1094, %v1090
        %v1769 = vpack.c.bf16 %v1102, %v1098
        %v1770 = vpack.c.bf16 %v1104, %v1100
        %v1771 = vpack.c.bf16 %v1112, %v1108
        %v1772 = vpack.c.bf16 %v1114, %v1110
        %v1773 = vpack.c.bf16 %v1122, %v1118
        %v1774 = vpack.c.bf16 %v1124, %v1120
        %v1775 = vpack.c.bf16 %v1132, %v1128
        %v1776 = vpack.c.bf16 %v1134, %v1130
        %v1777 = vpack.c.bf16 %v1142, %v1138
        %v1778 = vpack.c.bf16 %v1144, %v1140
        %v1779 = vpack.c.bf16 %v1152, %v1148
        %v1780 = vpack.c.bf16 %v1154, %v1150
        %v1781 = vpack.c.bf16 %v1162, %v1158
        %v1782 = vpack.c.bf16 %v1164, %v1160
        %v1783 = vpack.c.bf16 %v1172, %v1168
        %v1784 = vpack.c.bf16 %v1174, %v1170
        %v1785 = vpack.c.bf16 %v1182, %v1178
        %v1786 = vpack.c.bf16 %v1184, %v1180
        %v1787 = vpack.c.bf16 %v1192, %v1188
        %v1788 = vpack.c.bf16 %v1194, %v1190
        %v1789 = vpack.c.bf16 %v1202, %v1198
        %v1790 = vpack.c.bf16 %v1204, %v1200
        %v1791 = vpack.c.bf16 %v1212, %v1208
        %v1792 = vpack.c.bf16 %v1214, %v1210
        %v1793 = vpack.c.bf16 %v1222, %v1218
        %v1794 = vpack.c.bf16 %v1224, %v1220
        %v1795 = vpack.c.bf16 %v1232, %v1228
        %v1796 = vpack.c.bf16 %v1234, %v1230
        %v1797 = vpack.c.bf16 %v1242, %v1238
        %v1798 = vpack.c.bf16 %v1244, %v1240
        %v1799 = vpack.c.bf16 %v1252, %v1248
        %v1800 = vpack.c.bf16 %v1254, %v1250
        %v1801 = vpack.c.bf16 %v1262, %v1258
        %v1802 = vpack.c.bf16 %v1264, %v1260
        %v1803 = vpack.c.bf16 %v1272, %v1268
        %v1804 = vpack.c.bf16 %v1274, %v1270
        %v1805 = vpack.c.bf16 %v1282, %v1278
        %v1806 = vpack.c.bf16 %v1284, %v1280
        %v1807 = vpack.c.bf16 %v1292, %v1288
        %v1808 = vpack.c.bf16 %v1294, %v1290
        %v1809 = vpack.c.bf16 %v1302, %v1298
        %v1810 = vpack.c.bf16 %v1304, %v1300
        %v1811 = vpack.c.bf16 %v1312, %v1308
        %v1812 = vpack.c.bf16 %v1314, %v1310
        %v1813 = vpack.c.bf16 %v1322, %v1318
        %v1814 = vpack.c.bf16 %v1324, %v1320
        %v1815 = vpack.c.bf16 %v1332, %v1328
        %v1816 = vpack.c.bf16 %v1334, %v1330
        %v1817 = vld [vmem:[%s10] sm:$0x3]
        %v1820 = vunpack.c.l.s4 1966171168
        %v1821 = vunpack.c.0.s8 %v1820
        %v1822 = vlaneseq
        %v1823 = vshrl.u32 %v1822, 7
        %v1824 = vsub.s32 %v1821, %v1823
        %v1825 = vrot.slane %v1817, %v1824
        %v1826 = vcombine.high %v1825, %v1825
        %v1828 = vunpack.c.l.s4 1966171168
        %v1829 = vunpack.c.0.s8 %v1828
        %v1830 = vlaneseq
        %v1831 = vshrl.u32 %v1830, 7
        %v1832 = vsub.s32 %v1829, %v1831
        %v1833 = vrot.slane %v1825, %v1832
        %v1835 = vunpack.c.l.s4 1966171168
        %v1836 = vunpack.c.0.s8 %v1835
        %v1837 = vlaneseq
        %v1838 = vshrl.u32 %v1837, 7
        %v1839 = vsub.s32 %v1836, %v1838
        %v1840 = vrot.slane %v1826, %v1839
        %v1842 = vpack.i.b16 %v1833, %v1833
        %v1844 = vlaneseq
        %v1845 = vshrl.u32 %v1844, 7
        %v1846 = vsub.s32 0, %v1845
        %v1847 = vrot.slane %v1842, %v1846
        %v1849 = vpack.i.b16 %v1840, %v1840
        %v1851 = vlaneseq
        %v1852 = vshrl.u32 %v1851, 7
        %v1853 = vsub.s32 0, %v1852
        %v1854 = vrot.slane %v1849, %v1853
        %v1855 = vadd.bf16 %v1753, %v1847
        %v1856 = vadd.bf16 %v1754, %v1854
        %v1857 = vadd.bf16 %v1755, %v1847
        %v1858 = vadd.bf16 %v1756, %v1854
        %v1859 = vadd.bf16 %v1757, %v1847
        %v1860 = vadd.bf16 %v1758, %v1854
        %v1861 = vadd.bf16 %v1759, %v1847
        %v1862 = vadd.bf16 %v1760, %v1854
        %v1863 = vadd.bf16 %v1761, %v1847
        %v1864 = vadd.bf16 %v1762, %v1854
        %v1865 = vadd.bf16 %v1763, %v1847
        %v1866 = vadd.bf16 %v1764, %v1854
        %v1867 = vadd.bf16 %v1765, %v1847
        %v1868 = vadd.bf16 %v1766, %v1854
        %v1869 = vadd.bf16 %v1767, %v1847
        %v1870 = vadd.bf16 %v1768, %v1854
        %v1871 = vadd.bf16 %v1769, %v1847
        %v1872 = vadd.bf16 %v1770, %v1854
        %v1873 = vadd.bf16 %v1771, %v1847
        %v1874 = vadd.bf16 %v1772, %v1854
        %v1875 = vadd.bf16 %v1773, %v1847
        %v1876 = vadd.bf16 %v1774, %v1854
        %v1877 = vadd.bf16 %v1775, %v1847
        %v1878 = vadd.bf16 %v1776, %v1854
        %v1879 = vadd.bf16 %v1777, %v1847
        %v1880 = vadd.bf16 %v1778, %v1854
        %v1881 = vadd.bf16 %v1779, %v1847
        %v1882 = vadd.bf16 %v1780, %v1854
        %v1883 = vadd.bf16 %v1781, %v1847
        %v1884 = vadd.bf16 %v1782, %v1854
        %v1885 = vadd.bf16 %v1783, %v1847
        %v1886 = vadd.bf16 %v1784, %v1854
        %v1887 = vadd.bf16 %v1785, %v1847
        %v1888 = vadd.bf16 %v1786, %v1854
        %v1889 = vadd.bf16 %v1787, %v1847
        %v1890 = vadd.bf16 %v1788, %v1854
        %v1891 = vadd.bf16 %v1789, %v1847
        %v1892 = vadd.bf16 %v1790, %v1854
        %v1893 = vadd.bf16 %v1791, %v1847
        %v1894 = vadd.bf16 %v1792, %v1854
        %v1895 = vadd.bf16 %v1793, %v1847
        %v1896 = vadd.bf16 %v1794, %v1854
        %v1897 = vadd.bf16 %v1795, %v1847
        %v1898 = vadd.bf16 %v1796, %v1854
        %v1899 = vadd.bf16 %v1797, %v1847
        %v1900 = vadd.bf16 %v1798, %v1854
        %v1901 = vadd.bf16 %v1799, %v1847
        %v1902 = vadd.bf16 %v1800, %v1854
        %v1903 = vadd.bf16 %v1801, %v1847
        %v1904 = vadd.bf16 %v1802, %v1854
        %v1905 = vadd.bf16 %v1803, %v1847
        %v1906 = vadd.bf16 %v1804, %v1854
        %v1907 = vadd.bf16 %v1805, %v1847
        %v1908 = vadd.bf16 %v1806, %v1854
        %v1909 = vadd.bf16 %v1807, %v1847
        %v1910 = vadd.bf16 %v1808, %v1854
        %v1911 = vadd.bf16 %v1809, %v1847
        %v1912 = vadd.bf16 %v1810, %v1854
        %v1913 = vadd.bf16 %v1811, %v1847
        %v1914 = vadd.bf16 %v1812, %v1854
        %v1915 = vadd.bf16 %v1813, %v1847
        %v1916 = vadd.bf16 %v1814, %v1854
        %v1917 = vadd.bf16 %v1815, %v1847
        %v1918 = vadd.bf16 %v1816, %v1854
        %v1919 = vmax.bf16 %v1855, 0
        %v1920 = vmax.bf16 %v1856, 0
        %v1921 = vmax.bf16 %v1857, 0
        %v1922 = vmax.bf16 %v1858, 0
        %v1923 = vmax.bf16 %v1859, 0
        %v1924 = vmax.bf16 %v1860, 0
        %v1925 = vmax.bf16 %v1861, 0
        %v1926 = vmax.bf16 %v1862, 0
        %v1927 = vmax.bf16 %v1863, 0
        %v1928 = vmax.bf16 %v1864, 0
        %v1929 = vmax.bf16 %v1865, 0
        %v1930 = vmax.bf16 %v1866, 0
        %v1931 = vmax.bf16 %v1867, 0
        %v1932 = vmax.bf16 %v1868, 0
        %v1933 = vmax.bf16 %v1869, 0
        %v1934 = vmax.bf16 %v1870, 0
        %v1935 = vmax.bf16 %v1871, 0
        %v1936 = vmax.bf16 %v1872, 0
        %v1937 = vmax.bf16 %v1873, 0
        %v1938 = vmax.bf16 %v1874, 0
        %v1939 = vmax.bf16 %v1875, 0
        %v1940 = vmax.bf16 %v1876, 0
        %v1941 = vmax.bf16 %v1877, 0
        %v1942 = vmax.bf16 %v1878, 0
        %v1943 = vmax.bf16 %v1879, 0
        %v1944 = vmax.bf16 %v1880, 0
        %v1945 = vmax.bf16 %v1881, 0
        %v1946 = vmax.bf16 %v1882, 0
        %v1947 = vmax.bf16 %v1883, 0
        %v1948 = vmax.bf16 %v1884, 0
        %v1949 = vmax.bf16 %v1885, 0
        %v1950 = vmax.bf16 %v1886, 0
        %v1951 = vmax.bf16 %v1887, 0
        %v1952 = vmax.bf16 %v1888, 0
        %v1953 = vmax.bf16 %v1889, 0
        %v1954 = vmax.bf16 %v1890, 0
        %v1955 = vmax.bf16 %v1891, 0
        %v1956 = vmax.bf16 %v1892, 0
        %v1957 = vmax.bf16 %v1893, 0
        %v1958 = vmax.bf16 %v1894, 0
        %v1959 = vmax.bf16 %v1895, 0
        %v1960 = vmax.bf16 %v1896, 0
        %v1961 = vmax.bf16 %v1897, 0
        %v1962 = vmax.bf16 %v1898, 0
        %v1963 = vmax.bf16 %v1899, 0
        %v1964 = vmax.bf16 %v1900, 0
        %v1965 = vmax.bf16 %v1901, 0
        %v1966 = vmax.bf16 %v1902, 0
        %v1967 = vmax.bf16 %v1903, 0
        %v1968 = vmax.bf16 %v1904, 0
        %v1969 = vmax.bf16 %v1905, 0
        %v1970 = vmax.bf16 %v1906, 0
        %v1971 = vmax.bf16 %v1907, 0
        %v1972 = vmax.bf16 %v1908, 0
        %v1973 = vmax.bf16 %v1909, 0
        %v1974 = vmax.bf16 %v1910, 0
        %v1975 = vmax.bf16 %v1911, 0
        %v1976 = vmax.bf16 %v1912, 0
        %v1977 = vmax.bf16 %v1913, 0
        %v1978 = vmax.bf16 %v1914, 0
        %v1979 = vmax.bf16 %v1915, 0
        %v1980 = vmax.bf16 %v1916, 0
        %v1981 = vmax.bf16 %v1917, 0
        %v1982 = vmax.bf16 %v1918, 0
        %v1983 = vld [vmem:[%s2] sm:$0xff]
        %v1984 = vld [vmem:[%s2 + $0x8] sm:$0xff]
        %v1985 = vld [vmem:[%s2 + $0x10] sm:$0xff]
        %v1986 = vld [vmem:[%s2 + $0x18] sm:$0xff]
        %v1987 = vld [vmem:[%s2 + $0x20] sm:$0xff]
        %v1988 = vld [vmem:[%s2 + $0x28] sm:$0xff]
        %v1989 = vld [vmem:[%s2 + $0x30] sm:$0xff]
        %v1990 = vld [vmem:[%s2 + $0x38] sm:$0xff]
        %v1991 = vld [vmem:[%s2 + $0x40] sm:$0xff]
        %v1992 = vld [vmem:[%s2 + $0x48] sm:$0xff]
        %v1993 = vld [vmem:[%s2 + $0x50] sm:$0xff]
        %v1994 = vld [vmem:[%s2 + $0x58] sm:$0xff]
        %v1995 = vld [vmem:[%s2 + $0x60] sm:$0xff]
        %v1996 = vld [vmem:[%s2 + $0x68] sm:$0xff]
        %v1997 = vld [vmem:[%s2 + $0x70] sm:$0xff]
        %v1998 = vld [vmem:[%s2 + $0x78] sm:$0xff]
        %v1999 = vld [vmem:[%s2 + $0x80] sm:$0xff]
        %v2000 = vld [vmem:[%s2 + $0x88] sm:$0xff]
        %v2001 = vld [vmem:[%s2 + $0x90] sm:$0xff]
        %v2002 = vld [vmem:[%s2 + $0x98] sm:$0xff]
        %v2003 = vld [vmem:[%s2 + $0xa0] sm:$0xff]
        %v2004 = vld [vmem:[%s2 + $0xa8] sm:$0xff]
        %v2005 = vld [vmem:[%s2 + $0xb0] sm:$0xff]
        %v2006 = vld [vmem:[%s2 + $0xb8] sm:$0xff]
        %v2007 = vld [vmem:[%s2 + $0xc0] sm:$0xff]
        %v2008 = vld [vmem:[%s2 + $0xc8] sm:$0xff]
        %v2009 = vld [vmem:[%s2 + $0xd0] sm:$0xff]
        %v2010 = vld [vmem:[%s2 + $0xd8] sm:$0xff]
        %v2011 = vld [vmem:[%s2 + $0xe0] sm:$0xff]
        %v2012 = vld [vmem:[%s2 + $0xe8] sm:$0xff]
        %v2013 = vld [vmem:[%s2 + $0xf0] sm:$0xff]
        %v2014 = vld [vmem:[%s2 + $0xf8] sm:$0xff]
        %v2047 = vunpack.c.l.b16 %v1983
        %v2048 = vunpack.c.h.b16 %v1983
        %v2049 = vunpack.c.l.b16 %v1984
        %v2050 = vunpack.c.h.b16 %v1984
        %v2051 = vunpack.c.l.b16 %v1985
        %v2052 = vunpack.c.h.b16 %v1985
        %v2053 = vunpack.c.l.b16 %v1986
        %v2054 = vunpack.c.h.b16 %v1986
        %v2055 = vunpack.c.l.b16 %v1987
        %v2056 = vunpack.c.h.b16 %v1987
        %v2057 = vunpack.c.l.b16 %v1988
        %v2058 = vunpack.c.h.b16 %v1988
        %v2059 = vunpack.c.l.b16 %v1989
        %v2060 = vunpack.c.h.b16 %v1989
        %v2061 = vunpack.c.l.b16 %v1990
        %v2062 = vunpack.c.h.b16 %v1990
        %v2063 = vunpack.c.l.b16 %v1991
        %v2064 = vunpack.c.h.b16 %v1991
        %v2065 = vunpack.c.l.b16 %v1992
        %v2066 = vunpack.c.h.b16 %v1992
        %v2067 = vunpack.c.l.b16 %v1993
        %v2068 = vunpack.c.h.b16 %v1993
        %v2069 = vunpack.c.l.b16 %v1994
        %v2070 = vunpack.c.h.b16 %v1994
        %v2071 = vunpack.c.l.b16 %v1995
        %v2072 = vunpack.c.h.b16 %v1995
        %v2073 = vunpack.c.l.b16 %v1996
        %v2074 = vunpack.c.h.b16 %v1996
        %v2075 = vunpack.c.l.b16 %v1997
        %v2076 = vunpack.c.h.b16 %v1997
        %v2077 = vunpack.c.l.b16 %v1998
        %v2078 = vunpack.c.h.b16 %v1998
        %v2079 = vunpack.c.l.b16 %v1999
        %v2080 = vunpack.c.h.b16 %v1999
        %v2081 = vunpack.c.l.b16 %v2000
        %v2082 = vunpack.c.h.b16 %v2000
        %v2083 = vunpack.c.l.b16 %v2001
        %v2084 = vunpack.c.h.b16 %v2001
        %v2085 = vunpack.c.l.b16 %v2002
        %v2086 = vunpack.c.h.b16 %v2002
        %v2087 = vunpack.c.l.b16 %v2003
        %v2088 = vunpack.c.h.b16 %v2003
        %v2089 = vunpack.c.l.b16 %v2004
        %v2090 = vunpack.c.h.b16 %v2004
        %v2091 = vunpack.c.l.b16 %v2005
        %v2092 = vunpack.c.h.b16 %v2005
        %v2093 = vunpack.c.l.b16 %v2006
        %v2094 = vunpack.c.h.b16 %v2006
        %v2095 = vunpack.c.l.b16 %v2007
        %v2096 = vunpack.c.h.b16 %v2007
        %v2097 = vunpack.c.l.b16 %v2008
        %v2098 = vunpack.c.h.b16 %v2008
        %v2099 = vunpack.c.l.b16 %v2009
        %v2100 = vunpack.c.h.b16 %v2009
        %v2101 = vunpack.c.l.b16 %v2010
        %v2102 = vunpack.c.h.b16 %v2010
        %v2103 = vunpack.c.l.b16 %v2011
        %v2104 = vunpack.c.h.b16 %v2011
        %v2105 = vunpack.c.l.b16 %v2012
        %v2106 = vunpack.c.h.b16 %v2012
        %v2107 = vunpack.c.l.b16 %v2013
        %v2108 = vunpack.c.h.b16 %v2013
        %v2109 = vunpack.c.l.b16 %v2014
        %v2110 = vunpack.c.h.b16 %v2014
        %v2111 = vpack.c.b16 %v2049, %v2047
        %v2112 = vpack.c.b16 %v2050, %v2048
        %v2113 = vpack.c.b16 %v2053, %v2051
        %v2114 = vpack.c.b16 %v2054, %v2052
        %v2115 = vpack.c.b16 %v2057, %v2055
        %v2116 = vpack.c.b16 %v2058, %v2056
        %v2117 = vpack.c.b16 %v2061, %v2059
        %v2118 = vpack.c.b16 %v2062, %v2060
        %v2119 = vpack.c.b16 %v2065, %v2063
        %v2120 = vpack.c.b16 %v2066, %v2064
        %v2121 = vpack.c.b16 %v2069, %v2067
        %v2122 = vpack.c.b16 %v2070, %v2068
        %v2123 = vpack.c.b16 %v2073, %v2071
        %v2124 = vpack.c.b16 %v2074, %v2072
        %v2125 = vpack.c.b16 %v2077, %v2075
        %v2126 = vpack.c.b16 %v2078, %v2076
        %v2127 = vpack.c.b16 %v2081, %v2079
        %v2128 = vpack.c.b16 %v2082, %v2080
        %v2129 = vpack.c.b16 %v2085, %v2083
        %v2130 = vpack.c.b16 %v2086, %v2084
        %v2131 = vpack.c.b16 %v2089, %v2087
        %v2132 = vpack.c.b16 %v2090, %v2088
        %v2133 = vpack.c.b16 %v2093, %v2091
        %v2134 = vpack.c.b16 %v2094, %v2092
        %v2135 = vpack.c.b16 %v2097, %v2095
        %v2136 = vpack.c.b16 %v2098, %v2096
        %v2137 = vpack.c.b16 %v2101, %v2099
        %v2138 = vpack.c.b16 %v2102, %v2100
        %v2139 = vpack.c.b16 %v2105, %v2103
        %v2140 = vpack.c.b16 %v2106, %v2104
        %v2141 = vpack.c.b16 %v2109, %v2107
        %v2142 = vpack.c.b16 %v2110, %v2108
        %2175 = vmatprep.subr.bf16.mxu0 %v2126
        %2176 = vmatpush1.bf16.msra.mxu0 %v2125
        %2177 = vmatprep.subr.bf16.mxu0 %v2124
        %2178 = vmatpush1.bf16.msra.mxu0 %v2123
        %2179 = vmatprep.subr.bf16.mxu0 %v2122
        %2180 = vmatpush1.bf16.msra.mxu0 %v2121
        %2181 = vmatprep.subr.bf16.mxu0 %v2120
        %2182 = vmatpush1.bf16.msra.mxu0 %v2119
        %2183 = vmatprep.subr.bf16.mxu0 %v2118
        %2184 = vmatpush1.bf16.msra.mxu0 %v2117
        %2185 = vmatprep.subr.bf16.mxu0 %v2116
        %2186 = vmatpush1.bf16.msra.mxu0 %v2115
        %2187 = vmatprep.subr.bf16.mxu0 %v2114
        %2188 = vmatpush1.bf16.msra.mxu0 %v2113
        %2189 = vmatprep.subr.bf16.mxu0 %v2112
        %2190 = vmatpush1.bf16.msra.mxu0 %v2111
        %2191 = vmatprep.subr.bf16.mxu0 %v2142
        %2192 = vmatpush2.bf16.msra.mxu0 %v2141
        %2193 = vmatprep.subr.bf16.mxu0 %v2140
        %2194 = vmatpush2.bf16.msra.mxu0 %v2139
        %2195 = vmatprep.subr.bf16.mxu0 %v2138
        %2196 = vmatpush2.bf16.msra.mxu0 %v2137
        %2197 = vmatprep.subr.bf16.mxu0 %v2136
        %2198 = vmatpush2.bf16.msra.mxu0 %v2135
        %2199 = vmatprep.subr.bf16.mxu0 %v2134
        %2200 = vmatpush2.bf16.msra.mxu0 %v2133
        %2201 = vmatprep.subr.bf16.mxu0 %v2132
        %2202 = vmatpush2.bf16.msra.mxu0 %v2131
        %2203 = vmatprep.subr.bf16.mxu0 %v2130
        %2204 = vmatpush2.bf16.msra.mxu0 %v2129
        %2205 = vmatprep.subr.bf16.mxu0 %v2128
        %2206 = vmatpush2.bf16.msra.mxu0 %v2127
        %2207 = vmatprep.mubr.bf16.mxu0 %v1920
        %2208 = vmatmul.mubr.bf16.gmra.mxu0 %v1919
        %v2209 = vpop.f32.mrf.mxu0
        %v2210 = vadd.f32 0.0, %v2209
        %v2211 = vpop.f32.mrf.mxu0
        %v2212 = vadd.f32 0.0, %v2211
        %v2213 = vpop.f32.mrf.mxu0
        %v2214 = vadd.f32 0.0, %v2213
        %v2215 = vpop.f32.mrf.mxu0
        %v2216 = vadd.f32 0.0, %v2215
        %2217 = vmatprep.mubr.bf16.mxu0 %v1922
        %2218 = vmatmul.mubr.bf16.gmra.mxu0 %v1921
        %v2219 = vpop.f32.mrf.mxu0
        %v2220 = vadd.f32 0.0, %v2219
        %v2221 = vpop.f32.mrf.mxu0
        %v2222 = vadd.f32 0.0, %v2221
        %v2223 = vpop.f32.mrf.mxu0
        %v2224 = vadd.f32 0.0, %v2223
        %v2225 = vpop.f32.mrf.mxu0
        %v2226 = vadd.f32 0.0, %v2225
        %2227 = vmatprep.mubr.bf16.mxu0 %v1924
        %2228 = vmatmul.mubr.bf16.gmra.mxu0 %v1923
        %v2229 = vpop.f32.mrf.mxu0
        %v2230 = vadd.f32 0.0, %v2229
        %v2231 = vpop.f32.mrf.mxu0
        %v2232 = vadd.f32 0.0, %v2231
        %v2233 = vpop.f32.mrf.mxu0
        %v2234 = vadd.f32 0.0, %v2233
        %v2235 = vpop.f32.mrf.mxu0
        %v2236 = vadd.f32 0.0, %v2235
        %2237 = vmatprep.mubr.bf16.mxu0 %v1926
        %2238 = vmatmul.mubr.bf16.gmra.mxu0 %v1925
        %v2239 = vpop.f32.mrf.mxu0
        %v2240 = vadd.f32 0.0, %v2239
        %v2241 = vpop.f32.mrf.mxu0
        %v2242 = vadd.f32 0.0, %v2241
        %v2243 = vpop.f32.mrf.mxu0
        %v2244 = vadd.f32 0.0, %v2243
        %v2245 = vpop.f32.mrf.mxu0
        %v2246 = vadd.f32 0.0, %v2245
        %2247 = vmatprep.mubr.bf16.mxu0 %v1928
        %2248 = vmatmul.mubr.bf16.gmra.mxu0 %v1927
        %v2249 = vpop.f32.mrf.mxu0
        %v2250 = vadd.f32 0.0, %v2249
        %v2251 = vpop.f32.mrf.mxu0
        %v2252 = vadd.f32 0.0, %v2251
        %v2253 = vpop.f32.mrf.mxu0
        %v2254 = vadd.f32 0.0, %v2253
        %v2255 = vpop.f32.mrf.mxu0
        %v2256 = vadd.f32 0.0, %v2255
        %2257 = vmatprep.mubr.bf16.mxu0 %v1930
        %2258 = vmatmul.mubr.bf16.gmra.mxu0 %v1929
        %v2259 = vpop.f32.mrf.mxu0
        %v2260 = vadd.f32 0.0, %v2259
        %v2261 = vpop.f32.mrf.mxu0
        %v2262 = vadd.f32 0.0, %v2261
        %v2263 = vpop.f32.mrf.mxu0
        %v2264 = vadd.f32 0.0, %v2263
        %v2265 = vpop.f32.mrf.mxu0
        %v2266 = vadd.f32 0.0, %v2265
        %2267 = vmatprep.mubr.bf16.mxu0 %v1932
        %2268 = vmatmul.mubr.bf16.gmra.mxu0 %v1931
        %v2269 = vpop.f32.mrf.mxu0
        %v2270 = vadd.f32 0.0, %v2269
        %v2271 = vpop.f32.mrf.mxu0
        %v2272 = vadd.f32 0.0, %v2271
        %v2273 = vpop.f32.mrf.mxu0
        %v2274 = vadd.f32 0.0, %v2273
        %v2275 = vpop.f32.mrf.mxu0
        %v2276 = vadd.f32 0.0, %v2275
        %2277 = vmatprep.mubr.bf16.mxu0 %v1934
        %2278 = vmatmul.mubr.bf16.gmra.mxu0 %v1933
        %v2279 = vpop.f32.mrf.mxu0
        %v2280 = vadd.f32 0.0, %v2279
        %v2281 = vpop.f32.mrf.mxu0
        %v2282 = vadd.f32 0.0, %v2281
        %v2283 = vpop.f32.mrf.mxu0
        %v2284 = vadd.f32 0.0, %v2283
        %v2285 = vpop.f32.mrf.mxu0
        %v2286 = vadd.f32 0.0, %v2285
        %2287 = vmatprep.mubr.bf16.mxu0 %v1936
        %2288 = vmatmul.mubr.bf16.gmra.mxu0 %v1935
        %v2289 = vpop.f32.mrf.mxu0
        %v2290 = vadd.f32 0.0, %v2289
        %v2291 = vpop.f32.mrf.mxu0
        %v2292 = vadd.f32 0.0, %v2291
        %v2293 = vpop.f32.mrf.mxu0
        %v2294 = vadd.f32 0.0, %v2293
        %v2295 = vpop.f32.mrf.mxu0
        %v2296 = vadd.f32 0.0, %v2295
        %2297 = vmatprep.mubr.bf16.mxu0 %v1938
        %2298 = vmatmul.mubr.bf16.gmra.mxu0 %v1937
        %v2299 = vpop.f32.mrf.mxu0
        %v2300 = vadd.f32 0.0, %v2299
        %v2301 = vpop.f32.mrf.mxu0
        %v2302 = vadd.f32 0.0, %v2301
        %v2303 = vpop.f32.mrf.mxu0
        %v2304 = vadd.f32 0.0, %v2303
        %v2305 = vpop.f32.mrf.mxu0
        %v2306 = vadd.f32 0.0, %v2305
        %2307 = vmatprep.mubr.bf16.mxu0 %v1940
        %2308 = vmatmul.mubr.bf16.gmra.mxu0 %v1939
        %v2309 = vpop.f32.mrf.mxu0
        %v2310 = vadd.f32 0.0, %v2309
        %v2311 = vpop.f32.mrf.mxu0
        %v2312 = vadd.f32 0.0, %v2311
        %v2313 = vpop.f32.mrf.mxu0
        %v2314 = vadd.f32 0.0, %v2313
        %v2315 = vpop.f32.mrf.mxu0
        %v2316 = vadd.f32 0.0, %v2315
        %2317 = vmatprep.mubr.bf16.mxu0 %v1942
        %2318 = vmatmul.mubr.bf16.gmra.mxu0 %v1941
        %v2319 = vpop.f32.mrf.mxu0
        %v2320 = vadd.f32 0.0, %v2319
        %v2321 = vpop.f32.mrf.mxu0
        %v2322 = vadd.f32 0.0, %v2321
        %v2323 = vpop.f32.mrf.mxu0
        %v2324 = vadd.f32 0.0, %v2323
        %v2325 = vpop.f32.mrf.mxu0
        %v2326 = vadd.f32 0.0, %v2325
        %2327 = vmatprep.mubr.bf16.mxu0 %v1944
        %2328 = vmatmul.mubr.bf16.gmra.mxu0 %v1943
        %v2329 = vpop.f32.mrf.mxu0
        %v2330 = vadd.f32 0.0, %v2329
        %v2331 = vpop.f32.mrf.mxu0
        %v2332 = vadd.f32 0.0, %v2331
        %v2333 = vpop.f32.mrf.mxu0
        %v2334 = vadd.f32 0.0, %v2333
        %v2335 = vpop.f32.mrf.mxu0
        %v2336 = vadd.f32 0.0, %v2335
        %2337 = vmatprep.mubr.bf16.mxu0 %v1946
        %2338 = vmatmul.mubr.bf16.gmra.mxu0 %v1945
        %v2339 = vpop.f32.mrf.mxu0
        %v2340 = vadd.f32 0.0, %v2339
        %v2341 = vpop.f32.mrf.mxu0
        %v2342 = vadd.f32 0.0, %v2341
        %v2343 = vpop.f32.mrf.mxu0
        %v2344 = vadd.f32 0.0, %v2343
        %v2345 = vpop.f32.mrf.mxu0
        %v2346 = vadd.f32 0.0, %v2345
        %2347 = vmatprep.mubr.bf16.mxu0 %v1948
        %2348 = vmatmul.mubr.bf16.gmra.mxu0 %v1947
        %v2349 = vpop.f32.mrf.mxu0
        %v2350 = vadd.f32 0.0, %v2349
        %v2351 = vpop.f32.mrf.mxu0
        %v2352 = vadd.f32 0.0, %v2351
        %v2353 = vpop.f32.mrf.mxu0
        %v2354 = vadd.f32 0.0, %v2353
        %v2355 = vpop.f32.mrf.mxu0
        %v2356 = vadd.f32 0.0, %v2355
        %2357 = vmatprep.mubr.bf16.mxu0 %v1950
        %2358 = vmatmul.mubr.bf16.gmra.mxu0 %v1949
        %v2359 = vpop.f32.mrf.mxu0
        %v2360 = vadd.f32 0.0, %v2359
        %v2361 = vpop.f32.mrf.mxu0
        %v2362 = vadd.f32 0.0, %v2361
        %v2363 = vpop.f32.mrf.mxu0
        %v2364 = vadd.f32 0.0, %v2363
        %v2365 = vpop.f32.mrf.mxu0
        %v2366 = vadd.f32 0.0, %v2365
        %2367 = vmatprep.mubr.bf16.mxu0 %v1952
        %2368 = vmatmul.mubr.bf16.gmra.mxu0 %v1951
        %v2369 = vpop.f32.mrf.mxu0
        %v2370 = vadd.f32 0.0, %v2369
        %v2371 = vpop.f32.mrf.mxu0
        %v2372 = vadd.f32 0.0, %v2371
        %v2373 = vpop.f32.mrf.mxu0
        %v2374 = vadd.f32 0.0, %v2373
        %v2375 = vpop.f32.mrf.mxu0
        %v2376 = vadd.f32 0.0, %v2375
        %2377 = vmatprep.mubr.bf16.mxu0 %v1954
        %2378 = vmatmul.mubr.bf16.gmra.mxu0 %v1953
        %v2379 = vpop.f32.mrf.mxu0
        %v2380 = vadd.f32 0.0, %v2379
        %v2381 = vpop.f32.mrf.mxu0
        %v2382 = vadd.f32 0.0, %v2381
        %v2383 = vpop.f32.mrf.mxu0
        %v2384 = vadd.f32 0.0, %v2383
        %v2385 = vpop.f32.mrf.mxu0
        %v2386 = vadd.f32 0.0, %v2385
        %2387 = vmatprep.mubr.bf16.mxu0 %v1956
        %2388 = vmatmul.mubr.bf16.gmra.mxu0 %v1955
        %v2389 = vpop.f32.mrf.mxu0
        %v2390 = vadd.f32 0.0, %v2389
        %v2391 = vpop.f32.mrf.mxu0
        %v2392 = vadd.f32 0.0, %v2391
        %v2393 = vpop.f32.mrf.mxu0
        %v2394 = vadd.f32 0.0, %v2393
        %v2395 = vpop.f32.mrf.mxu0
        %v2396 = vadd.f32 0.0, %v2395
        %2397 = vmatprep.mubr.bf16.mxu0 %v1958
        %2398 = vmatmul.mubr.bf16.gmra.mxu0 %v1957
        %v2399 = vpop.f32.mrf.mxu0
        %v2400 = vadd.f32 0.0, %v2399
        %v2401 = vpop.f32.mrf.mxu0
        %v2402 = vadd.f32 0.0, %v2401
        %v2403 = vpop.f32.mrf.mxu0
        %v2404 = vadd.f32 0.0, %v2403
        %v2405 = vpop.f32.mrf.mxu0
        %v2406 = vadd.f32 0.0, %v2405
        %2407 = vmatprep.mubr.bf16.mxu0 %v1960
        %2408 = vmatmul.mubr.bf16.gmra.mxu0 %v1959
        %v2409 = vpop.f32.mrf.mxu0
        %v2410 = vadd.f32 0.0, %v2409
        %v2411 = vpop.f32.mrf.mxu0
        %v2412 = vadd.f32 0.0, %v2411
        %v2413 = vpop.f32.mrf.mxu0
        %v2414 = vadd.f32 0.0, %v2413
        %v2415 = vpop.f32.mrf.mxu0
        %v2416 = vadd.f32 0.0, %v2415
        %2417 = vmatprep.mubr.bf16.mxu0 %v1962
        %2418 = vmatmul.mubr.bf16.gmra.mxu0 %v1961
        %v2419 = vpop.f32.mrf.mxu0
        %v2420 = vadd.f32 0.0, %v2419
        %v2421 = vpop.f32.mrf.mxu0
        %v2422 = vadd.f32 0.0, %v2421
        %v2423 = vpop.f32.mrf.mxu0
        %v2424 = vadd.f32 0.0, %v2423
        %v2425 = vpop.f32.mrf.mxu0
        %v2426 = vadd.f32 0.0, %v2425
        %2427 = vmatprep.mubr.bf16.mxu0 %v1964
        %2428 = vmatmul.mubr.bf16.gmra.mxu0 %v1963
        %v2429 = vpop.f32.mrf.mxu0
        %v2430 = vadd.f32 0.0, %v2429
        %v2431 = vpop.f32.mrf.mxu0
        %v2432 = vadd.f32 0.0, %v2431
        %v2433 = vpop.f32.mrf.mxu0
        %v2434 = vadd.f32 0.0, %v2433
        %v2435 = vpop.f32.mrf.mxu0
        %v2436 = vadd.f32 0.0, %v2435
        %2437 = vmatprep.mubr.bf16.mxu0 %v1966
        %2438 = vmatmul.mubr.bf16.gmra.mxu0 %v1965
        %v2439 = vpop.f32.mrf.mxu0
        %v2440 = vadd.f32 0.0, %v2439
        %v2441 = vpop.f32.mrf.mxu0
        %v2442 = vadd.f32 0.0, %v2441
        %v2443 = vpop.f32.mrf.mxu0
        %v2444 = vadd.f32 0.0, %v2443
        %v2445 = vpop.f32.mrf.mxu0
        %v2446 = vadd.f32 0.0, %v2445
        %2447 = vmatprep.mubr.bf16.mxu0 %v1968
        %2448 = vmatmul.mubr.bf16.gmra.mxu0 %v1967
        %v2449 = vpop.f32.mrf.mxu0
        %v2450 = vadd.f32 0.0, %v2449
        %v2451 = vpop.f32.mrf.mxu0
        %v2452 = vadd.f32 0.0, %v2451
        %v2453 = vpop.f32.mrf.mxu0
        %v2454 = vadd.f32 0.0, %v2453
        %v2455 = vpop.f32.mrf.mxu0
        %v2456 = vadd.f32 0.0, %v2455
        %2457 = vmatprep.mubr.bf16.mxu0 %v1970
        %2458 = vmatmul.mubr.bf16.gmra.mxu0 %v1969
        %v2459 = vpop.f32.mrf.mxu0
        %v2460 = vadd.f32 0.0, %v2459
        %v2461 = vpop.f32.mrf.mxu0
        %v2462 = vadd.f32 0.0, %v2461
        %v2463 = vpop.f32.mrf.mxu0
        %v2464 = vadd.f32 0.0, %v2463
        %v2465 = vpop.f32.mrf.mxu0
        %v2466 = vadd.f32 0.0, %v2465
        %2467 = vmatprep.mubr.bf16.mxu0 %v1972
        %2468 = vmatmul.mubr.bf16.gmra.mxu0 %v1971
        %v2469 = vpop.f32.mrf.mxu0
        %v2470 = vadd.f32 0.0, %v2469
        %v2471 = vpop.f32.mrf.mxu0
        %v2472 = vadd.f32 0.0, %v2471
        %v2473 = vpop.f32.mrf.mxu0
        %v2474 = vadd.f32 0.0, %v2473
        %v2475 = vpop.f32.mrf.mxu0
        %v2476 = vadd.f32 0.0, %v2475
        %2477 = vmatprep.mubr.bf16.mxu0 %v1974
        %2478 = vmatmul.mubr.bf16.gmra.mxu0 %v1973
        %v2479 = vpop.f32.mrf.mxu0
        %v2480 = vadd.f32 0.0, %v2479
        %v2481 = vpop.f32.mrf.mxu0
        %v2482 = vadd.f32 0.0, %v2481
        %v2483 = vpop.f32.mrf.mxu0
        %v2484 = vadd.f32 0.0, %v2483
        %v2485 = vpop.f32.mrf.mxu0
        %v2486 = vadd.f32 0.0, %v2485
        %2487 = vmatprep.mubr.bf16.mxu0 %v1976
        %2488 = vmatmul.mubr.bf16.gmra.mxu0 %v1975
        %v2489 = vpop.f32.mrf.mxu0
        %v2490 = vadd.f32 0.0, %v2489
        %v2491 = vpop.f32.mrf.mxu0
        %v2492 = vadd.f32 0.0, %v2491
        %v2493 = vpop.f32.mrf.mxu0
        %v2494 = vadd.f32 0.0, %v2493
        %v2495 = vpop.f32.mrf.mxu0
        %v2496 = vadd.f32 0.0, %v2495
        %2497 = vmatprep.mubr.bf16.mxu0 %v1978
        %2498 = vmatmul.mubr.bf16.gmra.mxu0 %v1977
        %v2499 = vpop.f32.mrf.mxu0
        %v2500 = vadd.f32 0.0, %v2499
        %v2501 = vpop.f32.mrf.mxu0
        %v2502 = vadd.f32 0.0, %v2501
        %v2503 = vpop.f32.mrf.mxu0
        %v2504 = vadd.f32 0.0, %v2503
        %v2505 = vpop.f32.mrf.mxu0
        %v2506 = vadd.f32 0.0, %v2505
        %2507 = vmatprep.mubr.bf16.mxu0 %v1980
        %2508 = vmatmul.mubr.bf16.gmra.mxu0 %v1979
        %v2509 = vpop.f32.mrf.mxu0
        %v2510 = vadd.f32 0.0, %v2509
        %v2511 = vpop.f32.mrf.mxu0
        %v2512 = vadd.f32 0.0, %v2511
        %v2513 = vpop.f32.mrf.mxu0
        %v2514 = vadd.f32 0.0, %v2513
        %v2515 = vpop.f32.mrf.mxu0
        %v2516 = vadd.f32 0.0, %v2515
        %2517 = vmatprep.mubr.bf16.mxu0 %v1982
        %2518 = vmatmul.mubr.bf16.gmra.mxu0 %v1981
        %v2519 = vpop.f32.mrf.mxu0
        %v2520 = vadd.f32 0.0, %v2519
        %v2521 = vpop.f32.mrf.mxu0
        %v2522 = vadd.f32 0.0, %v2521
        %v2523 = vpop.f32.mrf.mxu0
        %v2524 = vadd.f32 0.0, %v2523
        %v2525 = vpop.f32.mrf.mxu0
        %v2526 = vadd.f32 0.0, %v2525
        %2527 = vdwg.mxu0
        %v2528 = vpack.c.bf16 %v2214, %v2210
        %v2529 = vpack.c.bf16 %v2216, %v2212
        %v2530 = vpack.c.bf16 %v2224, %v2220
        %v2531 = vpack.c.bf16 %v2226, %v2222
        %v2532 = vpack.c.bf16 %v2234, %v2230
        %v2533 = vpack.c.bf16 %v2236, %v2232
        %v2534 = vpack.c.bf16 %v2244, %v2240
        %v2535 = vpack.c.bf16 %v2246, %v2242
        %v2536 = vpack.c.bf16 %v2254, %v2250
        %v2537 = vpack.c.bf16 %v2256, %v2252
        %v2538 = vpack.c.bf16 %v2264, %v2260
        %v2539 = vpack.c.bf16 %v2266, %v2262
        %v2540 = vpack.c.bf16 %v2274, %v2270
        %v2541 = vpack.c.bf16 %v2276, %v2272
        %v2542 = vpack.c.bf16 %v2284, %v2280
        %v2543 = vpack.c.bf16 %v2286, %v2282
        %v2544 = vpack.c.bf16 %v2294, %v2290
        %v2545 = vpack.c.bf16 %v2296, %v2292
        %v2546 = vpack.c.bf16 %v2304, %v2300
        %v2547 = vpack.c.bf16 %v2306, %v2302
        %v2548 = vpack.c.bf16 %v2314, %v2310
        %v2549 = vpack.c.bf16 %v2316, %v2312
        %v2550 = vpack.c.bf16 %v2324, %v2320
        %v2551 = vpack.c.bf16 %v2326, %v2322
        %v2552 = vpack.c.bf16 %v2334, %v2330
        %v2553 = vpack.c.bf16 %v2336, %v2332
        %v2554 = vpack.c.bf16 %v2344, %v2340
        %v2555 = vpack.c.bf16 %v2346, %v2342
        %v2556 = vpack.c.bf16 %v2354, %v2350
        %v2557 = vpack.c.bf16 %v2356, %v2352
        %v2558 = vpack.c.bf16 %v2364, %v2360
        %v2559 = vpack.c.bf16 %v2366, %v2362
        %v2560 = vpack.c.bf16 %v2374, %v2370
        %v2561 = vpack.c.bf16 %v2376, %v2372
        %v2562 = vpack.c.bf16 %v2384, %v2380
        %v2563 = vpack.c.bf16 %v2386, %v2382
        %v2564 = vpack.c.bf16 %v2394, %v2390
        %v2565 = vpack.c.bf16 %v2396, %v2392
        %v2566 = vpack.c.bf16 %v2404, %v2400
        %v2567 = vpack.c.bf16 %v2406, %v2402
        %v2568 = vpack.c.bf16 %v2414, %v2410
        %v2569 = vpack.c.bf16 %v2416, %v2412
        %v2570 = vpack.c.bf16 %v2424, %v2420
        %v2571 = vpack.c.bf16 %v2426, %v2422
        %v2572 = vpack.c.bf16 %v2434, %v2430
        %v2573 = vpack.c.bf16 %v2436, %v2432
        %v2574 = vpack.c.bf16 %v2444, %v2440
        %v2575 = vpack.c.bf16 %v2446, %v2442
        %v2576 = vpack.c.bf16 %v2454, %v2450
        %v2577 = vpack.c.bf16 %v2456, %v2452
        %v2578 = vpack.c.bf16 %v2464, %v2460
        %v2579 = vpack.c.bf16 %v2466, %v2462
        %v2580 = vpack.c.bf16 %v2474, %v2470
        %v2581 = vpack.c.bf16 %v2476, %v2472
        %v2582 = vpack.c.bf16 %v2484, %v2480
        %v2583 = vpack.c.bf16 %v2486, %v2482
        %v2584 = vpack.c.bf16 %v2494, %v2490
        %v2585 = vpack.c.bf16 %v2496, %v2492
        %v2586 = vpack.c.bf16 %v2504, %v2500
        %v2587 = vpack.c.bf16 %v2506, %v2502
        %v2588 = vpack.c.bf16 %v2514, %v2510
        %v2589 = vpack.c.bf16 %v2516, %v2512
        %v2590 = vpack.c.bf16 %v2524, %v2520
        %v2591 = vpack.c.bf16 %v2526, %v2522
        %v2592 = vld [vmem:[%s11] sm:$0x3]
        %v2595 = vunpack.c.l.s4 1966171168
        %v2596 = vunpack.c.0.s8 %v2595
        %v2597 = vlaneseq
        %v2598 = vshrl.u32 %v2597, 7
        %v2599 = vsub.s32 %v2596, %v2598
        %v2600 = vrot.slane %v2592, %v2599
        %v2601 = vcombine.high %v2600, %v2600
        %v2603 = vunpack.c.l.s4 1966171168
        %v2604 = vunpack.c.0.s8 %v2603
        %v2605 = vlaneseq
        %v2606 = vshrl.u32 %v2605, 7
        %v2607 = vsub.s32 %v2604, %v2606
        %v2608 = vrot.slane %v2600, %v2607
        %v2610 = vunpack.c.l.s4 1966171168
        %v2611 = vunpack.c.0.s8 %v2610
        %v2612 = vlaneseq
        %v2613 = vshrl.u32 %v2612, 7
        %v2614 = vsub.s32 %v2611, %v2613
        %v2615 = vrot.slane %v2601, %v2614
        %v2617 = vpack.i.b16 %v2608, %v2608
        %v2619 = vlaneseq
        %v2620 = vshrl.u32 %v2619, 7
        %v2621 = vsub.s32 0, %v2620
        %v2622 = vrot.slane %v2617, %v2621
        %v2624 = vpack.i.b16 %v2615, %v2615
        %v2626 = vlaneseq
        %v2627 = vshrl.u32 %v2626, 7
        %v2628 = vsub.s32 0, %v2627
        %v2629 = vrot.slane %v2624, %v2628
        %v2630 = vadd.bf16 %v2528, %v2622
        %v2631 = vadd.bf16 %v2529, %v2629
        %v2632 = vadd.bf16 %v2530, %v2622
        %v2633 = vadd.bf16 %v2531, %v2629
        %v2634 = vadd.bf16 %v2532, %v2622
        %v2635 = vadd.bf16 %v2533, %v2629
        %v2636 = vadd.bf16 %v2534, %v2622
        %v2637 = vadd.bf16 %v2535, %v2629
        %v2638 = vadd.bf16 %v2536, %v2622
        %v2639 = vadd.bf16 %v2537, %v2629
        %v2640 = vadd.bf16 %v2538, %v2622
        %v2641 = vadd.bf16 %v2539, %v2629
        %v2642 = vadd.bf16 %v2540, %v2622
        %v2643 = vadd.bf16 %v2541, %v2629
        %v2644 = vadd.bf16 %v2542, %v2622
        %v2645 = vadd.bf16 %v2543, %v2629
        %v2646 = vadd.bf16 %v2544, %v2622
        %v2647 = vadd.bf16 %v2545, %v2629
        %v2648 = vadd.bf16 %v2546, %v2622
        %v2649 = vadd.bf16 %v2547, %v2629
        %v2650 = vadd.bf16 %v2548, %v2622
        %v2651 = vadd.bf16 %v2549, %v2629
        %v2652 = vadd.bf16 %v2550, %v2622
        %v2653 = vadd.bf16 %v2551, %v2629
        %v2654 = vadd.bf16 %v2552, %v2622
        %v2655 = vadd.bf16 %v2553, %v2629
        %v2656 = vadd.bf16 %v2554, %v2622
        %v2657 = vadd.bf16 %v2555, %v2629
        %v2658 = vadd.bf16 %v2556, %v2622
        %v2659 = vadd.bf16 %v2557, %v2629
        %v2660 = vadd.bf16 %v2558, %v2622
        %v2661 = vadd.bf16 %v2559, %v2629
        %v2662 = vadd.bf16 %v2560, %v2622
        %v2663 = vadd.bf16 %v2561, %v2629
        %v2664 = vadd.bf16 %v2562, %v2622
        %v2665 = vadd.bf16 %v2563, %v2629
        %v2666 = vadd.bf16 %v2564, %v2622
        %v2667 = vadd.bf16 %v2565, %v2629
        %v2668 = vadd.bf16 %v2566, %v2622
        %v2669 = vadd.bf16 %v2567, %v2629
        %v2670 = vadd.bf16 %v2568, %v2622
        %v2671 = vadd.bf16 %v2569, %v2629
        %v2672 = vadd.bf16 %v2570, %v2622
        %v2673 = vadd.bf16 %v2571, %v2629
        %v2674 = vadd.bf16 %v2572, %v2622
        %v2675 = vadd.bf16 %v2573, %v2629
        %v2676 = vadd.bf16 %v2574, %v2622
        %v2677 = vadd.bf16 %v2575, %v2629
        %v2678 = vadd.bf16 %v2576, %v2622
        %v2679 = vadd.bf16 %v2577, %v2629
        %v2680 = vadd.bf16 %v2578, %v2622
        %v2681 = vadd.bf16 %v2579, %v2629
        %v2682 = vadd.bf16 %v2580, %v2622
        %v2683 = vadd.bf16 %v2581, %v2629
        %v2684 = vadd.bf16 %v2582, %v2622
        %v2685 = vadd.bf16 %v2583, %v2629
        %v2686 = vadd.bf16 %v2584, %v2622
        %v2687 = vadd.bf16 %v2585, %v2629
        %v2688 = vadd.bf16 %v2586, %v2622
        %v2689 = vadd.bf16 %v2587, %v2629
        %v2690 = vadd.bf16 %v2588, %v2622
        %v2691 = vadd.bf16 %v2589, %v2629
        %v2692 = vadd.bf16 %v2590, %v2622
        %v2693 = vadd.bf16 %v2591, %v2629
        %v2694 = vmax.bf16 %v2630, 0
        %v2695 = vmax.bf16 %v2631, 0
        %v2696 = vmax.bf16 %v2632, 0
        %v2697 = vmax.bf16 %v2633, 0
        %v2698 = vmax.bf16 %v2634, 0
        %v2699 = vmax.bf16 %v2635, 0
        %v2700 = vmax.bf16 %v2636, 0
        %v2701 = vmax.bf16 %v2637, 0
        %v2702 = vmax.bf16 %v2638, 0
        %v2703 = vmax.bf16 %v2639, 0
        %v2704 = vmax.bf16 %v2640, 0
        %v2705 = vmax.bf16 %v2641, 0
        %v2706 = vmax.bf16 %v2642, 0
        %v2707 = vmax.bf16 %v2643, 0
        %v2708 = vmax.bf16 %v2644, 0
        %v2709 = vmax.bf16 %v2645, 0
        %v2710 = vmax.bf16 %v2646, 0
        %v2711 = vmax.bf16 %v2647, 0
        %v2712 = vmax.bf16 %v2648, 0
        %v2713 = vmax.bf16 %v2649, 0
        %v2714 = vmax.bf16 %v2650, 0
        %v2715 = vmax.bf16 %v2651, 0
        %v2716 = vmax.bf16 %v2652, 0
        %v2717 = vmax.bf16 %v2653, 0
        %v2718 = vmax.bf16 %v2654, 0
        %v2719 = vmax.bf16 %v2655, 0
        %v2720 = vmax.bf16 %v2656, 0
        %v2721 = vmax.bf16 %v2657, 0
        %v2722 = vmax.bf16 %v2658, 0
        %v2723 = vmax.bf16 %v2659, 0
        %v2724 = vmax.bf16 %v2660, 0
        %v2725 = vmax.bf16 %v2661, 0
        %v2726 = vmax.bf16 %v2662, 0
        %v2727 = vmax.bf16 %v2663, 0
        %v2728 = vmax.bf16 %v2664, 0
        %v2729 = vmax.bf16 %v2665, 0
        %v2730 = vmax.bf16 %v2666, 0
        %v2731 = vmax.bf16 %v2667, 0
        %v2732 = vmax.bf16 %v2668, 0
        %v2733 = vmax.bf16 %v2669, 0
        %v2734 = vmax.bf16 %v2670, 0
        %v2735 = vmax.bf16 %v2671, 0
        %v2736 = vmax.bf16 %v2672, 0
        %v2737 = vmax.bf16 %v2673, 0
        %v2738 = vmax.bf16 %v2674, 0
        %v2739 = vmax.bf16 %v2675, 0
        %v2740 = vmax.bf16 %v2676, 0
        %v2741 = vmax.bf16 %v2677, 0
        %v2742 = vmax.bf16 %v2678, 0
        %v2743 = vmax.bf16 %v2679, 0
        %v2744 = vmax.bf16 %v2680, 0
        %v2745 = vmax.bf16 %v2681, 0
        %v2746 = vmax.bf16 %v2682, 0
        %v2747 = vmax.bf16 %v2683, 0
        %v2748 = vmax.bf16 %v2684, 0
        %v2749 = vmax.bf16 %v2685, 0
        %v2750 = vmax.bf16 %v2686, 0
        %v2751 = vmax.bf16 %v2687, 0
        %v2752 = vmax.bf16 %v2688, 0
        %v2753 = vmax.bf16 %v2689, 0
        %v2754 = vmax.bf16 %v2690, 0
        %v2755 = vmax.bf16 %v2691, 0
        %v2756 = vmax.bf16 %v2692, 0
        %v2757 = vmax.bf16 %v2693, 0
        %v2758 = vld [vmem:[%s3] sm:$0xff]
        %v2759 = vld [vmem:[%s3 + $0x8] sm:$0xff]
        %v2760 = vld [vmem:[%s3 + $0x10] sm:$0xff]
        %v2761 = vld [vmem:[%s3 + $0x18] sm:$0xff]
        %v2762 = vld [vmem:[%s3 + $0x20] sm:$0xff]
        %v2763 = vld [vmem:[%s3 + $0x28] sm:$0xff]
        %v2764 = vld [vmem:[%s3 + $0x30] sm:$0xff]
        %v2765 = vld [vmem:[%s3 + $0x38] sm:$0xff]
        %v2766 = vld [vmem:[%s3 + $0x40] sm:$0xff]
        %v2767 = vld [vmem:[%s3 + $0x48] sm:$0xff]
        %v2768 = vld [vmem:[%s3 + $0x50] sm:$0xff]
        %v2769 = vld [vmem:[%s3 + $0x58] sm:$0xff]
        %v2770 = vld [vmem:[%s3 + $0x60] sm:$0xff]
        %v2771 = vld [vmem:[%s3 + $0x68] sm:$0xff]
        %v2772 = vld [vmem:[%s3 + $0x70] sm:$0xff]
        %v2773 = vld [vmem:[%s3 + $0x78] sm:$0xff]
        %v2774 = vld [vmem:[%s3 + $0x80] sm:$0xff]
        %v2775 = vld [vmem:[%s3 + $0x88] sm:$0xff]
        %v2776 = vld [vmem:[%s3 + $0x90] sm:$0xff]
        %v2777 = vld [vmem:[%s3 + $0x98] sm:$0xff]
        %v2778 = vld [vmem:[%s3 + $0xa0] sm:$0xff]
        %v2779 = vld [vmem:[%s3 + $0xa8] sm:$0xff]
        %v2780 = vld [vmem:[%s3 + $0xb0] sm:$0xff]
        %v2781 = vld [vmem:[%s3 + $0xb8] sm:$0xff]
        %v2782 = vld [vmem:[%s3 + $0xc0] sm:$0xff]
        %v2783 = vld [vmem:[%s3 + $0xc8] sm:$0xff]
        %v2784 = vld [vmem:[%s3 + $0xd0] sm:$0xff]
        %v2785 = vld [vmem:[%s3 + $0xd8] sm:$0xff]
        %v2786 = vld [vmem:[%s3 + $0xe0] sm:$0xff]
        %v2787 = vld [vmem:[%s3 + $0xe8] sm:$0xff]
        %v2788 = vld [vmem:[%s3 + $0xf0] sm:$0xff]
        %v2789 = vld [vmem:[%s3 + $0xf8] sm:$0xff]
        %v2822 = vunpack.c.l.b16 %v2758
        %v2823 = vunpack.c.h.b16 %v2758
        %v2824 = vunpack.c.l.b16 %v2759
        %v2825 = vunpack.c.h.b16 %v2759
        %v2826 = vunpack.c.l.b16 %v2760
        %v2827 = vunpack.c.h.b16 %v2760
        %v2828 = vunpack.c.l.b16 %v2761
        %v2829 = vunpack.c.h.b16 %v2761
        %v2830 = vunpack.c.l.b16 %v2762
        %v2831 = vunpack.c.h.b16 %v2762
        %v2832 = vunpack.c.l.b16 %v2763
        %v2833 = vunpack.c.h.b16 %v2763
        %v2834 = vunpack.c.l.b16 %v2764
        %v2835 = vunpack.c.h.b16 %v2764
        %v2836 = vunpack.c.l.b16 %v2765
        %v2837 = vunpack.c.h.b16 %v2765
        %v2838 = vunpack.c.l.b16 %v2766
        %v2839 = vunpack.c.h.b16 %v2766
        %v2840 = vunpack.c.l.b16 %v2767
        %v2841 = vunpack.c.h.b16 %v2767
        %v2842 = vunpack.c.l.b16 %v2768
        %v2843 = vunpack.c.h.b16 %v2768
        %v2844 = vunpack.c.l.b16 %v2769
        %v2845 = vunpack.c.h.b16 %v2769
        %v2846 = vunpack.c.l.b16 %v2770
        %v2847 = vunpack.c.h.b16 %v2770
        %v2848 = vunpack.c.l.b16 %v2771
        %v2849 = vunpack.c.h.b16 %v2771
        %v2850 = vunpack.c.l.b16 %v2772
        %v2851 = vunpack.c.h.b16 %v2772
        %v2852 = vunpack.c.l.b16 %v2773
        %v2853 = vunpack.c.h.b16 %v2773
        %v2854 = vunpack.c.l.b16 %v2774
        %v2855 = vunpack.c.h.b16 %v2774
        %v2856 = vunpack.c.l.b16 %v2775
        %v2857 = vunpack.c.h.b16 %v2775
        %v2858 = vunpack.c.l.b16 %v2776
        %v2859 = vunpack.c.h.b16 %v2776
        %v2860 = vunpack.c.l.b16 %v2777
        %v2861 = vunpack.c.h.b16 %v2777
        %v2862 = vunpack.c.l.b16 %v2778
        %v2863 = vunpack.c.h.b16 %v2778
        %v2864 = vunpack.c.l.b16 %v2779
        %v2865 = vunpack.c.h.b16 %v2779
        %v2866 = vunpack.c.l.b16 %v2780
        %v2867 = vunpack.c.h.b16 %v2780
        %v2868 = vunpack.c.l.b16 %v2781
        %v2869 = vunpack.c.h.b16 %v2781
        %v2870 = vunpack.c.l.b16 %v2782
        %v2871 = vunpack.c.h.b16 %v2782
        %v2872 = vunpack.c.l.b16 %v2783
        %v2873 = vunpack.c.h.b16 %v2783
        %v2874 = vunpack.c.l.b16 %v2784
        %v2875 = vunpack.c.h.b16 %v2784
        %v2876 = vunpack.c.l.b16 %v2785
        %v2877 = vunpack.c.h.b16 %v2785
        %v2878 = vunpack.c.l.b16 %v2786
        %v2879 = vunpack.c.h.b16 %v2786
        %v2880 = vunpack.c.l.b16 %v2787
        %v2881 = vunpack.c.h.b16 %v2787
        %v2882 = vunpack.c.l.b16 %v2788
        %v2883 = vunpack.c.h.b16 %v2788
        %v2884 = vunpack.c.l.b16 %v2789
        %v2885 = vunpack.c.h.b16 %v2789
        %v2886 = vpack.c.b16 %v2824, %v2822
        %v2887 = vpack.c.b16 %v2825, %v2823
        %v2888 = vpack.c.b16 %v2828, %v2826
        %v2889 = vpack.c.b16 %v2829, %v2827
        %v2890 = vpack.c.b16 %v2832, %v2830
        %v2891 = vpack.c.b16 %v2833, %v2831
        %v2892 = vpack.c.b16 %v2836, %v2834
        %v2893 = vpack.c.b16 %v2837, %v2835
        %v2894 = vpack.c.b16 %v2840, %v2838
        %v2895 = vpack.c.b16 %v2841, %v2839
        %v2896 = vpack.c.b16 %v2844, %v2842
        %v2897 = vpack.c.b16 %v2845, %v2843
        %v2898 = vpack.c.b16 %v2848, %v2846
        %v2899 = vpack.c.b16 %v2849, %v2847
        %v2900 = vpack.c.b16 %v2852, %v2850
        %v2901 = vpack.c.b16 %v2853, %v2851
        %v2902 = vpack.c.b16 %v2856, %v2854
        %v2903 = vpack.c.b16 %v2857, %v2855
        %v2904 = vpack.c.b16 %v2860, %v2858
        %v2905 = vpack.c.b16 %v2861, %v2859
        %v2906 = vpack.c.b16 %v2864, %v2862
        %v2907 = vpack.c.b16 %v2865, %v2863
        %v2908 = vpack.c.b16 %v2868, %v2866
        %v2909 = vpack.c.b16 %v2869, %v2867
        %v2910 = vpack.c.b16 %v2872, %v2870
        %v2911 = vpack.c.b16 %v2873, %v2871
        %v2912 = vpack.c.b16 %v2876, %v2874
        %v2913 = vpack.c.b16 %v2877, %v2875
        %v2914 = vpack.c.b16 %v2880, %v2878
        %v2915 = vpack.c.b16 %v2881, %v2879
        %v2916 = vpack.c.b16 %v2884, %v2882
        %v2917 = vpack.c.b16 %v2885, %v2883
        %2950 = vmatprep.subr.bf16.mxu0 %v2901
        %2951 = vmatpush1.bf16.msra.mxu0 %v2900
        %2952 = vmatprep.subr.bf16.mxu0 %v2899
        %2953 = vmatpush1.bf16.msra.mxu0 %v2898
        %2954 = vmatprep.subr.bf16.mxu0 %v2897
        %2955 = vmatpush1.bf16.msra.mxu0 %v2896
        %2956 = vmatprep.subr.bf16.mxu0 %v2895
        %2957 = vmatpush1.bf16.msra.mxu0 %v2894
        %2958 = vmatprep.subr.bf16.mxu0 %v2893
        %2959 = vmatpush1.bf16.msra.mxu0 %v2892
        %2960 = vmatprep.subr.bf16.mxu0 %v2891
        %2961 = vmatpush1.bf16.msra.mxu0 %v2890
        %2962 = vmatprep.subr.bf16.mxu0 %v2889
        %2963 = vmatpush1.bf16.msra.mxu0 %v2888
        %2964 = vmatprep.subr.bf16.mxu0 %v2887
        %2965 = vmatpush1.bf16.msra.mxu0 %v2886
        %2966 = vmatprep.subr.bf16.mxu0 %v2917
        %2967 = vmatpush2.bf16.msra.mxu0 %v2916
        %2968 = vmatprep.subr.bf16.mxu0 %v2915
        %2969 = vmatpush2.bf16.msra.mxu0 %v2914
        %2970 = vmatprep.subr.bf16.mxu0 %v2913
        %2971 = vmatpush2.bf16.msra.mxu0 %v2912
        %2972 = vmatprep.subr.bf16.mxu0 %v2911
        %2973 = vmatpush2.bf16.msra.mxu0 %v2910
        %2974 = vmatprep.subr.bf16.mxu0 %v2909
        %2975 = vmatpush2.bf16.msra.mxu0 %v2908
        %2976 = vmatprep.subr.bf16.mxu0 %v2907
        %2977 = vmatpush2.bf16.msra.mxu0 %v2906
        %2978 = vmatprep.subr.bf16.mxu0 %v2905
        %2979 = vmatpush2.bf16.msra.mxu0 %v2904
        %2980 = vmatprep.subr.bf16.mxu0 %v2903
        %2981 = vmatpush2.bf16.msra.mxu0 %v2902
        %2982 = vmatprep.mubr.bf16.mxu0 %v2695
        %2983 = vmatmul.mubr.bf16.gmra.mxu0 %v2694
        %v2984 = vpop.f32.mrf.mxu0
        %v2985 = vadd.f32 0.0, %v2984
        %v2986 = vpop.f32.mrf.mxu0
        %v2987 = vadd.f32 0.0, %v2986
        %v2988 = vpop.f32.mrf.mxu0
        %v2989 = vadd.f32 0.0, %v2988
        %v2990 = vpop.f32.mrf.mxu0
        %v2991 = vadd.f32 0.0, %v2990
        %2992 = vmatprep.mubr.bf16.mxu0 %v2697
        %2993 = vmatmul.mubr.bf16.gmra.mxu0 %v2696
        %v2994 = vpop.f32.mrf.mxu0
        %v2995 = vadd.f32 0.0, %v2994
        %v2996 = vpop.f32.mrf.mxu0
        %v2997 = vadd.f32 0.0, %v2996
        %v2998 = vpop.f32.mrf.mxu0
        %v2999 = vadd.f32 0.0, %v2998
        %v3000 = vpop.f32.mrf.mxu0
        %v3001 = vadd.f32 0.0, %v3000
        %3002 = vmatprep.mubr.bf16.mxu0 %v2699
        %3003 = vmatmul.mubr.bf16.gmra.mxu0 %v2698
        %v3004 = vpop.f32.mrf.mxu0
        %v3005 = vadd.f32 0.0, %v3004
        %v3006 = vpop.f32.mrf.mxu0
        %v3007 = vadd.f32 0.0, %v3006
        %v3008 = vpop.f32.mrf.mxu0
        %v3009 = vadd.f32 0.0, %v3008
        %v3010 = vpop.f32.mrf.mxu0
        %v3011 = vadd.f32 0.0, %v3010
        %3012 = vmatprep.mubr.bf16.mxu0 %v2701
        %3013 = vmatmul.mubr.bf16.gmra.mxu0 %v2700
        %v3014 = vpop.f32.mrf.mxu0
        %v3015 = vadd.f32 0.0, %v3014
        %v3016 = vpop.f32.mrf.mxu0
        %v3017 = vadd.f32 0.0, %v3016
        %v3018 = vpop.f32.mrf.mxu0
        %v3019 = vadd.f32 0.0, %v3018
        %v3020 = vpop.f32.mrf.mxu0
        %v3021 = vadd.f32 0.0, %v3020
        %3022 = vmatprep.mubr.bf16.mxu0 %v2703
        %3023 = vmatmul.mubr.bf16.gmra.mxu0 %v2702
        %v3024 = vpop.f32.mrf.mxu0
        %v3025 = vadd.f32 0.0, %v3024
        %v3026 = vpop.f32.mrf.mxu0
        %v3027 = vadd.f32 0.0, %v3026
        %v3028 = vpop.f32.mrf.mxu0
        %v3029 = vadd.f32 0.0, %v3028
        %v3030 = vpop.f32.mrf.mxu0
        %v3031 = vadd.f32 0.0, %v3030
        %3032 = vmatprep.mubr.bf16.mxu0 %v2705
        %3033 = vmatmul.mubr.bf16.gmra.mxu0 %v2704
        %v3034 = vpop.f32.mrf.mxu0
        %v3035 = vadd.f32 0.0, %v3034
        %v3036 = vpop.f32.mrf.mxu0
        %v3037 = vadd.f32 0.0, %v3036
        %v3038 = vpop.f32.mrf.mxu0
        %v3039 = vadd.f32 0.0, %v3038
        %v3040 = vpop.f32.mrf.mxu0
        %v3041 = vadd.f32 0.0, %v3040
        %3042 = vmatprep.mubr.bf16.mxu0 %v2707
        %3043 = vmatmul.mubr.bf16.gmra.mxu0 %v2706
        %v3044 = vpop.f32.mrf.mxu0
        %v3045 = vadd.f32 0.0, %v3044
        %v3046 = vpop.f32.mrf.mxu0
        %v3047 = vadd.f32 0.0, %v3046
        %v3048 = vpop.f32.mrf.mxu0
        %v3049 = vadd.f32 0.0, %v3048
        %v3050 = vpop.f32.mrf.mxu0
        %v3051 = vadd.f32 0.0, %v3050
        %3052 = vmatprep.mubr.bf16.mxu0 %v2709
        %3053 = vmatmul.mubr.bf16.gmra.mxu0 %v2708
        %v3054 = vpop.f32.mrf.mxu0
        %v3055 = vadd.f32 0.0, %v3054
        %v3056 = vpop.f32.mrf.mxu0
        %v3057 = vadd.f32 0.0, %v3056
        %v3058 = vpop.f32.mrf.mxu0
        %v3059 = vadd.f32 0.0, %v3058
        %v3060 = vpop.f32.mrf.mxu0
        %v3061 = vadd.f32 0.0, %v3060
        %3062 = vmatprep.mubr.bf16.mxu0 %v2711
        %3063 = vmatmul.mubr.bf16.gmra.mxu0 %v2710
        %v3064 = vpop.f32.mrf.mxu0
        %v3065 = vadd.f32 0.0, %v3064
        %v3066 = vpop.f32.mrf.mxu0
        %v3067 = vadd.f32 0.0, %v3066
        %v3068 = vpop.f32.mrf.mxu0
        %v3069 = vadd.f32 0.0, %v3068
        %v3070 = vpop.f32.mrf.mxu0
        %v3071 = vadd.f32 0.0, %v3070
        %3072 = vmatprep.mubr.bf16.mxu0 %v2713
        %3073 = vmatmul.mubr.bf16.gmra.mxu0 %v2712
        %v3074 = vpop.f32.mrf.mxu0
        %v3075 = vadd.f32 0.0, %v3074
        %v3076 = vpop.f32.mrf.mxu0
        %v3077 = vadd.f32 0.0, %v3076
        %v3078 = vpop.f32.mrf.mxu0
        %v3079 = vadd.f32 0.0, %v3078
        %v3080 = vpop.f32.mrf.mxu0
        %v3081 = vadd.f32 0.0, %v3080
        %3082 = vmatprep.mubr.bf16.mxu0 %v2715
        %3083 = vmatmul.mubr.bf16.gmra.mxu0 %v2714
        %v3084 = vpop.f32.mrf.mxu0
        %v3085 = vadd.f32 0.0, %v3084
        %v3086 = vpop.f32.mrf.mxu0
        %v3087 = vadd.f32 0.0, %v3086
        %v3088 = vpop.f32.mrf.mxu0
        %v3089 = vadd.f32 0.0, %v3088
        %v3090 = vpop.f32.mrf.mxu0
        %v3091 = vadd.f32 0.0, %v3090
        %3092 = vmatprep.mubr.bf16.mxu0 %v2717
        %3093 = vmatmul.mubr.bf16.gmra.mxu0 %v2716
        %v3094 = vpop.f32.mrf.mxu0
        %v3095 = vadd.f32 0.0, %v3094
        %v3096 = vpop.f32.mrf.mxu0
        %v3097 = vadd.f32 0.0, %v3096
        %v3098 = vpop.f32.mrf.mxu0
        %v3099 = vadd.f32 0.0, %v3098
        %v3100 = vpop.f32.mrf.mxu0
        %v3101 = vadd.f32 0.0, %v3100
        %3102 = vmatprep.mubr.bf16.mxu0 %v2719
        %3103 = vmatmul.mubr.bf16.gmra.mxu0 %v2718
        %v3104 = vpop.f32.mrf.mxu0
        %v3105 = vadd.f32 0.0, %v3104
        %v3106 = vpop.f32.mrf.mxu0
        %v3107 = vadd.f32 0.0, %v3106
        %v3108 = vpop.f32.mrf.mxu0
        %v3109 = vadd.f32 0.0, %v3108
        %v3110 = vpop.f32.mrf.mxu0
        %v3111 = vadd.f32 0.0, %v3110
        %3112 = vmatprep.mubr.bf16.mxu0 %v2721
        %3113 = vmatmul.mubr.bf16.gmra.mxu0 %v2720
        %v3114 = vpop.f32.mrf.mxu0
        %v3115 = vadd.f32 0.0, %v3114
        %v3116 = vpop.f32.mrf.mxu0
        %v3117 = vadd.f32 0.0, %v3116
        %v3118 = vpop.f32.mrf.mxu0
        %v3119 = vadd.f32 0.0, %v3118
        %v3120 = vpop.f32.mrf.mxu0
        %v3121 = vadd.f32 0.0, %v3120
        %3122 = vmatprep.mubr.bf16.mxu0 %v2723
        %3123 = vmatmul.mubr.bf16.gmra.mxu0 %v2722
        %v3124 = vpop.f32.mrf.mxu0
        %v3125 = vadd.f32 0.0, %v3124
        %v3126 = vpop.f32.mrf.mxu0
        %v3127 = vadd.f32 0.0, %v3126
        %v3128 = vpop.f32.mrf.mxu0
        %v3129 = vadd.f32 0.0, %v3128
        %v3130 = vpop.f32.mrf.mxu0
        %v3131 = vadd.f32 0.0, %v3130
        %3132 = vmatprep.mubr.bf16.mxu0 %v2725
        %3133 = vmatmul.mubr.bf16.gmra.mxu0 %v2724
        %v3134 = vpop.f32.mrf.mxu0
        %v3135 = vadd.f32 0.0, %v3134
        %v3136 = vpop.f32.mrf.mxu0
        %v3137 = vadd.f32 0.0, %v3136
        %v3138 = vpop.f32.mrf.mxu0
        %v3139 = vadd.f32 0.0, %v3138
        %v3140 = vpop.f32.mrf.mxu0
        %v3141 = vadd.f32 0.0, %v3140
        %3142 = vmatprep.mubr.bf16.mxu0 %v2727
        %3143 = vmatmul.mubr.bf16.gmra.mxu0 %v2726
        %v3144 = vpop.f32.mrf.mxu0
        %v3145 = vadd.f32 0.0, %v3144
        %v3146 = vpop.f32.mrf.mxu0
        %v3147 = vadd.f32 0.0, %v3146
        %v3148 = vpop.f32.mrf.mxu0
        %v3149 = vadd.f32 0.0, %v3148
        %v3150 = vpop.f32.mrf.mxu0
        %v3151 = vadd.f32 0.0, %v3150
        %3152 = vmatprep.mubr.bf16.mxu0 %v2729
        %3153 = vmatmul.mubr.bf16.gmra.mxu0 %v2728
        %v3154 = vpop.f32.mrf.mxu0
        %v3155 = vadd.f32 0.0, %v3154
        %v3156 = vpop.f32.mrf.mxu0
        %v3157 = vadd.f32 0.0, %v3156
        %v3158 = vpop.f32.mrf.mxu0
        %v3159 = vadd.f32 0.0, %v3158
        %v3160 = vpop.f32.mrf.mxu0
        %v3161 = vadd.f32 0.0, %v3160
        %3162 = vmatprep.mubr.bf16.mxu0 %v2731
        %3163 = vmatmul.mubr.bf16.gmra.mxu0 %v2730
        %v3164 = vpop.f32.mrf.mxu0
        %v3165 = vadd.f32 0.0, %v3164
        %v3166 = vpop.f32.mrf.mxu0
        %v3167 = vadd.f32 0.0, %v3166
        %v3168 = vpop.f32.mrf.mxu0
        %v3169 = vadd.f32 0.0, %v3168
        %v3170 = vpop.f32.mrf.mxu0
        %v3171 = vadd.f32 0.0, %v3170
        %3172 = vmatprep.mubr.bf16.mxu0 %v2733
        %3173 = vmatmul.mubr.bf16.gmra.mxu0 %v2732
        %v3174 = vpop.f32.mrf.mxu0
        %v3175 = vadd.f32 0.0, %v3174
        %v3176 = vpop.f32.mrf.mxu0
        %v3177 = vadd.f32 0.0, %v3176
        %v3178 = vpop.f32.mrf.mxu0
        %v3179 = vadd.f32 0.0, %v3178
        %v3180 = vpop.f32.mrf.mxu0
        %v3181 = vadd.f32 0.0, %v3180
        %3182 = vmatprep.mubr.bf16.mxu0 %v2735
        %3183 = vmatmul.mubr.bf16.gmra.mxu0 %v2734
        %v3184 = vpop.f32.mrf.mxu0
        %v3185 = vadd.f32 0.0, %v3184
        %v3186 = vpop.f32.mrf.mxu0
        %v3187 = vadd.f32 0.0, %v3186
        %v3188 = vpop.f32.mrf.mxu0
        %v3189 = vadd.f32 0.0, %v3188
        %v3190 = vpop.f32.mrf.mxu0
        %v3191 = vadd.f32 0.0, %v3190
        %3192 = vmatprep.mubr.bf16.mxu0 %v2737
        %3193 = vmatmul.mubr.bf16.gmra.mxu0 %v2736
        %v3194 = vpop.f32.mrf.mxu0
        %v3195 = vadd.f32 0.0, %v3194
        %v3196 = vpop.f32.mrf.mxu0
        %v3197 = vadd.f32 0.0, %v3196
        %v3198 = vpop.f32.mrf.mxu0
        %v3199 = vadd.f32 0.0, %v3198
        %v3200 = vpop.f32.mrf.mxu0
        %v3201 = vadd.f32 0.0, %v3200
        %3202 = vmatprep.mubr.bf16.mxu0 %v2739
        %3203 = vmatmul.mubr.bf16.gmra.mxu0 %v2738
        %v3204 = vpop.f32.mrf.mxu0
        %v3205 = vadd.f32 0.0, %v3204
        %v3206 = vpop.f32.mrf.mxu0
        %v3207 = vadd.f32 0.0, %v3206
        %v3208 = vpop.f32.mrf.mxu0
        %v3209 = vadd.f32 0.0, %v3208
        %v3210 = vpop.f32.mrf.mxu0
        %v3211 = vadd.f32 0.0, %v3210
        %3212 = vmatprep.mubr.bf16.mxu0 %v2741
        %3213 = vmatmul.mubr.bf16.gmra.mxu0 %v2740
        %v3214 = vpop.f32.mrf.mxu0
        %v3215 = vadd.f32 0.0, %v3214
        %v3216 = vpop.f32.mrf.mxu0
        %v3217 = vadd.f32 0.0, %v3216
        %v3218 = vpop.f32.mrf.mxu0
        %v3219 = vadd.f32 0.0, %v3218
        %v3220 = vpop.f32.mrf.mxu0
        %v3221 = vadd.f32 0.0, %v3220
        %3222 = vmatprep.mubr.bf16.mxu0 %v2743
        %3223 = vmatmul.mubr.bf16.gmra.mxu0 %v2742
        %v3224 = vpop.f32.mrf.mxu0
        %v3225 = vadd.f32 0.0, %v3224
        %v3226 = vpop.f32.mrf.mxu0
        %v3227 = vadd.f32 0.0, %v3226
        %v3228 = vpop.f32.mrf.mxu0
        %v3229 = vadd.f32 0.0, %v3228
        %v3230 = vpop.f32.mrf.mxu0
        %v3231 = vadd.f32 0.0, %v3230
        %3232 = vmatprep.mubr.bf16.mxu0 %v2745
        %3233 = vmatmul.mubr.bf16.gmra.mxu0 %v2744
        %v3234 = vpop.f32.mrf.mxu0
        %v3235 = vadd.f32 0.0, %v3234
        %v3236 = vpop.f32.mrf.mxu0
        %v3237 = vadd.f32 0.0, %v3236
        %v3238 = vpop.f32.mrf.mxu0
        %v3239 = vadd.f32 0.0, %v3238
        %v3240 = vpop.f32.mrf.mxu0
        %v3241 = vadd.f32 0.0, %v3240
        %3242 = vmatprep.mubr.bf16.mxu0 %v2747
        %3243 = vmatmul.mubr.bf16.gmra.mxu0 %v2746
        %v3244 = vpop.f32.mrf.mxu0
        %v3245 = vadd.f32 0.0, %v3244
        %v3246 = vpop.f32.mrf.mxu0
        %v3247 = vadd.f32 0.0, %v3246
        %v3248 = vpop.f32.mrf.mxu0
        %v3249 = vadd.f32 0.0, %v3248
        %v3250 = vpop.f32.mrf.mxu0
        %v3251 = vadd.f32 0.0, %v3250
        %3252 = vmatprep.mubr.bf16.mxu0 %v2749
        %3253 = vmatmul.mubr.bf16.gmra.mxu0 %v2748
        %v3254 = vpop.f32.mrf.mxu0
        %v3255 = vadd.f32 0.0, %v3254
        %v3256 = vpop.f32.mrf.mxu0
        %v3257 = vadd.f32 0.0, %v3256
        %v3258 = vpop.f32.mrf.mxu0
        %v3259 = vadd.f32 0.0, %v3258
        %v3260 = vpop.f32.mrf.mxu0
        %v3261 = vadd.f32 0.0, %v3260
        %3262 = vmatprep.mubr.bf16.mxu0 %v2751
        %3263 = vmatmul.mubr.bf16.gmra.mxu0 %v2750
        %v3264 = vpop.f32.mrf.mxu0
        %v3265 = vadd.f32 0.0, %v3264
        %v3266 = vpop.f32.mrf.mxu0
        %v3267 = vadd.f32 0.0, %v3266
        %v3268 = vpop.f32.mrf.mxu0
        %v3269 = vadd.f32 0.0, %v3268
        %v3270 = vpop.f32.mrf.mxu0
        %v3271 = vadd.f32 0.0, %v3270
        %3272 = vmatprep.mubr.bf16.mxu0 %v2753
        %3273 = vmatmul.mubr.bf16.gmra.mxu0 %v2752
        %v3274 = vpop.f32.mrf.mxu0
        %v3275 = vadd.f32 0.0, %v3274
        %v3276 = vpop.f32.mrf.mxu0
        %v3277 = vadd.f32 0.0, %v3276
        %v3278 = vpop.f32.mrf.mxu0
        %v3279 = vadd.f32 0.0, %v3278
        %v3280 = vpop.f32.mrf.mxu0
        %v3281 = vadd.f32 0.0, %v3280
        %3282 = vmatprep.mubr.bf16.mxu0 %v2755
        %3283 = vmatmul.mubr.bf16.gmra.mxu0 %v2754
        %v3284 = vpop.f32.mrf.mxu0
        %v3285 = vadd.f32 0.0, %v3284
        %v3286 = vpop.f32.mrf.mxu0
        %v3287 = vadd.f32 0.0, %v3286
        %v3288 = vpop.f32.mrf.mxu0
        %v3289 = vadd.f32 0.0, %v3288
        %v3290 = vpop.f32.mrf.mxu0
        %v3291 = vadd.f32 0.0, %v3290
        %3292 = vmatprep.mubr.bf16.mxu0 %v2757
        %3293 = vmatmul.mubr.bf16.gmra.mxu0 %v2756
        %v3294 = vpop.f32.mrf.mxu0
        %v3295 = vadd.f32 0.0, %v3294
        %v3296 = vpop.f32.mrf.mxu0
        %v3297 = vadd.f32 0.0, %v3296
        %v3298 = vpop.f32.mrf.mxu0
        %v3299 = vadd.f32 0.0, %v3298
        %v3300 = vpop.f32.mrf.mxu0
        %v3301 = vadd.f32 0.0, %v3300
        %3302 = vdwg.mxu0
        %v3303 = vpack.c.bf16 %v2989, %v2985
        %v3304 = vpack.c.bf16 %v2991, %v2987
        %v3305 = vpack.c.bf16 %v2999, %v2995
        %v3306 = vpack.c.bf16 %v3001, %v2997
        %v3307 = vpack.c.bf16 %v3009, %v3005
        %v3308 = vpack.c.bf16 %v3011, %v3007
        %v3309 = vpack.c.bf16 %v3019, %v3015
        %v3310 = vpack.c.bf16 %v3021, %v3017
        %v3311 = vpack.c.bf16 %v3029, %v3025
        %v3312 = vpack.c.bf16 %v3031, %v3027
        %v3313 = vpack.c.bf16 %v3039, %v3035
        %v3314 = vpack.c.bf16 %v3041, %v3037
        %v3315 = vpack.c.bf16 %v3049, %v3045
        %v3316 = vpack.c.bf16 %v3051, %v3047
        %v3317 = vpack.c.bf16 %v3059, %v3055
        %v3318 = vpack.c.bf16 %v3061, %v3057
        %v3319 = vpack.c.bf16 %v3069, %v3065
        %v3320 = vpack.c.bf16 %v3071, %v3067
        %v3321 = vpack.c.bf16 %v3079, %v3075
        %v3322 = vpack.c.bf16 %v3081, %v3077
        %v3323 = vpack.c.bf16 %v3089, %v3085
        %v3324 = vpack.c.bf16 %v3091, %v3087
        %v3325 = vpack.c.bf16 %v3099, %v3095
        %v3326 = vpack.c.bf16 %v3101, %v3097
        %v3327 = vpack.c.bf16 %v3109, %v3105
        %v3328 = vpack.c.bf16 %v3111, %v3107
        %v3329 = vpack.c.bf16 %v3119, %v3115
        %v3330 = vpack.c.bf16 %v3121, %v3117
        %v3331 = vpack.c.bf16 %v3129, %v3125
        %v3332 = vpack.c.bf16 %v3131, %v3127
        %v3333 = vpack.c.bf16 %v3139, %v3135
        %v3334 = vpack.c.bf16 %v3141, %v3137
        %v3335 = vpack.c.bf16 %v3149, %v3145
        %v3336 = vpack.c.bf16 %v3151, %v3147
        %v3337 = vpack.c.bf16 %v3159, %v3155
        %v3338 = vpack.c.bf16 %v3161, %v3157
        %v3339 = vpack.c.bf16 %v3169, %v3165
        %v3340 = vpack.c.bf16 %v3171, %v3167
        %v3341 = vpack.c.bf16 %v3179, %v3175
        %v3342 = vpack.c.bf16 %v3181, %v3177
        %v3343 = vpack.c.bf16 %v3189, %v3185
        %v3344 = vpack.c.bf16 %v3191, %v3187
        %v3345 = vpack.c.bf16 %v3199, %v3195
        %v3346 = vpack.c.bf16 %v3201, %v3197
        %v3347 = vpack.c.bf16 %v3209, %v3205
        %v3348 = vpack.c.bf16 %v3211, %v3207
        %v3349 = vpack.c.bf16 %v3219, %v3215
        %v3350 = vpack.c.bf16 %v3221, %v3217
        %v3351 = vpack.c.bf16 %v3229, %v3225
        %v3352 = vpack.c.bf16 %v3231, %v3227
        %v3353 = vpack.c.bf16 %v3239, %v3235
        %v3354 = vpack.c.bf16 %v3241, %v3237
        %v3355 = vpack.c.bf16 %v3249, %v3245
        %v3356 = vpack.c.bf16 %v3251, %v3247
        %v3357 = vpack.c.bf16 %v3259, %v3255
        %v3358 = vpack.c.bf16 %v3261, %v3257
        %v3359 = vpack.c.bf16 %v3269, %v3265
        %v3360 = vpack.c.bf16 %v3271, %v3267
        %v3361 = vpack.c.bf16 %v3279, %v3275
        %v3362 = vpack.c.bf16 %v3281, %v3277
        %v3363 = vpack.c.bf16 %v3289, %v3285
        %v3364 = vpack.c.bf16 %v3291, %v3287
        %v3365 = vpack.c.bf16 %v3299, %v3295
        %v3366 = vpack.c.bf16 %v3301, %v3297
        %v3367 = vld [vmem:[%s12] sm:$0x3]
        %v3370 = vunpack.c.l.s4 1966171168
        %v3371 = vunpack.c.0.s8 %v3370
        %v3372 = vlaneseq
        %v3373 = vshrl.u32 %v3372, 7
        %v3374 = vsub.s32 %v3371, %v3373
        %v3375 = vrot.slane %v3367, %v3374
        %v3376 = vcombine.high %v3375, %v3375
        %v3378 = vunpack.c.l.s4 1966171168
        %v3379 = vunpack.c.0.s8 %v3378
        %v3380 = vlaneseq
        %v3381 = vshrl.u32 %v3380, 7
        %v3382 = vsub.s32 %v3379, %v3381
        %v3383 = vrot.slane %v3375, %v3382
        %v3385 = vunpack.c.l.s4 1966171168
        %v3386 = vunpack.c.0.s8 %v3385
        %v3387 = vlaneseq
        %v3388 = vshrl.u32 %v3387, 7
        %v3389 = vsub.s32 %v3386, %v3388
        %v3390 = vrot.slane %v3376, %v3389
        %v3392 = vpack.i.b16 %v3383, %v3383
        %v3394 = vlaneseq
        %v3395 = vshrl.u32 %v3394, 7
        %v3396 = vsub.s32 0, %v3395
        %v3397 = vrot.slane %v3392, %v3396
        %v3399 = vpack.i.b16 %v3390, %v3390
        %v3401 = vlaneseq
        %v3402 = vshrl.u32 %v3401, 7
        %v3403 = vsub.s32 0, %v3402
        %v3404 = vrot.slane %v3399, %v3403
        %v3405 = vadd.bf16 %v3303, %v3397
        %v3406 = vadd.bf16 %v3304, %v3404
        %v3407 = vadd.bf16 %v3305, %v3397
        %v3408 = vadd.bf16 %v3306, %v3404
        %v3409 = vadd.bf16 %v3307, %v3397
        %v3410 = vadd.bf16 %v3308, %v3404
        %v3411 = vadd.bf16 %v3309, %v3397
        %v3412 = vadd.bf16 %v3310, %v3404
        %v3413 = vadd.bf16 %v3311, %v3397
        %v3414 = vadd.bf16 %v3312, %v3404
        %v3415 = vadd.bf16 %v3313, %v3397
        %v3416 = vadd.bf16 %v3314, %v3404
        %v3417 = vadd.bf16 %v3315, %v3397
        %v3418 = vadd.bf16 %v3316, %v3404
        %v3419 = vadd.bf16 %v3317, %v3397
        %v3420 = vadd.bf16 %v3318, %v3404
        %v3421 = vadd.bf16 %v3319, %v3397
        %v3422 = vadd.bf16 %v3320, %v3404
        %v3423 = vadd.bf16 %v3321, %v3397
        %v3424 = vadd.bf16 %v3322, %v3404
        %v3425 = vadd.bf16 %v3323, %v3397
        %v3426 = vadd.bf16 %v3324, %v3404
        %v3427 = vadd.bf16 %v3325, %v3397
        %v3428 = vadd.bf16 %v3326, %v3404
        %v3429 = vadd.bf16 %v3327, %v3397
        %v3430 = vadd.bf16 %v3328, %v3404
        %v3431 = vadd.bf16 %v3329, %v3397
        %v3432 = vadd.bf16 %v3330, %v3404
        %v3433 = vadd.bf16 %v3331, %v3397
        %v3434 = vadd.bf16 %v3332, %v3404
        %v3435 = vadd.bf16 %v3333, %v3397
        %v3436 = vadd.bf16 %v3334, %v3404
        %v3437 = vadd.bf16 %v3335, %v3397
        %v3438 = vadd.bf16 %v3336, %v3404
        %v3439 = vadd.bf16 %v3337, %v3397
        %v3440 = vadd.bf16 %v3338, %v3404
        %v3441 = vadd.bf16 %v3339, %v3397
        %v3442 = vadd.bf16 %v3340, %v3404
        %v3443 = vadd.bf16 %v3341, %v3397
        %v3444 = vadd.bf16 %v3342, %v3404
        %v3445 = vadd.bf16 %v3343, %v3397
        %v3446 = vadd.bf16 %v3344, %v3404
        %v3447 = vadd.bf16 %v3345, %v3397
        %v3448 = vadd.bf16 %v3346, %v3404
        %v3449 = vadd.bf16 %v3347, %v3397
        %v3450 = vadd.bf16 %v3348, %v3404
        %v3451 = vadd.bf16 %v3349, %v3397
        %v3452 = vadd.bf16 %v3350, %v3404
        %v3453 = vadd.bf16 %v3351, %v3397
        %v3454 = vadd.bf16 %v3352, %v3404
        %v3455 = vadd.bf16 %v3353, %v3397
        %v3456 = vadd.bf16 %v3354, %v3404
        %v3457 = vadd.bf16 %v3355, %v3397
        %v3458 = vadd.bf16 %v3356, %v3404
        %v3459 = vadd.bf16 %v3357, %v3397
        %v3460 = vadd.bf16 %v3358, %v3404
        %v3461 = vadd.bf16 %v3359, %v3397
        %v3462 = vadd.bf16 %v3360, %v3404
        %v3463 = vadd.bf16 %v3361, %v3397
        %v3464 = vadd.bf16 %v3362, %v3404
        %v3465 = vadd.bf16 %v3363, %v3397
        %v3466 = vadd.bf16 %v3364, %v3404
        %v3467 = vadd.bf16 %v3365, %v3397
        %v3468 = vadd.bf16 %v3366, %v3404
        %v3469 = vmax.bf16 %v3405, 0
        %v3470 = vmax.bf16 %v3406, 0
        %v3471 = vmax.bf16 %v3407, 0
        %v3472 = vmax.bf16 %v3408, 0
        %v3473 = vmax.bf16 %v3409, 0
        %v3474 = vmax.bf16 %v3410, 0
        %v3475 = vmax.bf16 %v3411, 0
        %v3476 = vmax.bf16 %v3412, 0
        %v3477 = vmax.bf16 %v3413, 0
        %v3478 = vmax.bf16 %v3414, 0
        %v3479 = vmax.bf16 %v3415, 0
        %v3480 = vmax.bf16 %v3416, 0
        %v3481 = vmax.bf16 %v3417, 0
        %v3482 = vmax.bf16 %v3418, 0
        %v3483 = vmax.bf16 %v3419, 0
        %v3484 = vmax.bf16 %v3420, 0
        %v3485 = vmax.bf16 %v3421, 0
        %v3486 = vmax.bf16 %v3422, 0
        %v3487 = vmax.bf16 %v3423, 0
        %v3488 = vmax.bf16 %v3424, 0
        %v3489 = vmax.bf16 %v3425, 0
        %v3490 = vmax.bf16 %v3426, 0
        %v3491 = vmax.bf16 %v3427, 0
        %v3492 = vmax.bf16 %v3428, 0
        %v3493 = vmax.bf16 %v3429, 0
        %v3494 = vmax.bf16 %v3430, 0
        %v3495 = vmax.bf16 %v3431, 0
        %v3496 = vmax.bf16 %v3432, 0
        %v3497 = vmax.bf16 %v3433, 0
        %v3498 = vmax.bf16 %v3434, 0
        %v3499 = vmax.bf16 %v3435, 0
        %v3500 = vmax.bf16 %v3436, 0
        %v3501 = vmax.bf16 %v3437, 0
        %v3502 = vmax.bf16 %v3438, 0
        %v3503 = vmax.bf16 %v3439, 0
        %v3504 = vmax.bf16 %v3440, 0
        %v3505 = vmax.bf16 %v3441, 0
        %v3506 = vmax.bf16 %v3442, 0
        %v3507 = vmax.bf16 %v3443, 0
        %v3508 = vmax.bf16 %v3444, 0
        %v3509 = vmax.bf16 %v3445, 0
        %v3510 = vmax.bf16 %v3446, 0
        %v3511 = vmax.bf16 %v3447, 0
        %v3512 = vmax.bf16 %v3448, 0
        %v3513 = vmax.bf16 %v3449, 0
        %v3514 = vmax.bf16 %v3450, 0
        %v3515 = vmax.bf16 %v3451, 0
        %v3516 = vmax.bf16 %v3452, 0
        %v3517 = vmax.bf16 %v3453, 0
        %v3518 = vmax.bf16 %v3454, 0
        %v3519 = vmax.bf16 %v3455, 0
        %v3520 = vmax.bf16 %v3456, 0
        %v3521 = vmax.bf16 %v3457, 0
        %v3522 = vmax.bf16 %v3458, 0
        %v3523 = vmax.bf16 %v3459, 0
        %v3524 = vmax.bf16 %v3460, 0
        %v3525 = vmax.bf16 %v3461, 0
        %v3526 = vmax.bf16 %v3462, 0
        %v3527 = vmax.bf16 %v3463, 0
        %v3528 = vmax.bf16 %v3464, 0
        %v3529 = vmax.bf16 %v3465, 0
        %v3530 = vmax.bf16 %v3466, 0
        %v3531 = vmax.bf16 %v3467, 0
        %v3532 = vmax.bf16 %v3468, 0
        %v3533 = vld [vmem:[%s4] sm:$0xff]
        %v3534 = vld [vmem:[%s4 + $0x8] sm:$0xff]
        %v3535 = vld [vmem:[%s4 + $0x10] sm:$0xff]
        %v3536 = vld [vmem:[%s4 + $0x18] sm:$0xff]
        %v3537 = vld [vmem:[%s4 + $0x20] sm:$0xff]
        %v3538 = vld [vmem:[%s4 + $0x28] sm:$0xff]
        %v3539 = vld [vmem:[%s4 + $0x30] sm:$0xff]
        %v3540 = vld [vmem:[%s4 + $0x38] sm:$0xff]
        %v3541 = vld [vmem:[%s4 + $0x40] sm:$0xff]
        %v3542 = vld [vmem:[%s4 + $0x48] sm:$0xff]
        %v3543 = vld [vmem:[%s4 + $0x50] sm:$0xff]
        %v3544 = vld [vmem:[%s4 + $0x58] sm:$0xff]
        %v3545 = vld [vmem:[%s4 + $0x60] sm:$0xff]
        %v3546 = vld [vmem:[%s4 + $0x68] sm:$0xff]
        %v3547 = vld [vmem:[%s4 + $0x70] sm:$0xff]
        %v3548 = vld [vmem:[%s4 + $0x78] sm:$0xff]
        %v3549 = vld [vmem:[%s4 + $0x80] sm:$0xff]
        %v3550 = vld [vmem:[%s4 + $0x88] sm:$0xff]
        %v3551 = vld [vmem:[%s4 + $0x90] sm:$0xff]
        %v3552 = vld [vmem:[%s4 + $0x98] sm:$0xff]
        %v3553 = vld [vmem:[%s4 + $0xa0] sm:$0xff]
        %v3554 = vld [vmem:[%s4 + $0xa8] sm:$0xff]
        %v3555 = vld [vmem:[%s4 + $0xb0] sm:$0xff]
        %v3556 = vld [vmem:[%s4 + $0xb8] sm:$0xff]
        %v3557 = vld [vmem:[%s4 + $0xc0] sm:$0xff]
        %v3558 = vld [vmem:[%s4 + $0xc8] sm:$0xff]
        %v3559 = vld [vmem:[%s4 + $0xd0] sm:$0xff]
        %v3560 = vld [vmem:[%s4 + $0xd8] sm:$0xff]
        %v3561 = vld [vmem:[%s4 + $0xe0] sm:$0xff]
        %v3562 = vld [vmem:[%s4 + $0xe8] sm:$0xff]
        %v3563 = vld [vmem:[%s4 + $0xf0] sm:$0xff]
        %v3564 = vld [vmem:[%s4 + $0xf8] sm:$0xff]
        %v3597 = vunpack.c.l.b16 %v3533
        %v3598 = vunpack.c.h.b16 %v3533
        %v3599 = vunpack.c.l.b16 %v3534
        %v3600 = vunpack.c.h.b16 %v3534
        %v3601 = vunpack.c.l.b16 %v3535
        %v3602 = vunpack.c.h.b16 %v3535
        %v3603 = vunpack.c.l.b16 %v3536
        %v3604 = vunpack.c.h.b16 %v3536
        %v3605 = vunpack.c.l.b16 %v3537
        %v3606 = vunpack.c.h.b16 %v3537
        %v3607 = vunpack.c.l.b16 %v3538
        %v3608 = vunpack.c.h.b16 %v3538
        %v3609 = vunpack.c.l.b16 %v3539
        %v3610 = vunpack.c.h.b16 %v3539
        %v3611 = vunpack.c.l.b16 %v3540
        %v3612 = vunpack.c.h.b16 %v3540
        %v3613 = vunpack.c.l.b16 %v3541
        %v3614 = vunpack.c.h.b16 %v3541
        %v3615 = vunpack.c.l.b16 %v3542
        %v3616 = vunpack.c.h.b16 %v3542
        %v3617 = vunpack.c.l.b16 %v3543
        %v3618 = vunpack.c.h.b16 %v3543
        %v3619 = vunpack.c.l.b16 %v3544
        %v3620 = vunpack.c.h.b16 %v3544
        %v3621 = vunpack.c.l.b16 %v3545
        %v3622 = vunpack.c.h.b16 %v3545
        %v3623 = vunpack.c.l.b16 %v3546
        %v3624 = vunpack.c.h.b16 %v3546
        %v3625 = vunpack.c.l.b16 %v3547
        %v3626 = vunpack.c.h.b16 %v3547
        %v3627 = vunpack.c.l.b16 %v3548
        %v3628 = vunpack.c.h.b16 %v3548
        %v3629 = vunpack.c.l.b16 %v3549
        %v3630 = vunpack.c.h.b16 %v3549
        %v3631 = vunpack.c.l.b16 %v3550
        %v3632 = vunpack.c.h.b16 %v3550
        %v3633 = vunpack.c.l.b16 %v3551
        %v3634 = vunpack.c.h.b16 %v3551
        %v3635 = vunpack.c.l.b16 %v3552
        %v3636 = vunpack.c.h.b16 %v3552
        %v3637 = vunpack.c.l.b16 %v3553
        %v3638 = vunpack.c.h.b16 %v3553
        %v3639 = vunpack.c.l.b16 %v3554
        %v3640 = vunpack.c.h.b16 %v3554
        %v3641 = vunpack.c.l.b16 %v3555
        %v3642 = vunpack.c.h.b16 %v3555
        %v3643 = vunpack.c.l.b16 %v3556
        %v3644 = vunpack.c.h.b16 %v3556
        %v3645 = vunpack.c.l.b16 %v3557
        %v3646 = vunpack.c.h.b16 %v3557
        %v3647 = vunpack.c.l.b16 %v3558
        %v3648 = vunpack.c.h.b16 %v3558
        %v3649 = vunpack.c.l.b16 %v3559
        %v3650 = vunpack.c.h.b16 %v3559
        %v3651 = vunpack.c.l.b16 %v3560
        %v3652 = vunpack.c.h.b16 %v3560
        %v3653 = vunpack.c.l.b16 %v3561
        %v3654 = vunpack.c.h.b16 %v3561
        %v3655 = vunpack.c.l.b16 %v3562
        %v3656 = vunpack.c.h.b16 %v3562
        %v3657 = vunpack.c.l.b16 %v3563
        %v3658 = vunpack.c.h.b16 %v3563
        %v3659 = vunpack.c.l.b16 %v3564
        %v3660 = vunpack.c.h.b16 %v3564
        %v3661 = vpack.c.b16 %v3599, %v3597
        %v3662 = vpack.c.b16 %v3600, %v3598
        %v3663 = vpack.c.b16 %v3603, %v3601
        %v3664 = vpack.c.b16 %v3604, %v3602
        %v3665 = vpack.c.b16 %v3607, %v3605
        %v3666 = vpack.c.b16 %v3608, %v3606
        %v3667 = vpack.c.b16 %v3611, %v3609
        %v3668 = vpack.c.b16 %v3612, %v3610
        %v3669 = vpack.c.b16 %v3615, %v3613
        %v3670 = vpack.c.b16 %v3616, %v3614
        %v3671 = vpack.c.b16 %v3619, %v3617
        %v3672 = vpack.c.b16 %v3620, %v3618
        %v3673 = vpack.c.b16 %v3623, %v3621
        %v3674 = vpack.c.b16 %v3624, %v3622
        %v3675 = vpack.c.b16 %v3627, %v3625
        %v3676 = vpack.c.b16 %v3628, %v3626
        %v3677 = vpack.c.b16 %v3631, %v3629
        %v3678 = vpack.c.b16 %v3632, %v3630
        %v3679 = vpack.c.b16 %v3635, %v3633
        %v3680 = vpack.c.b16 %v3636, %v3634
        %v3681 = vpack.c.b16 %v3639, %v3637
        %v3682 = vpack.c.b16 %v3640, %v3638
        %v3683 = vpack.c.b16 %v3643, %v3641
        %v3684 = vpack.c.b16 %v3644, %v3642
        %v3685 = vpack.c.b16 %v3647, %v3645
        %v3686 = vpack.c.b16 %v3648, %v3646
        %v3687 = vpack.c.b16 %v3651, %v3649
        %v3688 = vpack.c.b16 %v3652, %v3650
        %v3689 = vpack.c.b16 %v3655, %v3653
        %v3690 = vpack.c.b16 %v3656, %v3654
        %v3691 = vpack.c.b16 %v3659, %v3657
        %v3692 = vpack.c.b16 %v3660, %v3658
        %3725 = vmatprep.subr.bf16.mxu0 %v3676
        %3726 = vmatpush1.bf16.msra.mxu0 %v3675
        %3727 = vmatprep.subr.bf16.mxu0 %v3674
        %3728 = vmatpush1.bf16.msra.mxu0 %v3673
        %3729 = vmatprep.subr.bf16.mxu0 %v3672
        %3730 = vmatpush1.bf16.msra.mxu0 %v3671
        %3731 = vmatprep.subr.bf16.mxu0 %v3670
        %3732 = vmatpush1.bf16.msra.mxu0 %v3669
        %3733 = vmatprep.subr.bf16.mxu0 %v3668
        %3734 = vmatpush1.bf16.msra.mxu0 %v3667
        %3735 = vmatprep.subr.bf16.mxu0 %v3666
        %3736 = vmatpush1.bf16.msra.mxu0 %v3665
        %3737 = vmatprep.subr.bf16.mxu0 %v3664
        %3738 = vmatpush1.bf16.msra.mxu0 %v3663
        %3739 = vmatprep.subr.bf16.mxu0 %v3662
        %3740 = vmatpush1.bf16.msra.mxu0 %v3661
        %3741 = vmatprep.subr.bf16.mxu0 %v3692
        %3742 = vmatpush2.bf16.msra.mxu0 %v3691
        %3743 = vmatprep.subr.bf16.mxu0 %v3690
        %3744 = vmatpush2.bf16.msra.mxu0 %v3689
        %3745 = vmatprep.subr.bf16.mxu0 %v3688
        %3746 = vmatpush2.bf16.msra.mxu0 %v3687
        %3747 = vmatprep.subr.bf16.mxu0 %v3686
        %3748 = vmatpush2.bf16.msra.mxu0 %v3685
        %3749 = vmatprep.subr.bf16.mxu0 %v3684
        %3750 = vmatpush2.bf16.msra.mxu0 %v3683
        %3751 = vmatprep.subr.bf16.mxu0 %v3682
        %3752 = vmatpush2.bf16.msra.mxu0 %v3681
        %3753 = vmatprep.subr.bf16.mxu0 %v3680
        %3754 = vmatpush2.bf16.msra.mxu0 %v3679
        %3755 = vmatprep.subr.bf16.mxu0 %v3678
        %3756 = vmatpush2.bf16.msra.mxu0 %v3677
        %3757 = vmatprep.mubr.bf16.mxu0 %v3470
        %3758 = vmatmul.mubr.bf16.gmra.mxu0 %v3469
        %v3759 = vpop.f32.mrf.mxu0
        %v3760 = vadd.f32 0.0, %v3759
        %v3761 = vpop.f32.mrf.mxu0
        %v3762 = vadd.f32 0.0, %v3761
        %v3763 = vpop.f32.mrf.mxu0
        %v3764 = vadd.f32 0.0, %v3763
        %v3765 = vpop.f32.mrf.mxu0
        %v3766 = vadd.f32 0.0, %v3765
        %3767 = vmatprep.mubr.bf16.mxu0 %v3472
        %3768 = vmatmul.mubr.bf16.gmra.mxu0 %v3471
        %v3769 = vpop.f32.mrf.mxu0
        %v3770 = vadd.f32 0.0, %v3769
        %v3771 = vpop.f32.mrf.mxu0
        %v3772 = vadd.f32 0.0, %v3771
        %v3773 = vpop.f32.mrf.mxu0
        %v3774 = vadd.f32 0.0, %v3773
        %v3775 = vpop.f32.mrf.mxu0
        %v3776 = vadd.f32 0.0, %v3775
        %3777 = vmatprep.mubr.bf16.mxu0 %v3474
        %3778 = vmatmul.mubr.bf16.gmra.mxu0 %v3473
        %v3779 = vpop.f32.mrf.mxu0
        %v3780 = vadd.f32 0.0, %v3779
        %v3781 = vpop.f32.mrf.mxu0
        %v3782 = vadd.f32 0.0, %v3781
        %v3783 = vpop.f32.mrf.mxu0
        %v3784 = vadd.f32 0.0, %v3783
        %v3785 = vpop.f32.mrf.mxu0
        %v3786 = vadd.f32 0.0, %v3785
        %3787 = vmatprep.mubr.bf16.mxu0 %v3476
        %3788 = vmatmul.mubr.bf16.gmra.mxu0 %v3475
        %v3789 = vpop.f32.mrf.mxu0
        %v3790 = vadd.f32 0.0, %v3789
        %v3791 = vpop.f32.mrf.mxu0
        %v3792 = vadd.f32 0.0, %v3791
        %v3793 = vpop.f32.mrf.mxu0
        %v3794 = vadd.f32 0.0, %v3793
        %v3795 = vpop.f32.mrf.mxu0
        %v3796 = vadd.f32 0.0, %v3795
        %3797 = vmatprep.mubr.bf16.mxu0 %v3478
        %3798 = vmatmul.mubr.bf16.gmra.mxu0 %v3477
        %v3799 = vpop.f32.mrf.mxu0
        %v3800 = vadd.f32 0.0, %v3799
        %v3801 = vpop.f32.mrf.mxu0
        %v3802 = vadd.f32 0.0, %v3801
        %v3803 = vpop.f32.mrf.mxu0
        %v3804 = vadd.f32 0.0, %v3803
        %v3805 = vpop.f32.mrf.mxu0
        %v3806 = vadd.f32 0.0, %v3805
        %3807 = vmatprep.mubr.bf16.mxu0 %v3480
        %3808 = vmatmul.mubr.bf16.gmra.mxu0 %v3479
        %v3809 = vpop.f32.mrf.mxu0
        %v3810 = vadd.f32 0.0, %v3809
        %v3811 = vpop.f32.mrf.mxu0
        %v3812 = vadd.f32 0.0, %v3811
        %v3813 = vpop.f32.mrf.mxu0
        %v3814 = vadd.f32 0.0, %v3813
        %v3815 = vpop.f32.mrf.mxu0
        %v3816 = vadd.f32 0.0, %v3815
        %3817 = vmatprep.mubr.bf16.mxu0 %v3482
        %3818 = vmatmul.mubr.bf16.gmra.mxu0 %v3481
        %v3819 = vpop.f32.mrf.mxu0
        %v3820 = vadd.f32 0.0, %v3819
        %v3821 = vpop.f32.mrf.mxu0
        %v3822 = vadd.f32 0.0, %v3821
        %v3823 = vpop.f32.mrf.mxu0
        %v3824 = vadd.f32 0.0, %v3823
        %v3825 = vpop.f32.mrf.mxu0
        %v3826 = vadd.f32 0.0, %v3825
        %3827 = vmatprep.mubr.bf16.mxu0 %v3484
        %3828 = vmatmul.mubr.bf16.gmra.mxu0 %v3483
        %v3829 = vpop.f32.mrf.mxu0
        %v3830 = vadd.f32 0.0, %v3829
        %v3831 = vpop.f32.mrf.mxu0
        %v3832 = vadd.f32 0.0, %v3831
        %v3833 = vpop.f32.mrf.mxu0
        %v3834 = vadd.f32 0.0, %v3833
        %v3835 = vpop.f32.mrf.mxu0
        %v3836 = vadd.f32 0.0, %v3835
        %3837 = vmatprep.mubr.bf16.mxu0 %v3486
        %3838 = vmatmul.mubr.bf16.gmra.mxu0 %v3485
        %v3839 = vpop.f32.mrf.mxu0
        %v3840 = vadd.f32 0.0, %v3839
        %v3841 = vpop.f32.mrf.mxu0
        %v3842 = vadd.f32 0.0, %v3841
        %v3843 = vpop.f32.mrf.mxu0
        %v3844 = vadd.f32 0.0, %v3843
        %v3845 = vpop.f32.mrf.mxu0
        %v3846 = vadd.f32 0.0, %v3845
        %3847 = vmatprep.mubr.bf16.mxu0 %v3488
        %3848 = vmatmul.mubr.bf16.gmra.mxu0 %v3487
        %v3849 = vpop.f32.mrf.mxu0
        %v3850 = vadd.f32 0.0, %v3849
        %v3851 = vpop.f32.mrf.mxu0
        %v3852 = vadd.f32 0.0, %v3851
        %v3853 = vpop.f32.mrf.mxu0
        %v3854 = vadd.f32 0.0, %v3853
        %v3855 = vpop.f32.mrf.mxu0
        %v3856 = vadd.f32 0.0, %v3855
        %3857 = vmatprep.mubr.bf16.mxu0 %v3490
        %3858 = vmatmul.mubr.bf16.gmra.mxu0 %v3489
        %v3859 = vpop.f32.mrf.mxu0
        %v3860 = vadd.f32 0.0, %v3859
        %v3861 = vpop.f32.mrf.mxu0
        %v3862 = vadd.f32 0.0, %v3861
        %v3863 = vpop.f32.mrf.mxu0
        %v3864 = vadd.f32 0.0, %v3863
        %v3865 = vpop.f32.mrf.mxu0
        %v3866 = vadd.f32 0.0, %v3865
        %3867 = vmatprep.mubr.bf16.mxu0 %v3492
        %3868 = vmatmul.mubr.bf16.gmra.mxu0 %v3491
        %v3869 = vpop.f32.mrf.mxu0
        %v3870 = vadd.f32 0.0, %v3869
        %v3871 = vpop.f32.mrf.mxu0
        %v3872 = vadd.f32 0.0, %v3871
        %v3873 = vpop.f32.mrf.mxu0
        %v3874 = vadd.f32 0.0, %v3873
        %v3875 = vpop.f32.mrf.mxu0
        %v3876 = vadd.f32 0.0, %v3875
        %3877 = vmatprep.mubr.bf16.mxu0 %v3494
        %3878 = vmatmul.mubr.bf16.gmra.mxu0 %v3493
        %v3879 = vpop.f32.mrf.mxu0
        %v3880 = vadd.f32 0.0, %v3879
        %v3881 = vpop.f32.mrf.mxu0
        %v3882 = vadd.f32 0.0, %v3881
        %v3883 = vpop.f32.mrf.mxu0
        %v3884 = vadd.f32 0.0, %v3883
        %v3885 = vpop.f32.mrf.mxu0
        %v3886 = vadd.f32 0.0, %v3885
        %3887 = vmatprep.mubr.bf16.mxu0 %v3496
        %3888 = vmatmul.mubr.bf16.gmra.mxu0 %v3495
        %v3889 = vpop.f32.mrf.mxu0
        %v3890 = vadd.f32 0.0, %v3889
        %v3891 = vpop.f32.mrf.mxu0
        %v3892 = vadd.f32 0.0, %v3891
        %v3893 = vpop.f32.mrf.mxu0
        %v3894 = vadd.f32 0.0, %v3893
        %v3895 = vpop.f32.mrf.mxu0
        %v3896 = vadd.f32 0.0, %v3895
        %3897 = vmatprep.mubr.bf16.mxu0 %v3498
        %3898 = vmatmul.mubr.bf16.gmra.mxu0 %v3497
        %v3899 = vpop.f32.mrf.mxu0
        %v3900 = vadd.f32 0.0, %v3899
        %v3901 = vpop.f32.mrf.mxu0
        %v3902 = vadd.f32 0.0, %v3901
        %v3903 = vpop.f32.mrf.mxu0
        %v3904 = vadd.f32 0.0, %v3903
        %v3905 = vpop.f32.mrf.mxu0
        %v3906 = vadd.f32 0.0, %v3905
        %3907 = vmatprep.mubr.bf16.mxu0 %v3500
        %3908 = vmatmul.mubr.bf16.gmra.mxu0 %v3499
        %v3909 = vpop.f32.mrf.mxu0
        %v3910 = vadd.f32 0.0, %v3909
        %v3911 = vpop.f32.mrf.mxu0
        %v3912 = vadd.f32 0.0, %v3911
        %v3913 = vpop.f32.mrf.mxu0
        %v3914 = vadd.f32 0.0, %v3913
        %v3915 = vpop.f32.mrf.mxu0
        %v3916 = vadd.f32 0.0, %v3915
        %3917 = vmatprep.mubr.bf16.mxu0 %v3502
        %3918 = vmatmul.mubr.bf16.gmra.mxu0 %v3501
        %v3919 = vpop.f32.mrf.mxu0
        %v3920 = vadd.f32 0.0, %v3919
        %v3921 = vpop.f32.mrf.mxu0
        %v3922 = vadd.f32 0.0, %v3921
        %v3923 = vpop.f32.mrf.mxu0
        %v3924 = vadd.f32 0.0, %v3923
        %v3925 = vpop.f32.mrf.mxu0
        %v3926 = vadd.f32 0.0, %v3925
        %3927 = vmatprep.mubr.bf16.mxu0 %v3504
        %3928 = vmatmul.mubr.bf16.gmra.mxu0 %v3503
        %v3929 = vpop.f32.mrf.mxu0
        %v3930 = vadd.f32 0.0, %v3929
        %v3931 = vpop.f32.mrf.mxu0
        %v3932 = vadd.f32 0.0, %v3931
        %v3933 = vpop.f32.mrf.mxu0
        %v3934 = vadd.f32 0.0, %v3933
        %v3935 = vpop.f32.mrf.mxu0
        %v3936 = vadd.f32 0.0, %v3935
        %3937 = vmatprep.mubr.bf16.mxu0 %v3506
        %3938 = vmatmul.mubr.bf16.gmra.mxu0 %v3505
        %v3939 = vpop.f32.mrf.mxu0
        %v3940 = vadd.f32 0.0, %v3939
        %v3941 = vpop.f32.mrf.mxu0
        %v3942 = vadd.f32 0.0, %v3941
        %v3943 = vpop.f32.mrf.mxu0
        %v3944 = vadd.f32 0.0, %v3943
        %v3945 = vpop.f32.mrf.mxu0
        %v3946 = vadd.f32 0.0, %v3945
        %3947 = vmatprep.mubr.bf16.mxu0 %v3508
        %3948 = vmatmul.mubr.bf16.gmra.mxu0 %v3507
        %v3949 = vpop.f32.mrf.mxu0
        %v3950 = vadd.f32 0.0, %v3949
        %v3951 = vpop.f32.mrf.mxu0
        %v3952 = vadd.f32 0.0, %v3951
        %v3953 = vpop.f32.mrf.mxu0
        %v3954 = vadd.f32 0.0, %v3953
        %v3955 = vpop.f32.mrf.mxu0
        %v3956 = vadd.f32 0.0, %v3955
        %3957 = vmatprep.mubr.bf16.mxu0 %v3510
        %3958 = vmatmul.mubr.bf16.gmra.mxu0 %v3509
        %v3959 = vpop.f32.mrf.mxu0
        %v3960 = vadd.f32 0.0, %v3959
        %v3961 = vpop.f32.mrf.mxu0
        %v3962 = vadd.f32 0.0, %v3961
        %v3963 = vpop.f32.mrf.mxu0
        %v3964 = vadd.f32 0.0, %v3963
        %v3965 = vpop.f32.mrf.mxu0
        %v3966 = vadd.f32 0.0, %v3965
        %3967 = vmatprep.mubr.bf16.mxu0 %v3512
        %3968 = vmatmul.mubr.bf16.gmra.mxu0 %v3511
        %v3969 = vpop.f32.mrf.mxu0
        %v3970 = vadd.f32 0.0, %v3969
        %v3971 = vpop.f32.mrf.mxu0
        %v3972 = vadd.f32 0.0, %v3971
        %v3973 = vpop.f32.mrf.mxu0
        %v3974 = vadd.f32 0.0, %v3973
        %v3975 = vpop.f32.mrf.mxu0
        %v3976 = vadd.f32 0.0, %v3975
        %3977 = vmatprep.mubr.bf16.mxu0 %v3514
        %3978 = vmatmul.mubr.bf16.gmra.mxu0 %v3513
        %v3979 = vpop.f32.mrf.mxu0
        %v3980 = vadd.f32 0.0, %v3979
        %v3981 = vpop.f32.mrf.mxu0
        %v3982 = vadd.f32 0.0, %v3981
        %v3983 = vpop.f32.mrf.mxu0
        %v3984 = vadd.f32 0.0, %v3983
        %v3985 = vpop.f32.mrf.mxu0
        %v3986 = vadd.f32 0.0, %v3985
        %3987 = vmatprep.mubr.bf16.mxu0 %v3516
        %3988 = vmatmul.mubr.bf16.gmra.mxu0 %v3515
        %v3989 = vpop.f32.mrf.mxu0
        %v3990 = vadd.f32 0.0, %v3989
        %v3991 = vpop.f32.mrf.mxu0
        %v3992 = vadd.f32 0.0, %v3991
        %v3993 = vpop.f32.mrf.mxu0
        %v3994 = vadd.f32 0.0, %v3993
        %v3995 = vpop.f32.mrf.mxu0
        %v3996 = vadd.f32 0.0, %v3995
        %3997 = vmatprep.mubr.bf16.mxu0 %v3518
        %3998 = vmatmul.mubr.bf16.gmra.mxu0 %v3517
        %v3999 = vpop.f32.mrf.mxu0
        %v4000 = vadd.f32 0.0, %v3999
        %v4001 = vpop.f32.mrf.mxu0
        %v4002 = vadd.f32 0.0, %v4001
        %v4003 = vpop.f32.mrf.mxu0
        %v4004 = vadd.f32 0.0, %v4003
        %v4005 = vpop.f32.mrf.mxu0
        %v4006 = vadd.f32 0.0, %v4005
        %4007 = vmatprep.mubr.bf16.mxu0 %v3520
        %4008 = vmatmul.mubr.bf16.gmra.mxu0 %v3519
        %v4009 = vpop.f32.mrf.mxu0
        %v4010 = vadd.f32 0.0, %v4009
        %v4011 = vpop.f32.mrf.mxu0
        %v4012 = vadd.f32 0.0, %v4011
        %v4013 = vpop.f32.mrf.mxu0
        %v4014 = vadd.f32 0.0, %v4013
        %v4015 = vpop.f32.mrf.mxu0
        %v4016 = vadd.f32 0.0, %v4015
        %4017 = vmatprep.mubr.bf16.mxu0 %v3522
        %4018 = vmatmul.mubr.bf16.gmra.mxu0 %v3521
        %v4019 = vpop.f32.mrf.mxu0
        %v4020 = vadd.f32 0.0, %v4019
        %v4021 = vpop.f32.mrf.mxu0
        %v4022 = vadd.f32 0.0, %v4021
        %v4023 = vpop.f32.mrf.mxu0
        %v4024 = vadd.f32 0.0, %v4023
        %v4025 = vpop.f32.mrf.mxu0
        %v4026 = vadd.f32 0.0, %v4025
        %4027 = vmatprep.mubr.bf16.mxu0 %v3524
        %4028 = vmatmul.mubr.bf16.gmra.mxu0 %v3523
        %v4029 = vpop.f32.mrf.mxu0
        %v4030 = vadd.f32 0.0, %v4029
        %v4031 = vpop.f32.mrf.mxu0
        %v4032 = vadd.f32 0.0, %v4031
        %v4033 = vpop.f32.mrf.mxu0
        %v4034 = vadd.f32 0.0, %v4033
        %v4035 = vpop.f32.mrf.mxu0
        %v4036 = vadd.f32 0.0, %v4035
        %4037 = vmatprep.mubr.bf16.mxu0 %v3526
        %4038 = vmatmul.mubr.bf16.gmra.mxu0 %v3525
        %v4039 = vpop.f32.mrf.mxu0
        %v4040 = vadd.f32 0.0, %v4039
        %v4041 = vpop.f32.mrf.mxu0
        %v4042 = vadd.f32 0.0, %v4041
        %v4043 = vpop.f32.mrf.mxu0
        %v4044 = vadd.f32 0.0, %v4043
        %v4045 = vpop.f32.mrf.mxu0
        %v4046 = vadd.f32 0.0, %v4045
        %4047 = vmatprep.mubr.bf16.mxu0 %v3528
        %4048 = vmatmul.mubr.bf16.gmra.mxu0 %v3527
        %v4049 = vpop.f32.mrf.mxu0
        %v4050 = vadd.f32 0.0, %v4049
        %v4051 = vpop.f32.mrf.mxu0
        %v4052 = vadd.f32 0.0, %v4051
        %v4053 = vpop.f32.mrf.mxu0
        %v4054 = vadd.f32 0.0, %v4053
        %v4055 = vpop.f32.mrf.mxu0
        %v4056 = vadd.f32 0.0, %v4055
        %4057 = vmatprep.mubr.bf16.mxu0 %v3530
        %4058 = vmatmul.mubr.bf16.gmra.mxu0 %v3529
        %v4059 = vpop.f32.mrf.mxu0
        %v4060 = vadd.f32 0.0, %v4059
        %v4061 = vpop.f32.mrf.mxu0
        %v4062 = vadd.f32 0.0, %v4061
        %v4063 = vpop.f32.mrf.mxu0
        %v4064 = vadd.f32 0.0, %v4063
        %v4065 = vpop.f32.mrf.mxu0
        %v4066 = vadd.f32 0.0, %v4065
        %4067 = vmatprep.mubr.bf16.mxu0 %v3532
        %4068 = vmatmul.mubr.bf16.gmra.mxu0 %v3531
        %v4069 = vpop.f32.mrf.mxu0
        %v4070 = vadd.f32 0.0, %v4069
        %v4071 = vpop.f32.mrf.mxu0
        %v4072 = vadd.f32 0.0, %v4071
        %v4073 = vpop.f32.mrf.mxu0
        %v4074 = vadd.f32 0.0, %v4073
        %v4075 = vpop.f32.mrf.mxu0
        %v4076 = vadd.f32 0.0, %v4075
        %4077 = vdwg.mxu0
        %v4078 = vpack.c.bf16 %v3764, %v3760
        %v4079 = vpack.c.bf16 %v3766, %v3762
        %v4080 = vpack.c.bf16 %v3774, %v3770
        %v4081 = vpack.c.bf16 %v3776, %v3772
        %v4082 = vpack.c.bf16 %v3784, %v3780
        %v4083 = vpack.c.bf16 %v3786, %v3782
        %v4084 = vpack.c.bf16 %v3794, %v3790
        %v4085 = vpack.c.bf16 %v3796, %v3792
        %v4086 = vpack.c.bf16 %v3804, %v3800
        %v4087 = vpack.c.bf16 %v3806, %v3802
        %v4088 = vpack.c.bf16 %v3814, %v3810
        %v4089 = vpack.c.bf16 %v3816, %v3812
        %v4090 = vpack.c.bf16 %v3824, %v3820
        %v4091 = vpack.c.bf16 %v3826, %v3822
        %v4092 = vpack.c.bf16 %v3834, %v3830
        %v4093 = vpack.c.bf16 %v3836, %v3832
        %v4094 = vpack.c.bf16 %v3844, %v3840
        %v4095 = vpack.c.bf16 %v3846, %v3842
        %v4096 = vpack.c.bf16 %v3854, %v3850
        %v4097 = vpack.c.bf16 %v3856, %v3852
        %v4098 = vpack.c.bf16 %v3864, %v3860
        %v4099 = vpack.c.bf16 %v3866, %v3862
        %v4100 = vpack.c.bf16 %v3874, %v3870
        %v4101 = vpack.c.bf16 %v3876, %v3872
        %v4102 = vpack.c.bf16 %v3884, %v3880
        %v4103 = vpack.c.bf16 %v3886, %v3882
        %v4104 = vpack.c.bf16 %v3894, %v3890
        %v4105 = vpack.c.bf16 %v3896, %v3892
        %v4106 = vpack.c.bf16 %v3904, %v3900
        %v4107 = vpack.c.bf16 %v3906, %v3902
        %v4108 = vpack.c.bf16 %v3914, %v3910
        %v4109 = vpack.c.bf16 %v3916, %v3912
        %v4110 = vpack.c.bf16 %v3924, %v3920
        %v4111 = vpack.c.bf16 %v3926, %v3922
        %v4112 = vpack.c.bf16 %v3934, %v3930
        %v4113 = vpack.c.bf16 %v3936, %v3932
        %v4114 = vpack.c.bf16 %v3944, %v3940
        %v4115 = vpack.c.bf16 %v3946, %v3942
        %v4116 = vpack.c.bf16 %v3954, %v3950
        %v4117 = vpack.c.bf16 %v3956, %v3952
        %v4118 = vpack.c.bf16 %v3964, %v3960
        %v4119 = vpack.c.bf16 %v3966, %v3962
        %v4120 = vpack.c.bf16 %v3974, %v3970
        %v4121 = vpack.c.bf16 %v3976, %v3972
        %v4122 = vpack.c.bf16 %v3984, %v3980
        %v4123 = vpack.c.bf16 %v3986, %v3982
        %v4124 = vpack.c.bf16 %v3994, %v3990
        %v4125 = vpack.c.bf16 %v3996, %v3992
        %v4126 = vpack.c.bf16 %v4004, %v4000
        %v4127 = vpack.c.bf16 %v4006, %v4002
        %v4128 = vpack.c.bf16 %v4014, %v4010
        %v4129 = vpack.c.bf16 %v4016, %v4012
        %v4130 = vpack.c.bf16 %v4024, %v4020
        %v4131 = vpack.c.bf16 %v4026, %v4022
        %v4132 = vpack.c.bf16 %v4034, %v4030
        %v4133 = vpack.c.bf16 %v4036, %v4032
        %v4134 = vpack.c.bf16 %v4044, %v4040
        %v4135 = vpack.c.bf16 %v4046, %v4042
        %v4136 = vpack.c.bf16 %v4054, %v4050
        %v4137 = vpack.c.bf16 %v4056, %v4052
        %v4138 = vpack.c.bf16 %v4064, %v4060
        %v4139 = vpack.c.bf16 %v4066, %v4062
        %v4140 = vpack.c.bf16 %v4074, %v4070
        %v4141 = vpack.c.bf16 %v4076, %v4072
        %v4142 = vld [vmem:[%s13] sm:$0x3]
        %v4145 = vunpack.c.l.s4 1966171168
        %v4146 = vunpack.c.0.s8 %v4145
        %v4147 = vlaneseq
        %v4148 = vshrl.u32 %v4147, 7
        %v4149 = vsub.s32 %v4146, %v4148
        %v4150 = vrot.slane %v4142, %v4149
        %v4151 = vcombine.high %v4150, %v4150
        %v4153 = vunpack.c.l.s4 1966171168
        %v4154 = vunpack.c.0.s8 %v4153
        %v4155 = vlaneseq
        %v4156 = vshrl.u32 %v4155, 7
        %v4157 = vsub.s32 %v4154, %v4156
        %v4158 = vrot.slane %v4150, %v4157
        %v4160 = vunpack.c.l.s4 1966171168
        %v4161 = vunpack.c.0.s8 %v4160
        %v4162 = vlaneseq
        %v4163 = vshrl.u32 %v4162, 7
        %v4164 = vsub.s32 %v4161, %v4163
        %v4165 = vrot.slane %v4151, %v4164
        %v4167 = vpack.i.b16 %v4158, %v4158
        %v4169 = vlaneseq
        %v4170 = vshrl.u32 %v4169, 7
        %v4171 = vsub.s32 0, %v4170
        %v4172 = vrot.slane %v4167, %v4171
        %v4174 = vpack.i.b16 %v4165, %v4165
        %v4176 = vlaneseq
        %v4177 = vshrl.u32 %v4176, 7
        %v4178 = vsub.s32 0, %v4177
        %v4179 = vrot.slane %v4174, %v4178
        %v4180 = vadd.bf16 %v4078, %v4172
        %v4181 = vadd.bf16 %v4079, %v4179
        %v4182 = vadd.bf16 %v4080, %v4172
        %v4183 = vadd.bf16 %v4081, %v4179
        %v4184 = vadd.bf16 %v4082, %v4172
        %v4185 = vadd.bf16 %v4083, %v4179
        %v4186 = vadd.bf16 %v4084, %v4172
        %v4187 = vadd.bf16 %v4085, %v4179
        %v4188 = vadd.bf16 %v4086, %v4172
        %v4189 = vadd.bf16 %v4087, %v4179
        %v4190 = vadd.bf16 %v4088, %v4172
        %v4191 = vadd.bf16 %v4089, %v4179
        %v4192 = vadd.bf16 %v4090, %v4172
        %v4193 = vadd.bf16 %v4091, %v4179
        %v4194 = vadd.bf16 %v4092, %v4172
        %v4195 = vadd.bf16 %v4093, %v4179
        %v4196 = vadd.bf16 %v4094, %v4172
        %v4197 = vadd.bf16 %v4095, %v4179
        %v4198 = vadd.bf16 %v4096, %v4172
        %v4199 = vadd.bf16 %v4097, %v4179
        %v4200 = vadd.bf16 %v4098, %v4172
        %v4201 = vadd.bf16 %v4099, %v4179
        %v4202 = vadd.bf16 %v4100, %v4172
        %v4203 = vadd.bf16 %v4101, %v4179
        %v4204 = vadd.bf16 %v4102, %v4172
        %v4205 = vadd.bf16 %v4103, %v4179
        %v4206 = vadd.bf16 %v4104, %v4172
        %v4207 = vadd.bf16 %v4105, %v4179
        %v4208 = vadd.bf16 %v4106, %v4172
        %v4209 = vadd.bf16 %v4107, %v4179
        %v4210 = vadd.bf16 %v4108, %v4172
        %v4211 = vadd.bf16 %v4109, %v4179
        %v4212 = vadd.bf16 %v4110, %v4172
        %v4213 = vadd.bf16 %v4111, %v4179
        %v4214 = vadd.bf16 %v4112, %v4172
        %v4215 = vadd.bf16 %v4113, %v4179
        %v4216 = vadd.bf16 %v4114, %v4172
        %v4217 = vadd.bf16 %v4115, %v4179
        %v4218 = vadd.bf16 %v4116, %v4172
        %v4219 = vadd.bf16 %v4117, %v4179
        %v4220 = vadd.bf16 %v4118, %v4172
        %v4221 = vadd.bf16 %v4119, %v4179
        %v4222 = vadd.bf16 %v4120, %v4172
        %v4223 = vadd.bf16 %v4121, %v4179
        %v4224 = vadd.bf16 %v4122, %v4172
        %v4225 = vadd.bf16 %v4123, %v4179
        %v4226 = vadd.bf16 %v4124, %v4172
        %v4227 = vadd.bf16 %v4125, %v4179
        %v4228 = vadd.bf16 %v4126, %v4172
        %v4229 = vadd.bf16 %v4127, %v4179
        %v4230 = vadd.bf16 %v4128, %v4172
        %v4231 = vadd.bf16 %v4129, %v4179
        %v4232 = vadd.bf16 %v4130, %v4172
        %v4233 = vadd.bf16 %v4131, %v4179
        %v4234 = vadd.bf16 %v4132, %v4172
        %v4235 = vadd.bf16 %v4133, %v4179
        %v4236 = vadd.bf16 %v4134, %v4172
        %v4237 = vadd.bf16 %v4135, %v4179
        %v4238 = vadd.bf16 %v4136, %v4172
        %v4239 = vadd.bf16 %v4137, %v4179
        %v4240 = vadd.bf16 %v4138, %v4172
        %v4241 = vadd.bf16 %v4139, %v4179
        %v4242 = vadd.bf16 %v4140, %v4172
        %v4243 = vadd.bf16 %v4141, %v4179
        %v4244 = vmax.bf16 %v4180, 0
        %v4245 = vmax.bf16 %v4181, 0
        %v4246 = vmax.bf16 %v4182, 0
        %v4247 = vmax.bf16 %v4183, 0
        %v4248 = vmax.bf16 %v4184, 0
        %v4249 = vmax.bf16 %v4185, 0
        %v4250 = vmax.bf16 %v4186, 0
        %v4251 = vmax.bf16 %v4187, 0
        %v4252 = vmax.bf16 %v4188, 0
        %v4253 = vmax.bf16 %v4189, 0
        %v4254 = vmax.bf16 %v4190, 0
        %v4255 = vmax.bf16 %v4191, 0
        %v4256 = vmax.bf16 %v4192, 0
        %v4257 = vmax.bf16 %v4193, 0
        %v4258 = vmax.bf16 %v4194, 0
        %v4259 = vmax.bf16 %v4195, 0
        %v4260 = vmax.bf16 %v4196, 0
        %v4261 = vmax.bf16 %v4197, 0
        %v4262 = vmax.bf16 %v4198, 0
        %v4263 = vmax.bf16 %v4199, 0
        %v4264 = vmax.bf16 %v4200, 0
        %v4265 = vmax.bf16 %v4201, 0
        %v4266 = vmax.bf16 %v4202, 0
        %v4267 = vmax.bf16 %v4203, 0
        %v4268 = vmax.bf16 %v4204, 0
        %v4269 = vmax.bf16 %v4205, 0
        %v4270 = vmax.bf16 %v4206, 0
        %v4271 = vmax.bf16 %v4207, 0
        %v4272 = vmax.bf16 %v4208, 0
        %v4273 = vmax.bf16 %v4209, 0
        %v4274 = vmax.bf16 %v4210, 0
        %v4275 = vmax.bf16 %v4211, 0
        %v4276 = vmax.bf16 %v4212, 0
        %v4277 = vmax.bf16 %v4213, 0
        %v4278 = vmax.bf16 %v4214, 0
        %v4279 = vmax.bf16 %v4215, 0
        %v4280 = vmax.bf16 %v4216, 0
        %v4281 = vmax.bf16 %v4217, 0
        %v4282 = vmax.bf16 %v4218, 0
        %v4283 = vmax.bf16 %v4219, 0
        %v4284 = vmax.bf16 %v4220, 0
        %v4285 = vmax.bf16 %v4221, 0
        %v4286 = vmax.bf16 %v4222, 0
        %v4287 = vmax.bf16 %v4223, 0
        %v4288 = vmax.bf16 %v4224, 0
        %v4289 = vmax.bf16 %v4225, 0
        %v4290 = vmax.bf16 %v4226, 0
        %v4291 = vmax.bf16 %v4227, 0
        %v4292 = vmax.bf16 %v4228, 0
        %v4293 = vmax.bf16 %v4229, 0
        %v4294 = vmax.bf16 %v4230, 0
        %v4295 = vmax.bf16 %v4231, 0
        %v4296 = vmax.bf16 %v4232, 0
        %v4297 = vmax.bf16 %v4233, 0
        %v4298 = vmax.bf16 %v4234, 0
        %v4299 = vmax.bf16 %v4235, 0
        %v4300 = vmax.bf16 %v4236, 0
        %v4301 = vmax.bf16 %v4237, 0
        %v4302 = vmax.bf16 %v4238, 0
        %v4303 = vmax.bf16 %v4239, 0
        %v4304 = vmax.bf16 %v4240, 0
        %v4305 = vmax.bf16 %v4241, 0
        %v4306 = vmax.bf16 %v4242, 0
        %v4307 = vmax.bf16 %v4243, 0
        %v4308 = vld [vmem:[%s5] sm:$0xff]
        %v4309 = vld [vmem:[%s5 + $0x8] sm:$0xff]
        %v4310 = vld [vmem:[%s5 + $0x10] sm:$0xff]
        %v4311 = vld [vmem:[%s5 + $0x18] sm:$0xff]
        %v4312 = vld [vmem:[%s5 + $0x20] sm:$0xff]
        %v4313 = vld [vmem:[%s5 + $0x28] sm:$0xff]
        %v4314 = vld [vmem:[%s5 + $0x30] sm:$0xff]
        %v4315 = vld [vmem:[%s5 + $0x38] sm:$0xff]
        %v4316 = vld [vmem:[%s5 + $0x40] sm:$0xff]
        %v4317 = vld [vmem:[%s5 + $0x48] sm:$0xff]
        %v4318 = vld [vmem:[%s5 + $0x50] sm:$0xff]
        %v4319 = vld [vmem:[%s5 + $0x58] sm:$0xff]
        %v4320 = vld [vmem:[%s5 + $0x60] sm:$0xff]
        %v4321 = vld [vmem:[%s5 + $0x68] sm:$0xff]
        %v4322 = vld [vmem:[%s5 + $0x70] sm:$0xff]
        %v4323 = vld [vmem:[%s5 + $0x78] sm:$0xff]
        %v4324 = vld [vmem:[%s5 + $0x80] sm:$0xff]
        %v4325 = vld [vmem:[%s5 + $0x88] sm:$0xff]
        %v4326 = vld [vmem:[%s5 + $0x90] sm:$0xff]
        %v4327 = vld [vmem:[%s5 + $0x98] sm:$0xff]
        %v4328 = vld [vmem:[%s5 + $0xa0] sm:$0xff]
        %v4329 = vld [vmem:[%s5 + $0xa8] sm:$0xff]
        %v4330 = vld [vmem:[%s5 + $0xb0] sm:$0xff]
        %v4331 = vld [vmem:[%s5 + $0xb8] sm:$0xff]
        %v4332 = vld [vmem:[%s5 + $0xc0] sm:$0xff]
        %v4333 = vld [vmem:[%s5 + $0xc8] sm:$0xff]
        %v4334 = vld [vmem:[%s5 + $0xd0] sm:$0xff]
        %v4335 = vld [vmem:[%s5 + $0xd8] sm:$0xff]
        %v4336 = vld [vmem:[%s5 + $0xe0] sm:$0xff]
        %v4337 = vld [vmem:[%s5 + $0xe8] sm:$0xff]
        %v4338 = vld [vmem:[%s5 + $0xf0] sm:$0xff]
        %v4339 = vld [vmem:[%s5 + $0xf8] sm:$0xff]
        %v4372 = vunpack.c.l.b16 %v4308
        %v4373 = vunpack.c.h.b16 %v4308
        %v4374 = vunpack.c.l.b16 %v4309
        %v4375 = vunpack.c.h.b16 %v4309
        %v4376 = vunpack.c.l.b16 %v4310
        %v4377 = vunpack.c.h.b16 %v4310
        %v4378 = vunpack.c.l.b16 %v4311
        %v4379 = vunpack.c.h.b16 %v4311
        %v4380 = vunpack.c.l.b16 %v4312
        %v4381 = vunpack.c.h.b16 %v4312
        %v4382 = vunpack.c.l.b16 %v4313
        %v4383 = vunpack.c.h.b16 %v4313
        %v4384 = vunpack.c.l.b16 %v4314
        %v4385 = vunpack.c.h.b16 %v4314
        %v4386 = vunpack.c.l.b16 %v4315
        %v4387 = vunpack.c.h.b16 %v4315
        %v4388 = vunpack.c.l.b16 %v4316
        %v4389 = vunpack.c.h.b16 %v4316
        %v4390 = vunpack.c.l.b16 %v4317
        %v4391 = vunpack.c.h.b16 %v4317
        %v4392 = vunpack.c.l.b16 %v4318
        %v4393 = vunpack.c.h.b16 %v4318
        %v4394 = vunpack.c.l.b16 %v4319
        %v4395 = vunpack.c.h.b16 %v4319
        %v4396 = vunpack.c.l.b16 %v4320
        %v4397 = vunpack.c.h.b16 %v4320
        %v4398 = vunpack.c.l.b16 %v4321
        %v4399 = vunpack.c.h.b16 %v4321
        %v4400 = vunpack.c.l.b16 %v4322
        %v4401 = vunpack.c.h.b16 %v4322
        %v4402 = vunpack.c.l.b16 %v4323
        %v4403 = vunpack.c.h.b16 %v4323
        %v4404 = vunpack.c.l.b16 %v4324
        %v4405 = vunpack.c.h.b16 %v4324
        %v4406 = vunpack.c.l.b16 %v4325
        %v4407 = vunpack.c.h.b16 %v4325
        %v4408 = vunpack.c.l.b16 %v4326
        %v4409 = vunpack.c.h.b16 %v4326
        %v4410 = vunpack.c.l.b16 %v4327
        %v4411 = vunpack.c.h.b16 %v4327
        %v4412 = vunpack.c.l.b16 %v4328
        %v4413 = vunpack.c.h.b16 %v4328
        %v4414 = vunpack.c.l.b16 %v4329
        %v4415 = vunpack.c.h.b16 %v4329
        %v4416 = vunpack.c.l.b16 %v4330
        %v4417 = vunpack.c.h.b16 %v4330
        %v4418 = vunpack.c.l.b16 %v4331
        %v4419 = vunpack.c.h.b16 %v4331
        %v4420 = vunpack.c.l.b16 %v4332
        %v4421 = vunpack.c.h.b16 %v4332
        %v4422 = vunpack.c.l.b16 %v4333
        %v4423 = vunpack.c.h.b16 %v4333
        %v4424 = vunpack.c.l.b16 %v4334
        %v4425 = vunpack.c.h.b16 %v4334
        %v4426 = vunpack.c.l.b16 %v4335
        %v4427 = vunpack.c.h.b16 %v4335
        %v4428 = vunpack.c.l.b16 %v4336
        %v4429 = vunpack.c.h.b16 %v4336
        %v4430 = vunpack.c.l.b16 %v4337
        %v4431 = vunpack.c.h.b16 %v4337
        %v4432 = vunpack.c.l.b16 %v4338
        %v4433 = vunpack.c.h.b16 %v4338
        %v4434 = vunpack.c.l.b16 %v4339
        %v4435 = vunpack.c.h.b16 %v4339
        %v4436 = vpack.c.b16 %v4374, %v4372
        %v4437 = vpack.c.b16 %v4375, %v4373
        %v4438 = vpack.c.b16 %v4378, %v4376
        %v4439 = vpack.c.b16 %v4379, %v4377
        %v4440 = vpack.c.b16 %v4382, %v4380
        %v4441 = vpack.c.b16 %v4383, %v4381
        %v4442 = vpack.c.b16 %v4386, %v4384
        %v4443 = vpack.c.b16 %v4387, %v4385
        %v4444 = vpack.c.b16 %v4390, %v4388
        %v4445 = vpack.c.b16 %v4391, %v4389
        %v4446 = vpack.c.b16 %v4394, %v4392
        %v4447 = vpack.c.b16 %v4395, %v4393
        %v4448 = vpack.c.b16 %v4398, %v4396
        %v4449 = vpack.c.b16 %v4399, %v4397
        %v4450 = vpack.c.b16 %v4402, %v4400
        %v4451 = vpack.c.b16 %v4403, %v4401
        %v4452 = vpack.c.b16 %v4406, %v4404
        %v4453 = vpack.c.b16 %v4407, %v4405
        %v4454 = vpack.c.b16 %v4410, %v4408
        %v4455 = vpack.c.b16 %v4411, %v4409
        %v4456 = vpack.c.b16 %v4414, %v4412
        %v4457 = vpack.c.b16 %v4415, %v4413
        %v4458 = vpack.c.b16 %v4418, %v4416
        %v4459 = vpack.c.b16 %v4419, %v4417
        %v4460 = vpack.c.b16 %v4422, %v4420
        %v4461 = vpack.c.b16 %v4423, %v4421
        %v4462 = vpack.c.b16 %v4426, %v4424
        %v4463 = vpack.c.b16 %v4427, %v4425
        %v4464 = vpack.c.b16 %v4430, %v4428
        %v4465 = vpack.c.b16 %v4431, %v4429
        %v4466 = vpack.c.b16 %v4434, %v4432
        %v4467 = vpack.c.b16 %v4435, %v4433
        %4500 = vmatprep.subr.bf16.mxu0 %v4451
        %4501 = vmatpush1.bf16.msra.mxu0 %v4450
        %4502 = vmatprep.subr.bf16.mxu0 %v4449
        %4503 = vmatpush1.bf16.msra.mxu0 %v4448
        %4504 = vmatprep.subr.bf16.mxu0 %v4447
        %4505 = vmatpush1.bf16.msra.mxu0 %v4446
        %4506 = vmatprep.subr.bf16.mxu0 %v4445
        %4507 = vmatpush1.bf16.msra.mxu0 %v4444
        %4508 = vmatprep.subr.bf16.mxu0 %v4443
        %4509 = vmatpush1.bf16.msra.mxu0 %v4442
        %4510 = vmatprep.subr.bf16.mxu0 %v4441
        %4511 = vmatpush1.bf16.msra.mxu0 %v4440
        %4512 = vmatprep.subr.bf16.mxu0 %v4439
        %4513 = vmatpush1.bf16.msra.mxu0 %v4438
        %4514 = vmatprep.subr.bf16.mxu0 %v4437
        %4515 = vmatpush1.bf16.msra.mxu0 %v4436
        %4516 = vmatprep.subr.bf16.mxu0 %v4467
        %4517 = vmatpush2.bf16.msra.mxu0 %v4466
        %4518 = vmatprep.subr.bf16.mxu0 %v4465
        %4519 = vmatpush2.bf16.msra.mxu0 %v4464
        %4520 = vmatprep.subr.bf16.mxu0 %v4463
        %4521 = vmatpush2.bf16.msra.mxu0 %v4462
        %4522 = vmatprep.subr.bf16.mxu0 %v4461
        %4523 = vmatpush2.bf16.msra.mxu0 %v4460
        %4524 = vmatprep.subr.bf16.mxu0 %v4459
        %4525 = vmatpush2.bf16.msra.mxu0 %v4458
        %4526 = vmatprep.subr.bf16.mxu0 %v4457
        %4527 = vmatpush2.bf16.msra.mxu0 %v4456
        %4528 = vmatprep.subr.bf16.mxu0 %v4455
        %4529 = vmatpush2.bf16.msra.mxu0 %v4454
        %4530 = vmatprep.subr.bf16.mxu0 %v4453
        %4531 = vmatpush2.bf16.msra.mxu0 %v4452
        %4532 = vmatprep.mubr.bf16.mxu0 %v4245
        %4533 = vmatmul.mubr.bf16.gmra.mxu0 %v4244
        %v4534 = vpop.f32.mrf.mxu0
        %v4535 = vadd.f32 0.0, %v4534
        %v4536 = vpop.f32.mrf.mxu0
        %v4537 = vadd.f32 0.0, %v4536
        %v4538 = vpop.f32.mrf.mxu0
        %v4539 = vadd.f32 0.0, %v4538
        %v4540 = vpop.f32.mrf.mxu0
        %v4541 = vadd.f32 0.0, %v4540
        %4542 = vmatprep.mubr.bf16.mxu0 %v4247
        %4543 = vmatmul.mubr.bf16.gmra.mxu0 %v4246
        %v4544 = vpop.f32.mrf.mxu0
        %v4545 = vadd.f32 0.0, %v4544
        %v4546 = vpop.f32.mrf.mxu0
        %v4547 = vadd.f32 0.0, %v4546
        %v4548 = vpop.f32.mrf.mxu0
        %v4549 = vadd.f32 0.0, %v4548
        %v4550 = vpop.f32.mrf.mxu0
        %v4551 = vadd.f32 0.0, %v4550
        %4552 = vmatprep.mubr.bf16.mxu0 %v4249
        %4553 = vmatmul.mubr.bf16.gmra.mxu0 %v4248
        %v4554 = vpop.f32.mrf.mxu0
        %v4555 = vadd.f32 0.0, %v4554
        %v4556 = vpop.f32.mrf.mxu0
        %v4557 = vadd.f32 0.0, %v4556
        %v4558 = vpop.f32.mrf.mxu0
        %v4559 = vadd.f32 0.0, %v4558
        %v4560 = vpop.f32.mrf.mxu0
        %v4561 = vadd.f32 0.0, %v4560
        %4562 = vmatprep.mubr.bf16.mxu0 %v4251
        %4563 = vmatmul.mubr.bf16.gmra.mxu0 %v4250
        %v4564 = vpop.f32.mrf.mxu0
        %v4565 = vadd.f32 0.0, %v4564
        %v4566 = vpop.f32.mrf.mxu0
        %v4567 = vadd.f32 0.0, %v4566
        %v4568 = vpop.f32.mrf.mxu0
        %v4569 = vadd.f32 0.0, %v4568
        %v4570 = vpop.f32.mrf.mxu0
        %v4571 = vadd.f32 0.0, %v4570
        %4572 = vmatprep.mubr.bf16.mxu0 %v4253
        %4573 = vmatmul.mubr.bf16.gmra.mxu0 %v4252
        %v4574 = vpop.f32.mrf.mxu0
        %v4575 = vadd.f32 0.0, %v4574
        %v4576 = vpop.f32.mrf.mxu0
        %v4577 = vadd.f32 0.0, %v4576
        %v4578 = vpop.f32.mrf.mxu0
        %v4579 = vadd.f32 0.0, %v4578
        %v4580 = vpop.f32.mrf.mxu0
        %v4581 = vadd.f32 0.0, %v4580
        %4582 = vmatprep.mubr.bf16.mxu0 %v4255
        %4583 = vmatmul.mubr.bf16.gmra.mxu0 %v4254
        %v4584 = vpop.f32.mrf.mxu0
        %v4585 = vadd.f32 0.0, %v4584
        %v4586 = vpop.f32.mrf.mxu0
        %v4587 = vadd.f32 0.0, %v4586
        %v4588 = vpop.f32.mrf.mxu0
        %v4589 = vadd.f32 0.0, %v4588
        %v4590 = vpop.f32.mrf.mxu0
        %v4591 = vadd.f32 0.0, %v4590
        %4592 = vmatprep.mubr.bf16.mxu0 %v4257
        %4593 = vmatmul.mubr.bf16.gmra.mxu0 %v4256
        %v4594 = vpop.f32.mrf.mxu0
        %v4595 = vadd.f32 0.0, %v4594
        %v4596 = vpop.f32.mrf.mxu0
        %v4597 = vadd.f32 0.0, %v4596
        %v4598 = vpop.f32.mrf.mxu0
        %v4599 = vadd.f32 0.0, %v4598
        %v4600 = vpop.f32.mrf.mxu0
        %v4601 = vadd.f32 0.0, %v4600
        %4602 = vmatprep.mubr.bf16.mxu0 %v4259
        %4603 = vmatmul.mubr.bf16.gmra.mxu0 %v4258
        %v4604 = vpop.f32.mrf.mxu0
        %v4605 = vadd.f32 0.0, %v4604
        %v4606 = vpop.f32.mrf.mxu0
        %v4607 = vadd.f32 0.0, %v4606
        %v4608 = vpop.f32.mrf.mxu0
        %v4609 = vadd.f32 0.0, %v4608
        %v4610 = vpop.f32.mrf.mxu0
        %v4611 = vadd.f32 0.0, %v4610
        %4612 = vmatprep.mubr.bf16.mxu0 %v4261
        %4613 = vmatmul.mubr.bf16.gmra.mxu0 %v4260
        %v4614 = vpop.f32.mrf.mxu0
        %v4615 = vadd.f32 0.0, %v4614
        %v4616 = vpop.f32.mrf.mxu0
        %v4617 = vadd.f32 0.0, %v4616
        %v4618 = vpop.f32.mrf.mxu0
        %v4619 = vadd.f32 0.0, %v4618
        %v4620 = vpop.f32.mrf.mxu0
        %v4621 = vadd.f32 0.0, %v4620
        %4622 = vmatprep.mubr.bf16.mxu0 %v4263
        %4623 = vmatmul.mubr.bf16.gmra.mxu0 %v4262
        %v4624 = vpop.f32.mrf.mxu0
        %v4625 = vadd.f32 0.0, %v4624
        %v4626 = vpop.f32.mrf.mxu0
        %v4627 = vadd.f32 0.0, %v4626
        %v4628 = vpop.f32.mrf.mxu0
        %v4629 = vadd.f32 0.0, %v4628
        %v4630 = vpop.f32.mrf.mxu0
        %v4631 = vadd.f32 0.0, %v4630
        %4632 = vmatprep.mubr.bf16.mxu0 %v4265
        %4633 = vmatmul.mubr.bf16.gmra.mxu0 %v4264
        %v4634 = vpop.f32.mrf.mxu0
        %v4635 = vadd.f32 0.0, %v4634
        %v4636 = vpop.f32.mrf.mxu0
        %v4637 = vadd.f32 0.0, %v4636
        %v4638 = vpop.f32.mrf.mxu0
        %v4639 = vadd.f32 0.0, %v4638
        %v4640 = vpop.f32.mrf.mxu0
        %v4641 = vadd.f32 0.0, %v4640
        %4642 = vmatprep.mubr.bf16.mxu0 %v4267
        %4643 = vmatmul.mubr.bf16.gmra.mxu0 %v4266
        %v4644 = vpop.f32.mrf.mxu0
        %v4645 = vadd.f32 0.0, %v4644
        %v4646 = vpop.f32.mrf.mxu0
        %v4647 = vadd.f32 0.0, %v4646
        %v4648 = vpop.f32.mrf.mxu0
        %v4649 = vadd.f32 0.0, %v4648
        %v4650 = vpop.f32.mrf.mxu0
        %v4651 = vadd.f32 0.0, %v4650
        %4652 = vmatprep.mubr.bf16.mxu0 %v4269
        %4653 = vmatmul.mubr.bf16.gmra.mxu0 %v4268
        %v4654 = vpop.f32.mrf.mxu0
        %v4655 = vadd.f32 0.0, %v4654
        %v4656 = vpop.f32.mrf.mxu0
        %v4657 = vadd.f32 0.0, %v4656
        %v4658 = vpop.f32.mrf.mxu0
        %v4659 = vadd.f32 0.0, %v4658
        %v4660 = vpop.f32.mrf.mxu0
        %v4661 = vadd.f32 0.0, %v4660
        %4662 = vmatprep.mubr.bf16.mxu0 %v4271
        %4663 = vmatmul.mubr.bf16.gmra.mxu0 %v4270
        %v4664 = vpop.f32.mrf.mxu0
        %v4665 = vadd.f32 0.0, %v4664
        %v4666 = vpop.f32.mrf.mxu0
        %v4667 = vadd.f32 0.0, %v4666
        %v4668 = vpop.f32.mrf.mxu0
        %v4669 = vadd.f32 0.0, %v4668
        %v4670 = vpop.f32.mrf.mxu0
        %v4671 = vadd.f32 0.0, %v4670
        %4672 = vmatprep.mubr.bf16.mxu0 %v4273
        %4673 = vmatmul.mubr.bf16.gmra.mxu0 %v4272
        %v4674 = vpop.f32.mrf.mxu0
        %v4675 = vadd.f32 0.0, %v4674
        %v4676 = vpop.f32.mrf.mxu0
        %v4677 = vadd.f32 0.0, %v4676
        %v4678 = vpop.f32.mrf.mxu0
        %v4679 = vadd.f32 0.0, %v4678
        %v4680 = vpop.f32.mrf.mxu0
        %v4681 = vadd.f32 0.0, %v4680
        %4682 = vmatprep.mubr.bf16.mxu0 %v4275
        %4683 = vmatmul.mubr.bf16.gmra.mxu0 %v4274
        %v4684 = vpop.f32.mrf.mxu0
        %v4685 = vadd.f32 0.0, %v4684
        %v4686 = vpop.f32.mrf.mxu0
        %v4687 = vadd.f32 0.0, %v4686
        %v4688 = vpop.f32.mrf.mxu0
        %v4689 = vadd.f32 0.0, %v4688
        %v4690 = vpop.f32.mrf.mxu0
        %v4691 = vadd.f32 0.0, %v4690
        %4692 = vmatprep.mubr.bf16.mxu0 %v4277
        %4693 = vmatmul.mubr.bf16.gmra.mxu0 %v4276
        %v4694 = vpop.f32.mrf.mxu0
        %v4695 = vadd.f32 0.0, %v4694
        %v4696 = vpop.f32.mrf.mxu0
        %v4697 = vadd.f32 0.0, %v4696
        %v4698 = vpop.f32.mrf.mxu0
        %v4699 = vadd.f32 0.0, %v4698
        %v4700 = vpop.f32.mrf.mxu0
        %v4701 = vadd.f32 0.0, %v4700
        %4702 = vmatprep.mubr.bf16.mxu0 %v4279
        %4703 = vmatmul.mubr.bf16.gmra.mxu0 %v4278
        %v4704 = vpop.f32.mrf.mxu0
        %v4705 = vadd.f32 0.0, %v4704
        %v4706 = vpop.f32.mrf.mxu0
        %v4707 = vadd.f32 0.0, %v4706
        %v4708 = vpop.f32.mrf.mxu0
        %v4709 = vadd.f32 0.0, %v4708
        %v4710 = vpop.f32.mrf.mxu0
        %v4711 = vadd.f32 0.0, %v4710
        %4712 = vmatprep.mubr.bf16.mxu0 %v4281
        %4713 = vmatmul.mubr.bf16.gmra.mxu0 %v4280
        %v4714 = vpop.f32.mrf.mxu0
        %v4715 = vadd.f32 0.0, %v4714
        %v4716 = vpop.f32.mrf.mxu0
        %v4717 = vadd.f32 0.0, %v4716
        %v4718 = vpop.f32.mrf.mxu0
        %v4719 = vadd.f32 0.0, %v4718
        %v4720 = vpop.f32.mrf.mxu0
        %v4721 = vadd.f32 0.0, %v4720
        %4722 = vmatprep.mubr.bf16.mxu0 %v4283
        %4723 = vmatmul.mubr.bf16.gmra.mxu0 %v4282
        %v4724 = vpop.f32.mrf.mxu0
        %v4725 = vadd.f32 0.0, %v4724
        %v4726 = vpop.f32.mrf.mxu0
        %v4727 = vadd.f32 0.0, %v4726
        %v4728 = vpop.f32.mrf.mxu0
        %v4729 = vadd.f32 0.0, %v4728
        %v4730 = vpop.f32.mrf.mxu0
        %v4731 = vadd.f32 0.0, %v4730
        %4732 = vmatprep.mubr.bf16.mxu0 %v4285
        %4733 = vmatmul.mubr.bf16.gmra.mxu0 %v4284
        %v4734 = vpop.f32.mrf.mxu0
        %v4735 = vadd.f32 0.0, %v4734
        %v4736 = vpop.f32.mrf.mxu0
        %v4737 = vadd.f32 0.0, %v4736
        %v4738 = vpop.f32.mrf.mxu0
        %v4739 = vadd.f32 0.0, %v4738
        %v4740 = vpop.f32.mrf.mxu0
        %v4741 = vadd.f32 0.0, %v4740
        %4742 = vmatprep.mubr.bf16.mxu0 %v4287
        %4743 = vmatmul.mubr.bf16.gmra.mxu0 %v4286
        %v4744 = vpop.f32.mrf.mxu0
        %v4745 = vadd.f32 0.0, %v4744
        %v4746 = vpop.f32.mrf.mxu0
        %v4747 = vadd.f32 0.0, %v4746
        %v4748 = vpop.f32.mrf.mxu0
        %v4749 = vadd.f32 0.0, %v4748
        %v4750 = vpop.f32.mrf.mxu0
        %v4751 = vadd.f32 0.0, %v4750
        %4752 = vmatprep.mubr.bf16.mxu0 %v4289
        %4753 = vmatmul.mubr.bf16.gmra.mxu0 %v4288
        %v4754 = vpop.f32.mrf.mxu0
        %v4755 = vadd.f32 0.0, %v4754
        %v4756 = vpop.f32.mrf.mxu0
        %v4757 = vadd.f32 0.0, %v4756
        %v4758 = vpop.f32.mrf.mxu0
        %v4759 = vadd.f32 0.0, %v4758
        %v4760 = vpop.f32.mrf.mxu0
        %v4761 = vadd.f32 0.0, %v4760
        %4762 = vmatprep.mubr.bf16.mxu0 %v4291
        %4763 = vmatmul.mubr.bf16.gmra.mxu0 %v4290
        %v4764 = vpop.f32.mrf.mxu0
        %v4765 = vadd.f32 0.0, %v4764
        %v4766 = vpop.f32.mrf.mxu0
        %v4767 = vadd.f32 0.0, %v4766
        %v4768 = vpop.f32.mrf.mxu0
        %v4769 = vadd.f32 0.0, %v4768
        %v4770 = vpop.f32.mrf.mxu0
        %v4771 = vadd.f32 0.0, %v4770
        %4772 = vmatprep.mubr.bf16.mxu0 %v4293
        %4773 = vmatmul.mubr.bf16.gmra.mxu0 %v4292
        %v4774 = vpop.f32.mrf.mxu0
        %v4775 = vadd.f32 0.0, %v4774
        %v4776 = vpop.f32.mrf.mxu0
        %v4777 = vadd.f32 0.0, %v4776
        %v4778 = vpop.f32.mrf.mxu0
        %v4779 = vadd.f32 0.0, %v4778
        %v4780 = vpop.f32.mrf.mxu0
        %v4781 = vadd.f32 0.0, %v4780
        %4782 = vmatprep.mubr.bf16.mxu0 %v4295
        %4783 = vmatmul.mubr.bf16.gmra.mxu0 %v4294
        %v4784 = vpop.f32.mrf.mxu0
        %v4785 = vadd.f32 0.0, %v4784
        %v4786 = vpop.f32.mrf.mxu0
        %v4787 = vadd.f32 0.0, %v4786
        %v4788 = vpop.f32.mrf.mxu0
        %v4789 = vadd.f32 0.0, %v4788
        %v4790 = vpop.f32.mrf.mxu0
        %v4791 = vadd.f32 0.0, %v4790
        %4792 = vmatprep.mubr.bf16.mxu0 %v4297
        %4793 = vmatmul.mubr.bf16.gmra.mxu0 %v4296
        %v4794 = vpop.f32.mrf.mxu0
        %v4795 = vadd.f32 0.0, %v4794
        %v4796 = vpop.f32.mrf.mxu0
        %v4797 = vadd.f32 0.0, %v4796
        %v4798 = vpop.f32.mrf.mxu0
        %v4799 = vadd.f32 0.0, %v4798
        %v4800 = vpop.f32.mrf.mxu0
        %v4801 = vadd.f32 0.0, %v4800
        %4802 = vmatprep.mubr.bf16.mxu0 %v4299
        %4803 = vmatmul.mubr.bf16.gmra.mxu0 %v4298
        %v4804 = vpop.f32.mrf.mxu0
        %v4805 = vadd.f32 0.0, %v4804
        %v4806 = vpop.f32.mrf.mxu0
        %v4807 = vadd.f32 0.0, %v4806
        %v4808 = vpop.f32.mrf.mxu0
        %v4809 = vadd.f32 0.0, %v4808
        %v4810 = vpop.f32.mrf.mxu0
        %v4811 = vadd.f32 0.0, %v4810
        %4812 = vmatprep.mubr.bf16.mxu0 %v4301
        %4813 = vmatmul.mubr.bf16.gmra.mxu0 %v4300
        %v4814 = vpop.f32.mrf.mxu0
        %v4815 = vadd.f32 0.0, %v4814
        %v4816 = vpop.f32.mrf.mxu0
        %v4817 = vadd.f32 0.0, %v4816
        %v4818 = vpop.f32.mrf.mxu0
        %v4819 = vadd.f32 0.0, %v4818
        %v4820 = vpop.f32.mrf.mxu0
        %v4821 = vadd.f32 0.0, %v4820
        %4822 = vmatprep.mubr.bf16.mxu0 %v4303
        %4823 = vmatmul.mubr.bf16.gmra.mxu0 %v4302
        %v4824 = vpop.f32.mrf.mxu0
        %v4825 = vadd.f32 0.0, %v4824
        %v4826 = vpop.f32.mrf.mxu0
        %v4827 = vadd.f32 0.0, %v4826
        %v4828 = vpop.f32.mrf.mxu0
        %v4829 = vadd.f32 0.0, %v4828
        %v4830 = vpop.f32.mrf.mxu0
        %v4831 = vadd.f32 0.0, %v4830
        %4832 = vmatprep.mubr.bf16.mxu0 %v4305
        %4833 = vmatmul.mubr.bf16.gmra.mxu0 %v4304
        %v4834 = vpop.f32.mrf.mxu0
        %v4835 = vadd.f32 0.0, %v4834
        %v4836 = vpop.f32.mrf.mxu0
        %v4837 = vadd.f32 0.0, %v4836
        %v4838 = vpop.f32.mrf.mxu0
        %v4839 = vadd.f32 0.0, %v4838
        %v4840 = vpop.f32.mrf.mxu0
        %v4841 = vadd.f32 0.0, %v4840
        %4842 = vmatprep.mubr.bf16.mxu0 %v4307
        %4843 = vmatmul.mubr.bf16.gmra.mxu0 %v4306
        %v4844 = vpop.f32.mrf.mxu0
        %v4845 = vadd.f32 0.0, %v4844
        %v4846 = vpop.f32.mrf.mxu0
        %v4847 = vadd.f32 0.0, %v4846
        %v4848 = vpop.f32.mrf.mxu0
        %v4849 = vadd.f32 0.0, %v4848
        %v4850 = vpop.f32.mrf.mxu0
        %v4851 = vadd.f32 0.0, %v4850
        %4852 = vdwg.mxu0
        %v4853 = vpack.c.bf16 %v4539, %v4535
        %v4854 = vpack.c.bf16 %v4541, %v4537
        %v4855 = vpack.c.bf16 %v4549, %v4545
        %v4856 = vpack.c.bf16 %v4551, %v4547
        %v4857 = vpack.c.bf16 %v4559, %v4555
        %v4858 = vpack.c.bf16 %v4561, %v4557
        %v4859 = vpack.c.bf16 %v4569, %v4565
        %v4860 = vpack.c.bf16 %v4571, %v4567
        %v4861 = vpack.c.bf16 %v4579, %v4575
        %v4862 = vpack.c.bf16 %v4581, %v4577
        %v4863 = vpack.c.bf16 %v4589, %v4585
        %v4864 = vpack.c.bf16 %v4591, %v4587
        %v4865 = vpack.c.bf16 %v4599, %v4595
        %v4866 = vpack.c.bf16 %v4601, %v4597
        %v4867 = vpack.c.bf16 %v4609, %v4605
        %v4868 = vpack.c.bf16 %v4611, %v4607
        %v4869 = vpack.c.bf16 %v4619, %v4615
        %v4870 = vpack.c.bf16 %v4621, %v4617
        %v4871 = vpack.c.bf16 %v4629, %v4625
        %v4872 = vpack.c.bf16 %v4631, %v4627
        %v4873 = vpack.c.bf16 %v4639, %v4635
        %v4874 = vpack.c.bf16 %v4641, %v4637
        %v4875 = vpack.c.bf16 %v4649, %v4645
        %v4876 = vpack.c.bf16 %v4651, %v4647
        %v4877 = vpack.c.bf16 %v4659, %v4655
        %v4878 = vpack.c.bf16 %v4661, %v4657
        %v4879 = vpack.c.bf16 %v4669, %v4665
        %v4880 = vpack.c.bf16 %v4671, %v4667
        %v4881 = vpack.c.bf16 %v4679, %v4675
        %v4882 = vpack.c.bf16 %v4681, %v4677
        %v4883 = vpack.c.bf16 %v4689, %v4685
        %v4884 = vpack.c.bf16 %v4691, %v4687
        %v4885 = vpack.c.bf16 %v4699, %v4695
        %v4886 = vpack.c.bf16 %v4701, %v4697
        %v4887 = vpack.c.bf16 %v4709, %v4705
        %v4888 = vpack.c.bf16 %v4711, %v4707
        %v4889 = vpack.c.bf16 %v4719, %v4715
        %v4890 = vpack.c.bf16 %v4721, %v4717
        %v4891 = vpack.c.bf16 %v4729, %v4725
        %v4892 = vpack.c.bf16 %v4731, %v4727
        %v4893 = vpack.c.bf16 %v4739, %v4735
        %v4894 = vpack.c.bf16 %v4741, %v4737
        %v4895 = vpack.c.bf16 %v4749, %v4745
        %v4896 = vpack.c.bf16 %v4751, %v4747
        %v4897 = vpack.c.bf16 %v4759, %v4755
        %v4898 = vpack.c.bf16 %v4761, %v4757
        %v4899 = vpack.c.bf16 %v4769, %v4765
        %v4900 = vpack.c.bf16 %v4771, %v4767
        %v4901 = vpack.c.bf16 %v4779, %v4775
        %v4902 = vpack.c.bf16 %v4781, %v4777
        %v4903 = vpack.c.bf16 %v4789, %v4785
        %v4904 = vpack.c.bf16 %v4791, %v4787
        %v4905 = vpack.c.bf16 %v4799, %v4795
        %v4906 = vpack.c.bf16 %v4801, %v4797
        %v4907 = vpack.c.bf16 %v4809, %v4805
        %v4908 = vpack.c.bf16 %v4811, %v4807
        %v4909 = vpack.c.bf16 %v4819, %v4815
        %v4910 = vpack.c.bf16 %v4821, %v4817
        %v4911 = vpack.c.bf16 %v4829, %v4825
        %v4912 = vpack.c.bf16 %v4831, %v4827
        %v4913 = vpack.c.bf16 %v4839, %v4835
        %v4914 = vpack.c.bf16 %v4841, %v4837
        %v4915 = vpack.c.bf16 %v4849, %v4845
        %v4916 = vpack.c.bf16 %v4851, %v4847
        %v4917 = vld [vmem:[%s14] sm:$0x3]
        %v4920 = vunpack.c.l.s4 1966171168
        %v4921 = vunpack.c.0.s8 %v4920
        %v4922 = vlaneseq
        %v4923 = vshrl.u32 %v4922, 7
        %v4924 = vsub.s32 %v4921, %v4923
        %v4925 = vrot.slane %v4917, %v4924
        %v4926 = vcombine.high %v4925, %v4925
        %v4928 = vunpack.c.l.s4 1966171168
        %v4929 = vunpack.c.0.s8 %v4928
        %v4930 = vlaneseq
        %v4931 = vshrl.u32 %v4930, 7
        %v4932 = vsub.s32 %v4929, %v4931
        %v4933 = vrot.slane %v4925, %v4932
        %v4935 = vunpack.c.l.s4 1966171168
        %v4936 = vunpack.c.0.s8 %v4935
        %v4937 = vlaneseq
        %v4938 = vshrl.u32 %v4937, 7
        %v4939 = vsub.s32 %v4936, %v4938
        %v4940 = vrot.slane %v4926, %v4939
        %v4942 = vpack.i.b16 %v4933, %v4933
        %v4944 = vlaneseq
        %v4945 = vshrl.u32 %v4944, 7
        %v4946 = vsub.s32 0, %v4945
        %v4947 = vrot.slane %v4942, %v4946
        %v4949 = vpack.i.b16 %v4940, %v4940
        %v4951 = vlaneseq
        %v4952 = vshrl.u32 %v4951, 7
        %v4953 = vsub.s32 0, %v4952
        %v4954 = vrot.slane %v4949, %v4953
        %v4955 = vadd.bf16 %v4853, %v4947
        %v4956 = vadd.bf16 %v4854, %v4954
        %v4957 = vadd.bf16 %v4855, %v4947
        %v4958 = vadd.bf16 %v4856, %v4954
        %v4959 = vadd.bf16 %v4857, %v4947
        %v4960 = vadd.bf16 %v4858, %v4954
        %v4961 = vadd.bf16 %v4859, %v4947
        %v4962 = vadd.bf16 %v4860, %v4954
        %v4963 = vadd.bf16 %v4861, %v4947
        %v4964 = vadd.bf16 %v4862, %v4954
        %v4965 = vadd.bf16 %v4863, %v4947
        %v4966 = vadd.bf16 %v4864, %v4954
        %v4967 = vadd.bf16 %v4865, %v4947
        %v4968 = vadd.bf16 %v4866, %v4954
        %v4969 = vadd.bf16 %v4867, %v4947
        %v4970 = vadd.bf16 %v4868, %v4954
        %v4971 = vadd.bf16 %v4869, %v4947
        %v4972 = vadd.bf16 %v4870, %v4954
        %v4973 = vadd.bf16 %v4871, %v4947
        %v4974 = vadd.bf16 %v4872, %v4954
        %v4975 = vadd.bf16 %v4873, %v4947
        %v4976 = vadd.bf16 %v4874, %v4954
        %v4977 = vadd.bf16 %v4875, %v4947
        %v4978 = vadd.bf16 %v4876, %v4954
        %v4979 = vadd.bf16 %v4877, %v4947
        %v4980 = vadd.bf16 %v4878, %v4954
        %v4981 = vadd.bf16 %v4879, %v4947
        %v4982 = vadd.bf16 %v4880, %v4954
        %v4983 = vadd.bf16 %v4881, %v4947
        %v4984 = vadd.bf16 %v4882, %v4954
        %v4985 = vadd.bf16 %v4883, %v4947
        %v4986 = vadd.bf16 %v4884, %v4954
        %v4987 = vadd.bf16 %v4885, %v4947
        %v4988 = vadd.bf16 %v4886, %v4954
        %v4989 = vadd.bf16 %v4887, %v4947
        %v4990 = vadd.bf16 %v4888, %v4954
        %v4991 = vadd.bf16 %v4889, %v4947
        %v4992 = vadd.bf16 %v4890, %v4954
        %v4993 = vadd.bf16 %v4891, %v4947
        %v4994 = vadd.bf16 %v4892, %v4954
        %v4995 = vadd.bf16 %v4893, %v4947
        %v4996 = vadd.bf16 %v4894, %v4954
        %v4997 = vadd.bf16 %v4895, %v4947
        %v4998 = vadd.bf16 %v4896, %v4954
        %v4999 = vadd.bf16 %v4897, %v4947
        %v5000 = vadd.bf16 %v4898, %v4954
        %v5001 = vadd.bf16 %v4899, %v4947
        %v5002 = vadd.bf16 %v4900, %v4954
        %v5003 = vadd.bf16 %v4901, %v4947
        %v5004 = vadd.bf16 %v4902, %v4954
        %v5005 = vadd.bf16 %v4903, %v4947
        %v5006 = vadd.bf16 %v4904, %v4954
        %v5007 = vadd.bf16 %v4905, %v4947
        %v5008 = vadd.bf16 %v4906, %v4954
        %v5009 = vadd.bf16 %v4907, %v4947
        %v5010 = vadd.bf16 %v4908, %v4954
        %v5011 = vadd.bf16 %v4909, %v4947
        %v5012 = vadd.bf16 %v4910, %v4954
        %v5013 = vadd.bf16 %v4911, %v4947
        %v5014 = vadd.bf16 %v4912, %v4954
        %v5015 = vadd.bf16 %v4913, %v4947
        %v5016 = vadd.bf16 %v4914, %v4954
        %v5017 = vadd.bf16 %v4915, %v4947
        %v5018 = vadd.bf16 %v4916, %v4954
        %v5019 = vmax.bf16 %v4955, 0
        %v5020 = vmax.bf16 %v4956, 0
        %v5021 = vmax.bf16 %v4957, 0
        %v5022 = vmax.bf16 %v4958, 0
        %v5023 = vmax.bf16 %v4959, 0
        %v5024 = vmax.bf16 %v4960, 0
        %v5025 = vmax.bf16 %v4961, 0
        %v5026 = vmax.bf16 %v4962, 0
        %v5027 = vmax.bf16 %v4963, 0
        %v5028 = vmax.bf16 %v4964, 0
        %v5029 = vmax.bf16 %v4965, 0
        %v5030 = vmax.bf16 %v4966, 0
        %v5031 = vmax.bf16 %v4967, 0
        %v5032 = vmax.bf16 %v4968, 0
        %v5033 = vmax.bf16 %v4969, 0
        %v5034 = vmax.bf16 %v4970, 0
        %v5035 = vmax.bf16 %v4971, 0
        %v5036 = vmax.bf16 %v4972, 0
        %v5037 = vmax.bf16 %v4973, 0
        %v5038 = vmax.bf16 %v4974, 0
        %v5039 = vmax.bf16 %v4975, 0
        %v5040 = vmax.bf16 %v4976, 0
        %v5041 = vmax.bf16 %v4977, 0
        %v5042 = vmax.bf16 %v4978, 0
        %v5043 = vmax.bf16 %v4979, 0
        %v5044 = vmax.bf16 %v4980, 0
        %v5045 = vmax.bf16 %v4981, 0
        %v5046 = vmax.bf16 %v4982, 0
        %v5047 = vmax.bf16 %v4983, 0
        %v5048 = vmax.bf16 %v4984, 0
        %v5049 = vmax.bf16 %v4985, 0
        %v5050 = vmax.bf16 %v4986, 0
        %v5051 = vmax.bf16 %v4987, 0
        %v5052 = vmax.bf16 %v4988, 0
        %v5053 = vmax.bf16 %v4989, 0
        %v5054 = vmax.bf16 %v4990, 0
        %v5055 = vmax.bf16 %v4991, 0
        %v5056 = vmax.bf16 %v4992, 0
        %v5057 = vmax.bf16 %v4993, 0
        %v5058 = vmax.bf16 %v4994, 0
        %v5059 = vmax.bf16 %v4995, 0
        %v5060 = vmax.bf16 %v4996, 0
        %v5061 = vmax.bf16 %v4997, 0
        %v5062 = vmax.bf16 %v4998, 0
        %v5063 = vmax.bf16 %v4999, 0
        %v5064 = vmax.bf16 %v5000, 0
        %v5065 = vmax.bf16 %v5001, 0
        %v5066 = vmax.bf16 %v5002, 0
        %v5067 = vmax.bf16 %v5003, 0
        %v5068 = vmax.bf16 %v5004, 0
        %v5069 = vmax.bf16 %v5005, 0
        %v5070 = vmax.bf16 %v5006, 0
        %v5071 = vmax.bf16 %v5007, 0
        %v5072 = vmax.bf16 %v5008, 0
        %v5073 = vmax.bf16 %v5009, 0
        %v5074 = vmax.bf16 %v5010, 0
        %v5075 = vmax.bf16 %v5011, 0
        %v5076 = vmax.bf16 %v5012, 0
        %v5077 = vmax.bf16 %v5013, 0
        %v5078 = vmax.bf16 %v5014, 0
        %v5079 = vmax.bf16 %v5015, 0
        %v5080 = vmax.bf16 %v5016, 0
        %v5081 = vmax.bf16 %v5017, 0
        %v5082 = vmax.bf16 %v5018, 0
        %v5083 = vld [vmem:[%s6] sm:$0xff]
        %v5084 = vld [vmem:[%s6 + $0x8] sm:$0xff]
        %v5085 = vld [vmem:[%s6 + $0x10] sm:$0xff]
        %v5086 = vld [vmem:[%s6 + $0x18] sm:$0xff]
        %v5087 = vld [vmem:[%s6 + $0x20] sm:$0xff]
        %v5088 = vld [vmem:[%s6 + $0x28] sm:$0xff]
        %v5089 = vld [vmem:[%s6 + $0x30] sm:$0xff]
        %v5090 = vld [vmem:[%s6 + $0x38] sm:$0xff]
        %v5091 = vld [vmem:[%s6 + $0x40] sm:$0xff]
        %v5092 = vld [vmem:[%s6 + $0x48] sm:$0xff]
        %v5093 = vld [vmem:[%s6 + $0x50] sm:$0xff]
        %v5094 = vld [vmem:[%s6 + $0x58] sm:$0xff]
        %v5095 = vld [vmem:[%s6 + $0x60] sm:$0xff]
        %v5096 = vld [vmem:[%s6 + $0x68] sm:$0xff]
        %v5097 = vld [vmem:[%s6 + $0x70] sm:$0xff]
        %v5098 = vld [vmem:[%s6 + $0x78] sm:$0xff]
        %v5099 = vld [vmem:[%s6 + $0x80] sm:$0xff]
        %v5100 = vld [vmem:[%s6 + $0x88] sm:$0xff]
        %v5101 = vld [vmem:[%s6 + $0x90] sm:$0xff]
        %v5102 = vld [vmem:[%s6 + $0x98] sm:$0xff]
        %v5103 = vld [vmem:[%s6 + $0xa0] sm:$0xff]
        %v5104 = vld [vmem:[%s6 + $0xa8] sm:$0xff]
        %v5105 = vld [vmem:[%s6 + $0xb0] sm:$0xff]
        %v5106 = vld [vmem:[%s6 + $0xb8] sm:$0xff]
        %v5107 = vld [vmem:[%s6 + $0xc0] sm:$0xff]
        %v5108 = vld [vmem:[%s6 + $0xc8] sm:$0xff]
        %v5109 = vld [vmem:[%s6 + $0xd0] sm:$0xff]
        %v5110 = vld [vmem:[%s6 + $0xd8] sm:$0xff]
        %v5111 = vld [vmem:[%s6 + $0xe0] sm:$0xff]
        %v5112 = vld [vmem:[%s6 + $0xe8] sm:$0xff]
        %v5113 = vld [vmem:[%s6 + $0xf0] sm:$0xff]
        %v5114 = vld [vmem:[%s6 + $0xf8] sm:$0xff]
        %v5147 = vunpack.c.l.b16 %v5083
        %v5148 = vunpack.c.h.b16 %v5083
        %v5149 = vunpack.c.l.b16 %v5084
        %v5150 = vunpack.c.h.b16 %v5084
        %v5151 = vunpack.c.l.b16 %v5085
        %v5152 = vunpack.c.h.b16 %v5085
        %v5153 = vunpack.c.l.b16 %v5086
        %v5154 = vunpack.c.h.b16 %v5086
        %v5155 = vunpack.c.l.b16 %v5087
        %v5156 = vunpack.c.h.b16 %v5087
        %v5157 = vunpack.c.l.b16 %v5088
        %v5158 = vunpack.c.h.b16 %v5088
        %v5159 = vunpack.c.l.b16 %v5089
        %v5160 = vunpack.c.h.b16 %v5089
        %v5161 = vunpack.c.l.b16 %v5090
        %v5162 = vunpack.c.h.b16 %v5090
        %v5163 = vunpack.c.l.b16 %v5091
        %v5164 = vunpack.c.h.b16 %v5091
        %v5165 = vunpack.c.l.b16 %v5092
        %v5166 = vunpack.c.h.b16 %v5092
        %v5167 = vunpack.c.l.b16 %v5093
        %v5168 = vunpack.c.h.b16 %v5093
        %v5169 = vunpack.c.l.b16 %v5094
        %v5170 = vunpack.c.h.b16 %v5094
        %v5171 = vunpack.c.l.b16 %v5095
        %v5172 = vunpack.c.h.b16 %v5095
        %v5173 = vunpack.c.l.b16 %v5096
        %v5174 = vunpack.c.h.b16 %v5096
        %v5175 = vunpack.c.l.b16 %v5097
        %v5176 = vunpack.c.h.b16 %v5097
        %v5177 = vunpack.c.l.b16 %v5098
        %v5178 = vunpack.c.h.b16 %v5098
        %v5179 = vunpack.c.l.b16 %v5099
        %v5180 = vunpack.c.h.b16 %v5099
        %v5181 = vunpack.c.l.b16 %v5100
        %v5182 = vunpack.c.h.b16 %v5100
        %v5183 = vunpack.c.l.b16 %v5101
        %v5184 = vunpack.c.h.b16 %v5101
        %v5185 = vunpack.c.l.b16 %v5102
        %v5186 = vunpack.c.h.b16 %v5102
        %v5187 = vunpack.c.l.b16 %v5103
        %v5188 = vunpack.c.h.b16 %v5103
        %v5189 = vunpack.c.l.b16 %v5104
        %v5190 = vunpack.c.h.b16 %v5104
        %v5191 = vunpack.c.l.b16 %v5105
        %v5192 = vunpack.c.h.b16 %v5105
        %v5193 = vunpack.c.l.b16 %v5106
        %v5194 = vunpack.c.h.b16 %v5106
        %v5195 = vunpack.c.l.b16 %v5107
        %v5196 = vunpack.c.h.b16 %v5107
        %v5197 = vunpack.c.l.b16 %v5108
        %v5198 = vunpack.c.h.b16 %v5108
        %v5199 = vunpack.c.l.b16 %v5109
        %v5200 = vunpack.c.h.b16 %v5109
        %v5201 = vunpack.c.l.b16 %v5110
        %v5202 = vunpack.c.h.b16 %v5110
        %v5203 = vunpack.c.l.b16 %v5111
        %v5204 = vunpack.c.h.b16 %v5111
        %v5205 = vunpack.c.l.b16 %v5112
        %v5206 = vunpack.c.h.b16 %v5112
        %v5207 = vunpack.c.l.b16 %v5113
        %v5208 = vunpack.c.h.b16 %v5113
        %v5209 = vunpack.c.l.b16 %v5114
        %v5210 = vunpack.c.h.b16 %v5114
        %v5211 = vpack.c.b16 %v5149, %v5147
        %v5212 = vpack.c.b16 %v5150, %v5148
        %v5213 = vpack.c.b16 %v5153, %v5151
        %v5214 = vpack.c.b16 %v5154, %v5152
        %v5215 = vpack.c.b16 %v5157, %v5155
        %v5216 = vpack.c.b16 %v5158, %v5156
        %v5217 = vpack.c.b16 %v5161, %v5159
        %v5218 = vpack.c.b16 %v5162, %v5160
        %v5219 = vpack.c.b16 %v5165, %v5163
        %v5220 = vpack.c.b16 %v5166, %v5164
        %v5221 = vpack.c.b16 %v5169, %v5167
        %v5222 = vpack.c.b16 %v5170, %v5168
        %v5223 = vpack.c.b16 %v5173, %v5171
        %v5224 = vpack.c.b16 %v5174, %v5172
        %v5225 = vpack.c.b16 %v5177, %v5175
        %v5226 = vpack.c.b16 %v5178, %v5176
        %v5227 = vpack.c.b16 %v5181, %v5179
        %v5228 = vpack.c.b16 %v5182, %v5180
        %v5229 = vpack.c.b16 %v5185, %v5183
        %v5230 = vpack.c.b16 %v5186, %v5184
        %v5231 = vpack.c.b16 %v5189, %v5187
        %v5232 = vpack.c.b16 %v5190, %v5188
        %v5233 = vpack.c.b16 %v5193, %v5191
        %v5234 = vpack.c.b16 %v5194, %v5192
        %v5235 = vpack.c.b16 %v5197, %v5195
        %v5236 = vpack.c.b16 %v5198, %v5196
        %v5237 = vpack.c.b16 %v5201, %v5199
        %v5238 = vpack.c.b16 %v5202, %v5200
        %v5239 = vpack.c.b16 %v5205, %v5203
        %v5240 = vpack.c.b16 %v5206, %v5204
        %v5241 = vpack.c.b16 %v5209, %v5207
        %v5242 = vpack.c.b16 %v5210, %v5208
        %5275 = vmatprep.subr.bf16.mxu0 %v5226
        %5276 = vmatpush1.bf16.msra.mxu0 %v5225
        %5277 = vmatprep.subr.bf16.mxu0 %v5224
        %5278 = vmatpush1.bf16.msra.mxu0 %v5223
        %5279 = vmatprep.subr.bf16.mxu0 %v5222
        %5280 = vmatpush1.bf16.msra.mxu0 %v5221
        %5281 = vmatprep.subr.bf16.mxu0 %v5220
        %5282 = vmatpush1.bf16.msra.mxu0 %v5219
        %5283 = vmatprep.subr.bf16.mxu0 %v5218
        %5284 = vmatpush1.bf16.msra.mxu0 %v5217
        %5285 = vmatprep.subr.bf16.mxu0 %v5216
        %5286 = vmatpush1.bf16.msra.mxu0 %v5215
        %5287 = vmatprep.subr.bf16.mxu0 %v5214
        %5288 = vmatpush1.bf16.msra.mxu0 %v5213
        %5289 = vmatprep.subr.bf16.mxu0 %v5212
        %5290 = vmatpush1.bf16.msra.mxu0 %v5211
        %5291 = vmatprep.subr.bf16.mxu0 %v5242
        %5292 = vmatpush2.bf16.msra.mxu0 %v5241
        %5293 = vmatprep.subr.bf16.mxu0 %v5240
        %5294 = vmatpush2.bf16.msra.mxu0 %v5239
        %5295 = vmatprep.subr.bf16.mxu0 %v5238
        %5296 = vmatpush2.bf16.msra.mxu0 %v5237
        %5297 = vmatprep.subr.bf16.mxu0 %v5236
        %5298 = vmatpush2.bf16.msra.mxu0 %v5235
        %5299 = vmatprep.subr.bf16.mxu0 %v5234
        %5300 = vmatpush2.bf16.msra.mxu0 %v5233
        %5301 = vmatprep.subr.bf16.mxu0 %v5232
        %5302 = vmatpush2.bf16.msra.mxu0 %v5231
        %5303 = vmatprep.subr.bf16.mxu0 %v5230
        %5304 = vmatpush2.bf16.msra.mxu0 %v5229
        %5305 = vmatprep.subr.bf16.mxu0 %v5228
        %5306 = vmatpush2.bf16.msra.mxu0 %v5227
        %5307 = vmatprep.mubr.bf16.mxu0 %v5020
        %5308 = vmatmul.mubr.bf16.gmra.mxu0 %v5019
        %v5309 = vpop.f32.mrf.mxu0
        %v5310 = vadd.f32 0.0, %v5309
        %v5311 = vpop.f32.mrf.mxu0
        %v5312 = vadd.f32 0.0, %v5311
        %v5313 = vpop.f32.mrf.mxu0
        %v5314 = vadd.f32 0.0, %v5313
        %v5315 = vpop.f32.mrf.mxu0
        %v5316 = vadd.f32 0.0, %v5315
        %5317 = vmatprep.mubr.bf16.mxu0 %v5022
        %5318 = vmatmul.mubr.bf16.gmra.mxu0 %v5021
        %v5319 = vpop.f32.mrf.mxu0
        %v5320 = vadd.f32 0.0, %v5319
        %v5321 = vpop.f32.mrf.mxu0
        %v5322 = vadd.f32 0.0, %v5321
        %v5323 = vpop.f32.mrf.mxu0
        %v5324 = vadd.f32 0.0, %v5323
        %v5325 = vpop.f32.mrf.mxu0
        %v5326 = vadd.f32 0.0, %v5325
        %5327 = vmatprep.mubr.bf16.mxu0 %v5024
        %5328 = vmatmul.mubr.bf16.gmra.mxu0 %v5023
        %v5329 = vpop.f32.mrf.mxu0
        %v5330 = vadd.f32 0.0, %v5329
        %v5331 = vpop.f32.mrf.mxu0
        %v5332 = vadd.f32 0.0, %v5331
        %v5333 = vpop.f32.mrf.mxu0
        %v5334 = vadd.f32 0.0, %v5333
        %v5335 = vpop.f32.mrf.mxu0
        %v5336 = vadd.f32 0.0, %v5335
        %5337 = vmatprep.mubr.bf16.mxu0 %v5026
        %5338 = vmatmul.mubr.bf16.gmra.mxu0 %v5025
        %v5339 = vpop.f32.mrf.mxu0
        %v5340 = vadd.f32 0.0, %v5339
        %v5341 = vpop.f32.mrf.mxu0
        %v5342 = vadd.f32 0.0, %v5341
        %v5343 = vpop.f32.mrf.mxu0
        %v5344 = vadd.f32 0.0, %v5343
        %v5345 = vpop.f32.mrf.mxu0
        %v5346 = vadd.f32 0.0, %v5345
        %5347 = vmatprep.mubr.bf16.mxu0 %v5028
        %5348 = vmatmul.mubr.bf16.gmra.mxu0 %v5027
        %v5349 = vpop.f32.mrf.mxu0
        %v5350 = vadd.f32 0.0, %v5349
        %v5351 = vpop.f32.mrf.mxu0
        %v5352 = vadd.f32 0.0, %v5351
        %v5353 = vpop.f32.mrf.mxu0
        %v5354 = vadd.f32 0.0, %v5353
        %v5355 = vpop.f32.mrf.mxu0
        %v5356 = vadd.f32 0.0, %v5355
        %5357 = vmatprep.mubr.bf16.mxu0 %v5030
        %5358 = vmatmul.mubr.bf16.gmra.mxu0 %v5029
        %v5359 = vpop.f32.mrf.mxu0
        %v5360 = vadd.f32 0.0, %v5359
        %v5361 = vpop.f32.mrf.mxu0
        %v5362 = vadd.f32 0.0, %v5361
        %v5363 = vpop.f32.mrf.mxu0
        %v5364 = vadd.f32 0.0, %v5363
        %v5365 = vpop.f32.mrf.mxu0
        %v5366 = vadd.f32 0.0, %v5365
        %5367 = vmatprep.mubr.bf16.mxu0 %v5032
        %5368 = vmatmul.mubr.bf16.gmra.mxu0 %v5031
        %v5369 = vpop.f32.mrf.mxu0
        %v5370 = vadd.f32 0.0, %v5369
        %v5371 = vpop.f32.mrf.mxu0
        %v5372 = vadd.f32 0.0, %v5371
        %v5373 = vpop.f32.mrf.mxu0
        %v5374 = vadd.f32 0.0, %v5373
        %v5375 = vpop.f32.mrf.mxu0
        %v5376 = vadd.f32 0.0, %v5375
        %5377 = vmatprep.mubr.bf16.mxu0 %v5034
        %5378 = vmatmul.mubr.bf16.gmra.mxu0 %v5033
        %v5379 = vpop.f32.mrf.mxu0
        %v5380 = vadd.f32 0.0, %v5379
        %v5381 = vpop.f32.mrf.mxu0
        %v5382 = vadd.f32 0.0, %v5381
        %v5383 = vpop.f32.mrf.mxu0
        %v5384 = vadd.f32 0.0, %v5383
        %v5385 = vpop.f32.mrf.mxu0
        %v5386 = vadd.f32 0.0, %v5385
        %5387 = vmatprep.mubr.bf16.mxu0 %v5036
        %5388 = vmatmul.mubr.bf16.gmra.mxu0 %v5035
        %v5389 = vpop.f32.mrf.mxu0
        %v5390 = vadd.f32 0.0, %v5389
        %v5391 = vpop.f32.mrf.mxu0
        %v5392 = vadd.f32 0.0, %v5391
        %v5393 = vpop.f32.mrf.mxu0
        %v5394 = vadd.f32 0.0, %v5393
        %v5395 = vpop.f32.mrf.mxu0
        %v5396 = vadd.f32 0.0, %v5395
        %5397 = vmatprep.mubr.bf16.mxu0 %v5038
        %5398 = vmatmul.mubr.bf16.gmra.mxu0 %v5037
        %v5399 = vpop.f32.mrf.mxu0
        %v5400 = vadd.f32 0.0, %v5399
        %v5401 = vpop.f32.mrf.mxu0
        %v5402 = vadd.f32 0.0, %v5401
        %v5403 = vpop.f32.mrf.mxu0
        %v5404 = vadd.f32 0.0, %v5403
        %v5405 = vpop.f32.mrf.mxu0
        %v5406 = vadd.f32 0.0, %v5405
        %5407 = vmatprep.mubr.bf16.mxu0 %v5040
        %5408 = vmatmul.mubr.bf16.gmra.mxu0 %v5039
        %v5409 = vpop.f32.mrf.mxu0
        %v5410 = vadd.f32 0.0, %v5409
        %v5411 = vpop.f32.mrf.mxu0
        %v5412 = vadd.f32 0.0, %v5411
        %v5413 = vpop.f32.mrf.mxu0
        %v5414 = vadd.f32 0.0, %v5413
        %v5415 = vpop.f32.mrf.mxu0
        %v5416 = vadd.f32 0.0, %v5415
        %5417 = vmatprep.mubr.bf16.mxu0 %v5042
        %5418 = vmatmul.mubr.bf16.gmra.mxu0 %v5041
        %v5419 = vpop.f32.mrf.mxu0
        %v5420 = vadd.f32 0.0, %v5419
        %v5421 = vpop.f32.mrf.mxu0
        %v5422 = vadd.f32 0.0, %v5421
        %v5423 = vpop.f32.mrf.mxu0
        %v5424 = vadd.f32 0.0, %v5423
        %v5425 = vpop.f32.mrf.mxu0
        %v5426 = vadd.f32 0.0, %v5425
        %5427 = vmatprep.mubr.bf16.mxu0 %v5044
        %5428 = vmatmul.mubr.bf16.gmra.mxu0 %v5043
        %v5429 = vpop.f32.mrf.mxu0
        %v5430 = vadd.f32 0.0, %v5429
        %v5431 = vpop.f32.mrf.mxu0
        %v5432 = vadd.f32 0.0, %v5431
        %v5433 = vpop.f32.mrf.mxu0
        %v5434 = vadd.f32 0.0, %v5433
        %v5435 = vpop.f32.mrf.mxu0
        %v5436 = vadd.f32 0.0, %v5435
        %5437 = vmatprep.mubr.bf16.mxu0 %v5046
        %5438 = vmatmul.mubr.bf16.gmra.mxu0 %v5045
        %v5439 = vpop.f32.mrf.mxu0
        %v5440 = vadd.f32 0.0, %v5439
        %v5441 = vpop.f32.mrf.mxu0
        %v5442 = vadd.f32 0.0, %v5441
        %v5443 = vpop.f32.mrf.mxu0
        %v5444 = vadd.f32 0.0, %v5443
        %v5445 = vpop.f32.mrf.mxu0
        %v5446 = vadd.f32 0.0, %v5445
        %5447 = vmatprep.mubr.bf16.mxu0 %v5048
        %5448 = vmatmul.mubr.bf16.gmra.mxu0 %v5047
        %v5449 = vpop.f32.mrf.mxu0
        %v5450 = vadd.f32 0.0, %v5449
        %v5451 = vpop.f32.mrf.mxu0
        %v5452 = vadd.f32 0.0, %v5451
        %v5453 = vpop.f32.mrf.mxu0
        %v5454 = vadd.f32 0.0, %v5453
        %v5455 = vpop.f32.mrf.mxu0
        %v5456 = vadd.f32 0.0, %v5455
        %5457 = vmatprep.mubr.bf16.mxu0 %v5050
        %5458 = vmatmul.mubr.bf16.gmra.mxu0 %v5049
        %v5459 = vpop.f32.mrf.mxu0
        %v5460 = vadd.f32 0.0, %v5459
        %v5461 = vpop.f32.mrf.mxu0
        %v5462 = vadd.f32 0.0, %v5461
        %v5463 = vpop.f32.mrf.mxu0
        %v5464 = vadd.f32 0.0, %v5463
        %v5465 = vpop.f32.mrf.mxu0
        %v5466 = vadd.f32 0.0, %v5465
        %5467 = vmatprep.mubr.bf16.mxu0 %v5052
        %5468 = vmatmul.mubr.bf16.gmra.mxu0 %v5051
        %v5469 = vpop.f32.mrf.mxu0
        %v5470 = vadd.f32 0.0, %v5469
        %v5471 = vpop.f32.mrf.mxu0
        %v5472 = vadd.f32 0.0, %v5471
        %v5473 = vpop.f32.mrf.mxu0
        %v5474 = vadd.f32 0.0, %v5473
        %v5475 = vpop.f32.mrf.mxu0
        %v5476 = vadd.f32 0.0, %v5475
        %5477 = vmatprep.mubr.bf16.mxu0 %v5054
        %5478 = vmatmul.mubr.bf16.gmra.mxu0 %v5053
        %v5479 = vpop.f32.mrf.mxu0
        %v5480 = vadd.f32 0.0, %v5479
        %v5481 = vpop.f32.mrf.mxu0
        %v5482 = vadd.f32 0.0, %v5481
        %v5483 = vpop.f32.mrf.mxu0
        %v5484 = vadd.f32 0.0, %v5483
        %v5485 = vpop.f32.mrf.mxu0
        %v5486 = vadd.f32 0.0, %v5485
        %5487 = vmatprep.mubr.bf16.mxu0 %v5056
        %5488 = vmatmul.mubr.bf16.gmra.mxu0 %v5055
        %v5489 = vpop.f32.mrf.mxu0
        %v5490 = vadd.f32 0.0, %v5489
        %v5491 = vpop.f32.mrf.mxu0
        %v5492 = vadd.f32 0.0, %v5491
        %v5493 = vpop.f32.mrf.mxu0
        %v5494 = vadd.f32 0.0, %v5493
        %v5495 = vpop.f32.mrf.mxu0
        %v5496 = vadd.f32 0.0, %v5495
        %5497 = vmatprep.mubr.bf16.mxu0 %v5058
        %5498 = vmatmul.mubr.bf16.gmra.mxu0 %v5057
        %v5499 = vpop.f32.mrf.mxu0
        %v5500 = vadd.f32 0.0, %v5499
        %v5501 = vpop.f32.mrf.mxu0
        %v5502 = vadd.f32 0.0, %v5501
        %v5503 = vpop.f32.mrf.mxu0
        %v5504 = vadd.f32 0.0, %v5503
        %v5505 = vpop.f32.mrf.mxu0
        %v5506 = vadd.f32 0.0, %v5505
        %5507 = vmatprep.mubr.bf16.mxu0 %v5060
        %5508 = vmatmul.mubr.bf16.gmra.mxu0 %v5059
        %v5509 = vpop.f32.mrf.mxu0
        %v5510 = vadd.f32 0.0, %v5509
        %v5511 = vpop.f32.mrf.mxu0
        %v5512 = vadd.f32 0.0, %v5511
        %v5513 = vpop.f32.mrf.mxu0
        %v5514 = vadd.f32 0.0, %v5513
        %v5515 = vpop.f32.mrf.mxu0
        %v5516 = vadd.f32 0.0, %v5515
        %5517 = vmatprep.mubr.bf16.mxu0 %v5062
        %5518 = vmatmul.mubr.bf16.gmra.mxu0 %v5061
        %v5519 = vpop.f32.mrf.mxu0
        %v5520 = vadd.f32 0.0, %v5519
        %v5521 = vpop.f32.mrf.mxu0
        %v5522 = vadd.f32 0.0, %v5521
        %v5523 = vpop.f32.mrf.mxu0
        %v5524 = vadd.f32 0.0, %v5523
        %v5525 = vpop.f32.mrf.mxu0
        %v5526 = vadd.f32 0.0, %v5525
        %5527 = vmatprep.mubr.bf16.mxu0 %v5064
        %5528 = vmatmul.mubr.bf16.gmra.mxu0 %v5063
        %v5529 = vpop.f32.mrf.mxu0
        %v5530 = vadd.f32 0.0, %v5529
        %v5531 = vpop.f32.mrf.mxu0
        %v5532 = vadd.f32 0.0, %v5531
        %v5533 = vpop.f32.mrf.mxu0
        %v5534 = vadd.f32 0.0, %v5533
        %v5535 = vpop.f32.mrf.mxu0
        %v5536 = vadd.f32 0.0, %v5535
        %5537 = vmatprep.mubr.bf16.mxu0 %v5066
        %5538 = vmatmul.mubr.bf16.gmra.mxu0 %v5065
        %v5539 = vpop.f32.mrf.mxu0
        %v5540 = vadd.f32 0.0, %v5539
        %v5541 = vpop.f32.mrf.mxu0
        %v5542 = vadd.f32 0.0, %v5541
        %v5543 = vpop.f32.mrf.mxu0
        %v5544 = vadd.f32 0.0, %v5543
        %v5545 = vpop.f32.mrf.mxu0
        %v5546 = vadd.f32 0.0, %v5545
        %5547 = vmatprep.mubr.bf16.mxu0 %v5068
        %5548 = vmatmul.mubr.bf16.gmra.mxu0 %v5067
        %v5549 = vpop.f32.mrf.mxu0
        %v5550 = vadd.f32 0.0, %v5549
        %v5551 = vpop.f32.mrf.mxu0
        %v5552 = vadd.f32 0.0, %v5551
        %v5553 = vpop.f32.mrf.mxu0
        %v5554 = vadd.f32 0.0, %v5553
        %v5555 = vpop.f32.mrf.mxu0
        %v5556 = vadd.f32 0.0, %v5555
        %5557 = vmatprep.mubr.bf16.mxu0 %v5070
        %5558 = vmatmul.mubr.bf16.gmra.mxu0 %v5069
        %v5559 = vpop.f32.mrf.mxu0
        %v5560 = vadd.f32 0.0, %v5559
        %v5561 = vpop.f32.mrf.mxu0
        %v5562 = vadd.f32 0.0, %v5561
        %v5563 = vpop.f32.mrf.mxu0
        %v5564 = vadd.f32 0.0, %v5563
        %v5565 = vpop.f32.mrf.mxu0
        %v5566 = vadd.f32 0.0, %v5565
        %5567 = vmatprep.mubr.bf16.mxu0 %v5072
        %5568 = vmatmul.mubr.bf16.gmra.mxu0 %v5071
        %v5569 = vpop.f32.mrf.mxu0
        %v5570 = vadd.f32 0.0, %v5569
        %v5571 = vpop.f32.mrf.mxu0
        %v5572 = vadd.f32 0.0, %v5571
        %v5573 = vpop.f32.mrf.mxu0
        %v5574 = vadd.f32 0.0, %v5573
        %v5575 = vpop.f32.mrf.mxu0
        %v5576 = vadd.f32 0.0, %v5575
        %5577 = vmatprep.mubr.bf16.mxu0 %v5074
        %5578 = vmatmul.mubr.bf16.gmra.mxu0 %v5073
        %v5579 = vpop.f32.mrf.mxu0
        %v5580 = vadd.f32 0.0, %v5579
        %v5581 = vpop.f32.mrf.mxu0
        %v5582 = vadd.f32 0.0, %v5581
        %v5583 = vpop.f32.mrf.mxu0
        %v5584 = vadd.f32 0.0, %v5583
        %v5585 = vpop.f32.mrf.mxu0
        %v5586 = vadd.f32 0.0, %v5585
        %5587 = vmatprep.mubr.bf16.mxu0 %v5076
        %5588 = vmatmul.mubr.bf16.gmra.mxu0 %v5075
        %v5589 = vpop.f32.mrf.mxu0
        %v5590 = vadd.f32 0.0, %v5589
        %v5591 = vpop.f32.mrf.mxu0
        %v5592 = vadd.f32 0.0, %v5591
        %v5593 = vpop.f32.mrf.mxu0
        %v5594 = vadd.f32 0.0, %v5593
        %v5595 = vpop.f32.mrf.mxu0
        %v5596 = vadd.f32 0.0, %v5595
        %5597 = vmatprep.mubr.bf16.mxu0 %v5078
        %5598 = vmatmul.mubr.bf16.gmra.mxu0 %v5077
        %v5599 = vpop.f32.mrf.mxu0
        %v5600 = vadd.f32 0.0, %v5599
        %v5601 = vpop.f32.mrf.mxu0
        %v5602 = vadd.f32 0.0, %v5601
        %v5603 = vpop.f32.mrf.mxu0
        %v5604 = vadd.f32 0.0, %v5603
        %v5605 = vpop.f32.mrf.mxu0
        %v5606 = vadd.f32 0.0, %v5605
        %5607 = vmatprep.mubr.bf16.mxu0 %v5080
        %5608 = vmatmul.mubr.bf16.gmra.mxu0 %v5079
        %v5609 = vpop.f32.mrf.mxu0
        %v5610 = vadd.f32 0.0, %v5609
        %v5611 = vpop.f32.mrf.mxu0
        %v5612 = vadd.f32 0.0, %v5611
        %v5613 = vpop.f32.mrf.mxu0
        %v5614 = vadd.f32 0.0, %v5613
        %v5615 = vpop.f32.mrf.mxu0
        %v5616 = vadd.f32 0.0, %v5615
        %5617 = vmatprep.mubr.bf16.mxu0 %v5082
        %5618 = vmatmul.mubr.bf16.gmra.mxu0 %v5081
        %v5619 = vpop.f32.mrf.mxu0
        %v5620 = vadd.f32 0.0, %v5619
        %v5621 = vpop.f32.mrf.mxu0
        %v5622 = vadd.f32 0.0, %v5621
        %v5623 = vpop.f32.mrf.mxu0
        %v5624 = vadd.f32 0.0, %v5623
        %v5625 = vpop.f32.mrf.mxu0
        %v5626 = vadd.f32 0.0, %v5625
        %5627 = vdwg.mxu0
        %v5628 = vpack.c.bf16 %v5314, %v5310
        %v5629 = vpack.c.bf16 %v5316, %v5312
        %v5630 = vpack.c.bf16 %v5324, %v5320
        %v5631 = vpack.c.bf16 %v5326, %v5322
        %v5632 = vpack.c.bf16 %v5334, %v5330
        %v5633 = vpack.c.bf16 %v5336, %v5332
        %v5634 = vpack.c.bf16 %v5344, %v5340
        %v5635 = vpack.c.bf16 %v5346, %v5342
        %v5636 = vpack.c.bf16 %v5354, %v5350
        %v5637 = vpack.c.bf16 %v5356, %v5352
        %v5638 = vpack.c.bf16 %v5364, %v5360
        %v5639 = vpack.c.bf16 %v5366, %v5362
        %v5640 = vpack.c.bf16 %v5374, %v5370
        %v5641 = vpack.c.bf16 %v5376, %v5372
        %v5642 = vpack.c.bf16 %v5384, %v5380
        %v5643 = vpack.c.bf16 %v5386, %v5382
        %v5644 = vpack.c.bf16 %v5394, %v5390
        %v5645 = vpack.c.bf16 %v5396, %v5392
        %v5646 = vpack.c.bf16 %v5404, %v5400
        %v5647 = vpack.c.bf16 %v5406, %v5402
        %v5648 = vpack.c.bf16 %v5414, %v5410
        %v5649 = vpack.c.bf16 %v5416, %v5412
        %v5650 = vpack.c.bf16 %v5424, %v5420
        %v5651 = vpack.c.bf16 %v5426, %v5422
        %v5652 = vpack.c.bf16 %v5434, %v5430
        %v5653 = vpack.c.bf16 %v5436, %v5432
        %v5654 = vpack.c.bf16 %v5444, %v5440
        %v5655 = vpack.c.bf16 %v5446, %v5442
        %v5656 = vpack.c.bf16 %v5454, %v5450
        %v5657 = vpack.c.bf16 %v5456, %v5452
        %v5658 = vpack.c.bf16 %v5464, %v5460
        %v5659 = vpack.c.bf16 %v5466, %v5462
        %v5660 = vpack.c.bf16 %v5474, %v5470
        %v5661 = vpack.c.bf16 %v5476, %v5472
        %v5662 = vpack.c.bf16 %v5484, %v5480
        %v5663 = vpack.c.bf16 %v5486, %v5482
        %v5664 = vpack.c.bf16 %v5494, %v5490
        %v5665 = vpack.c.bf16 %v5496, %v5492
        %v5666 = vpack.c.bf16 %v5504, %v5500
        %v5667 = vpack.c.bf16 %v5506, %v5502
        %v5668 = vpack.c.bf16 %v5514, %v5510
        %v5669 = vpack.c.bf16 %v5516, %v5512
        %v5670 = vpack.c.bf16 %v5524, %v5520
        %v5671 = vpack.c.bf16 %v5526, %v5522
        %v5672 = vpack.c.bf16 %v5534, %v5530
        %v5673 = vpack.c.bf16 %v5536, %v5532
        %v5674 = vpack.c.bf16 %v5544, %v5540
        %v5675 = vpack.c.bf16 %v5546, %v5542
        %v5676 = vpack.c.bf16 %v5554, %v5550
        %v5677 = vpack.c.bf16 %v5556, %v5552
        %v5678 = vpack.c.bf16 %v5564, %v5560
        %v5679 = vpack.c.bf16 %v5566, %v5562
        %v5680 = vpack.c.bf16 %v5574, %v5570
        %v5681 = vpack.c.bf16 %v5576, %v5572
        %v5682 = vpack.c.bf16 %v5584, %v5580
        %v5683 = vpack.c.bf16 %v5586, %v5582
        %v5684 = vpack.c.bf16 %v5594, %v5590
        %v5685 = vpack.c.bf16 %v5596, %v5592
        %v5686 = vpack.c.bf16 %v5604, %v5600
        %v5687 = vpack.c.bf16 %v5606, %v5602
        %v5688 = vpack.c.bf16 %v5614, %v5610
        %v5689 = vpack.c.bf16 %v5616, %v5612
        %v5690 = vpack.c.bf16 %v5624, %v5620
        %v5691 = vpack.c.bf16 %v5626, %v5622
        %v5692 = vld [vmem:[%s15] sm:$0x3]
        %v5695 = vunpack.c.l.s4 1966171168
        %v5696 = vunpack.c.0.s8 %v5695
        %v5697 = vlaneseq
        %v5698 = vshrl.u32 %v5697, 7
        %v5699 = vsub.s32 %v5696, %v5698
        %v5700 = vrot.slane %v5692, %v5699
        %v5701 = vcombine.high %v5700, %v5700
        %v5703 = vunpack.c.l.s4 1966171168
        %v5704 = vunpack.c.0.s8 %v5703
        %v5705 = vlaneseq
        %v5706 = vshrl.u32 %v5705, 7
        %v5707 = vsub.s32 %v5704, %v5706
        %v5708 = vrot.slane %v5700, %v5707
        %v5710 = vunpack.c.l.s4 1966171168
        %v5711 = vunpack.c.0.s8 %v5710
        %v5712 = vlaneseq
        %v5713 = vshrl.u32 %v5712, 7
        %v5714 = vsub.s32 %v5711, %v5713
        %v5715 = vrot.slane %v5701, %v5714
        %v5717 = vpack.i.b16 %v5708, %v5708
        %v5719 = vlaneseq
        %v5720 = vshrl.u32 %v5719, 7
        %v5721 = vsub.s32 0, %v5720
        %v5722 = vrot.slane %v5717, %v5721
        %v5724 = vpack.i.b16 %v5715, %v5715
        %v5726 = vlaneseq
        %v5727 = vshrl.u32 %v5726, 7
        %v5728 = vsub.s32 0, %v5727
        %v5729 = vrot.slane %v5724, %v5728
        %v5730 = vadd.bf16 %v5628, %v5722
        %v5731 = vadd.bf16 %v5629, %v5729
        %v5732 = vadd.bf16 %v5630, %v5722
        %v5733 = vadd.bf16 %v5631, %v5729
        %v5734 = vadd.bf16 %v5632, %v5722
        %v5735 = vadd.bf16 %v5633, %v5729
        %v5736 = vadd.bf16 %v5634, %v5722
        %v5737 = vadd.bf16 %v5635, %v5729
        %v5738 = vadd.bf16 %v5636, %v5722
        %v5739 = vadd.bf16 %v5637, %v5729
        %v5740 = vadd.bf16 %v5638, %v5722
        %v5741 = vadd.bf16 %v5639, %v5729
        %v5742 = vadd.bf16 %v5640, %v5722
        %v5743 = vadd.bf16 %v5641, %v5729
        %v5744 = vadd.bf16 %v5642, %v5722
        %v5745 = vadd.bf16 %v5643, %v5729
        %v5746 = vadd.bf16 %v5644, %v5722
        %v5747 = vadd.bf16 %v5645, %v5729
        %v5748 = vadd.bf16 %v5646, %v5722
        %v5749 = vadd.bf16 %v5647, %v5729
        %v5750 = vadd.bf16 %v5648, %v5722
        %v5751 = vadd.bf16 %v5649, %v5729
        %v5752 = vadd.bf16 %v5650, %v5722
        %v5753 = vadd.bf16 %v5651, %v5729
        %v5754 = vadd.bf16 %v5652, %v5722
        %v5755 = vadd.bf16 %v5653, %v5729
        %v5756 = vadd.bf16 %v5654, %v5722
        %v5757 = vadd.bf16 %v5655, %v5729
        %v5758 = vadd.bf16 %v5656, %v5722
        %v5759 = vadd.bf16 %v5657, %v5729
        %v5760 = vadd.bf16 %v5658, %v5722
        %v5761 = vadd.bf16 %v5659, %v5729
        %v5762 = vadd.bf16 %v5660, %v5722
        %v5763 = vadd.bf16 %v5661, %v5729
        %v5764 = vadd.bf16 %v5662, %v5722
        %v5765 = vadd.bf16 %v5663, %v5729
        %v5766 = vadd.bf16 %v5664, %v5722
        %v5767 = vadd.bf16 %v5665, %v5729
        %v5768 = vadd.bf16 %v5666, %v5722
        %v5769 = vadd.bf16 %v5667, %v5729
        %v5770 = vadd.bf16 %v5668, %v5722
        %v5771 = vadd.bf16 %v5669, %v5729
        %v5772 = vadd.bf16 %v5670, %v5722
        %v5773 = vadd.bf16 %v5671, %v5729
        %v5774 = vadd.bf16 %v5672, %v5722
        %v5775 = vadd.bf16 %v5673, %v5729
        %v5776 = vadd.bf16 %v5674, %v5722
        %v5777 = vadd.bf16 %v5675, %v5729
        %v5778 = vadd.bf16 %v5676, %v5722
        %v5779 = vadd.bf16 %v5677, %v5729
        %v5780 = vadd.bf16 %v5678, %v5722
        %v5781 = vadd.bf16 %v5679, %v5729
        %v5782 = vadd.bf16 %v5680, %v5722
        %v5783 = vadd.bf16 %v5681, %v5729
        %v5784 = vadd.bf16 %v5682, %v5722
        %v5785 = vadd.bf16 %v5683, %v5729
        %v5786 = vadd.bf16 %v5684, %v5722
        %v5787 = vadd.bf16 %v5685, %v5729
        %v5788 = vadd.bf16 %v5686, %v5722
        %v5789 = vadd.bf16 %v5687, %v5729
        %v5790 = vadd.bf16 %v5688, %v5722
        %v5791 = vadd.bf16 %v5689, %v5729
        %v5792 = vadd.bf16 %v5690, %v5722
        %v5793 = vadd.bf16 %v5691, %v5729
        %v5794 = vadd.bf16 %v5730, %v1689
        %v5795 = vadd.bf16 %v5731, %v1690
        %v5796 = vadd.bf16 %v5732, %v1691
        %v5797 = vadd.bf16 %v5733, %v1692
        %v5798 = vadd.bf16 %v5734, %v1693
        %v5799 = vadd.bf16 %v5735, %v1694
        %v5800 = vadd.bf16 %v5736, %v1695
        %v5801 = vadd.bf16 %v5737, %v1696
        %v5802 = vadd.bf16 %v5738, %v1697
        %v5803 = vadd.bf16 %v5739, %v1698
        %v5804 = vadd.bf16 %v5740, %v1699
        %v5805 = vadd.bf16 %v5741, %v1700
        %v5806 = vadd.bf16 %v5742, %v1701
        %v5807 = vadd.bf16 %v5743, %v1702
        %v5808 = vadd.bf16 %v5744, %v1703
        %v5809 = vadd.bf16 %v5745, %v1704
        %v5810 = vadd.bf16 %v5746, %v1705
        %v5811 = vadd.bf16 %v5747, %v1706
        %v5812 = vadd.bf16 %v5748, %v1707
        %v5813 = vadd.bf16 %v5749, %v1708
        %v5814 = vadd.bf16 %v5750, %v1709
        %v5815 = vadd.bf16 %v5751, %v1710
        %v5816 = vadd.bf16 %v5752, %v1711
        %v5817 = vadd.bf16 %v5753, %v1712
        %v5818 = vadd.bf16 %v5754, %v1713
        %v5819 = vadd.bf16 %v5755, %v1714
        %v5820 = vadd.bf16 %v5756, %v1715
        %v5821 = vadd.bf16 %v5757, %v1716
        %v5822 = vadd.bf16 %v5758, %v1717
        %v5823 = vadd.bf16 %v5759, %v1718
        %v5824 = vadd.bf16 %v5760, %v1719
        %v5825 = vadd.bf16 %v5761, %v1720
        %v5826 = vadd.bf16 %v5762, %v1721
        %v5827 = vadd.bf16 %v5763, %v1722
        %v5828 = vadd.bf16 %v5764, %v1723
        %v5829 = vadd.bf16 %v5765, %v1724
        %v5830 = vadd.bf16 %v5766, %v1725
        %v5831 = vadd.bf16 %v5767, %v1726
        %v5832 = vadd.bf16 %v5768, %v1727
        %v5833 = vadd.bf16 %v5769, %v1728
        %v5834 = vadd.bf16 %v5770, %v1729
        %v5835 = vadd.bf16 %v5771, %v1730
        %v5836 = vadd.bf16 %v5772, %v1731
        %v5837 = vadd.bf16 %v5773, %v1732
        %v5838 = vadd.bf16 %v5774, %v1733
        %v5839 = vadd.bf16 %v5775, %v1734
        %v5840 = vadd.bf16 %v5776, %v1735
        %v5841 = vadd.bf16 %v5777, %v1736
        %v5842 = vadd.bf16 %v5778, %v1737
        %v5843 = vadd.bf16 %v5779, %v1738
        %v5844 = vadd.bf16 %v5780, %v1739
        %v5845 = vadd.bf16 %v5781, %v1740
        %v5846 = vadd.bf16 %v5782, %v1741
        %v5847 = vadd.bf16 %v5783, %v1742
        %v5848 = vadd.bf16 %v5784, %v1743
        %v5849 = vadd.bf16 %v5785, %v1744
        %v5850 = vadd.bf16 %v5786, %v1745
        %v5851 = vadd.bf16 %v5787, %v1746
        %v5852 = vadd.bf16 %v5788, %v1747
        %v5853 = vadd.bf16 %v5789, %v1748
        %v5854 = vadd.bf16 %v5790, %v1749
        %v5855 = vadd.bf16 %v5791, %v1750
        %v5856 = vadd.bf16 %v5792, %v1751
        %v5857 = vadd.bf16 %v5793, %v1752
        %v5858 = vmax.bf16 %v5794, 0
        %v5859 = vmax.bf16 %v5795, 0
        %v5860 = vmax.bf16 %v5796, 0
        %v5861 = vmax.bf16 %v5797, 0
        %v5862 = vmax.bf16 %v5798, 0
        %v5863 = vmax.bf16 %v5799, 0
        %v5864 = vmax.bf16 %v5800, 0
        %v5865 = vmax.bf16 %v5801, 0
        %v5866 = vmax.bf16 %v5802, 0
        %v5867 = vmax.bf16 %v5803, 0
        %v5868 = vmax.bf16 %v5804, 0
        %v5869 = vmax.bf16 %v5805, 0
        %v5870 = vmax.bf16 %v5806, 0
        %v5871 = vmax.bf16 %v5807, 0
        %v5872 = vmax.bf16 %v5808, 0
        %v5873 = vmax.bf16 %v5809, 0
        %v5874 = vmax.bf16 %v5810, 0
        %v5875 = vmax.bf16 %v5811, 0
        %v5876 = vmax.bf16 %v5812, 0
        %v5877 = vmax.bf16 %v5813, 0
        %v5878 = vmax.bf16 %v5814, 0
        %v5879 = vmax.bf16 %v5815, 0
        %v5880 = vmax.bf16 %v5816, 0
        %v5881 = vmax.bf16 %v5817, 0
        %v5882 = vmax.bf16 %v5818, 0
        %v5883 = vmax.bf16 %v5819, 0
        %v5884 = vmax.bf16 %v5820, 0
        %v5885 = vmax.bf16 %v5821, 0
        %v5886 = vmax.bf16 %v5822, 0
        %v5887 = vmax.bf16 %v5823, 0
        %v5888 = vmax.bf16 %v5824, 0
        %v5889 = vmax.bf16 %v5825, 0
        %v5890 = vmax.bf16 %v5826, 0
        %v5891 = vmax.bf16 %v5827, 0
        %v5892 = vmax.bf16 %v5828, 0
        %v5893 = vmax.bf16 %v5829, 0
        %v5894 = vmax.bf16 %v5830, 0
        %v5895 = vmax.bf16 %v5831, 0
        %v5896 = vmax.bf16 %v5832, 0
        %v5897 = vmax.bf16 %v5833, 0
        %v5898 = vmax.bf16 %v5834, 0
        %v5899 = vmax.bf16 %v5835, 0
        %v5900 = vmax.bf16 %v5836, 0
        %v5901 = vmax.bf16 %v5837, 0
        %v5902 = vmax.bf16 %v5838, 0
        %v5903 = vmax.bf16 %v5839, 0
        %v5904 = vmax.bf16 %v5840, 0
        %v5905 = vmax.bf16 %v5841, 0
        %v5906 = vmax.bf16 %v5842, 0
        %v5907 = vmax.bf16 %v5843, 0
        %v5908 = vmax.bf16 %v5844, 0
        %v5909 = vmax.bf16 %v5845, 0
        %v5910 = vmax.bf16 %v5846, 0
        %v5911 = vmax.bf16 %v5847, 0
        %v5912 = vmax.bf16 %v5848, 0
        %v5913 = vmax.bf16 %v5849, 0
        %v5914 = vmax.bf16 %v5850, 0
        %v5915 = vmax.bf16 %v5851, 0
        %v5916 = vmax.bf16 %v5852, 0
        %v5917 = vmax.bf16 %v5853, 0
        %v5918 = vmax.bf16 %v5854, 0
        %v5919 = vmax.bf16 %v5855, 0
        %v5920 = vmax.bf16 %v5856, 0
        %v5921 = vmax.bf16 %v5857, 0
        %v5922 = vld [vmem:[%s7] sm:$0xff]
        %v5923 = vld [vmem:[%s7 + $0x8] sm:$0xff]
        %v5924 = vld [vmem:[%s7 + $0x10] sm:$0xff]
        %v5925 = vld [vmem:[%s7 + $0x18] sm:$0xff]
        %v5926 = vld [vmem:[%s7 + $0x20] sm:$0xff]
        %v5927 = vld [vmem:[%s7 + $0x28] sm:$0xff]
        %v5928 = vld [vmem:[%s7 + $0x30] sm:$0xff]
        %v5929 = vld [vmem:[%s7 + $0x38] sm:$0xff]
        %v5930 = vld [vmem:[%s7 + $0x40] sm:$0xff]
        %v5931 = vld [vmem:[%s7 + $0x48] sm:$0xff]
        %v5932 = vld [vmem:[%s7 + $0x50] sm:$0xff]
        %v5933 = vld [vmem:[%s7 + $0x58] sm:$0xff]
        %v5934 = vld [vmem:[%s7 + $0x60] sm:$0xff]
        %v5935 = vld [vmem:[%s7 + $0x68] sm:$0xff]
        %v5936 = vld [vmem:[%s7 + $0x70] sm:$0xff]
        %v5937 = vld [vmem:[%s7 + $0x78] sm:$0xff]
        %v5938 = vld [vmem:[%s7 + $0x80] sm:$0xff]
        %v5939 = vld [vmem:[%s7 + $0x88] sm:$0xff]
        %v5940 = vld [vmem:[%s7 + $0x90] sm:$0xff]
        %v5941 = vld [vmem:[%s7 + $0x98] sm:$0xff]
        %v5942 = vld [vmem:[%s7 + $0xa0] sm:$0xff]
        %v5943 = vld [vmem:[%s7 + $0xa8] sm:$0xff]
        %v5944 = vld [vmem:[%s7 + $0xb0] sm:$0xff]
        %v5945 = vld [vmem:[%s7 + $0xb8] sm:$0xff]
        %v5946 = vld [vmem:[%s7 + $0xc0] sm:$0xff]
        %v5947 = vld [vmem:[%s7 + $0xc8] sm:$0xff]
        %v5948 = vld [vmem:[%s7 + $0xd0] sm:$0xff]
        %v5949 = vld [vmem:[%s7 + $0xd8] sm:$0xff]
        %v5950 = vld [vmem:[%s7 + $0xe0] sm:$0xff]
        %v5951 = vld [vmem:[%s7 + $0xe8] sm:$0xff]
        %v5952 = vld [vmem:[%s7 + $0xf0] sm:$0xff]
        %v5953 = vld [vmem:[%s7 + $0xf8] sm:$0xff]
        %v5986 = vunpack.c.l.b16 %v5922
        %v5987 = vunpack.c.h.b16 %v5922
        %v5988 = vunpack.c.l.b16 %v5923
        %v5989 = vunpack.c.h.b16 %v5923
        %v5990 = vunpack.c.l.b16 %v5924
        %v5991 = vunpack.c.h.b16 %v5924
        %v5992 = vunpack.c.l.b16 %v5925
        %v5993 = vunpack.c.h.b16 %v5925
        %v5994 = vunpack.c.l.b16 %v5926
        %v5995 = vunpack.c.h.b16 %v5926
        %v5996 = vunpack.c.l.b16 %v5927
        %v5997 = vunpack.c.h.b16 %v5927
        %v5998 = vunpack.c.l.b16 %v5928
        %v5999 = vunpack.c.h.b16 %v5928
        %v6000 = vunpack.c.l.b16 %v5929
        %v6001 = vunpack.c.h.b16 %v5929
        %v6002 = vunpack.c.l.b16 %v5930
        %v6003 = vunpack.c.h.b16 %v5930
        %v6004 = vunpack.c.l.b16 %v5931
        %v6005 = vunpack.c.h.b16 %v5931
        %v6006 = vunpack.c.l.b16 %v5932
        %v6007 = vunpack.c.h.b16 %v5932
        %v6008 = vunpack.c.l.b16 %v5933
        %v6009 = vunpack.c.h.b16 %v5933
        %v6010 = vunpack.c.l.b16 %v5934
        %v6011 = vunpack.c.h.b16 %v5934
        %v6012 = vunpack.c.l.b16 %v5935
        %v6013 = vunpack.c.h.b16 %v5935
        %v6014 = vunpack.c.l.b16 %v5936
        %v6015 = vunpack.c.h.b16 %v5936
        %v6016 = vunpack.c.l.b16 %v5937
        %v6017 = vunpack.c.h.b16 %v5937
        %v6018 = vunpack.c.l.b16 %v5938
        %v6019 = vunpack.c.h.b16 %v5938
        %v6020 = vunpack.c.l.b16 %v5939
        %v6021 = vunpack.c.h.b16 %v5939
        %v6022 = vunpack.c.l.b16 %v5940
        %v6023 = vunpack.c.h.b16 %v5940
        %v6024 = vunpack.c.l.b16 %v5941
        %v6025 = vunpack.c.h.b16 %v5941
        %v6026 = vunpack.c.l.b16 %v5942
        %v6027 = vunpack.c.h.b16 %v5942
        %v6028 = vunpack.c.l.b16 %v5943
        %v6029 = vunpack.c.h.b16 %v5943
        %v6030 = vunpack.c.l.b16 %v5944
        %v6031 = vunpack.c.h.b16 %v5944
        %v6032 = vunpack.c.l.b16 %v5945
        %v6033 = vunpack.c.h.b16 %v5945
        %v6034 = vunpack.c.l.b16 %v5946
        %v6035 = vunpack.c.h.b16 %v5946
        %v6036 = vunpack.c.l.b16 %v5947
        %v6037 = vunpack.c.h.b16 %v5947
        %v6038 = vunpack.c.l.b16 %v5948
        %v6039 = vunpack.c.h.b16 %v5948
        %v6040 = vunpack.c.l.b16 %v5949
        %v6041 = vunpack.c.h.b16 %v5949
        %v6042 = vunpack.c.l.b16 %v5950
        %v6043 = vunpack.c.h.b16 %v5950
        %v6044 = vunpack.c.l.b16 %v5951
        %v6045 = vunpack.c.h.b16 %v5951
        %v6046 = vunpack.c.l.b16 %v5952
        %v6047 = vunpack.c.h.b16 %v5952
        %v6048 = vunpack.c.l.b16 %v5953
        %v6049 = vunpack.c.h.b16 %v5953
        %v6050 = vpack.c.b16 %v5988, %v5986
        %v6051 = vpack.c.b16 %v5989, %v5987
        %v6052 = vpack.c.b16 %v5992, %v5990
        %v6053 = vpack.c.b16 %v5993, %v5991
        %v6054 = vpack.c.b16 %v5996, %v5994
        %v6055 = vpack.c.b16 %v5997, %v5995
        %v6056 = vpack.c.b16 %v6000, %v5998
        %v6057 = vpack.c.b16 %v6001, %v5999
        %v6058 = vpack.c.b16 %v6004, %v6002
        %v6059 = vpack.c.b16 %v6005, %v6003
        %v6060 = vpack.c.b16 %v6008, %v6006
        %v6061 = vpack.c.b16 %v6009, %v6007
        %v6062 = vpack.c.b16 %v6012, %v6010
        %v6063 = vpack.c.b16 %v6013, %v6011
        %v6064 = vpack.c.b16 %v6016, %v6014
        %v6065 = vpack.c.b16 %v6017, %v6015
        %v6066 = vpack.c.b16 %v6020, %v6018
        %v6067 = vpack.c.b16 %v6021, %v6019
        %v6068 = vpack.c.b16 %v6024, %v6022
        %v6069 = vpack.c.b16 %v6025, %v6023
        %v6070 = vpack.c.b16 %v6028, %v6026
        %v6071 = vpack.c.b16 %v6029, %v6027
        %v6072 = vpack.c.b16 %v6032, %v6030
        %v6073 = vpack.c.b16 %v6033, %v6031
        %v6074 = vpack.c.b16 %v6036, %v6034
        %v6075 = vpack.c.b16 %v6037, %v6035
        %v6076 = vpack.c.b16 %v6040, %v6038
        %v6077 = vpack.c.b16 %v6041, %v6039
        %v6078 = vpack.c.b16 %v6044, %v6042
        %v6079 = vpack.c.b16 %v6045, %v6043
        %v6080 = vpack.c.b16 %v6048, %v6046
        %v6081 = vpack.c.b16 %v6049, %v6047
        %6114 = vmatprep.subr.bf16.mxu0 %v6065
        %6115 = vmatpush1.bf16.msra.mxu0 %v6064
        %6116 = vmatprep.subr.bf16.mxu0 %v6063
        %6117 = vmatpush1.bf16.msra.mxu0 %v6062
        %6118 = vmatprep.subr.bf16.mxu0 %v6061
        %6119 = vmatpush1.bf16.msra.mxu0 %v6060
        %6120 = vmatprep.subr.bf16.mxu0 %v6059
        %6121 = vmatpush1.bf16.msra.mxu0 %v6058
        %6122 = vmatprep.subr.bf16.mxu0 %v6057
        %6123 = vmatpush1.bf16.msra.mxu0 %v6056
        %6124 = vmatprep.subr.bf16.mxu0 %v6055
        %6125 = vmatpush1.bf16.msra.mxu0 %v6054
        %6126 = vmatprep.subr.bf16.mxu0 %v6053
        %6127 = vmatpush1.bf16.msra.mxu0 %v6052
        %6128 = vmatprep.subr.bf16.mxu0 %v6051
        %6129 = vmatpush1.bf16.msra.mxu0 %v6050
        %6130 = vmatprep.subr.bf16.mxu0 %v6081
        %6131 = vmatpush2.bf16.msra.mxu0 %v6080
        %6132 = vmatprep.subr.bf16.mxu0 %v6079
        %6133 = vmatpush2.bf16.msra.mxu0 %v6078
        %6134 = vmatprep.subr.bf16.mxu0 %v6077
        %6135 = vmatpush2.bf16.msra.mxu0 %v6076
        %6136 = vmatprep.subr.bf16.mxu0 %v6075
        %6137 = vmatpush2.bf16.msra.mxu0 %v6074
        %6138 = vmatprep.subr.bf16.mxu0 %v6073
        %6139 = vmatpush2.bf16.msra.mxu0 %v6072
        %6140 = vmatprep.subr.bf16.mxu0 %v6071
        %6141 = vmatpush2.bf16.msra.mxu0 %v6070
        %6142 = vmatprep.subr.bf16.mxu0 %v6069
        %6143 = vmatpush2.bf16.msra.mxu0 %v6068
        %6144 = vmatprep.subr.bf16.mxu0 %v6067
        %6145 = vmatpush2.bf16.msra.mxu0 %v6066
        %6146 = vmatprep.mubr.bf16.mxu0 %v5859
        %6147 = vmatmul.mubr.bf16.gmra.mxu0 %v5858
        %v6148 = vpop.f32.mrf.mxu0
        %v6149 = vadd.f32 0.0, %v6148
        %v6150 = vpop.f32.mrf.mxu0
        %v6151 = vadd.f32 0.0, %v6150
        %v6152 = vpop.f32.mrf.mxu0
        %v6153 = vadd.f32 0.0, %v6152
        %v6154 = vpop.f32.mrf.mxu0
        %v6155 = vadd.f32 0.0, %v6154
        %6156 = vmatprep.mubr.bf16.mxu0 %v5861
        %6157 = vmatmul.mubr.bf16.gmra.mxu0 %v5860
        %v6158 = vpop.f32.mrf.mxu0
        %v6159 = vadd.f32 0.0, %v6158
        %v6160 = vpop.f32.mrf.mxu0
        %v6161 = vadd.f32 0.0, %v6160
        %v6162 = vpop.f32.mrf.mxu0
        %v6163 = vadd.f32 0.0, %v6162
        %v6164 = vpop.f32.mrf.mxu0
        %v6165 = vadd.f32 0.0, %v6164
        %6166 = vmatprep.mubr.bf16.mxu0 %v5863
        %6167 = vmatmul.mubr.bf16.gmra.mxu0 %v5862
        %v6168 = vpop.f32.mrf.mxu0
        %v6169 = vadd.f32 0.0, %v6168
        %v6170 = vpop.f32.mrf.mxu0
        %v6171 = vadd.f32 0.0, %v6170
        %v6172 = vpop.f32.mrf.mxu0
        %v6173 = vadd.f32 0.0, %v6172
        %v6174 = vpop.f32.mrf.mxu0
        %v6175 = vadd.f32 0.0, %v6174
        %6176 = vmatprep.mubr.bf16.mxu0 %v5865
        %6177 = vmatmul.mubr.bf16.gmra.mxu0 %v5864
        %v6178 = vpop.f32.mrf.mxu0
        %v6179 = vadd.f32 0.0, %v6178
        %v6180 = vpop.f32.mrf.mxu0
        %v6181 = vadd.f32 0.0, %v6180
        %v6182 = vpop.f32.mrf.mxu0
        %v6183 = vadd.f32 0.0, %v6182
        %v6184 = vpop.f32.mrf.mxu0
        %v6185 = vadd.f32 0.0, %v6184
        %6186 = vmatprep.mubr.bf16.mxu0 %v5867
        %6187 = vmatmul.mubr.bf16.gmra.mxu0 %v5866
        %v6188 = vpop.f32.mrf.mxu0
        %v6189 = vadd.f32 0.0, %v6188
        %v6190 = vpop.f32.mrf.mxu0
        %v6191 = vadd.f32 0.0, %v6190
        %v6192 = vpop.f32.mrf.mxu0
        %v6193 = vadd.f32 0.0, %v6192
        %v6194 = vpop.f32.mrf.mxu0
        %v6195 = vadd.f32 0.0, %v6194
        %6196 = vmatprep.mubr.bf16.mxu0 %v5869
        %6197 = vmatmul.mubr.bf16.gmra.mxu0 %v5868
        %v6198 = vpop.f32.mrf.mxu0
        %v6199 = vadd.f32 0.0, %v6198
        %v6200 = vpop.f32.mrf.mxu0
        %v6201 = vadd.f32 0.0, %v6200
        %v6202 = vpop.f32.mrf.mxu0
        %v6203 = vadd.f32 0.0, %v6202
        %v6204 = vpop.f32.mrf.mxu0
        %v6205 = vadd.f32 0.0, %v6204
        %6206 = vmatprep.mubr.bf16.mxu0 %v5871
        %6207 = vmatmul.mubr.bf16.gmra.mxu0 %v5870
        %v6208 = vpop.f32.mrf.mxu0
        %v6209 = vadd.f32 0.0, %v6208
        %v6210 = vpop.f32.mrf.mxu0
        %v6211 = vadd.f32 0.0, %v6210
        %v6212 = vpop.f32.mrf.mxu0
        %v6213 = vadd.f32 0.0, %v6212
        %v6214 = vpop.f32.mrf.mxu0
        %v6215 = vadd.f32 0.0, %v6214
        %6216 = vmatprep.mubr.bf16.mxu0 %v5873
        %6217 = vmatmul.mubr.bf16.gmra.mxu0 %v5872
        %v6218 = vpop.f32.mrf.mxu0
        %v6219 = vadd.f32 0.0, %v6218
        %v6220 = vpop.f32.mrf.mxu0
        %v6221 = vadd.f32 0.0, %v6220
        %v6222 = vpop.f32.mrf.mxu0
        %v6223 = vadd.f32 0.0, %v6222
        %v6224 = vpop.f32.mrf.mxu0
        %v6225 = vadd.f32 0.0, %v6224
        %6226 = vmatprep.mubr.bf16.mxu0 %v5875
        %6227 = vmatmul.mubr.bf16.gmra.mxu0 %v5874
        %v6228 = vpop.f32.mrf.mxu0
        %v6229 = vadd.f32 0.0, %v6228
        %v6230 = vpop.f32.mrf.mxu0
        %v6231 = vadd.f32 0.0, %v6230
        %v6232 = vpop.f32.mrf.mxu0
        %v6233 = vadd.f32 0.0, %v6232
        %v6234 = vpop.f32.mrf.mxu0
        %v6235 = vadd.f32 0.0, %v6234
        %6236 = vmatprep.mubr.bf16.mxu0 %v5877
        %6237 = vmatmul.mubr.bf16.gmra.mxu0 %v5876
        %v6238 = vpop.f32.mrf.mxu0
        %v6239 = vadd.f32 0.0, %v6238
        %v6240 = vpop.f32.mrf.mxu0
        %v6241 = vadd.f32 0.0, %v6240
        %v6242 = vpop.f32.mrf.mxu0
        %v6243 = vadd.f32 0.0, %v6242
        %v6244 = vpop.f32.mrf.mxu0
        %v6245 = vadd.f32 0.0, %v6244
        %6246 = vmatprep.mubr.bf16.mxu0 %v5879
        %6247 = vmatmul.mubr.bf16.gmra.mxu0 %v5878
        %v6248 = vpop.f32.mrf.mxu0
        %v6249 = vadd.f32 0.0, %v6248
        %v6250 = vpop.f32.mrf.mxu0
        %v6251 = vadd.f32 0.0, %v6250
        %v6252 = vpop.f32.mrf.mxu0
        %v6253 = vadd.f32 0.0, %v6252
        %v6254 = vpop.f32.mrf.mxu0
        %v6255 = vadd.f32 0.0, %v6254
        %6256 = vmatprep.mubr.bf16.mxu0 %v5881
        %6257 = vmatmul.mubr.bf16.gmra.mxu0 %v5880
        %v6258 = vpop.f32.mrf.mxu0
        %v6259 = vadd.f32 0.0, %v6258
        %v6260 = vpop.f32.mrf.mxu0
        %v6261 = vadd.f32 0.0, %v6260
        %v6262 = vpop.f32.mrf.mxu0
        %v6263 = vadd.f32 0.0, %v6262
        %v6264 = vpop.f32.mrf.mxu0
        %v6265 = vadd.f32 0.0, %v6264
        %6266 = vmatprep.mubr.bf16.mxu0 %v5883
        %6267 = vmatmul.mubr.bf16.gmra.mxu0 %v5882
        %v6268 = vpop.f32.mrf.mxu0
        %v6269 = vadd.f32 0.0, %v6268
        %v6270 = vpop.f32.mrf.mxu0
        %v6271 = vadd.f32 0.0, %v6270
        %v6272 = vpop.f32.mrf.mxu0
        %v6273 = vadd.f32 0.0, %v6272
        %v6274 = vpop.f32.mrf.mxu0
        %v6275 = vadd.f32 0.0, %v6274
        %6276 = vmatprep.mubr.bf16.mxu0 %v5885
        %6277 = vmatmul.mubr.bf16.gmra.mxu0 %v5884
        %v6278 = vpop.f32.mrf.mxu0
        %v6279 = vadd.f32 0.0, %v6278
        %v6280 = vpop.f32.mrf.mxu0
        %v6281 = vadd.f32 0.0, %v6280
        %v6282 = vpop.f32.mrf.mxu0
        %v6283 = vadd.f32 0.0, %v6282
        %v6284 = vpop.f32.mrf.mxu0
        %v6285 = vadd.f32 0.0, %v6284
        %6286 = vmatprep.mubr.bf16.mxu0 %v5887
        %6287 = vmatmul.mubr.bf16.gmra.mxu0 %v5886
        %v6288 = vpop.f32.mrf.mxu0
        %v6289 = vadd.f32 0.0, %v6288
        %v6290 = vpop.f32.mrf.mxu0
        %v6291 = vadd.f32 0.0, %v6290
        %v6292 = vpop.f32.mrf.mxu0
        %v6293 = vadd.f32 0.0, %v6292
        %v6294 = vpop.f32.mrf.mxu0
        %v6295 = vadd.f32 0.0, %v6294
        %6296 = vmatprep.mubr.bf16.mxu0 %v5889
        %6297 = vmatmul.mubr.bf16.gmra.mxu0 %v5888
        %v6298 = vpop.f32.mrf.mxu0
        %v6299 = vadd.f32 0.0, %v6298
        %v6300 = vpop.f32.mrf.mxu0
        %v6301 = vadd.f32 0.0, %v6300
        %v6302 = vpop.f32.mrf.mxu0
        %v6303 = vadd.f32 0.0, %v6302
        %v6304 = vpop.f32.mrf.mxu0
        %v6305 = vadd.f32 0.0, %v6304
        %6306 = vmatprep.mubr.bf16.mxu0 %v5891
        %6307 = vmatmul.mubr.bf16.gmra.mxu0 %v5890
        %v6308 = vpop.f32.mrf.mxu0
        %v6309 = vadd.f32 0.0, %v6308
        %v6310 = vpop.f32.mrf.mxu0
        %v6311 = vadd.f32 0.0, %v6310
        %v6312 = vpop.f32.mrf.mxu0
        %v6313 = vadd.f32 0.0, %v6312
        %v6314 = vpop.f32.mrf.mxu0
        %v6315 = vadd.f32 0.0, %v6314
        %6316 = vmatprep.mubr.bf16.mxu0 %v5893
        %6317 = vmatmul.mubr.bf16.gmra.mxu0 %v5892
        %v6318 = vpop.f32.mrf.mxu0
        %v6319 = vadd.f32 0.0, %v6318
        %v6320 = vpop.f32.mrf.mxu0
        %v6321 = vadd.f32 0.0, %v6320
        %v6322 = vpop.f32.mrf.mxu0
        %v6323 = vadd.f32 0.0, %v6322
        %v6324 = vpop.f32.mrf.mxu0
        %v6325 = vadd.f32 0.0, %v6324
        %6326 = vmatprep.mubr.bf16.mxu0 %v5895
        %6327 = vmatmul.mubr.bf16.gmra.mxu0 %v5894
        %v6328 = vpop.f32.mrf.mxu0
        %v6329 = vadd.f32 0.0, %v6328
        %v6330 = vpop.f32.mrf.mxu0
        %v6331 = vadd.f32 0.0, %v6330
        %v6332 = vpop.f32.mrf.mxu0
        %v6333 = vadd.f32 0.0, %v6332
        %v6334 = vpop.f32.mrf.mxu0
        %v6335 = vadd.f32 0.0, %v6334
        %6336 = vmatprep.mubr.bf16.mxu0 %v5897
        %6337 = vmatmul.mubr.bf16.gmra.mxu0 %v5896
        %v6338 = vpop.f32.mrf.mxu0
        %v6339 = vadd.f32 0.0, %v6338
        %v6340 = vpop.f32.mrf.mxu0
        %v6341 = vadd.f32 0.0, %v6340
        %v6342 = vpop.f32.mrf.mxu0
        %v6343 = vadd.f32 0.0, %v6342
        %v6344 = vpop.f32.mrf.mxu0
        %v6345 = vadd.f32 0.0, %v6344
        %6346 = vmatprep.mubr.bf16.mxu0 %v5899
        %6347 = vmatmul.mubr.bf16.gmra.mxu0 %v5898
        %v6348 = vpop.f32.mrf.mxu0
        %v6349 = vadd.f32 0.0, %v6348
        %v6350 = vpop.f32.mrf.mxu0
        %v6351 = vadd.f32 0.0, %v6350
        %v6352 = vpop.f32.mrf.mxu0
        %v6353 = vadd.f32 0.0, %v6352
        %v6354 = vpop.f32.mrf.mxu0
        %v6355 = vadd.f32 0.0, %v6354
        %6356 = vmatprep.mubr.bf16.mxu0 %v5901
        %6357 = vmatmul.mubr.bf16.gmra.mxu0 %v5900
        %v6358 = vpop.f32.mrf.mxu0
        %v6359 = vadd.f32 0.0, %v6358
        %v6360 = vpop.f32.mrf.mxu0
        %v6361 = vadd.f32 0.0, %v6360
        %v6362 = vpop.f32.mrf.mxu0
        %v6363 = vadd.f32 0.0, %v6362
        %v6364 = vpop.f32.mrf.mxu0
        %v6365 = vadd.f32 0.0, %v6364
        %6366 = vmatprep.mubr.bf16.mxu0 %v5903
        %6367 = vmatmul.mubr.bf16.gmra.mxu0 %v5902
        %v6368 = vpop.f32.mrf.mxu0
        %v6369 = vadd.f32 0.0, %v6368
        %v6370 = vpop.f32.mrf.mxu0
        %v6371 = vadd.f32 0.0, %v6370
        %v6372 = vpop.f32.mrf.mxu0
        %v6373 = vadd.f32 0.0, %v6372
        %v6374 = vpop.f32.mrf.mxu0
        %v6375 = vadd.f32 0.0, %v6374
        %6376 = vmatprep.mubr.bf16.mxu0 %v5905
        %6377 = vmatmul.mubr.bf16.gmra.mxu0 %v5904
        %v6378 = vpop.f32.mrf.mxu0
        %v6379 = vadd.f32 0.0, %v6378
        %v6380 = vpop.f32.mrf.mxu0
        %v6381 = vadd.f32 0.0, %v6380
        %v6382 = vpop.f32.mrf.mxu0
        %v6383 = vadd.f32 0.0, %v6382
        %v6384 = vpop.f32.mrf.mxu0
        %v6385 = vadd.f32 0.0, %v6384
        %6386 = vmatprep.mubr.bf16.mxu0 %v5907
        %6387 = vmatmul.mubr.bf16.gmra.mxu0 %v5906
        %v6388 = vpop.f32.mrf.mxu0
        %v6389 = vadd.f32 0.0, %v6388
        %v6390 = vpop.f32.mrf.mxu0
        %v6391 = vadd.f32 0.0, %v6390
        %v6392 = vpop.f32.mrf.mxu0
        %v6393 = vadd.f32 0.0, %v6392
        %v6394 = vpop.f32.mrf.mxu0
        %v6395 = vadd.f32 0.0, %v6394
        %6396 = vmatprep.mubr.bf16.mxu0 %v5909
        %6397 = vmatmul.mubr.bf16.gmra.mxu0 %v5908
        %v6398 = vpop.f32.mrf.mxu0
        %v6399 = vadd.f32 0.0, %v6398
        %v6400 = vpop.f32.mrf.mxu0
        %v6401 = vadd.f32 0.0, %v6400
        %v6402 = vpop.f32.mrf.mxu0
        %v6403 = vadd.f32 0.0, %v6402
        %v6404 = vpop.f32.mrf.mxu0
        %v6405 = vadd.f32 0.0, %v6404
        %6406 = vmatprep.mubr.bf16.mxu0 %v5911
        %6407 = vmatmul.mubr.bf16.gmra.mxu0 %v5910
        %v6408 = vpop.f32.mrf.mxu0
        %v6409 = vadd.f32 0.0, %v6408
        %v6410 = vpop.f32.mrf.mxu0
        %v6411 = vadd.f32 0.0, %v6410
        %v6412 = vpop.f32.mrf.mxu0
        %v6413 = vadd.f32 0.0, %v6412
        %v6414 = vpop.f32.mrf.mxu0
        %v6415 = vadd.f32 0.0, %v6414
        %6416 = vmatprep.mubr.bf16.mxu0 %v5913
        %6417 = vmatmul.mubr.bf16.gmra.mxu0 %v5912
        %v6418 = vpop.f32.mrf.mxu0
        %v6419 = vadd.f32 0.0, %v6418
        %v6420 = vpop.f32.mrf.mxu0
        %v6421 = vadd.f32 0.0, %v6420
        %v6422 = vpop.f32.mrf.mxu0
        %v6423 = vadd.f32 0.0, %v6422
        %v6424 = vpop.f32.mrf.mxu0
        %v6425 = vadd.f32 0.0, %v6424
        %6426 = vmatprep.mubr.bf16.mxu0 %v5915
        %6427 = vmatmul.mubr.bf16.gmra.mxu0 %v5914
        %v6428 = vpop.f32.mrf.mxu0
        %v6429 = vadd.f32 0.0, %v6428
        %v6430 = vpop.f32.mrf.mxu0
        %v6431 = vadd.f32 0.0, %v6430
        %v6432 = vpop.f32.mrf.mxu0
        %v6433 = vadd.f32 0.0, %v6432
        %v6434 = vpop.f32.mrf.mxu0
        %v6435 = vadd.f32 0.0, %v6434
        %6436 = vmatprep.mubr.bf16.mxu0 %v5917
        %6437 = vmatmul.mubr.bf16.gmra.mxu0 %v5916
        %v6438 = vpop.f32.mrf.mxu0
        %v6439 = vadd.f32 0.0, %v6438
        %v6440 = vpop.f32.mrf.mxu0
        %v6441 = vadd.f32 0.0, %v6440
        %v6442 = vpop.f32.mrf.mxu0
        %v6443 = vadd.f32 0.0, %v6442
        %v6444 = vpop.f32.mrf.mxu0
        %v6445 = vadd.f32 0.0, %v6444
        %6446 = vmatprep.mubr.bf16.mxu0 %v5919
        %6447 = vmatmul.mubr.bf16.gmra.mxu0 %v5918
        %v6448 = vpop.f32.mrf.mxu0
        %v6449 = vadd.f32 0.0, %v6448
        %v6450 = vpop.f32.mrf.mxu0
        %v6451 = vadd.f32 0.0, %v6450
        %v6452 = vpop.f32.mrf.mxu0
        %v6453 = vadd.f32 0.0, %v6452
        %v6454 = vpop.f32.mrf.mxu0
        %v6455 = vadd.f32 0.0, %v6454
        %6456 = vmatprep.mubr.bf16.mxu0 %v5921
        %6457 = vmatmul.mubr.bf16.gmra.mxu0 %v5920
        %v6458 = vpop.f32.mrf.mxu0
        %v6459 = vadd.f32 0.0, %v6458
        %v6460 = vpop.f32.mrf.mxu0
        %v6461 = vadd.f32 0.0, %v6460
        %v6462 = vpop.f32.mrf.mxu0
        %v6463 = vadd.f32 0.0, %v6462
        %v6464 = vpop.f32.mrf.mxu0
        %v6465 = vadd.f32 0.0, %v6464
        %6466 = vdwg.mxu0
        %v6467 = vpack.c.bf16 %v6153, %v6149
        %v6468 = vpack.c.bf16 %v6155, %v6151
        %v6469 = vpack.c.bf16 %v6163, %v6159
        %v6470 = vpack.c.bf16 %v6165, %v6161
        %v6471 = vpack.c.bf16 %v6173, %v6169
        %v6472 = vpack.c.bf16 %v6175, %v6171
        %v6473 = vpack.c.bf16 %v6183, %v6179
        %v6474 = vpack.c.bf16 %v6185, %v6181
        %v6475 = vpack.c.bf16 %v6193, %v6189
        %v6476 = vpack.c.bf16 %v6195, %v6191
        %v6477 = vpack.c.bf16 %v6203, %v6199
        %v6478 = vpack.c.bf16 %v6205, %v6201
        %v6479 = vpack.c.bf16 %v6213, %v6209
        %v6480 = vpack.c.bf16 %v6215, %v6211
        %v6481 = vpack.c.bf16 %v6223, %v6219
        %v6482 = vpack.c.bf16 %v6225, %v6221
        %v6483 = vpack.c.bf16 %v6233, %v6229
        %v6484 = vpack.c.bf16 %v6235, %v6231
        %v6485 = vpack.c.bf16 %v6243, %v6239
        %v6486 = vpack.c.bf16 %v6245, %v6241
        %v6487 = vpack.c.bf16 %v6253, %v6249
        %v6488 = vpack.c.bf16 %v6255, %v6251
        %v6489 = vpack.c.bf16 %v6263, %v6259
        %v6490 = vpack.c.bf16 %v6265, %v6261
        %v6491 = vpack.c.bf16 %v6273, %v6269
        %v6492 = vpack.c.bf16 %v6275, %v6271
        %v6493 = vpack.c.bf16 %v6283, %v6279
        %v6494 = vpack.c.bf16 %v6285, %v6281
        %v6495 = vpack.c.bf16 %v6293, %v6289
        %v6496 = vpack.c.bf16 %v6295, %v6291
        %v6497 = vpack.c.bf16 %v6303, %v6299
        %v6498 = vpack.c.bf16 %v6305, %v6301
        %v6499 = vpack.c.bf16 %v6313, %v6309
        %v6500 = vpack.c.bf16 %v6315, %v6311
        %v6501 = vpack.c.bf16 %v6323, %v6319
        %v6502 = vpack.c.bf16 %v6325, %v6321
        %v6503 = vpack.c.bf16 %v6333, %v6329
        %v6504 = vpack.c.bf16 %v6335, %v6331
        %v6505 = vpack.c.bf16 %v6343, %v6339
        %v6506 = vpack.c.bf16 %v6345, %v6341
        %v6507 = vpack.c.bf16 %v6353, %v6349
        %v6508 = vpack.c.bf16 %v6355, %v6351
        %v6509 = vpack.c.bf16 %v6363, %v6359
        %v6510 = vpack.c.bf16 %v6365, %v6361
        %v6511 = vpack.c.bf16 %v6373, %v6369
        %v6512 = vpack.c.bf16 %v6375, %v6371
        %v6513 = vpack.c.bf16 %v6383, %v6379
        %v6514 = vpack.c.bf16 %v6385, %v6381
        %v6515 = vpack.c.bf16 %v6393, %v6389
        %v6516 = vpack.c.bf16 %v6395, %v6391
        %v6517 = vpack.c.bf16 %v6403, %v6399
        %v6518 = vpack.c.bf16 %v6405, %v6401
        %v6519 = vpack.c.bf16 %v6413, %v6409
        %v6520 = vpack.c.bf16 %v6415, %v6411
        %v6521 = vpack.c.bf16 %v6423, %v6419
        %v6522 = vpack.c.bf16 %v6425, %v6421
        %v6523 = vpack.c.bf16 %v6433, %v6429
        %v6524 = vpack.c.bf16 %v6435, %v6431
        %v6525 = vpack.c.bf16 %v6443, %v6439
        %v6526 = vpack.c.bf16 %v6445, %v6441
        %v6527 = vpack.c.bf16 %v6453, %v6449
        %v6528 = vpack.c.bf16 %v6455, %v6451
        %v6529 = vpack.c.bf16 %v6463, %v6459
        %v6530 = vpack.c.bf16 %v6465, %v6461
        %v6531 = vld [vmem:[%s16] sm:$0x3]
        %v6534 = vunpack.c.l.s4 1966171168
        %v6535 = vunpack.c.0.s8 %v6534
        %v6536 = vlaneseq
        %v6537 = vshrl.u32 %v6536, 7
        %v6538 = vsub.s32 %v6535, %v6537
        %v6539 = vrot.slane %v6531, %v6538
        %v6540 = vcombine.high %v6539, %v6539
        %v6542 = vunpack.c.l.s4 1966171168
        %v6543 = vunpack.c.0.s8 %v6542
        %v6544 = vlaneseq
        %v6545 = vshrl.u32 %v6544, 7
        %v6546 = vsub.s32 %v6543, %v6545
        %v6547 = vrot.slane %v6539, %v6546
        %v6549 = vunpack.c.l.s4 1966171168
        %v6550 = vunpack.c.0.s8 %v6549
        %v6551 = vlaneseq
        %v6552 = vshrl.u32 %v6551, 7
        %v6553 = vsub.s32 %v6550, %v6552
        %v6554 = vrot.slane %v6540, %v6553
        %v6556 = vpack.i.b16 %v6547, %v6547
        %v6558 = vlaneseq
        %v6559 = vshrl.u32 %v6558, 7
        %v6560 = vsub.s32 0, %v6559
        %v6561 = vrot.slane %v6556, %v6560
        %v6563 = vpack.i.b16 %v6554, %v6554
        %v6565 = vlaneseq
        %v6566 = vshrl.u32 %v6565, 7
        %v6567 = vsub.s32 0, %v6566
        %v6568 = vrot.slane %v6563, %v6567
        %v6569 = vadd.bf16 %v6467, %v6561
        %v6570 = vadd.bf16 %v6468, %v6568
        %v6571 = vadd.bf16 %v6469, %v6561
        %v6572 = vadd.bf16 %v6470, %v6568
        %v6573 = vadd.bf16 %v6471, %v6561
        %v6574 = vadd.bf16 %v6472, %v6568
        %v6575 = vadd.bf16 %v6473, %v6561
        %v6576 = vadd.bf16 %v6474, %v6568
        %v6577 = vadd.bf16 %v6475, %v6561
        %v6578 = vadd.bf16 %v6476, %v6568
        %v6579 = vadd.bf16 %v6477, %v6561
        %v6580 = vadd.bf16 %v6478, %v6568
        %v6581 = vadd.bf16 %v6479, %v6561
        %v6582 = vadd.bf16 %v6480, %v6568
        %v6583 = vadd.bf16 %v6481, %v6561
        %v6584 = vadd.bf16 %v6482, %v6568
        %v6585 = vadd.bf16 %v6483, %v6561
        %v6586 = vadd.bf16 %v6484, %v6568
        %v6587 = vadd.bf16 %v6485, %v6561
        %v6588 = vadd.bf16 %v6486, %v6568
        %v6589 = vadd.bf16 %v6487, %v6561
        %v6590 = vadd.bf16 %v6488, %v6568
        %v6591 = vadd.bf16 %v6489, %v6561
        %v6592 = vadd.bf16 %v6490, %v6568
        %v6593 = vadd.bf16 %v6491, %v6561
        %v6594 = vadd.bf16 %v6492, %v6568
        %v6595 = vadd.bf16 %v6493, %v6561
        %v6596 = vadd.bf16 %v6494, %v6568
        %v6597 = vadd.bf16 %v6495, %v6561
        %v6598 = vadd.bf16 %v6496, %v6568
        %v6599 = vadd.bf16 %v6497, %v6561
        %v6600 = vadd.bf16 %v6498, %v6568
        %v6601 = vadd.bf16 %v6499, %v6561
        %v6602 = vadd.bf16 %v6500, %v6568
        %v6603 = vadd.bf16 %v6501, %v6561
        %v6604 = vadd.bf16 %v6502, %v6568
        %v6605 = vadd.bf16 %v6503, %v6561
        %v6606 = vadd.bf16 %v6504, %v6568
        %v6607 = vadd.bf16 %v6505, %v6561
        %v6608 = vadd.bf16 %v6506, %v6568
        %v6609 = vadd.bf16 %v6507, %v6561
        %v6610 = vadd.bf16 %v6508, %v6568
        %v6611 = vadd.bf16 %v6509, %v6561
        %v6612 = vadd.bf16 %v6510, %v6568
        %v6613 = vadd.bf16 %v6511, %v6561
        %v6614 = vadd.bf16 %v6512, %v6568
        %v6615 = vadd.bf16 %v6513, %v6561
        %v6616 = vadd.bf16 %v6514, %v6568
        %v6617 = vadd.bf16 %v6515, %v6561
        %v6618 = vadd.bf16 %v6516, %v6568
        %v6619 = vadd.bf16 %v6517, %v6561
        %v6620 = vadd.bf16 %v6518, %v6568
        %v6621 = vadd.bf16 %v6519, %v6561
        %v6622 = vadd.bf16 %v6520, %v6568
        %v6623 = vadd.bf16 %v6521, %v6561
        %v6624 = vadd.bf16 %v6522, %v6568
        %v6625 = vadd.bf16 %v6523, %v6561
        %v6626 = vadd.bf16 %v6524, %v6568
        %v6627 = vadd.bf16 %v6525, %v6561
        %v6628 = vadd.bf16 %v6526, %v6568
        %v6629 = vadd.bf16 %v6527, %v6561
        %v6630 = vadd.bf16 %v6528, %v6568
        %v6631 = vadd.bf16 %v6529, %v6561
        %v6632 = vadd.bf16 %v6530, %v6568
        %v6633 = vmax.bf16 %v6569, 0
        %v6634 = vmax.bf16 %v6570, 0
        %v6635 = vmax.bf16 %v6571, 0
        %v6636 = vmax.bf16 %v6572, 0
        %v6637 = vmax.bf16 %v6573, 0
        %v6638 = vmax.bf16 %v6574, 0
        %v6639 = vmax.bf16 %v6575, 0
        %v6640 = vmax.bf16 %v6576, 0
        %v6641 = vmax.bf16 %v6577, 0
        %v6642 = vmax.bf16 %v6578, 0
        %v6643 = vmax.bf16 %v6579, 0
        %v6644 = vmax.bf16 %v6580, 0
        %v6645 = vmax.bf16 %v6581, 0
        %v6646 = vmax.bf16 %v6582, 0
        %v6647 = vmax.bf16 %v6583, 0
        %v6648 = vmax.bf16 %v6584, 0
        %v6649 = vmax.bf16 %v6585, 0
        %v6650 = vmax.bf16 %v6586, 0
        %v6651 = vmax.bf16 %v6587, 0
        %v6652 = vmax.bf16 %v6588, 0
        %v6653 = vmax.bf16 %v6589, 0
        %v6654 = vmax.bf16 %v6590, 0
        %v6655 = vmax.bf16 %v6591, 0
        %v6656 = vmax.bf16 %v6592, 0
        %v6657 = vmax.bf16 %v6593, 0
        %v6658 = vmax.bf16 %v6594, 0
        %v6659 = vmax.bf16 %v6595, 0
        %v6660 = vmax.bf16 %v6596, 0
        %v6661 = vmax.bf16 %v6597, 0
        %v6662 = vmax.bf16 %v6598, 0
        %v6663 = vmax.bf16 %v6599, 0
        %v6664 = vmax.bf16 %v6600, 0
        %v6665 = vmax.bf16 %v6601, 0
        %v6666 = vmax.bf16 %v6602, 0
        %v6667 = vmax.bf16 %v6603, 0
        %v6668 = vmax.bf16 %v6604, 0
        %v6669 = vmax.bf16 %v6605, 0
        %v6670 = vmax.bf16 %v6606, 0
        %v6671 = vmax.bf16 %v6607, 0
        %v6672 = vmax.bf16 %v6608, 0
        %v6673 = vmax.bf16 %v6609, 0
        %v6674 = vmax.bf16 %v6610, 0
        %v6675 = vmax.bf16 %v6611, 0
        %v6676 = vmax.bf16 %v6612, 0
        %v6677 = vmax.bf16 %v6613, 0
        %v6678 = vmax.bf16 %v6614, 0
        %v6679 = vmax.bf16 %v6615, 0
        %v6680 = vmax.bf16 %v6616, 0
        %v6681 = vmax.bf16 %v6617, 0
        %v6682 = vmax.bf16 %v6618, 0
        %v6683 = vmax.bf16 %v6619, 0
        %v6684 = vmax.bf16 %v6620, 0
        %v6685 = vmax.bf16 %v6621, 0
        %v6686 = vmax.bf16 %v6622, 0
        %v6687 = vmax.bf16 %v6623, 0
        %v6688 = vmax.bf16 %v6624, 0
        %v6689 = vmax.bf16 %v6625, 0
        %v6690 = vmax.bf16 %v6626, 0
        %v6691 = vmax.bf16 %v6627, 0
        %v6692 = vmax.bf16 %v6628, 0
        %v6693 = vmax.bf16 %v6629, 0
        %v6694 = vmax.bf16 %v6630, 0
        %v6695 = vmax.bf16 %v6631, 0
        %v6696 = vmax.bf16 %v6632, 0
        %v6697 = vld [vmem:[#allocation2] sm:$0xff]
        %v6698 = vld [vmem:[#allocation2 + $0x8] sm:$0xff]
        %v6699 = vld [vmem:[#allocation2 + $0x10] sm:$0xff]
        %v6700 = vld [vmem:[#allocation2 + $0x18] sm:$0xff]
        %v6701 = vld [vmem:[#allocation2 + $0x20] sm:$0xff]
        %v6702 = vld [vmem:[#allocation2 + $0x28] sm:$0xff]
        %v6703 = vld [vmem:[#allocation2 + $0x30] sm:$0xff]
        %v6704 = vld [vmem:[#allocation2 + $0x38] sm:$0xff]
        %v6705 = vld [vmem:[#allocation2 + $0x40] sm:$0xff]
        %v6706 = vld [vmem:[#allocation2 + $0x48] sm:$0xff]
        %v6707 = vld [vmem:[#allocation2 + $0x50] sm:$0xff]
        %v6708 = vld [vmem:[#allocation2 + $0x58] sm:$0xff]
        %v6709 = vld [vmem:[#allocation2 + $0x60] sm:$0xff]
        %v6710 = vld [vmem:[#allocation2 + $0x68] sm:$0xff]
        %v6711 = vld [vmem:[#allocation2 + $0x70] sm:$0xff]
        %v6712 = vld [vmem:[#allocation2 + $0x78] sm:$0xff]
        %v6713 = vld [vmem:[#allocation2 + $0x80] sm:$0xff]
        %v6714 = vld [vmem:[#allocation2 + $0x88] sm:$0xff]
        %v6715 = vld [vmem:[#allocation2 + $0x90] sm:$0xff]
        %v6716 = vld [vmem:[#allocation2 + $0x98] sm:$0xff]
        %v6717 = vld [vmem:[#allocation2 + $0xa0] sm:$0xff]
        %v6718 = vld [vmem:[#allocation2 + $0xa8] sm:$0xff]
        %v6719 = vld [vmem:[#allocation2 + $0xb0] sm:$0xff]
        %v6720 = vld [vmem:[#allocation2 + $0xb8] sm:$0xff]
        %v6721 = vld [vmem:[#allocation2 + $0xc0] sm:$0xff]
        %v6722 = vld [vmem:[#allocation2 + $0xc8] sm:$0xff]
        %v6723 = vld [vmem:[#allocation2 + $0xd0] sm:$0xff]
        %v6724 = vld [vmem:[#allocation2 + $0xd8] sm:$0xff]
        %v6725 = vld [vmem:[#allocation2 + $0xe0] sm:$0xff]
        %v6726 = vld [vmem:[#allocation2 + $0xe8] sm:$0xff]
        %v6727 = vld [vmem:[#allocation2 + $0xf0] sm:$0xff]
        %v6728 = vld [vmem:[#allocation2 + $0xf8] sm:$0xff]
        %v6761 = vunpack.c.l.b16 %v6697
        %v6762 = vunpack.c.h.b16 %v6697
        %v6763 = vunpack.c.l.b16 %v6698
        %v6764 = vunpack.c.h.b16 %v6698
        %v6765 = vunpack.c.l.b16 %v6699
        %v6766 = vunpack.c.h.b16 %v6699
        %v6767 = vunpack.c.l.b16 %v6700
        %v6768 = vunpack.c.h.b16 %v6700
        %v6769 = vunpack.c.l.b16 %v6701
        %v6770 = vunpack.c.h.b16 %v6701
        %v6771 = vunpack.c.l.b16 %v6702
        %v6772 = vunpack.c.h.b16 %v6702
        %v6773 = vunpack.c.l.b16 %v6703
        %v6774 = vunpack.c.h.b16 %v6703
        %v6775 = vunpack.c.l.b16 %v6704
        %v6776 = vunpack.c.h.b16 %v6704
        %v6777 = vunpack.c.l.b16 %v6705
        %v6778 = vunpack.c.h.b16 %v6705
        %v6779 = vunpack.c.l.b16 %v6706
        %v6780 = vunpack.c.h.b16 %v6706
        %v6781 = vunpack.c.l.b16 %v6707
        %v6782 = vunpack.c.h.b16 %v6707
        %v6783 = vunpack.c.l.b16 %v6708
        %v6784 = vunpack.c.h.b16 %v6708
        %v6785 = vunpack.c.l.b16 %v6709
        %v6786 = vunpack.c.h.b16 %v6709
        %v6787 = vunpack.c.l.b16 %v6710
        %v6788 = vunpack.c.h.b16 %v6710
        %v6789 = vunpack.c.l.b16 %v6711
        %v6790 = vunpack.c.h.b16 %v6711
        %v6791 = vunpack.c.l.b16 %v6712
        %v6792 = vunpack.c.h.b16 %v6712
        %v6793 = vunpack.c.l.b16 %v6713
        %v6794 = vunpack.c.h.b16 %v6713
        %v6795 = vunpack.c.l.b16 %v6714
        %v6796 = vunpack.c.h.b16 %v6714
        %v6797 = vunpack.c.l.b16 %v6715
        %v6798 = vunpack.c.h.b16 %v6715
        %v6799 = vunpack.c.l.b16 %v6716
        %v6800 = vunpack.c.h.b16 %v6716
        %v6801 = vunpack.c.l.b16 %v6717
        %v6802 = vunpack.c.h.b16 %v6717
        %v6803 = vunpack.c.l.b16 %v6718
        %v6804 = vunpack.c.h.b16 %v6718
        %v6805 = vunpack.c.l.b16 %v6719
        %v6806 = vunpack.c.h.b16 %v6719
        %v6807 = vunpack.c.l.b16 %v6720
        %v6808 = vunpack.c.h.b16 %v6720
        %v6809 = vunpack.c.l.b16 %v6721
        %v6810 = vunpack.c.h.b16 %v6721
        %v6811 = vunpack.c.l.b16 %v6722
        %v6812 = vunpack.c.h.b16 %v6722
        %v6813 = vunpack.c.l.b16 %v6723
        %v6814 = vunpack.c.h.b16 %v6723
        %v6815 = vunpack.c.l.b16 %v6724
        %v6816 = vunpack.c.h.b16 %v6724
        %v6817 = vunpack.c.l.b16 %v6725
        %v6818 = vunpack.c.h.b16 %v6725
        %v6819 = vunpack.c.l.b16 %v6726
        %v6820 = vunpack.c.h.b16 %v6726
        %v6821 = vunpack.c.l.b16 %v6727
        %v6822 = vunpack.c.h.b16 %v6727
        %v6823 = vunpack.c.l.b16 %v6728
        %v6824 = vunpack.c.h.b16 %v6728
        %v6825 = vpack.c.b16 %v6763, %v6761
        %v6826 = vpack.c.b16 %v6764, %v6762
        %v6827 = vpack.c.b16 %v6767, %v6765
        %v6828 = vpack.c.b16 %v6768, %v6766
        %v6829 = vpack.c.b16 %v6771, %v6769
        %v6830 = vpack.c.b16 %v6772, %v6770
        %v6831 = vpack.c.b16 %v6775, %v6773
        %v6832 = vpack.c.b16 %v6776, %v6774
        %v6833 = vpack.c.b16 %v6779, %v6777
        %v6834 = vpack.c.b16 %v6780, %v6778
        %v6835 = vpack.c.b16 %v6783, %v6781
        %v6836 = vpack.c.b16 %v6784, %v6782
        %v6837 = vpack.c.b16 %v6787, %v6785
        %v6838 = vpack.c.b16 %v6788, %v6786
        %v6839 = vpack.c.b16 %v6791, %v6789
        %v6840 = vpack.c.b16 %v6792, %v6790
        %v6841 = vpack.c.b16 %v6795, %v6793
        %v6842 = vpack.c.b16 %v6796, %v6794
        %v6843 = vpack.c.b16 %v6799, %v6797
        %v6844 = vpack.c.b16 %v6800, %v6798
        %v6845 = vpack.c.b16 %v6803, %v6801
        %v6846 = vpack.c.b16 %v6804, %v6802
        %v6847 = vpack.c.b16 %v6807, %v6805
        %v6848 = vpack.c.b16 %v6808, %v6806
        %v6849 = vpack.c.b16 %v6811, %v6809
        %v6850 = vpack.c.b16 %v6812, %v6810
        %v6851 = vpack.c.b16 %v6815, %v6813
        %v6852 = vpack.c.b16 %v6816, %v6814
        %v6853 = vpack.c.b16 %v6819, %v6817
        %v6854 = vpack.c.b16 %v6820, %v6818
        %v6855 = vpack.c.b16 %v6823, %v6821
        %v6856 = vpack.c.b16 %v6824, %v6822
        %6889 = vmatprep.subr.bf16.mxu0 %v6840
        %6890 = vmatpush1.bf16.msra.mxu0 %v6839
        %6891 = vmatprep.subr.bf16.mxu0 %v6838
        %6892 = vmatpush1.bf16.msra.mxu0 %v6837
        %6893 = vmatprep.subr.bf16.mxu0 %v6836
        %6894 = vmatpush1.bf16.msra.mxu0 %v6835
        %6895 = vmatprep.subr.bf16.mxu0 %v6834
        %6896 = vmatpush1.bf16.msra.mxu0 %v6833
        %6897 = vmatprep.subr.bf16.mxu0 %v6832
        %6898 = vmatpush1.bf16.msra.mxu0 %v6831
        %6899 = vmatprep.subr.bf16.mxu0 %v6830
        %6900 = vmatpush1.bf16.msra.mxu0 %v6829
        %6901 = vmatprep.subr.bf16.mxu0 %v6828
        %6902 = vmatpush1.bf16.msra.mxu0 %v6827
        %6903 = vmatprep.subr.bf16.mxu0 %v6826
        %6904 = vmatpush1.bf16.msra.mxu0 %v6825
        %6905 = vmatprep.subr.bf16.mxu0 %v6856
        %6906 = vmatpush2.bf16.msra.mxu0 %v6855
        %6907 = vmatprep.subr.bf16.mxu0 %v6854
        %6908 = vmatpush2.bf16.msra.mxu0 %v6853
        %6909 = vmatprep.subr.bf16.mxu0 %v6852
        %6910 = vmatpush2.bf16.msra.mxu0 %v6851
        %6911 = vmatprep.subr.bf16.mxu0 %v6850
        %6912 = vmatpush2.bf16.msra.mxu0 %v6849
        %6913 = vmatprep.subr.bf16.mxu0 %v6848
        %6914 = vmatpush2.bf16.msra.mxu0 %v6847
        %6915 = vmatprep.subr.bf16.mxu0 %v6846
        %6916 = vmatpush2.bf16.msra.mxu0 %v6845
        %6917 = vmatprep.subr.bf16.mxu0 %v6844
        %6918 = vmatpush2.bf16.msra.mxu0 %v6843
        %6919 = vmatprep.subr.bf16.mxu0 %v6842
        %6920 = vmatpush2.bf16.msra.mxu0 %v6841
        %6921 = vmatprep.mubr.bf16.mxu0 %v6634
        %6922 = vmatmul.mubr.bf16.gmra.mxu0 %v6633
        %v6923 = vpop.f32.mrf.mxu0
        %v6924 = vadd.f32 0.0, %v6923
        %v6925 = vpop.f32.mrf.mxu0
        %v6926 = vadd.f32 0.0, %v6925
        %v6927 = vpop.f32.mrf.mxu0
        %v6928 = vadd.f32 0.0, %v6927
        %v6929 = vpop.f32.mrf.mxu0
        %v6930 = vadd.f32 0.0, %v6929
        %6931 = vmatprep.mubr.bf16.mxu0 %v6636
        %6932 = vmatmul.mubr.bf16.gmra.mxu0 %v6635
        %v6933 = vpop.f32.mrf.mxu0
        %v6934 = vadd.f32 0.0, %v6933
        %v6935 = vpop.f32.mrf.mxu0
        %v6936 = vadd.f32 0.0, %v6935
        %v6937 = vpop.f32.mrf.mxu0
        %v6938 = vadd.f32 0.0, %v6937
        %v6939 = vpop.f32.mrf.mxu0
        %v6940 = vadd.f32 0.0, %v6939
        %6941 = vmatprep.mubr.bf16.mxu0 %v6638
        %6942 = vmatmul.mubr.bf16.gmra.mxu0 %v6637
        %v6943 = vpop.f32.mrf.mxu0
        %v6944 = vadd.f32 0.0, %v6943
        %v6945 = vpop.f32.mrf.mxu0
        %v6946 = vadd.f32 0.0, %v6945
        %v6947 = vpop.f32.mrf.mxu0
        %v6948 = vadd.f32 0.0, %v6947
        %v6949 = vpop.f32.mrf.mxu0
        %v6950 = vadd.f32 0.0, %v6949
        %6951 = vmatprep.mubr.bf16.mxu0 %v6640
        %6952 = vmatmul.mubr.bf16.gmra.mxu0 %v6639
        %v6953 = vpop.f32.mrf.mxu0
        %v6954 = vadd.f32 0.0, %v6953
        %v6955 = vpop.f32.mrf.mxu0
        %v6956 = vadd.f32 0.0, %v6955
        %v6957 = vpop.f32.mrf.mxu0
        %v6958 = vadd.f32 0.0, %v6957
        %v6959 = vpop.f32.mrf.mxu0
        %v6960 = vadd.f32 0.0, %v6959
        %6961 = vmatprep.mubr.bf16.mxu0 %v6642
        %6962 = vmatmul.mubr.bf16.gmra.mxu0 %v6641
        %v6963 = vpop.f32.mrf.mxu0
        %v6964 = vadd.f32 0.0, %v6963
        %v6965 = vpop.f32.mrf.mxu0
        %v6966 = vadd.f32 0.0, %v6965
        %v6967 = vpop.f32.mrf.mxu0
        %v6968 = vadd.f32 0.0, %v6967
        %v6969 = vpop.f32.mrf.mxu0
        %v6970 = vadd.f32 0.0, %v6969
        %6971 = vmatprep.mubr.bf16.mxu0 %v6644
        %6972 = vmatmul.mubr.bf16.gmra.mxu0 %v6643
        %v6973 = vpop.f32.mrf.mxu0
        %v6974 = vadd.f32 0.0, %v6973
        %v6975 = vpop.f32.mrf.mxu0
        %v6976 = vadd.f32 0.0, %v6975
        %v6977 = vpop.f32.mrf.mxu0
        %v6978 = vadd.f32 0.0, %v6977
        %v6979 = vpop.f32.mrf.mxu0
        %v6980 = vadd.f32 0.0, %v6979
        %6981 = vmatprep.mubr.bf16.mxu0 %v6646
        %6982 = vmatmul.mubr.bf16.gmra.mxu0 %v6645
        %v6983 = vpop.f32.mrf.mxu0
        %v6984 = vadd.f32 0.0, %v6983
        %v6985 = vpop.f32.mrf.mxu0
        %v6986 = vadd.f32 0.0, %v6985
        %v6987 = vpop.f32.mrf.mxu0
        %v6988 = vadd.f32 0.0, %v6987
        %v6989 = vpop.f32.mrf.mxu0
        %v6990 = vadd.f32 0.0, %v6989
        %6991 = vmatprep.mubr.bf16.mxu0 %v6648
        %6992 = vmatmul.mubr.bf16.gmra.mxu0 %v6647
        %v6993 = vpop.f32.mrf.mxu0
        %v6994 = vadd.f32 0.0, %v6993
        %v6995 = vpop.f32.mrf.mxu0
        %v6996 = vadd.f32 0.0, %v6995
        %v6997 = vpop.f32.mrf.mxu0
        %v6998 = vadd.f32 0.0, %v6997
        %v6999 = vpop.f32.mrf.mxu0
        %v7000 = vadd.f32 0.0, %v6999
        %7001 = vmatprep.mubr.bf16.mxu0 %v6650
        %7002 = vmatmul.mubr.bf16.gmra.mxu0 %v6649
        %v7003 = vpop.f32.mrf.mxu0
        %v7004 = vadd.f32 0.0, %v7003
        %v7005 = vpop.f32.mrf.mxu0
        %v7006 = vadd.f32 0.0, %v7005
        %v7007 = vpop.f32.mrf.mxu0
        %v7008 = vadd.f32 0.0, %v7007
        %v7009 = vpop.f32.mrf.mxu0
        %v7010 = vadd.f32 0.0, %v7009
        %7011 = vmatprep.mubr.bf16.mxu0 %v6652
        %7012 = vmatmul.mubr.bf16.gmra.mxu0 %v6651
        %v7013 = vpop.f32.mrf.mxu0
        %v7014 = vadd.f32 0.0, %v7013
        %v7015 = vpop.f32.mrf.mxu0
        %v7016 = vadd.f32 0.0, %v7015
        %v7017 = vpop.f32.mrf.mxu0
        %v7018 = vadd.f32 0.0, %v7017
        %v7019 = vpop.f32.mrf.mxu0
        %v7020 = vadd.f32 0.0, %v7019
        %7021 = vmatprep.mubr.bf16.mxu0 %v6654
        %7022 = vmatmul.mubr.bf16.gmra.mxu0 %v6653
        %v7023 = vpop.f32.mrf.mxu0
        %v7024 = vadd.f32 0.0, %v7023
        %v7025 = vpop.f32.mrf.mxu0
        %v7026 = vadd.f32 0.0, %v7025
        %v7027 = vpop.f32.mrf.mxu0
        %v7028 = vadd.f32 0.0, %v7027
        %v7029 = vpop.f32.mrf.mxu0
        %v7030 = vadd.f32 0.0, %v7029
        %7031 = vmatprep.mubr.bf16.mxu0 %v6656
        %7032 = vmatmul.mubr.bf16.gmra.mxu0 %v6655
        %v7033 = vpop.f32.mrf.mxu0
        %v7034 = vadd.f32 0.0, %v7033
        %v7035 = vpop.f32.mrf.mxu0
        %v7036 = vadd.f32 0.0, %v7035
        %v7037 = vpop.f32.mrf.mxu0
        %v7038 = vadd.f32 0.0, %v7037
        %v7039 = vpop.f32.mrf.mxu0
        %v7040 = vadd.f32 0.0, %v7039
        %7041 = vmatprep.mubr.bf16.mxu0 %v6658
        %7042 = vmatmul.mubr.bf16.gmra.mxu0 %v6657
        %v7043 = vpop.f32.mrf.mxu0
        %v7044 = vadd.f32 0.0, %v7043
        %v7045 = vpop.f32.mrf.mxu0
        %v7046 = vadd.f32 0.0, %v7045
        %v7047 = vpop.f32.mrf.mxu0
        %v7048 = vadd.f32 0.0, %v7047
        %v7049 = vpop.f32.mrf.mxu0
        %v7050 = vadd.f32 0.0, %v7049
        %7051 = vmatprep.mubr.bf16.mxu0 %v6660
        %7052 = vmatmul.mubr.bf16.gmra.mxu0 %v6659
        %v7053 = vpop.f32.mrf.mxu0
        %v7054 = vadd.f32 0.0, %v7053
        %v7055 = vpop.f32.mrf.mxu0
        %v7056 = vadd.f32 0.0, %v7055
        %v7057 = vpop.f32.mrf.mxu0
        %v7058 = vadd.f32 0.0, %v7057
        %v7059 = vpop.f32.mrf.mxu0
        %v7060 = vadd.f32 0.0, %v7059
        %7061 = vmatprep.mubr.bf16.mxu0 %v6662
        %7062 = vmatmul.mubr.bf16.gmra.mxu0 %v6661
        %v7063 = vpop.f32.mrf.mxu0
        %v7064 = vadd.f32 0.0, %v7063
        %v7065 = vpop.f32.mrf.mxu0
        %v7066 = vadd.f32 0.0, %v7065
        %v7067 = vpop.f32.mrf.mxu0
        %v7068 = vadd.f32 0.0, %v7067
        %v7069 = vpop.f32.mrf.mxu0
        %v7070 = vadd.f32 0.0, %v7069
        %7071 = vmatprep.mubr.bf16.mxu0 %v6664
        %7072 = vmatmul.mubr.bf16.gmra.mxu0 %v6663
        %v7073 = vpop.f32.mrf.mxu0
        %v7074 = vadd.f32 0.0, %v7073
        %v7075 = vpop.f32.mrf.mxu0
        %v7076 = vadd.f32 0.0, %v7075
        %v7077 = vpop.f32.mrf.mxu0
        %v7078 = vadd.f32 0.0, %v7077
        %v7079 = vpop.f32.mrf.mxu0
        %v7080 = vadd.f32 0.0, %v7079
        %7081 = vmatprep.mubr.bf16.mxu0 %v6666
        %7082 = vmatmul.mubr.bf16.gmra.mxu0 %v6665
        %v7083 = vpop.f32.mrf.mxu0
        %v7084 = vadd.f32 0.0, %v7083
        %v7085 = vpop.f32.mrf.mxu0
        %v7086 = vadd.f32 0.0, %v7085
        %v7087 = vpop.f32.mrf.mxu0
        %v7088 = vadd.f32 0.0, %v7087
        %v7089 = vpop.f32.mrf.mxu0
        %v7090 = vadd.f32 0.0, %v7089
        %7091 = vmatprep.mubr.bf16.mxu0 %v6668
        %7092 = vmatmul.mubr.bf16.gmra.mxu0 %v6667
        %v7093 = vpop.f32.mrf.mxu0
        %v7094 = vadd.f32 0.0, %v7093
        %v7095 = vpop.f32.mrf.mxu0
        %v7096 = vadd.f32 0.0, %v7095
        %v7097 = vpop.f32.mrf.mxu0
        %v7098 = vadd.f32 0.0, %v7097
        %v7099 = vpop.f32.mrf.mxu0
        %v7100 = vadd.f32 0.0, %v7099
        %7101 = vmatprep.mubr.bf16.mxu0 %v6670
        %7102 = vmatmul.mubr.bf16.gmra.mxu0 %v6669
        %v7103 = vpop.f32.mrf.mxu0
        %v7104 = vadd.f32 0.0, %v7103
        %v7105 = vpop.f32.mrf.mxu0
        %v7106 = vadd.f32 0.0, %v7105
        %v7107 = vpop.f32.mrf.mxu0
        %v7108 = vadd.f32 0.0, %v7107
        %v7109 = vpop.f32.mrf.mxu0
        %v7110 = vadd.f32 0.0, %v7109
        %7111 = vmatprep.mubr.bf16.mxu0 %v6672
        %7112 = vmatmul.mubr.bf16.gmra.mxu0 %v6671
        %v7113 = vpop.f32.mrf.mxu0
        %v7114 = vadd.f32 0.0, %v7113
        %v7115 = vpop.f32.mrf.mxu0
        %v7116 = vadd.f32 0.0, %v7115
        %v7117 = vpop.f32.mrf.mxu0
        %v7118 = vadd.f32 0.0, %v7117
        %v7119 = vpop.f32.mrf.mxu0
        %v7120 = vadd.f32 0.0, %v7119
        %7121 = vmatprep.mubr.bf16.mxu0 %v6674
        %7122 = vmatmul.mubr.bf16.gmra.mxu0 %v6673
        %v7123 = vpop.f32.mrf.mxu0
        %v7124 = vadd.f32 0.0, %v7123
        %v7125 = vpop.f32.mrf.mxu0
        %v7126 = vadd.f32 0.0, %v7125
        %v7127 = vpop.f32.mrf.mxu0
        %v7128 = vadd.f32 0.0, %v7127
        %v7129 = vpop.f32.mrf.mxu0
        %v7130 = vadd.f32 0.0, %v7129
        %7131 = vmatprep.mubr.bf16.mxu0 %v6676
        %7132 = vmatmul.mubr.bf16.gmra.mxu0 %v6675
        %v7133 = vpop.f32.mrf.mxu0
        %v7134 = vadd.f32 0.0, %v7133
        %v7135 = vpop.f32.mrf.mxu0
        %v7136 = vadd.f32 0.0, %v7135
        %v7137 = vpop.f32.mrf.mxu0
        %v7138 = vadd.f32 0.0, %v7137
        %v7139 = vpop.f32.mrf.mxu0
        %v7140 = vadd.f32 0.0, %v7139
        %7141 = vmatprep.mubr.bf16.mxu0 %v6678
        %7142 = vmatmul.mubr.bf16.gmra.mxu0 %v6677
        %v7143 = vpop.f32.mrf.mxu0
        %v7144 = vadd.f32 0.0, %v7143
        %v7145 = vpop.f32.mrf.mxu0
        %v7146 = vadd.f32 0.0, %v7145
        %v7147 = vpop.f32.mrf.mxu0
        %v7148 = vadd.f32 0.0, %v7147
        %v7149 = vpop.f32.mrf.mxu0
        %v7150 = vadd.f32 0.0, %v7149
        %7151 = vmatprep.mubr.bf16.mxu0 %v6680
        %7152 = vmatmul.mubr.bf16.gmra.mxu0 %v6679
        %v7153 = vpop.f32.mrf.mxu0
        %v7154 = vadd.f32 0.0, %v7153
        %v7155 = vpop.f32.mrf.mxu0
        %v7156 = vadd.f32 0.0, %v7155
        %v7157 = vpop.f32.mrf.mxu0
        %v7158 = vadd.f32 0.0, %v7157
        %v7159 = vpop.f32.mrf.mxu0
        %v7160 = vadd.f32 0.0, %v7159
        %7161 = vmatprep.mubr.bf16.mxu0 %v6682
        %7162 = vmatmul.mubr.bf16.gmra.mxu0 %v6681
        %v7163 = vpop.f32.mrf.mxu0
        %v7164 = vadd.f32 0.0, %v7163
        %v7165 = vpop.f32.mrf.mxu0
        %v7166 = vadd.f32 0.0, %v7165
        %v7167 = vpop.f32.mrf.mxu0
        %v7168 = vadd.f32 0.0, %v7167
        %v7169 = vpop.f32.mrf.mxu0
        %v7170 = vadd.f32 0.0, %v7169
        %7171 = vmatprep.mubr.bf16.mxu0 %v6684
        %7172 = vmatmul.mubr.bf16.gmra.mxu0 %v6683
        %v7173 = vpop.f32.mrf.mxu0
        %v7174 = vadd.f32 0.0, %v7173
        %v7175 = vpop.f32.mrf.mxu0
        %v7176 = vadd.f32 0.0, %v7175
        %v7177 = vpop.f32.mrf.mxu0
        %v7178 = vadd.f32 0.0, %v7177
        %v7179 = vpop.f32.mrf.mxu0
        %v7180 = vadd.f32 0.0, %v7179
        %7181 = vmatprep.mubr.bf16.mxu0 %v6686
        %7182 = vmatmul.mubr.bf16.gmra.mxu0 %v6685
        %v7183 = vpop.f32.mrf.mxu0
        %v7184 = vadd.f32 0.0, %v7183
        %v7185 = vpop.f32.mrf.mxu0
        %v7186 = vadd.f32 0.0, %v7185
        %v7187 = vpop.f32.mrf.mxu0
        %v7188 = vadd.f32 0.0, %v7187
        %v7189 = vpop.f32.mrf.mxu0
        %v7190 = vadd.f32 0.0, %v7189
        %7191 = vmatprep.mubr.bf16.mxu0 %v6688
        %7192 = vmatmul.mubr.bf16.gmra.mxu0 %v6687
        %v7193 = vpop.f32.mrf.mxu0
        %v7194 = vadd.f32 0.0, %v7193
        %v7195 = vpop.f32.mrf.mxu0
        %v7196 = vadd.f32 0.0, %v7195
        %v7197 = vpop.f32.mrf.mxu0
        %v7198 = vadd.f32 0.0, %v7197
        %v7199 = vpop.f32.mrf.mxu0
        %v7200 = vadd.f32 0.0, %v7199
        %7201 = vmatprep.mubr.bf16.mxu0 %v6690
        %7202 = vmatmul.mubr.bf16.gmra.mxu0 %v6689
        %v7203 = vpop.f32.mrf.mxu0
        %v7204 = vadd.f32 0.0, %v7203
        %v7205 = vpop.f32.mrf.mxu0
        %v7206 = vadd.f32 0.0, %v7205
        %v7207 = vpop.f32.mrf.mxu0
        %v7208 = vadd.f32 0.0, %v7207
        %v7209 = vpop.f32.mrf.mxu0
        %v7210 = vadd.f32 0.0, %v7209
        %7211 = vmatprep.mubr.bf16.mxu0 %v6692
        %7212 = vmatmul.mubr.bf16.gmra.mxu0 %v6691
        %v7213 = vpop.f32.mrf.mxu0
        %v7214 = vadd.f32 0.0, %v7213
        %v7215 = vpop.f32.mrf.mxu0
        %v7216 = vadd.f32 0.0, %v7215
        %v7217 = vpop.f32.mrf.mxu0
        %v7218 = vadd.f32 0.0, %v7217
        %v7219 = vpop.f32.mrf.mxu0
        %v7220 = vadd.f32 0.0, %v7219
        %7221 = vmatprep.mubr.bf16.mxu0 %v6694
        %7222 = vmatmul.mubr.bf16.gmra.mxu0 %v6693
        %v7223 = vpop.f32.mrf.mxu0
        %v7224 = vadd.f32 0.0, %v7223
        %v7225 = vpop.f32.mrf.mxu0
        %v7226 = vadd.f32 0.0, %v7225
        %v7227 = vpop.f32.mrf.mxu0
        %v7228 = vadd.f32 0.0, %v7227
        %v7229 = vpop.f32.mrf.mxu0
        %v7230 = vadd.f32 0.0, %v7229
        %7231 = vmatprep.mubr.bf16.mxu0 %v6696
        %7232 = vmatmul.mubr.bf16.gmra.mxu0 %v6695
        %v7233 = vpop.f32.mrf.mxu0
        %v7234 = vadd.f32 0.0, %v7233
        %v7235 = vpop.f32.mrf.mxu0
        %v7236 = vadd.f32 0.0, %v7235
        %v7237 = vpop.f32.mrf.mxu0
        %v7238 = vadd.f32 0.0, %v7237
        %v7239 = vpop.f32.mrf.mxu0
        %v7240 = vadd.f32 0.0, %v7239
        %7241 = vdwg.mxu0
        %v7242 = vpack.c.bf16 %v6928, %v6924
        %v7243 = vpack.c.bf16 %v6930, %v6926
        %v7244 = vpack.c.bf16 %v6938, %v6934
        %v7245 = vpack.c.bf16 %v6940, %v6936
        %v7246 = vpack.c.bf16 %v6948, %v6944
        %v7247 = vpack.c.bf16 %v6950, %v6946
        %v7248 = vpack.c.bf16 %v6958, %v6954
        %v7249 = vpack.c.bf16 %v6960, %v6956
        %v7250 = vpack.c.bf16 %v6968, %v6964
        %v7251 = vpack.c.bf16 %v6970, %v6966
        %v7252 = vpack.c.bf16 %v6978, %v6974
        %v7253 = vpack.c.bf16 %v6980, %v6976
        %v7254 = vpack.c.bf16 %v6988, %v6984
        %v7255 = vpack.c.bf16 %v6990, %v6986
        %v7256 = vpack.c.bf16 %v6998, %v6994
        %v7257 = vpack.c.bf16 %v7000, %v6996
        %v7258 = vpack.c.bf16 %v7008, %v7004
        %v7259 = vpack.c.bf16 %v7010, %v7006
        %v7260 = vpack.c.bf16 %v7018, %v7014
        %v7261 = vpack.c.bf16 %v7020, %v7016
        %v7262 = vpack.c.bf16 %v7028, %v7024
        %v7263 = vpack.c.bf16 %v7030, %v7026
        %v7264 = vpack.c.bf16 %v7038, %v7034
        %v7265 = vpack.c.bf16 %v7040, %v7036
        %v7266 = vpack.c.bf16 %v7048, %v7044
        %v7267 = vpack.c.bf16 %v7050, %v7046
        %v7268 = vpack.c.bf16 %v7058, %v7054
        %v7269 = vpack.c.bf16 %v7060, %v7056
        %v7270 = vpack.c.bf16 %v7068, %v7064
        %v7271 = vpack.c.bf16 %v7070, %v7066
        %v7272 = vpack.c.bf16 %v7078, %v7074
        %v7273 = vpack.c.bf16 %v7080, %v7076
        %v7274 = vpack.c.bf16 %v7088, %v7084
        %v7275 = vpack.c.bf16 %v7090, %v7086
        %v7276 = vpack.c.bf16 %v7098, %v7094
        %v7277 = vpack.c.bf16 %v7100, %v7096
        %v7278 = vpack.c.bf16 %v7108, %v7104
        %v7279 = vpack.c.bf16 %v7110, %v7106
        %v7280 = vpack.c.bf16 %v7118, %v7114
        %v7281 = vpack.c.bf16 %v7120, %v7116
        %v7282 = vpack.c.bf16 %v7128, %v7124
        %v7283 = vpack.c.bf16 %v7130, %v7126
        %v7284 = vpack.c.bf16 %v7138, %v7134
        %v7285 = vpack.c.bf16 %v7140, %v7136
        %v7286 = vpack.c.bf16 %v7148, %v7144
        %v7287 = vpack.c.bf16 %v7150, %v7146
        %v7288 = vpack.c.bf16 %v7158, %v7154
        %v7289 = vpack.c.bf16 %v7160, %v7156
        %v7290 = vpack.c.bf16 %v7168, %v7164
        %v7291 = vpack.c.bf16 %v7170, %v7166
        %v7292 = vpack.c.bf16 %v7178, %v7174
        %v7293 = vpack.c.bf16 %v7180, %v7176
        %v7294 = vpack.c.bf16 %v7188, %v7184
        %v7295 = vpack.c.bf16 %v7190, %v7186
        %v7296 = vpack.c.bf16 %v7198, %v7194
        %v7297 = vpack.c.bf16 %v7200, %v7196
        %v7298 = vpack.c.bf16 %v7208, %v7204
        %v7299 = vpack.c.bf16 %v7210, %v7206
        %v7300 = vpack.c.bf16 %v7218, %v7214
        %v7301 = vpack.c.bf16 %v7220, %v7216
        %v7302 = vpack.c.bf16 %v7228, %v7224
        %v7303 = vpack.c.bf16 %v7230, %v7226
        %v7304 = vpack.c.bf16 %v7238, %v7234
        %v7305 = vpack.c.bf16 %v7240, %v7236
        %v7306 = vld [vmem:[%s17] sm:$0x3]
        %v7309 = vunpack.c.l.s4 1966171168
        %v7310 = vunpack.c.0.s8 %v7309
        %v7311 = vlaneseq
        %v7312 = vshrl.u32 %v7311, 7
        %v7313 = vsub.s32 %v7310, %v7312
        %v7314 = vrot.slane %v7306, %v7313
        %v7315 = vcombine.high %v7314, %v7314
        %v7317 = vunpack.c.l.s4 1966171168
        %v7318 = vunpack.c.0.s8 %v7317
        %v7319 = vlaneseq
        %v7320 = vshrl.u32 %v7319, 7
        %v7321 = vsub.s32 %v7318, %v7320
        %v7322 = vrot.slane %v7314, %v7321
        %v7324 = vunpack.c.l.s4 1966171168
        %v7325 = vunpack.c.0.s8 %v7324
        %v7326 = vlaneseq
        %v7327 = vshrl.u32 %v7326, 7
        %v7328 = vsub.s32 %v7325, %v7327
        %v7329 = vrot.slane %v7315, %v7328
        %v7331 = vpack.i.b16 %v7322, %v7322
        %v7333 = vlaneseq
        %v7334 = vshrl.u32 %v7333, 7
        %v7335 = vsub.s32 0, %v7334
        %v7336 = vrot.slane %v7331, %v7335
        %v7338 = vpack.i.b16 %v7329, %v7329
        %v7340 = vlaneseq
        %v7341 = vshrl.u32 %v7340, 7
        %v7342 = vsub.s32 0, %v7341
        %v7343 = vrot.slane %v7338, %v7342
        %v7344 = vadd.bf16 %v7242, %v7336
        %v7345 = vadd.bf16 %v7243, %v7343
        %v7346 = vadd.bf16 %v7244, %v7336
        %v7347 = vadd.bf16 %v7245, %v7343
        %v7348 = vadd.bf16 %v7246, %v7336
        %v7349 = vadd.bf16 %v7247, %v7343
        %v7350 = vadd.bf16 %v7248, %v7336
        %v7351 = vadd.bf16 %v7249, %v7343
        %v7352 = vadd.bf16 %v7250, %v7336
        %v7353 = vadd.bf16 %v7251, %v7343
        %v7354 = vadd.bf16 %v7252, %v7336
        %v7355 = vadd.bf16 %v7253, %v7343
        %v7356 = vadd.bf16 %v7254, %v7336
        %v7357 = vadd.bf16 %v7255, %v7343
        %v7358 = vadd.bf16 %v7256, %v7336
        %v7359 = vadd.bf16 %v7257, %v7343
        %v7360 = vadd.bf16 %v7258, %v7336
        %v7361 = vadd.bf16 %v7259, %v7343
        %v7362 = vadd.bf16 %v7260, %v7336
        %v7363 = vadd.bf16 %v7261, %v7343
        %v7364 = vadd.bf16 %v7262, %v7336
        %v7365 = vadd.bf16 %v7263, %v7343
        %v7366 = vadd.bf16 %v7264, %v7336
        %v7367 = vadd.bf16 %v7265, %v7343
        %v7368 = vadd.bf16 %v7266, %v7336
        %v7369 = vadd.bf16 %v7267, %v7343
        %v7370 = vadd.bf16 %v7268, %v7336
        %v7371 = vadd.bf16 %v7269, %v7343
        %v7372 = vadd.bf16 %v7270, %v7336
        %v7373 = vadd.bf16 %v7271, %v7343
        %v7374 = vadd.bf16 %v7272, %v7336
        %v7375 = vadd.bf16 %v7273, %v7343
        %v7376 = vadd.bf16 %v7274, %v7336
        %v7377 = vadd.bf16 %v7275, %v7343
        %v7378 = vadd.bf16 %v7276, %v7336
        %v7379 = vadd.bf16 %v7277, %v7343
        %v7380 = vadd.bf16 %v7278, %v7336
        %v7381 = vadd.bf16 %v7279, %v7343
        %v7382 = vadd.bf16 %v7280, %v7336
        %v7383 = vadd.bf16 %v7281, %v7343
        %v7384 = vadd.bf16 %v7282, %v7336
        %v7385 = vadd.bf16 %v7283, %v7343
        %v7386 = vadd.bf16 %v7284, %v7336
        %v7387 = vadd.bf16 %v7285, %v7343
        %v7388 = vadd.bf16 %v7286, %v7336
        %v7389 = vadd.bf16 %v7287, %v7343
        %v7390 = vadd.bf16 %v7288, %v7336
        %v7391 = vadd.bf16 %v7289, %v7343
        %v7392 = vadd.bf16 %v7290, %v7336
        %v7393 = vadd.bf16 %v7291, %v7343
        %v7394 = vadd.bf16 %v7292, %v7336
        %v7395 = vadd.bf16 %v7293, %v7343
        %v7396 = vadd.bf16 %v7294, %v7336
        %v7397 = vadd.bf16 %v7295, %v7343
        %v7398 = vadd.bf16 %v7296, %v7336
        %v7399 = vadd.bf16 %v7297, %v7343
        %v7400 = vadd.bf16 %v7298, %v7336
        %v7401 = vadd.bf16 %v7299, %v7343
        %v7402 = vadd.bf16 %v7300, %v7336
        %v7403 = vadd.bf16 %v7301, %v7343
        %v7404 = vadd.bf16 %v7302, %v7336
        %v7405 = vadd.bf16 %v7303, %v7343
        %v7406 = vadd.bf16 %v7304, %v7336
        %v7407 = vadd.bf16 %v7305, %v7343
        %v7408 = vmax.bf16 %v7344, 0
        %v7409 = vmax.bf16 %v7345, 0
        %v7410 = vmax.bf16 %v7346, 0
        %v7411 = vmax.bf16 %v7347, 0
        %v7412 = vmax.bf16 %v7348, 0
        %v7413 = vmax.bf16 %v7349, 0
        %v7414 = vmax.bf16 %v7350, 0
        %v7415 = vmax.bf16 %v7351, 0
        %v7416 = vmax.bf16 %v7352, 0
        %v7417 = vmax.bf16 %v7353, 0
        %v7418 = vmax.bf16 %v7354, 0
        %v7419 = vmax.bf16 %v7355, 0
        %v7420 = vmax.bf16 %v7356, 0
        %v7421 = vmax.bf16 %v7357, 0
        %v7422 = vmax.bf16 %v7358, 0
        %v7423 = vmax.bf16 %v7359, 0
        %v7424 = vmax.bf16 %v7360, 0
        %v7425 = vmax.bf16 %v7361, 0
        %v7426 = vmax.bf16 %v7362, 0
        %v7427 = vmax.bf16 %v7363, 0
        %v7428 = vmax.bf16 %v7364, 0
        %v7429 = vmax.bf16 %v7365, 0
        %v7430 = vmax.bf16 %v7366, 0
        %v7431 = vmax.bf16 %v7367, 0
        %v7432 = vmax.bf16 %v7368, 0
        %v7433 = vmax.bf16 %v7369, 0
        %v7434 = vmax.bf16 %v7370, 0
        %v7435 = vmax.bf16 %v7371, 0
        %v7436 = vmax.bf16 %v7372, 0
        %v7437 = vmax.bf16 %v7373, 0
        %v7438 = vmax.bf16 %v7374, 0
        %v7439 = vmax.bf16 %v7375, 0
        %v7440 = vmax.bf16 %v7376, 0
        %v7441 = vmax.bf16 %v7377, 0
        %v7442 = vmax.bf16 %v7378, 0
        %v7443 = vmax.bf16 %v7379, 0
        %v7444 = vmax.bf16 %v7380, 0
        %v7445 = vmax.bf16 %v7381, 0
        %v7446 = vmax.bf16 %v7382, 0
        %v7447 = vmax.bf16 %v7383, 0
        %v7448 = vmax.bf16 %v7384, 0
        %v7449 = vmax.bf16 %v7385, 0
        %v7450 = vmax.bf16 %v7386, 0
        %v7451 = vmax.bf16 %v7387, 0
        %v7452 = vmax.bf16 %v7388, 0
        %v7453 = vmax.bf16 %v7389, 0
        %v7454 = vmax.bf16 %v7390, 0
        %v7455 = vmax.bf16 %v7391, 0
        %v7456 = vmax.bf16 %v7392, 0
        %v7457 = vmax.bf16 %v7393, 0
        %v7458 = vmax.bf16 %v7394, 0
        %v7459 = vmax.bf16 %v7395, 0
        %v7460 = vmax.bf16 %v7396, 0
        %v7461 = vmax.bf16 %v7397, 0
        %v7462 = vmax.bf16 %v7398, 0
        %v7463 = vmax.bf16 %v7399, 0
        %v7464 = vmax.bf16 %v7400, 0
        %v7465 = vmax.bf16 %v7401, 0
        %v7466 = vmax.bf16 %v7402, 0
        %v7467 = vmax.bf16 %v7403, 0
        %v7468 = vmax.bf16 %v7404, 0
        %v7469 = vmax.bf16 %v7405, 0
        %v7470 = vmax.bf16 %v7406, 0
        %v7471 = vmax.bf16 %v7407, 0
        %v7472 = vld [vmem:[#allocation4] sm:$0xf]
        %v7473 = vld [vmem:[#allocation4 + $0x4] sm:$0xf]
        %v7474 = vld [vmem:[#allocation4 + $0x8] sm:$0xf]
        %v7475 = vld [vmem:[#allocation4 + $0xc] sm:$0xf]
        %v7476 = vld [vmem:[#allocation4 + $0x10] sm:$0xf]
        %v7477 = vld [vmem:[#allocation4 + $0x14] sm:$0xf]
        %v7478 = vld [vmem:[#allocation4 + $0x18] sm:$0xf]
        %v7479 = vld [vmem:[#allocation4 + $0x1c] sm:$0xf]
        %v7480 = vld [vmem:[#allocation4 + $0x20] sm:$0xf]
        %v7481 = vld [vmem:[#allocation4 + $0x24] sm:$0xf]
        %v7482 = vld [vmem:[#allocation4 + $0x28] sm:$0xf]
        %v7483 = vld [vmem:[#allocation4 + $0x2c] sm:$0xf]
        %v7484 = vld [vmem:[#allocation4 + $0x30] sm:$0xf]
        %v7485 = vld [vmem:[#allocation4 + $0x34] sm:$0xf]
        %v7486 = vld [vmem:[#allocation4 + $0x38] sm:$0xf]
        %v7487 = vld [vmem:[#allocation4 + $0x3c] sm:$0xf]
        %v7488 = vld [vmem:[#allocation4 + $0x40] sm:$0xf]
        %v7489 = vld [vmem:[#allocation4 + $0x44] sm:$0xf]
        %v7490 = vld [vmem:[#allocation4 + $0x48] sm:$0xf]
        %v7491 = vld [vmem:[#allocation4 + $0x4c] sm:$0xf]
        %v7492 = vld [vmem:[#allocation4 + $0x50] sm:$0xf]
        %v7493 = vld [vmem:[#allocation4 + $0x54] sm:$0xf]
        %v7494 = vld [vmem:[#allocation4 + $0x58] sm:$0xf]
        %v7495 = vld [vmem:[#allocation4 + $0x5c] sm:$0xf]
        %v7496 = vld [vmem:[#allocation4 + $0x60] sm:$0xf]
        %v7497 = vld [vmem:[#allocation4 + $0x64] sm:$0xf]
        %v7498 = vld [vmem:[#allocation4 + $0x68] sm:$0xf]
        %v7499 = vld [vmem:[#allocation4 + $0x6c] sm:$0xf]
        %v7500 = vld [vmem:[#allocation4 + $0x70] sm:$0xf]
        %v7501 = vld [vmem:[#allocation4 + $0x74] sm:$0xf]
        %v7502 = vld [vmem:[#allocation4 + $0x78] sm:$0xf]
        %v7503 = vld [vmem:[#allocation4 + $0x7c] sm:$0xf]
        %v7504 = vld [vmem:[%s18] sm:$0x1]
        %v7506 = vlaneseq
        %v7507 = vshrl.u32 %v7506, 7
        %v7508 = vsub.s32 0, %v7507
        %v7509 = vrot.slane %v7504, %v7508
        %v7543 = vunpack.c.l.b16 %v7472
        %v7544 = vunpack.c.l.b16 %v7473
        %v7545 = vunpack.c.l.b16 %v7474
        %v7546 = vunpack.c.l.b16 %v7475
        %v7547 = vunpack.c.l.b16 %v7476
        %v7548 = vunpack.c.l.b16 %v7477
        %v7549 = vunpack.c.l.b16 %v7478
        %v7550 = vunpack.c.l.b16 %v7479
        %v7551 = vunpack.c.l.b16 %v7480
        %v7552 = vunpack.c.l.b16 %v7481
        %v7553 = vunpack.c.l.b16 %v7482
        %v7554 = vunpack.c.l.b16 %v7483
        %v7555 = vunpack.c.l.b16 %v7484
        %v7556 = vunpack.c.l.b16 %v7485
        %v7557 = vunpack.c.l.b16 %v7486
        %v7558 = vunpack.c.l.b16 %v7487
        %v7559 = vunpack.c.l.b16 %v7488
        %v7560 = vunpack.c.l.b16 %v7489
        %v7561 = vunpack.c.l.b16 %v7490
        %v7562 = vunpack.c.l.b16 %v7491
        %v7563 = vunpack.c.l.b16 %v7492
        %v7564 = vunpack.c.l.b16 %v7493
        %v7565 = vunpack.c.l.b16 %v7494
        %v7566 = vunpack.c.l.b16 %v7495
        %v7567 = vunpack.c.l.b16 %v7496
        %v7568 = vunpack.c.l.b16 %v7497
        %v7569 = vunpack.c.l.b16 %v7498
        %v7570 = vunpack.c.l.b16 %v7499
        %v7571 = vunpack.c.l.b16 %v7500
        %v7572 = vunpack.c.l.b16 %v7501
        %v7573 = vunpack.c.l.b16 %v7502
        %v7574 = vunpack.c.l.b16 %v7503
        %v7575 = vpack.c.b16 %v7544, %v7543
        %v7576 = vpack.c.b16 %v7546, %v7545
        %v7577 = vpack.c.b16 %v7548, %v7547
        %v7578 = vpack.c.b16 %v7550, %v7549
        %v7579 = vpack.c.b16 %v7552, %v7551
        %v7580 = vpack.c.b16 %v7554, %v7553
        %v7581 = vpack.c.b16 %v7556, %v7555
        %v7582 = vpack.c.b16 %v7558, %v7557
        %v7583 = vpack.c.b16 %v7560, %v7559
        %v7584 = vpack.c.b16 %v7562, %v7561
        %v7585 = vpack.c.b16 %v7564, %v7563
        %v7586 = vpack.c.b16 %v7566, %v7565
        %v7587 = vpack.c.b16 %v7568, %v7567
        %v7588 = vpack.c.b16 %v7570, %v7569
        %v7589 = vpack.c.b16 %v7572, %v7571
        %v7590 = vpack.c.b16 %v7574, %v7573
        %7607 = vmatprep.subr.bf16.mxu0 0
        %7608 = vmatpush1.bf16.msra.mxu0 %v7582
        %7609 = vmatprep.subr.bf16.mxu0 0
        %7610 = vmatpush1.bf16.msra.mxu0 %v7581
        %7611 = vmatprep.subr.bf16.mxu0 0
        %7612 = vmatpush1.bf16.msra.mxu0 %v7580
        %7613 = vmatprep.subr.bf16.mxu0 0
        %7614 = vmatpush1.bf16.msra.mxu0 %v7579
        %7615 = vmatprep.subr.bf16.mxu0 0
        %7616 = vmatpush1.bf16.msra.mxu0 %v7578
        %7617 = vmatprep.subr.bf16.mxu0 0
        %7618 = vmatpush1.bf16.msra.mxu0 %v7577
        %7619 = vmatprep.subr.bf16.mxu0 0
        %7620 = vmatpush1.bf16.msra.mxu0 %v7576
        %7621 = vmatprep.subr.bf16.mxu0 0
        %7622 = vmatpush1.bf16.msra.mxu0 %v7575
        %7623 = vmatprep.subr.bf16.mxu0 0
        %7624 = vmatpush2.bf16.msra.mxu0 %v7590
        %7625 = vmatprep.subr.bf16.mxu0 0
        %7626 = vmatpush2.bf16.msra.mxu0 %v7589
        %7627 = vmatprep.subr.bf16.mxu0 0
        %7628 = vmatpush2.bf16.msra.mxu0 %v7588
        %7629 = vmatprep.subr.bf16.mxu0 0
        %7630 = vmatpush2.bf16.msra.mxu0 %v7587
        %7631 = vmatprep.subr.bf16.mxu0 0
        %7632 = vmatpush2.bf16.msra.mxu0 %v7586
        %7633 = vmatprep.subr.bf16.mxu0 0
        %7634 = vmatpush2.bf16.msra.mxu0 %v7585
        %7635 = vmatprep.subr.bf16.mxu0 0
        %7636 = vmatpush2.bf16.msra.mxu0 %v7584
        %7637 = vmatprep.subr.bf16.mxu0 0
        %7638 = vmatpush2.bf16.msra.mxu0 %v7583
        %7639 = vmatprep.mubr.bf16.mxu0 %v7409
        %7640 = vmatmul.mubr.bf16.gmra.mxu0 %v7408
        %v7641 = vpop.f32.mrf.mxu0
        %v7642 = vadd.f32 %v7509, %v7641
        %v7643 = vpop.f32.mrf.mxu0
        %v7644 = vpop.f32.mrf.mxu0
        %v7645 = vadd.f32 %v7509, %v7644
        %v7646 = vpop.f32.mrf.mxu0
        %7647 = vmatprep.mubr.bf16.mxu0 %v7411
        %7648 = vmatmul.mubr.bf16.gmra.mxu0 %v7410
        %v7649 = vpop.f32.mrf.mxu0
        %v7650 = vadd.f32 %v7509, %v7649
        %v7651 = vpop.f32.mrf.mxu0
        %v7652 = vpop.f32.mrf.mxu0
        %v7653 = vadd.f32 %v7509, %v7652
        %v7654 = vpop.f32.mrf.mxu0
        %7655 = vmatprep.mubr.bf16.mxu0 %v7413
        %7656 = vmatmul.mubr.bf16.gmra.mxu0 %v7412
        %v7657 = vpop.f32.mrf.mxu0
        %v7658 = vadd.f32 %v7509, %v7657
        %v7659 = vpop.f32.mrf.mxu0
        %v7660 = vpop.f32.mrf.mxu0
        %v7661 = vadd.f32 %v7509, %v7660
        %v7662 = vpop.f32.mrf.mxu0
        %7663 = vmatprep.mubr.bf16.mxu0 %v7415
        %7664 = vmatmul.mubr.bf16.gmra.mxu0 %v7414
        %v7665 = vpop.f32.mrf.mxu0
        %v7666 = vadd.f32 %v7509, %v7665
        %v7667 = vpop.f32.mrf.mxu0
        %v7668 = vpop.f32.mrf.mxu0
        %v7669 = vadd.f32 %v7509, %v7668
        %v7670 = vpop.f32.mrf.mxu0
        %7671 = vmatprep.mubr.bf16.mxu0 %v7417
        %7672 = vmatmul.mubr.bf16.gmra.mxu0 %v7416
        %v7673 = vpop.f32.mrf.mxu0
        %v7674 = vadd.f32 %v7509, %v7673
        %v7675 = vpop.f32.mrf.mxu0
        %v7676 = vpop.f32.mrf.mxu0
        %v7677 = vadd.f32 %v7509, %v7676
        %v7678 = vpop.f32.mrf.mxu0
        %7679 = vmatprep.mubr.bf16.mxu0 %v7419
        %7680 = vmatmul.mubr.bf16.gmra.mxu0 %v7418
        %v7681 = vpop.f32.mrf.mxu0
        %v7682 = vadd.f32 %v7509, %v7681
        %v7683 = vpop.f32.mrf.mxu0
        %v7684 = vpop.f32.mrf.mxu0
        %v7685 = vadd.f32 %v7509, %v7684
        %v7686 = vpop.f32.mrf.mxu0
        %7687 = vmatprep.mubr.bf16.mxu0 %v7421
        %7688 = vmatmul.mubr.bf16.gmra.mxu0 %v7420
        %v7689 = vpop.f32.mrf.mxu0
        %v7690 = vadd.f32 %v7509, %v7689
        %v7691 = vpop.f32.mrf.mxu0
        %v7692 = vpop.f32.mrf.mxu0
        %v7693 = vadd.f32 %v7509, %v7692
        %v7694 = vpop.f32.mrf.mxu0
        %7695 = vmatprep.mubr.bf16.mxu0 %v7423
        %7696 = vmatmul.mubr.bf16.gmra.mxu0 %v7422
        %v7697 = vpop.f32.mrf.mxu0
        %v7698 = vadd.f32 %v7509, %v7697
        %v7699 = vpop.f32.mrf.mxu0
        %v7700 = vpop.f32.mrf.mxu0
        %v7701 = vadd.f32 %v7509, %v7700
        %v7702 = vpop.f32.mrf.mxu0
        %7703 = vmatprep.mubr.bf16.mxu0 %v7425
        %7704 = vmatmul.mubr.bf16.gmra.mxu0 %v7424
        %v7705 = vpop.f32.mrf.mxu0
        %v7706 = vadd.f32 %v7509, %v7705
        %v7707 = vpop.f32.mrf.mxu0
        %v7708 = vpop.f32.mrf.mxu0
        %v7709 = vadd.f32 %v7509, %v7708
        %v7710 = vpop.f32.mrf.mxu0
        %7711 = vmatprep.mubr.bf16.mxu0 %v7427
        %7712 = vmatmul.mubr.bf16.gmra.mxu0 %v7426
        %v7713 = vpop.f32.mrf.mxu0
        %v7714 = vadd.f32 %v7509, %v7713
        %v7715 = vpop.f32.mrf.mxu0
        %v7716 = vpop.f32.mrf.mxu0
        %v7717 = vadd.f32 %v7509, %v7716
        %v7718 = vpop.f32.mrf.mxu0
        %7719 = vmatprep.mubr.bf16.mxu0 %v7429
        %7720 = vmatmul.mubr.bf16.gmra.mxu0 %v7428
        %v7721 = vpop.f32.mrf.mxu0
        %v7722 = vadd.f32 %v7509, %v7721
        %v7723 = vpop.f32.mrf.mxu0
        %v7724 = vpop.f32.mrf.mxu0
        %v7725 = vadd.f32 %v7509, %v7724
        %v7726 = vpop.f32.mrf.mxu0
        %7727 = vmatprep.mubr.bf16.mxu0 %v7431
        %7728 = vmatmul.mubr.bf16.gmra.mxu0 %v7430
        %v7729 = vpop.f32.mrf.mxu0
        %v7730 = vadd.f32 %v7509, %v7729
        %v7731 = vpop.f32.mrf.mxu0
        %v7732 = vpop.f32.mrf.mxu0
        %v7733 = vadd.f32 %v7509, %v7732
        %v7734 = vpop.f32.mrf.mxu0
        %7735 = vmatprep.mubr.bf16.mxu0 %v7433
        %7736 = vmatmul.mubr.bf16.gmra.mxu0 %v7432
        %v7737 = vpop.f32.mrf.mxu0
        %v7738 = vadd.f32 %v7509, %v7737
        %v7739 = vpop.f32.mrf.mxu0
        %v7740 = vpop.f32.mrf.mxu0
        %v7741 = vadd.f32 %v7509, %v7740
        %v7742 = vpop.f32.mrf.mxu0
        %7743 = vmatprep.mubr.bf16.mxu0 %v7435
        %7744 = vmatmul.mubr.bf16.gmra.mxu0 %v7434
        %v7745 = vpop.f32.mrf.mxu0
        %v7746 = vadd.f32 %v7509, %v7745
        %v7747 = vpop.f32.mrf.mxu0
        %v7748 = vpop.f32.mrf.mxu0
        %v7749 = vadd.f32 %v7509, %v7748
        %v7750 = vpop.f32.mrf.mxu0
        %7751 = vmatprep.mubr.bf16.mxu0 %v7437
        %7752 = vmatmul.mubr.bf16.gmra.mxu0 %v7436
        %v7753 = vpop.f32.mrf.mxu0
        %v7754 = vadd.f32 %v7509, %v7753
        %v7755 = vpop.f32.mrf.mxu0
        %v7756 = vpop.f32.mrf.mxu0
        %v7757 = vadd.f32 %v7509, %v7756
        %v7758 = vpop.f32.mrf.mxu0
        %7759 = vmatprep.mubr.bf16.mxu0 %v7439
        %7760 = vmatmul.mubr.bf16.gmra.mxu0 %v7438
        %v7761 = vpop.f32.mrf.mxu0
        %v7762 = vadd.f32 %v7509, %v7761
        %v7763 = vpop.f32.mrf.mxu0
        %v7764 = vpop.f32.mrf.mxu0
        %v7765 = vadd.f32 %v7509, %v7764
        %v7766 = vpop.f32.mrf.mxu0
        %7767 = vmatprep.mubr.bf16.mxu0 %v7441
        %7768 = vmatmul.mubr.bf16.gmra.mxu0 %v7440
        %v7769 = vpop.f32.mrf.mxu0
        %v7770 = vadd.f32 %v7509, %v7769
        %v7771 = vpop.f32.mrf.mxu0
        %v7772 = vpop.f32.mrf.mxu0
        %v7773 = vadd.f32 %v7509, %v7772
        %v7774 = vpop.f32.mrf.mxu0
        %7775 = vmatprep.mubr.bf16.mxu0 %v7443
        %7776 = vmatmul.mubr.bf16.gmra.mxu0 %v7442
        %v7777 = vpop.f32.mrf.mxu0
        %v7778 = vadd.f32 %v7509, %v7777
        %v7779 = vpop.f32.mrf.mxu0
        %v7780 = vpop.f32.mrf.mxu0
        %v7781 = vadd.f32 %v7509, %v7780
        %v7782 = vpop.f32.mrf.mxu0
        %7783 = vmatprep.mubr.bf16.mxu0 %v7445
        %7784 = vmatmul.mubr.bf16.gmra.mxu0 %v7444
        %v7785 = vpop.f32.mrf.mxu0
        %v7786 = vadd.f32 %v7509, %v7785
        %v7787 = vpop.f32.mrf.mxu0
        %v7788 = vpop.f32.mrf.mxu0
        %v7789 = vadd.f32 %v7509, %v7788
        %v7790 = vpop.f32.mrf.mxu0
        %7791 = vmatprep.mubr.bf16.mxu0 %v7447
        %7792 = vmatmul.mubr.bf16.gmra.mxu0 %v7446
        %v7793 = vpop.f32.mrf.mxu0
        %v7794 = vadd.f32 %v7509, %v7793
        %v7795 = vpop.f32.mrf.mxu0
        %v7796 = vpop.f32.mrf.mxu0
        %v7797 = vadd.f32 %v7509, %v7796
        %v7798 = vpop.f32.mrf.mxu0
        %7799 = vmatprep.mubr.bf16.mxu0 %v7449
        %7800 = vmatmul.mubr.bf16.gmra.mxu0 %v7448
        %v7801 = vpop.f32.mrf.mxu0
        %v7802 = vadd.f32 %v7509, %v7801
        %v7803 = vpop.f32.mrf.mxu0
        %v7804 = vpop.f32.mrf.mxu0
        %v7805 = vadd.f32 %v7509, %v7804
        %v7806 = vpop.f32.mrf.mxu0
        %7807 = vmatprep.mubr.bf16.mxu0 %v7451
        %7808 = vmatmul.mubr.bf16.gmra.mxu0 %v7450
        %v7809 = vpop.f32.mrf.mxu0
        %v7810 = vadd.f32 %v7509, %v7809
        %v7811 = vpop.f32.mrf.mxu0
        %v7812 = vpop.f32.mrf.mxu0
        %v7813 = vadd.f32 %v7509, %v7812
        %v7814 = vpop.f32.mrf.mxu0
        %7815 = vmatprep.mubr.bf16.mxu0 %v7453
        %7816 = vmatmul.mubr.bf16.gmra.mxu0 %v7452
        %v7817 = vpop.f32.mrf.mxu0
        %v7818 = vadd.f32 %v7509, %v7817
        %v7819 = vpop.f32.mrf.mxu0
        %v7820 = vpop.f32.mrf.mxu0
        %v7821 = vadd.f32 %v7509, %v7820
        %v7822 = vpop.f32.mrf.mxu0
        %7823 = vmatprep.mubr.bf16.mxu0 %v7455
        %7824 = vmatmul.mubr.bf16.gmra.mxu0 %v7454
        %v7825 = vpop.f32.mrf.mxu0
        %v7826 = vadd.f32 %v7509, %v7825
        %v7827 = vpop.f32.mrf.mxu0
        %v7828 = vpop.f32.mrf.mxu0
        %v7829 = vadd.f32 %v7509, %v7828
        %v7830 = vpop.f32.mrf.mxu0
        %7831 = vmatprep.mubr.bf16.mxu0 %v7457
        %7832 = vmatmul.mubr.bf16.gmra.mxu0 %v7456
        %v7833 = vpop.f32.mrf.mxu0
        %v7834 = vadd.f32 %v7509, %v7833
        %v7835 = vpop.f32.mrf.mxu0
        %v7836 = vpop.f32.mrf.mxu0
        %v7837 = vadd.f32 %v7509, %v7836
        %v7838 = vpop.f32.mrf.mxu0
        %7839 = vmatprep.mubr.bf16.mxu0 %v7459
        %7840 = vmatmul.mubr.bf16.gmra.mxu0 %v7458
        %v7841 = vpop.f32.mrf.mxu0
        %v7842 = vadd.f32 %v7509, %v7841
        %v7843 = vpop.f32.mrf.mxu0
        %v7844 = vpop.f32.mrf.mxu0
        %v7845 = vadd.f32 %v7509, %v7844
        %v7846 = vpop.f32.mrf.mxu0
        %7847 = vmatprep.mubr.bf16.mxu0 %v7461
        %7848 = vmatmul.mubr.bf16.gmra.mxu0 %v7460
        %v7849 = vpop.f32.mrf.mxu0
        %v7850 = vadd.f32 %v7509, %v7849
        %v7851 = vpop.f32.mrf.mxu0
        %v7852 = vpop.f32.mrf.mxu0
        %v7853 = vadd.f32 %v7509, %v7852
        %v7854 = vpop.f32.mrf.mxu0
        %7855 = vmatprep.mubr.bf16.mxu0 %v7463
        %7856 = vmatmul.mubr.bf16.gmra.mxu0 %v7462
        %v7857 = vpop.f32.mrf.mxu0
        %v7858 = vadd.f32 %v7509, %v7857
        %v7859 = vpop.f32.mrf.mxu0
        %v7860 = vpop.f32.mrf.mxu0
        %v7861 = vadd.f32 %v7509, %v7860
        %v7862 = vpop.f32.mrf.mxu0
        %7863 = vmatprep.mubr.bf16.mxu0 %v7465
        %7864 = vmatmul.mubr.bf16.gmra.mxu0 %v7464
        %v7865 = vpop.f32.mrf.mxu0
        %v7866 = vadd.f32 %v7509, %v7865
        %v7867 = vpop.f32.mrf.mxu0
        %v7868 = vpop.f32.mrf.mxu0
        %v7869 = vadd.f32 %v7509, %v7868
        %v7870 = vpop.f32.mrf.mxu0
        %7871 = vmatprep.mubr.bf16.mxu0 %v7467
        %7872 = vmatmul.mubr.bf16.gmra.mxu0 %v7466
        %v7873 = vpop.f32.mrf.mxu0
        %v7874 = vadd.f32 %v7509, %v7873
        %v7875 = vpop.f32.mrf.mxu0
        %v7876 = vpop.f32.mrf.mxu0
        %v7877 = vadd.f32 %v7509, %v7876
        %v7878 = vpop.f32.mrf.mxu0
        %7879 = vmatprep.mubr.bf16.mxu0 %v7469
        %7880 = vmatmul.mubr.bf16.gmra.mxu0 %v7468
        %v7881 = vpop.f32.mrf.mxu0
        %v7882 = vadd.f32 %v7509, %v7881
        %v7883 = vpop.f32.mrf.mxu0
        %v7884 = vpop.f32.mrf.mxu0
        %v7885 = vadd.f32 %v7509, %v7884
        %v7886 = vpop.f32.mrf.mxu0
        %7887 = vmatprep.mubr.bf16.mxu0 %v7471
        %7888 = vmatmul.mubr.bf16.gmra.mxu0 %v7470
        %v7889 = vpop.f32.mrf.mxu0
        %v7890 = vadd.f32 %v7509, %v7889
        %v7891 = vpop.f32.mrf.mxu0
        %v7892 = vpop.f32.mrf.mxu0
        %v7893 = vadd.f32 %v7509, %v7892
        %v7894 = vpop.f32.mrf.mxu0
        %7895 = vdwg.mxu0
        %7896 = vst [vmem:[%s634] sm:$0xff] %v7642
        %7897 = vst [vmem:[%s634 + $0x8] sm:$0xff] %v7645
        %7898 = vst [vmem:[%s634 + $0x10] sm:$0xff] %v7650
        %7899 = vst [vmem:[%s634 + $0x18] sm:$0xff] %v7653
        %7900 = vst [vmem:[%s634 + $0x20] sm:$0xff] %v7658
        %7901 = vst [vmem:[%s634 + $0x28] sm:$0xff] %v7661
        %7902 = vst [vmem:[%s634 + $0x30] sm:$0xff] %v7666
        %7903 = vst [vmem:[%s634 + $0x38] sm:$0xff] %v7669
        %7904 = vst [vmem:[%s634 + $0x40] sm:$0xff] %v7674
        %7905 = vst [vmem:[%s634 + $0x48] sm:$0xff] %v7677
        %7906 = vst [vmem:[%s634 + $0x50] sm:$0xff] %v7682
        %7907 = vst [vmem:[%s634 + $0x58] sm:$0xff] %v7685
        %7908 = vst [vmem:[%s634 + $0x60] sm:$0xff] %v7690
        %7909 = vst [vmem:[%s634 + $0x68] sm:$0xff] %v7693
        %7910 = vst [vmem:[%s634 + $0x70] sm:$0xff] %v7698
        %7911 = vst [vmem:[%s634 + $0x78] sm:$0xff] %v7701
        %7912 = vst [vmem:[%s634 + $0x80] sm:$0xff] %v7706
        %7913 = vst [vmem:[%s634 + $0x88] sm:$0xff] %v7709
        %7914 = vst [vmem:[%s634 + $0x90] sm:$0xff] %v7714
        %7915 = vst [vmem:[%s634 + $0x98] sm:$0xff] %v7717
        %7916 = vst [vmem:[%s634 + $0xa0] sm:$0xff] %v7722
        %7917 = vst [vmem:[%s634 + $0xa8] sm:$0xff] %v7725
        %7918 = vst [vmem:[%s634 + $0xb0] sm:$0xff] %v7730
        %7919 = vst [vmem:[%s634 + $0xb8] sm:$0xff] %v7733
        %7920 = vst [vmem:[%s634 + $0xc0] sm:$0xff] %v7738
        %7921 = vst [vmem:[%s634 + $0xc8] sm:$0xff] %v7741
        %7922 = vst [vmem:[%s634 + $0xd0] sm:$0xff] %v7746
        %7923 = vst [vmem:[%s634 + $0xd8] sm:$0xff] %v7749
        %7924 = vst [vmem:[%s634 + $0xe0] sm:$0xff] %v7754
        %7925 = vst [vmem:[%s634 + $0xe8] sm:$0xff] %v7757
        %7926 = vst [vmem:[%s634 + $0xf0] sm:$0xff] %v7762
        %7927 = vst [vmem:[%s634 + $0xf8] sm:$0xff] %v7765
        %7928 = vst [vmem:[%s634 + $0x100] sm:$0xff] %v7770
        %7929 = vst [vmem:[%s634 + $0x108] sm:$0xff] %v7773
        %7930 = vst [vmem:[%s634 + $0x110] sm:$0xff] %v7778
        %7931 = vst [vmem:[%s634 + $0x118] sm:$0xff] %v7781
        %7932 = vst [vmem:[%s634 + $0x120] sm:$0xff] %v7786
        %7933 = vst [vmem:[%s634 + $0x128] sm:$0xff] %v7789
        %7934 = vst [vmem:[%s634 + $0x130] sm:$0xff] %v7794
        %7935 = vst [vmem:[%s634 + $0x138] sm:$0xff] %v7797
        %7936 = vst [vmem:[%s634 + $0x140] sm:$0xff] %v7802
        %7937 = vst [vmem:[%s634 + $0x148] sm:$0xff] %v7805
        %7938 = vst [vmem:[%s634 + $0x150] sm:$0xff] %v7810
        %7939 = vst [vmem:[%s634 + $0x158] sm:$0xff] %v7813
        %7940 = vst [vmem:[%s634 + $0x160] sm:$0xff] %v7818
        %7941 = vst [vmem:[%s634 + $0x168] sm:$0xff] %v7821
        %7942 = vst [vmem:[%s634 + $0x170] sm:$0xff] %v7826
        %7943 = vst [vmem:[%s634 + $0x178] sm:$0xff] %v7829
        %7944 = vst [vmem:[%s634 + $0x180] sm:$0xff] %v7834
        %7945 = vst [vmem:[%s634 + $0x188] sm:$0xff] %v7837
        %7946 = vst [vmem:[%s634 + $0x190] sm:$0xff] %v7842
        %7947 = vst [vmem:[%s634 + $0x198] sm:$0xff] %v7845
        %7948 = vst [vmem:[%s634 + $0x1a0] sm:$0xff] %v7850
        %7949 = vst [vmem:[%s634 + $0x1a8] sm:$0xff] %v7853
        %7950 = vst [vmem:[%s634 + $0x1b0] sm:$0xff] %v7858
        %7951 = vst [vmem:[%s634 + $0x1b8] sm:$0xff] %v7861
        %7952 = vst [vmem:[%s634 + $0x1c0] sm:$0xff] %v7866
        %7953 = vst [vmem:[%s634 + $0x1c8] sm:$0xff] %v7869
        %7954 = vst [vmem:[%s634 + $0x1d0] sm:$0xff] %v7874
        %7955 = vst [vmem:[%s634 + $0x1d8] sm:$0xff] %v7877
        %7956 = vst [vmem:[%s634 + $0x1e0] sm:$0xff] %v7882
        %7957 = vst [vmem:[%s634 + $0x1e8] sm:$0xff] %v7885
        %7958 = vst [vmem:[%s634 + $0x1f0] sm:$0xff] %v7890
        %7959 = vst [vmem:[%s634 + $0x1f8] sm:$0xff] %v7893
        %s7960 = smul.u32 64, %s32
        %p7961 = scmp.lt.s32.totalorder %s7960, 127
        %s7962 = scalar_select %p7961, %s7960, 127
        %s7963 = smul.addr %s7962, 8
        %s7964 = scalar_lea.vmem %s19, %s7963
        // Predicated region
        $region105: #{nerf_forward_pallas.1} parent=95 // pred_check
          %p7965 = pneg %p454
        $region106: #{nerf_forward_pallas.1} parent=95 // pred_check_branch
          %7967 = sbr.rel (%p7965) target = $region108
        $region107: #{nerf_forward_pallas.1} parent=95 // pred_region
          %s7968 = smul.u32 64, %s32
        $region108: #{nerf_forward_pallas.1} parent=95 // pred_fallthru
          _
      $region96: #{nerf_forward_pallas.1} parent=5 // pred_fallthru
        _
      %p7969 = scmp.le.s32.totalorder 2, %s27
      // Predicated region
      $region109: #{nerf_forward_pallas.1} parent=5 // pred_check
        %p7970 = pneg %p7969
      $region110: #{nerf_forward_pallas.1} parent=5 // pred_check_branch
        %7972 = sbr.rel (%p7970) target = $region112
      $region111: #{nerf_forward_pallas.1} parent=5 // pred_region
        %s7973 = ssub.s32 %s27, 2
        // Predicated region
        $region113: #{nerf_forward_pallas.1} parent=111 // pred_check
          %p7974 = pneg %p460
        $region114: #{nerf_forward_pallas.1} parent=111 // pred_check_branch
          %7976 = sbr.rel (%p7974) target = $region116
        $region115: #{nerf_forward_pallas.1} parent=111 // pred_region
          %s7977 = smul.u32 64, %s33
          %p7978 = scmp.lt.s32.totalorder %s7977, 127
          %s7979 = scalar_select %p7978, %s7977, 127
          %s7980 = smul.addr %s7979, 8
          %s7981 = scalar_lea.vmem %s19, %s7980
        $region116: #{nerf_forward_pallas.1} parent=111 // pred_fallthru
          _
      $region112: #{nerf_forward_pallas.1} parent=5 // pred_fallthru
        _
    $region6: #{nerf_forward_pallas.1} parent=1 // loop_footer
      %s31 = sadd.s32 1, %s27
    $region7: #{nerf_forward_pallas.1} parent=1 // loop_footer_branch
      %26 = sbr.rel target = $region3
    $region8: #{nerf_forward_pallas.1} parent=1 // loop_exit
      _
    %7982 = vsyncpa [#allocation3], 1
    %s7983 = scalar_lea.sflag [#allocation3], 1
    %7984 = vsyncpa %s7983, 1
    %7985 = vsyncpa [#allocation5], 1

</llo_original>
